<compile_context>
chip_gen: v6e
topology: v6e:2x2x1
jax: 0.10.0
libtpu: 0.0.40
codegen_flags: <defaults>
</compile_context>

<pallas_src>
import jax
import jax.numpy as jnp
import numpy as np
from jax.experimental import pallas as pl
from jax.experimental.pallas import tpu as pltpu


# -----------------------------------------------------------------------------
# Pallas kernel: full forward pass (eval mode, BN pre-folded into weights)
# -----------------------------------------------------------------------------
def make_classifier_kernel(hidden_dim, ncls_padded):
    H, H2 = hidden_dim, 2 * hidden_dim
    widths = (H, H2, H2, H, ncls_padded)                  # per-layer output widths
    offsets = [int(o) for o in np.concatenate([[0], np.cumsum(widths)[:-1]])]

    def kernel(x_ref, w0_ref, w1_ref, w2_ref, w3_ref, w4_ref, b_ref, o_ref):
        f32, bf16 = jnp.float32, jnp.bfloat16

        def bias(i):
            # Static, lane-aligned slice of the concatenated (1, total) bias row.
            return b_ref[:, offsets[i]:offsets[i] + widths[i]]

        def layer(h_bf16, w_ref, i):
            # Fused: bf16 MXU dot with f32 accumulation, +bias, ReLU, bf16
            # downcast in one expression (elementwise math stays f32 -> v5e-safe).
            return jnp.maximum(
                jnp.dot(h_bf16, w_ref[...], preferred_element_type=f32) + bias(i),
                0.0,
            ).astype(bf16)

        # astype is a no-op when the input is already streamed as bf16.
        h = layer(x_ref[...].astype(bf16), w0_ref, 0)     # text_proj (+BN1 folded)
        h = layer(h, w1_ref, 1)                           # Linear(H, 2H)  (+BN2)
        h = layer(h, w2_ref, 2)                           # Linear(2H, 2H) (+BN3)
        h = layer(h, w3_ref, 3)                           # Linear(2H, H)  (+BN4)
        # Final Linear(H, num_classes): no ReLU, f32 lane-padded logits.
        o_ref[...] = jnp.dot(h, w4_ref[...], preferred_element_type=f32) + bias(4)

    return kernel


# -----------------------------------------------------------------------------
# Parameter construction (deterministic, synthetic) with BN folding
# -----------------------------------------------------------------------------
def fold_bn(gamma, beta, running_mean, running_var, eps=1e-5):
    """BatchNorm1d (eval) -> per-feature (scale, shift)."""
    scale = gamma / jnp.sqrt(running_var + eps)
    shift = beta - running_mean * scale
    return scale, shift


def make_params(key, text_dim, hidden_dim, num_classes, ncls_padded):
    ks = jax.random.split(key, 32)
    ki = iter(range(32))

    def lin(k_w, k_b, fan_in, fan_out):
        bound = 1.0 / np.sqrt(fan_in)
        w = jax.random.uniform(k_w, (fan_in, fan_out), jnp.float32, -bound, bound)
        b = jax.random.uniform(k_b, (fan_out,), jnp.float32, -bound, bound)
        return w, b

    def bn(k, dim):
        gamma = 1.0 + 0.1 * jax.random.normal(k, (dim,), jnp.float32)
        beta = 0.05 * jax.random.normal(jax.random.fold_in(k, 1), (dim,), jnp.float32)
        rmean = 0.1 * jax.random.normal(jax.random.fold_in(k, 2), (dim,), jnp.float32)
        rvar = 1.0 + 0.1 * jax.random.uniform(jax.random.fold_in(k, 3), (dim,), jnp.float32)
        return gamma, beta, rmean, rvar

    H, H2 = hidden_dim, hidden_dim * 2
    w0, b0 = lin(ks[next(ki)], ks[next(ki)], text_dim, H)       # text_proj
    bn1 = bn(ks[next(ki)], H)
    w1, b1 = lin(ks[next(ki)], ks[next(ki)], H, H2)
    bn2 = bn(ks[next(ki)], H2)
    w2, b2 = lin(ks[next(ki)], ks[next(ki)], H2, H2)
    bn3 = bn(ks[next(ki)], H2)
    w3, b3 = lin(ks[next(ki)], ks[next(ki)], H2, H)
    bn4 = bn(ks[next(ki)], H)
    w4, b4 = lin(ks[next(ki)], ks[next(ki)], H, num_classes)

    s1, t1 = fold_bn(*bn1)
    s2, t2 = fold_bn(*bn2)
    s3, t3 = fold_bn(*bn3)
    s4, t4 = fold_bn(*bn4)

    # Fold BN of each producing Linear's output into that Linear:
    #   BN(Wx + b) = (W*s)x + (b*s + t).
    w0f, b0f = w0 * s1[None, :], b0 * s1 + t1
    w1f, b1f = w1 * s2[None, :], b1 * s2 + t2
    w2f, b2f = w2 * s3[None, :], b2 * s3 + t3
    w3f, b3f = w3 * s4[None, :], b3 * s4 + t4

    # Lane-pad the final layer to 128 output columns (zero logits sliced away).
    w4p = jnp.zeros((H, ncls_padded), jnp.float32).at[:, :num_classes].set(w4)
    b4p = jnp.zeros((ncls_padded,), jnp.float32).at[:num_classes].set(b4)

    # Concatenate all biases into a single lane-aligned (1, total) row.
    bcat = jnp.concatenate([b0f, b1f, b2f, b3f, b4p])[None, :]

    bf16 = jnp.bfloat16
    return dict(
        # kernel params (folded, bf16 weights / f32 biases)
        w0=w0f.astype(bf16), w1=w1f.astype(bf16), w2=w2f.astype(bf16),
        w3=w3f.astype(bf16), w4=w4p.astype(bf16), bcat=bcat,
        hidden_dim=hidden_dim, num_classes=num_classes,
        # raw f32 params (for the unfolded reference check)
        raw=dict(w0=w0, b0=b0, w1=w1, b1=b1, w2=w2, b2=b2, w3=w3, b3=b3,
                 w4=w4, b4=b4, s1=s1, t1=t1, s2=s2, t2=t2, s3=s3, t3=t3,
                 s4=s4, t4=t4),
    )


# -----------------------------------------------------------------------------
# Wrapper: grid over batch, weights resident (single-buffered) in VMEM
# -----------------------------------------------------------------------------
def _pick_tile_b(batch):
    """Largest batch tile in {128, 256, 384, 512} that keeps the grid length >= 2
    (so both v7x TensorCores get work), preferring an even grid length.
    Falls back to 128 for small batches."""
    cands = [t for t in (128, 256, 384, 512) if -(-batch // t) >= 2]
    if not cands:
        return 128
    even = [t for t in cands if (-(-batch // t)) % 2 == 0]
    return max(even) if even else max(cands)


def standalone_classifier_forward(text_emb, params, *, tile_b=None):
    B, text_dim = text_emb.shape
    H = params["hidden_dim"]
    ncls_padded = params["w4"].shape[1]
    if tile_b is None:
        tile_b = _pick_tile_b(B)

    # Pad batch to a multiple of the batch tile.
    pB = pl.cdiv(B, tile_b) * tile_b
    if pB != B:
        text_emb = jnp.pad(text_emb, ((0, pB - B), (0, 0)))

    weights = (params["w0"], params["w1"], params["w2"], params["w3"], params["w4"])
    bcat = params["bcat"]
    kernel = make_classifier_kernel(H, ncls_padded)

    def const_map(i):
        return (0, 0)

    def build(single_buffer_weights):
        # Constant index_map -> weights/bias DMA'd once and stay VMEM-resident;
        # Buffered(1) drops the pointless second buffer (halves resident VMEM).
        resident = (dict(pipeline_mode=pl.Buffered(1))
                    if single_buffer_weights else {})
        in_specs = [pl.BlockSpec((tile_b, text_dim), lambda i: (i, 0))]
        in_specs += [pl.BlockSpec(w.shape, const_map, **resident) for w in weights]
        in_specs += [pl.BlockSpec(bcat.shape, const_map, **resident)]
        out_spec = pl.BlockSpec((tile_b, ncls_padded), lambda i: (i, 0))

        # Right-sized VMEM budget: resident params (1x when single-buffered)
        # + double-buffered x/out tiles + activation headroom.
        param_bytes = sum(int(np.prod(a.shape)) * a.dtype.itemsize
                          for a in (*weights, bcat))
        io_tile_bytes = tile_b * (text_dim * text_emb.dtype.itemsize
                                  + ncls_padded * 4)
        act_bytes = tile_b * (2 * H) * 4
        wfac = 1 if single_buffer_weights else 2
        need = wfac * param_bytes + 2 * io_tile_bytes + 4 * act_bytes + (4 << 20)
        # Per-generation cap: ~3/4 of physical VMEM (48 MiB on v7x's 64 MiB core,
        # 96 MiB on v5e/v6e) leaves headroom for Mosaic internal scratch.
        try:
            phys = int(pltpu.get_tpu_info().vmem_capacity_bytes)
        except Exception:
            phys = 64 << 20  # conservative fallback (v7x per-core size)
        vmem_limit = int(min(max(need, 16 << 20), (phys * 3) // 4))

        return pl.pallas_call(
            kernel,
            out_shape=jax.ShapeDtypeStruct((pB, ncls_padded), jnp.float32),
            grid_spec=pltpu.PrefetchScalarGridSpec(
                num_scalar_prefetch=0,
                grid=(pB // tile_b,),
                in_specs=in_specs,
                out_specs=out_spec,
            ),
            compiler_params=pltpu.CompilerParams(
                dimension_semantics=("parallel",),
                vmem_limit_bytes=vmem_limit,
            ),
        )

    try:
        out_padded = build(True)(text_emb, *weights, bcat)
    except Exception:
        # pipeline_mode=pl.Buffered(1) unsupported on this JAX build; retry with
        # default (double-buffered) resident weights — identical numerics.
        out_padded = build(False)(text_emb, *weights, bcat)

    return out_padded[:B, :params["num_classes"]]


# -----------------------------------------------------------------------------
# References
# -----------------------------------------------------------------------------
def reference_mirror(text_emb, params):
    """Pure-JAX mirror of the kernel math (folded bf16 weights, f32 accum)."""
    bf16, f32 = jnp.bfloat16, jnp.float32
    H, H2 = params["hidden_dim"], 2 * params["hidden_dim"]
    ncls_padded = params["w4"].shape[1]
    widths = (H, H2, H2, H, ncls_padded)
    offs = np.concatenate([[0], np.cumsum(widths)]).astype(int)
    b = [params["bcat"][:, offs[i]:offs[i + 1]] for i in range(5)]

    def layer(h_bf16, w, bi):
        return jnp.maximum(
            jnp.dot(h_bf16, w, preferred_element_type=f32) + bi, 0.0
        ).astype(bf16)

    h = layer(text_emb.astype(bf16), params["w0"], b[0])
    h = layer(h, params["w1"], b[1])
    h = layer(h, params["w2"], b[2])
    h = layer(h, params["w3"], b[3])
    h = jnp.dot(h, params["w4"], preferred_element_type=f32) + b[4]
    return h[:, :params["num_classes"]]


def reference_unfolded_f32(text_emb, params):
    """Original eval-mode math (f32, explicit BN) — validates the BN folding."""
    r = params["raw"]
    h = text_emb @ r["w0"] + r["b0"]
    h = jnp.maximum(h * r["s1"] + r["t1"], 0.0) @ r["w1"] + r["b1"]
    h = jnp.maximum(h * r["s2"] + r["t2"], 0.0) @ r["w2"] + r["b2"]
    h = jnp.maximum(h * r["s3"] + r["t3"], 0.0) @ r["w3"] + r["b3"]
    h = jnp.maximum(h * r["s4"] + r["t4"], 0.0) @ r["w4"] + r["b4"]
    return h


# -----------------------------------------------------------------------------
if __name__ == "__main__":
    # Scaled-down shapes consistent with the module: (B, text_dim) -> (B, classes)
    BATCH = 256           # grid length 2 at tile 128 (both v7x TCs exercised)
    TEXT_DIM = 256        # stand-in for 768
    HIDDEN_DIM = 256      # stand-in for 512; MXU-friendly width
    NUM_CLASSES = 3
    NUM_CLASSES_PADDED = 128

    key = jax.random.PRNGKey(0)
    k_params, k_x = jax.random.split(key)

    params = make_params(k_params, TEXT_DIM, HIDDEN_DIM, NUM_CLASSES, NUM_CLASSES_PADDED)
    # Production path: embeddings arrive in bf16 (halves steady-state input DMA).
    text_emb = jax.random.normal(k_x, (BATCH, TEXT_DIM), jnp.float32).astype(jnp.bfloat16)

    out = standalone_classifier_forward(text_emb, params)   # tile_b auto-picked
    out = jax.block_until_ready(out)
    assert out.shape == (BATCH, NUM_CLASSES), out.shape

    # 1) Tight check vs. an exact pure-JAX mirror of the kernel math.
    ref_m = jax.block_until_ready(reference_mirror(text_emb, params))
    np.testing.assert_allclose(np.asarray(out), np.asarray(ref_m),
                               rtol=2e-3, atol=2e-3)

    # 2) Loose check vs. the original (unfolded, f32) eval-mode math — validates
    #    BN-into-weight folding and the bf16 quantization error budget.
    ref_f = jax.block_until_ready(
        reference_unfolded_f32(text_emb.astype(jnp.float32), params))
    np.testing.assert_allclose(np.asarray(out), np.asarray(ref_f),
                               rtol=5e-2, atol=5e-2)

    print("KERNEL_OK")
</pallas_src>

<mosaic_0001>
module attributes {stable_mosaic.version = 11 : i64} {
  func.func @kernel(%arg0: i32, %arg1: memref<128x256xbf16, #tpu.memory_space<vmem>>, %arg2: memref<256x256xbf16, #tpu.memory_space<vmem>>, %arg3: memref<256x512xbf16, #tpu.memory_space<vmem>>, %arg4: memref<512x512xbf16, #tpu.memory_space<vmem>>, %arg5: memref<512x256xbf16, #tpu.memory_space<vmem>>, %arg6: memref<256x128xbf16, #tpu.memory_space<vmem>>, %arg7: memref<1x1664xf32, #tpu.memory_space<vmem>>, %arg8: memref<128x128xf32, #tpu.memory_space<vmem>>) attributes {dimension_semantics = [#tpu.dimension_semantics<parallel>], iteration_bounds = array<i64: 2>, scalar_prefetch = 0 : i64, scratch_operands = 0 : i64, tpu.core_type = #tpu.core_type<tc>, window_params = [{transform_indices = @transform_0, window_bounds = array<i64: 128, 256>}, {pipeline_mode = #tpu.pipeline_mode<synchronous>, transform_indices = @transform_1, window_bounds = array<i64: 256, 256>}, {pipeline_mode = #tpu.pipeline_mode<synchronous>, transform_indices = @transform_2, window_bounds = array<i64: 256, 512>}, {pipeline_mode = #tpu.pipeline_mode<synchronous>, transform_indices = @transform_3, window_bounds = array<i64: 512, 512>}, {pipeline_mode = #tpu.pipeline_mode<synchronous>, transform_indices = @transform_4, window_bounds = array<i64: 512, 256>}, {pipeline_mode = #tpu.pipeline_mode<synchronous>, transform_indices = @transform_5, window_bounds = array<i64: 256, 128>}, {pipeline_mode = #tpu.pipeline_mode<synchronous>, transform_indices = @transform_6, window_bounds = array<i64: 1, 1664>}, {transform_indices = @transform_7, window_bounds = array<i64: 128, 128>}]} {
    %c0 = arith.constant 0 : index
    %c0_0 = arith.constant 0 : index
    %0 = vector.load %arg1[%c0, %c0_0] : memref<128x256xbf16, #tpu.memory_space<vmem>>, vector<128x256xbf16>
    %c0_1 = arith.constant 0 : index
    %c0_2 = arith.constant 0 : index
    %1 = vector.load %arg2[%c0_1, %c0_2] : memref<256x256xbf16, #tpu.memory_space<vmem>>, vector<256x256xbf16>
    %cst = arith.constant dense<0.000000e+00> : vector<128x256xf32>
    %2 = tpu.matmul %0, %1, %cst {dimension_numbers = #tpu.dot_dimension_numbers<[1], [0], [0], [1], [0, 0, 1, 1], [], []>} : vector<128x256xbf16>, vector<256x256xbf16>, vector<128x256xf32> -> vector<128x256xf32>
    %c0_3 = arith.constant 0 : index
    %c0_4 = arith.constant 0 : index
    %3 = vector.load %arg7[%c0_3, %c0_4] : memref<1x1664xf32, #tpu.memory_space<vmem>>, vector<1x256xf32>
    %4 = vector.broadcast %3 : vector<1x256xf32> to vector<128x256xf32>
    %5 = arith.addf %2, %4 : vector<128x256xf32>
    %cst_5 = arith.constant 0.000000e+00 : f32
    %6 = vector.broadcast %cst_5 : f32 to vector<128x256xf32>
    %7 = arith.maximumf %5, %6 : vector<128x256xf32>
    %8 = arith.truncf %7 : vector<128x256xf32> to vector<128x256xbf16>
    %c0_6 = arith.constant 0 : index
    %c0_7 = arith.constant 0 : index
    %9 = vector.load %arg3[%c0_6, %c0_7] : memref<256x512xbf16, #tpu.memory_space<vmem>>, vector<256x512xbf16>
    %cst_8 = arith.constant dense<0.000000e+00> : vector<128x512xf32>
    %10 = tpu.matmul %8, %9, %cst_8 {dimension_numbers = #tpu.dot_dimension_numbers<[1], [0], [0], [1], [0, 0, 1, 1], [], []>} : vector<128x256xbf16>, vector<256x512xbf16>, vector<128x512xf32> -> vector<128x512xf32>
    %c0_9 = arith.constant 0 : index
    %c256 = arith.constant 256 : index
    %11 = vector.load %arg7[%c0_9, %c256] : memref<1x1664xf32, #tpu.memory_space<vmem>>, vector<1x512xf32>
    %12 = vector.broadcast %11 : vector<1x512xf32> to vector<128x512xf32>
    %13 = arith.addf %10, %12 : vector<128x512xf32>
    %cst_10 = arith.constant 0.000000e+00 : f32
    %14 = vector.broadcast %cst_10 : f32 to vector<128x512xf32>
    %15 = arith.maximumf %13, %14 : vector<128x512xf32>
    %16 = arith.truncf %15 : vector<128x512xf32> to vector<128x512xbf16>
    %c0_11 = arith.constant 0 : index
    %c0_12 = arith.constant 0 : index
    %17 = vector.load %arg4[%c0_11, %c0_12] : memref<512x512xbf16, #tpu.memory_space<vmem>>, vector<512x512xbf16>
    %cst_13 = arith.constant dense<0.000000e+00> : vector<128x512xf32>
    %18 = tpu.matmul %16, %17, %cst_13 {dimension_numbers = #tpu.dot_dimension_numbers<[1], [0], [0], [1], [0, 0, 1, 1], [], []>} : vector<128x512xbf16>, vector<512x512xbf16>, vector<128x512xf32> -> vector<128x512xf32>
    %c0_14 = arith.constant 0 : index
    %c768 = arith.constant 768 : index
    %19 = vector.load %arg7[%c0_14, %c768] : memref<1x1664xf32, #tpu.memory_space<vmem>>, vector<1x512xf32>
    %20 = vector.broadcast %19 : vector<1x512xf32> to vector<128x512xf32>
    %21 = arith.addf %18, %20 : vector<128x512xf32>
    %cst_15 = arith.constant 0.000000e+00 : f32
    %22 = vector.broadcast %cst_15 : f32 to vector<128x512xf32>
    %23 = arith.maximumf %21, %22 : vector<128x512xf32>
    %24 = arith.truncf %23 : vector<128x512xf32> to vector<128x512xbf16>
    %c0_16 = arith.constant 0 : index
    %c0_17 = arith.constant 0 : index
    %25 = vector.load %arg5[%c0_16, %c0_17] : memref<512x256xbf16, #tpu.memory_space<vmem>>, vector<512x256xbf16>
    %cst_18 = arith.constant dense<0.000000e+00> : vector<128x256xf32>
    %26 = tpu.matmul %24, %25, %cst_18 {dimension_numbers = #tpu.dot_dimension_numbers<[1], [0], [0], [1], [0, 0, 1, 1], [], []>} : vector<128x512xbf16>, vector<512x256xbf16>, vector<128x256xf32> -> vector<128x256xf32>
    %c0_19 = arith.constant 0 : index
    %c1280 = arith.constant 1280 : index
    %27 = vector.load %arg7[%c0_19, %c1280] : memref<1x1664xf32, #tpu.memory_space<vmem>>, vector<1x256xf32>
    %28 = vector.broadcast %27 : vector<1x256xf32> to vector<128x256xf32>
    %29 = arith.addf %26, %28 : vector<128x256xf32>
    %cst_20 = arith.constant 0.000000e+00 : f32
    %30 = vector.broadcast %cst_20 : f32 to vector<128x256xf32>
    %31 = arith.maximumf %29, %30 : vector<128x256xf32>
    %32 = arith.truncf %31 : vector<128x256xf32> to vector<128x256xbf16>
    %c0_21 = arith.constant 0 : index
    %c0_22 = arith.constant 0 : index
    %33 = vector.load %arg6[%c0_21, %c0_22] : memref<256x128xbf16, #tpu.memory_space<vmem>>, vector<256x128xbf16>
    %cst_23 = arith.constant dense<0.000000e+00> : vector<128x128xf32>
    %34 = tpu.matmul %32, %33, %cst_23 {dimension_numbers = #tpu.dot_dimension_numbers<[1], [0], [0], [1], [0, 0, 1, 1], [], []>} : vector<128x256xbf16>, vector<256x128xbf16>, vector<128x128xf32> -> vector<128x128xf32>
    %c0_24 = arith.constant 0 : index
    %c1536 = arith.constant 1536 : index
    %35 = vector.load %arg7[%c0_24, %c1536] : memref<1x1664xf32, #tpu.memory_space<vmem>>, vector<1x128xf32>
    %36 = vector.broadcast %35 : vector<1x128xf32> to vector<128x128xf32>
    %37 = arith.addf %34, %36 : vector<128x128xf32>
    %c0_25 = arith.constant 0 : index
    %c0_26 = arith.constant 0 : index
    %38 = vector.load %arg8[%c0_25, %c0_26] : memref<128x128xf32, #tpu.memory_space<vmem>>, vector<128x128xf32>
    tpu.vector_store %arg8[%c0_25, %c0_26], %37 {strides = array<i32>} : memref<128x128xf32, #tpu.memory_space<vmem>>, vector<128x128xf32>,
    return
  }
  func.func @transform_0(%arg0: i32) -> (i32, i32) {
    %c0_i32 = arith.constant 0 : i32
    %c0_i32_0 = arith.constant 0 : i32
    return %arg0, %c0_i32 : i32, i32
  }
  func.func @transform_1(%arg0: i32) -> (i32, i32) {
    %c0_i32 = arith.constant 0 : i32
    %c0_i32_0 = arith.constant 0 : i32
    %c0_i32_1 = arith.constant 0 : i32
    return %c0_i32, %c0_i32_0 : i32, i32
  }
  func.func @transform_2(%arg0: i32) -> (i32, i32) {
    %c0_i32 = arith.constant 0 : i32
    %c0_i32_0 = arith.constant 0 : i32
    %c0_i32_1 = arith.constant 0 : i32
    return %c0_i32, %c0_i32_0 : i32, i32
  }
  func.func @transform_3(%arg0: i32) -> (i32, i32) {
    %c0_i32 = arith.constant 0 : i32
    %c0_i32_0 = arith.constant 0 : i32
    %c0_i32_1 = arith.constant 0 : i32
    return %c0_i32, %c0_i32_0 : i32, i32
  }
  func.func @transform_4(%arg0: i32) -> (i32, i32) {
    %c0_i32 = arith.constant 0 : i32
    %c0_i32_0 = arith.constant 0 : i32
    %c0_i32_1 = arith.constant 0 : i32
    return %c0_i32, %c0_i32_0 : i32, i32
  }
  func.func @transform_5(%arg0: i32) -> (i32, i32) {
    %c0_i32 = arith.constant 0 : i32
    %c0_i32_0 = arith.constant 0 : i32
    %c0_i32_1 = arith.constant 0 : i32
    return %c0_i32, %c0_i32_0 : i32, i32
  }
  func.func @transform_6(%arg0: i32) -> (i32, i32) {
    %c0_i32 = arith.constant 0 : i32
    %c0_i32_0 = arith.constant 0 : i32
    %c0_i32_1 = arith.constant 0 : i32
    return %c0_i32, %c0_i32_0 : i32, i32
  }
  func.func @transform_7(%arg0: i32) -> (i32, i32) {
    %c0_i32 = arith.constant 0 : i32
    %c0_i32_0 = arith.constant 0 : i32
    return %arg0, %c0_i32 : i32, i32
  }
}

module attributes {stable_mosaic.version = 11 : i64} {
  func.func @kernel(%arg0: i32, %arg1: memref<128x256xbf16, #tpu.memory_space<vmem>>, %arg2: memref<256x256xbf16, #tpu.memory_space<vmem>>, %arg3: memref<256x512xbf16, #tpu.memory_space<vmem>>, %arg4: memref<512x512xbf16, #tpu.memory_space<vmem>>, %arg5: memref<512x256xbf16, #tpu.memory_space<vmem>>, %arg6: memref<256x128xbf16, #tpu.memory_space<vmem>>, %arg7: memref<1x1664xf32, #tpu.memory_space<vmem>>, %arg8: memref<128x128xf32, #tpu.memory_space<vmem>>) attributes {dimension_semantics = [#tpu.dimension_semantics<parallel>], iteration_bounds = array<i64: 2>, scalar_prefetch = 0 : i64, scratch_operands = 0 : i64, tpu.core_type = #tpu.core_type<tc>, window_params = [{transform_indices = @transform_0, window_bounds = array<i64: 128, 256>}, {pipeline_mode = #tpu.pipeline_mode<synchronous>, transform_indices = @transform_1, window_bounds = array<i64: 256, 256>}, {pipeline_mode = #tpu.pipeline_mode<synchronous>, transform_indices = @transform_2, window_bounds = array<i64: 256, 512>}, {pipeline_mode = #tpu.pipeline_mode<synchronous>, transform_indices = @transform_3, window_bounds = array<i64: 512, 512>}, {pipeline_mode = #tpu.pipeline_mode<synchronous>, transform_indices = @transform_4, window_bounds = array<i64: 512, 256>}, {pipeline_mode = #tpu.pipeline_mode<synchronous>, transform_indices = @transform_5, window_bounds = array<i64: 256, 128>}, {pipeline_mode = #tpu.pipeline_mode<synchronous>, transform_indices = @transform_6, window_bounds = array<i64: 1, 1664>}, {transform_indices = @transform_7, window_bounds = array<i64: 128, 128>}]} {
    %c0 = arith.constant 0 : index
    %c0_0 = arith.constant 0 : index
    %0 = vector.load %arg1[%c0, %c0_0] : memref<128x256xbf16, #tpu.memory_space<vmem>>, vector<128x256xbf16>
    %c0_1 = arith.constant 0 : index
    %c0_2 = arith.constant 0 : index
    %1 = vector.load %arg2[%c0_1, %c0_2] : memref<256x256xbf16, #tpu.memory_space<vmem>>, vector<256x256xbf16>
    %cst = arith.constant dense<0.000000e+00> : vector<128x256xf32>
    %2 = tpu.matmul %0, %1, %cst {dimension_numbers = #tpu.dot_dimension_numbers<[1], [0], [0], [1], [0, 0, 1, 1], [], []>} : vector<128x256xbf16>, vector<256x256xbf16>, vector<128x256xf32> -> vector<128x256xf32>
    %c0_3 = arith.constant 0 : index
    %c0_4 = arith.constant 0 : index
    %3 = vector.load %arg7[%c0_3, %c0_4] : memref<1x1664xf32, #tpu.memory_space<vmem>>, vector<1x256xf32>
    %4 = vector.broadcast %3 : vector<1x256xf32> to vector<128x256xf32>
    %5 = arith.addf %2, %4 : vector<128x256xf32>
    %cst_5 = arith.constant 0.000000e+00 : f32
    %6 = vector.broadcast %cst_5 : f32 to vector<128x256xf32>
    %7 = arith.maximumf %5, %6 : vector<128x256xf32>
    %8 = arith.truncf %7 : vector<128x256xf32> to vector<128x256xbf16>
    %c0_6 = arith.constant 0 : index
    %c0_7 = arith.constant 0 : index
    %9 = vector.load %arg3[%c0_6, %c0_7] : memref<256x512xbf16, #tpu.memory_space<vmem>>, vector<256x512xbf16>
    %cst_8 = arith.constant dense<0.000000e+00> : vector<128x512xf32>
    %10 = tpu.matmul %8, %9, %cst_8 {dimension_numbers = #tpu.dot_dimension_numbers<[1], [0], [0], [1], [0, 0, 1, 1], [], []>} : vector<128x256xbf16>, vector<256x512xbf16>, vector<128x512xf32> -> vector<128x512xf32>
    %c0_9 = arith.constant 0 : index
    %c256 = arith.constant 256 : index
    %11 = vector.load %arg7[%c0_9, %c256] : memref<1x1664xf32, #tpu.memory_space<vmem>>, vector<1x512xf32>
    %12 = vector.broadcast %11 : vector<1x512xf32> to vector<128x512xf32>
    %13 = arith.addf %10, %12 : vector<128x512xf32>
    %cst_10 = arith.constant 0.000000e+00 : f32
    %14 = vector.broadcast %cst_10 : f32 to vector<128x512xf32>
    %15 = arith.maximumf %13, %14 : vector<128x512xf32>
    %16 = arith.truncf %15 : vector<128x512xf32> to vector<128x512xbf16>
    %c0_11 = arith.constant 0 : index
    %c0_12 = arith.constant 0 : index
    %17 = vector.load %arg4[%c0_11, %c0_12] : memref<512x512xbf16, #tpu.memory_space<vmem>>, vector<512x512xbf16>
    %cst_13 = arith.constant dense<0.000000e+00> : vector<128x512xf32>
    %18 = tpu.matmul %16, %17, %cst_13 {dimension_numbers = #tpu.dot_dimension_numbers<[1], [0], [0], [1], [0, 0, 1, 1], [], []>} : vector<128x512xbf16>, vector<512x512xbf16>, vector<128x512xf32> -> vector<128x512xf32>
    %c0_14 = arith.constant 0 : index
    %c768 = arith.constant 768 : index
    %19 = vector.load %arg7[%c0_14, %c768] : memref<1x1664xf32, #tpu.memory_space<vmem>>, vector<1x512xf32>
    %20 = vector.broadcast %19 : vector<1x512xf32> to vector<128x512xf32>
    %21 = arith.addf %18, %20 : vector<128x512xf32>
    %cst_15 = arith.constant 0.000000e+00 : f32
    %22 = vector.broadcast %cst_15 : f32 to vector<128x512xf32>
    %23 = arith.maximumf %21, %22 : vector<128x512xf32>
    %24 = arith.truncf %23 : vector<128x512xf32> to vector<128x512xbf16>
    %c0_16 = arith.constant 0 : index
    %c0_17 = arith.constant 0 : index
    %25 = vector.load %arg5[%c0_16, %c0_17] : memref<512x256xbf16, #tpu.memory_space<vmem>>, vector<512x256xbf16>
    %cst_18 = arith.constant dense<0.000000e+00> : vector<128x256xf32>
    %26 = tpu.matmul %24, %25, %cst_18 {dimension_numbers = #tpu.dot_dimension_numbers<[1], [0], [0], [1], [0, 0, 1, 1], [], []>} : vector<128x512xbf16>, vector<512x256xbf16>, vector<128x256xf32> -> vector<128x256xf32>
    %c0_19 = arith.constant 0 : index
    %c1280 = arith.constant 1280 : index
    %27 = vector.load %arg7[%c0_19, %c1280] : memref<1x1664xf32, #tpu.memory_space<vmem>>, vector<1x256xf32>
    %28 = vector.broadcast %27 : vector<1x256xf32> to vector<128x256xf32>
    %29 = arith.addf %26, %28 : vector<128x256xf32>
    %cst_20 = arith.constant 0.000000e+00 : f32
    %30 = vector.broadcast %cst_20 : f32 to vector<128x256xf32>
    %31 = arith.maximumf %29, %30 : vector<128x256xf32>
    %32 = arith.truncf %31 : vector<128x256xf32> to vector<128x256xbf16>
    %c0_21 = arith.constant 0 : index
    %c0_22 = arith.constant 0 : index
    %33 = vector.load %arg6[%c0_21, %c0_22] : memref<256x128xbf16, #tpu.memory_space<vmem>>, vector<256x128xbf16>
    %cst_23 = arith.constant dense<0.000000e+00> : vector<128x128xf32>
    %34 = tpu.matmul %32, %33, %cst_23 {dimension_numbers = #tpu.dot_dimension_numbers<[1], [0], [0], [1], [0, 0, 1, 1], [], []>} : vector<128x256xbf16>, vector<256x128xbf16>, vector<128x128xf32> -> vector<128x128xf32>
    %c0_24 = arith.constant 0 : index
    %c1536 = arith.constant 1536 : index
    %35 = vector.load %arg7[%c0_24, %c1536] : memref<1x1664xf32, #tpu.memory_space<vmem>>, vector<1x128xf32>
    %36 = vector.broadcast %35 : vector<1x128xf32> to vector<128x128xf32>
    %37 = arith.addf %34, %36 : vector<128x128xf32>
    %c0_25 = arith.constant 0 : index
    %c0_26 = arith.constant 0 : index
    %38 = vector.load %arg8[%c0_25, %c0_26] : memref<128x128xf32, #tpu.memory_space<vmem>>, vector<128x128xf32>
    tpu.vector_store %arg8[%c0_25, %c0_26], %37 {strides = array<i32>} : memref<128x128xf32, #tpu.memory_space<vmem>>, vector<128x128xf32>,
    return
  }
  func.func @transform_0(%arg0: i32) -> (i32, i32) {
    %c0_i32 = arith.constant 0 : i32
    %c0_i32_0 = arith.constant 0 : i32
    return %arg0, %c0_i32 : i32, i32
  }
  func.func @transform_1(%arg0: i32) -> (i32, i32) {
    %c0_i32 = arith.constant 0 : i32
    %c0_i32_0 = arith.constant 0 : i32
    %c0_i32_1 = arith.constant 0 : i32
    return %c0_i32, %c0_i32_0 : i32, i32
  }
  func.func @transform_2(%arg0: i32) -> (i32, i32) {
    %c0_i32 = arith.constant 0 : i32
    %c0_i32_0 = arith.constant 0 : i32
    %c0_i32_1 = arith.constant 0 : i32
    return %c0_i32, %c0_i32_0 : i32, i32
  }
  func.func @transform_3(%arg0: i32) -> (i32, i32) {
    %c0_i32 = arith.constant 0 : i32
    %c0_i32_0 = arith.constant 0 : i32
    %c0_i32_1 = arith.constant 0 : i32
    return %c0_i32, %c0_i32_0 : i32, i32
  }
  func.func @transform_4(%arg0: i32) -> (i32, i32) {
    %c0_i32 = arith.constant 0 : i32
    %c0_i32_0 = arith.constant 0 : i32
    %c0_i32_1 = arith.constant 0 : i32
    return %c0_i32, %c0_i32_0 : i32, i32
  }
  func.func @transform_5(%arg0: i32) -> (i32, i32) {
    %c0_i32 = arith.constant 0 : i32
    %c0_i32_0 = arith.constant 0 : i32
    %c0_i32_1 = arith.constant 0 : i32
    return %c0_i32, %c0_i32_0 : i32, i32
  }
  func.func @transform_6(%arg0: i32) -> (i32, i32) {
    %c0_i32 = arith.constant 0 : i32
    %c0_i32_0 = arith.constant 0 : i32
    %c0_i32_1 = arith.constant 0 : i32
    return %c0_i32, %c0_i32_0 : i32, i32
  }
  func.func @transform_7(%arg0: i32) -> (i32, i32) {
    %c0_i32 = arith.constant 0 : i32
    %c0_i32_0 = arith.constant 0 : i32
    return %arg0, %c0_i32 : i32, i32
  }
}

</mosaic_0001>

<llo_original>
// kernel: tpu_custom_call.1
$region0: #{tpu_custom_call.1}
  #allocation0 [shape = 'u32[]', space=smem, size = 0x4, offset = 0x4, fixed_abs, tag = 'smem constant byte address 0x4 - core index']
  #allocation1 [shape = 'u32[144,128]{1,0:T(1,128)}', space=vmem, size = 0x12000, scoped, tag = 'internal scratch']
  %s0 = inlined_call_operand.hbm [shape: bf16[256,256], index: 0, kind: input, shape index: {}]
  %s1 = inlined_call_operand.hbm [shape: bf16[256,256], index: 1, kind: input, shape index: {}]
  %s2 = inlined_call_operand.hbm [shape: bf16[256,512], index: 2, kind: input, shape index: {}]
  %s3 = inlined_call_operand.hbm [shape: bf16[512,512], index: 3, kind: input, shape index: {}]
  %s4 = inlined_call_operand.hbm [shape: bf16[512,256], index: 4, kind: input, shape index: {}]
  %s5 = inlined_call_operand.hbm [shape: bf16[256,128], index: 5, kind: input, shape index: {}]
  %s6 = inlined_call_operand.hbm [shape: f32[1,1664], index: 6, kind: input, shape index: {}]
  %s7 = inlined_call_operand.hbm [shape: f32[256,128], index: 7, kind: output, shape index: {}]
  %s8 = sld [smem:[#allocation0]]
  $region89: #{tpu_custom_call.1} parent=0
    _
  %s10 = ssub.s32 1, %s8
  %s11 = scalar_select 0, %s10, %s8
  $region1: #{tpu_custom_call.1} parent=0
    #allocation2 [shape = 'u8[131072]{0}', space=vmem, size = 0x20000, scoped, tag = 'input window, operand 0']
    #allocation3 [shape = 's32[2]{0}', space=sflag, size = 0x8, scoped, tag = 'scoped memory for tpu_custom_call.1']
    #allocation4 [shape = 's32[2]{0}', space=sflag, size = 0x8, scoped, tag = 'scoped memory for tpu_custom_call.1']
    #allocation5 [shape = 'u8[131072]{0}', space=vmem, size = 0x20000, scoped, tag = 'input window, operand 1, single buffered']
    #allocation6 [shape = 's32[1]{0}', space=sflag, size = 0x4, scoped, tag = 'scoped memory for tpu_custom_call.1']
    #allocation7 [shape = 'u8[262144]{0}', space=vmem, size = 0x40000, scoped, tag = 'input window, operand 2, single buffered']
    #allocation8 [shape = 'u8[524288]{0}', space=vmem, size = 0x80000, scoped, tag = 'input window, operand 3, single buffered']
    #allocation9 [shape = 's32[1]{0}', space=sflag, size = 0x4, scoped, tag = 'scoped memory for tpu_custom_call.1']
    #allocation10 [shape = 'u8[262144]{0}', space=vmem, size = 0x40000, scoped, tag = 'input window, operand 4, single buffered']
    #allocation11 [shape = 'u8[65536]{0}', space=vmem, size = 0x10000, scoped, tag = 'input window, operand 5, single buffered']
    #allocation12 [shape = 's32[1]{0}', space=sflag, size = 0x4, scoped, tag = 'scoped memory for tpu_custom_call.1']
    #allocation13 [shape = 'u8[6656]{0}', space=vmem, size = 0x1c00, scoped, tag = 'input window, operand 6, single buffered']
    #allocation14 [shape = 'u8[131072]{0}', space=vmem, size = 0x20000, scoped, tag = 'output window, operand 0']
    %12 = vsyncpa [#allocation3], 0
    %s13 = scalar_lea.sflag [#allocation3], 1
    %14 = vsyncpa %s13, 0
    %15 = vsyncpa [#allocation6], 0
    %16 = vsyncpa [#allocation9], 0
    %17 = vsyncpa [#allocation12], 0
    %18 = vsyncpa [#allocation4], 0
    %s19 = scalar_lea.sflag [#allocation4], 1
    %20 = vsyncpa %s19, 0
    loop: start=0, step=1, limit=4
    $region2: #{tpu_custom_call.1} parent=1 // loop_pre_header
      _
    $region3: #{tpu_custom_call.1} parent=1 // loop_header
      %s22 = sphi 0, %s26
      %p23 = scmp.ge.s32.totalorder %s22, 4
      %s32 = sphi 0, %s34
      %s35 = sphi 0, %s32
      %s36 = sphi 0, %s35
      %s52 = sphi 0, %s36
      %s56 = sphi 0, %s56
      %s58 = sphi 0, %s56
      %s59 = sphi 0, %s58
      %s73 = sphi 0, %s59
      %s77 = sphi 0, %s77
      %s79 = sphi 0, %s77
      %s80 = sphi 0, %s79
      %s94 = sphi 0, %s80
      %s98 = sphi 0, %s98
      %s100 = sphi 0, %s98
      %s101 = sphi 0, %s100
      %s115 = sphi 0, %s101
      %s119 = sphi 0, %s119
      %s121 = sphi 0, %s119
      %s122 = sphi 0, %s121
      %s136 = sphi 0, %s122
      %s140 = sphi 0, %s140
      %s142 = sphi 0, %s140
      %s143 = sphi 0, %s142
      %s157 = sphi 0, %s143
      %s161 = sphi 0, %s161
      %s163 = sphi 0, %s161
      %s164 = sphi 0, %s163
      %s178 = sphi 0, %s164
      %s184 = sphi 0, %s186
      %s187 = sphi 0, %s184
      %s188 = sphi 0, %s187
      %s204 = sphi 0, %s188
    $region4: #{tpu_custom_call.1} parent=1 // loop_header_branch
      %25 = sbr.rel (%p23) target = $region8
    $region5: #{tpu_custom_call.1} parent=1 // loop_body
      %s27 = ssub.s32 %s22, 1
      %s28 = ssub.s32 %s22, 2
      %s29 = sadd.s32 %s22, 1
      %s30 = ssub.s32 %s22, %s29
      %p31 = scmp.eq.s32.totalorder %s30, 0
      %s33 = sadd.s32 %s32, 1
      %s34 = scalar_select %p31, %s32, %s33
      %p37 = pneg %p31
      %p38 = scmp.eq.s32.totalorder %s22, 1
      %p39 = por %p37, %p38
      %p40 = scmp.ne.s32.totalorder %s32, %s35
      %p41 = scmp.eq.s32.totalorder %s22, 0
      %p42 = por %p40, %p41
      %p43 = scmp.ne.s32.totalorder %s32, %s35
      %p44 = scmp.eq.s32.totalorder %s27, 1
      %p45 = por %p43, %p44
      %p46 = scmp.ne.s32.totalorder %s35, %s36
      %p47 = scmp.eq.s32.totalorder %s27, 0
      %p48 = por %p46, %p47
      %p49 = scmp.ne.s32.totalorder %s35, %s36
      %p50 = scmp.eq.s32.totalorder %s28, 1
      %p51 = por %p49, %p50
      %p53 = scmp.ne.s32.totalorder %s36, %s52
      %p54 = scmp.eq.s32.totalorder %s28, 0
      %p55 = por %p53, %p54
      %s57 = sadd.s32 %s56, 1
      %p60 = scmp.eq.s32.totalorder %s22, 1
      %p61 = scmp.ne.s32.totalorder %s56, %s58
      %p62 = scmp.eq.s32.totalorder %s22, 0
      %p63 = por %p61, %p62
      %p64 = scmp.ne.s32.totalorder %s56, %s58
      %p65 = scmp.eq.s32.totalorder %s27, 1
      %p66 = por %p64, %p65
      %p67 = scmp.ne.s32.totalorder %s58, %s59
      %p68 = scmp.eq.s32.totalorder %s27, 0
      %p69 = por %p67, %p68
      %p70 = scmp.ne.s32.totalorder %s58, %s59
      %p71 = scmp.eq.s32.totalorder %s28, 1
      %p72 = por %p70, %p71
      %p74 = scmp.ne.s32.totalorder %s59, %s73
      %p75 = scmp.eq.s32.totalorder %s28, 0
      %p76 = por %p74, %p75
      %s78 = sadd.s32 %s77, 1
      %p81 = scmp.eq.s32.totalorder %s22, 1
      %p82 = scmp.ne.s32.totalorder %s77, %s79
      %p83 = scmp.eq.s32.totalorder %s22, 0
      %p84 = por %p82, %p83
      %p85 = scmp.ne.s32.totalorder %s77, %s79
      %p86 = scmp.eq.s32.totalorder %s27, 1
      %p87 = por %p85, %p86
      %p88 = scmp.ne.s32.totalorder %s79, %s80
      %p89 = scmp.eq.s32.totalorder %s27, 0
      %p90 = por %p88, %p89
      %p91 = scmp.ne.s32.totalorder %s79, %s80
      %p92 = scmp.eq.s32.totalorder %s28, 1
      %p93 = por %p91, %p92
      %p95 = scmp.ne.s32.totalorder %s80, %s94
      %p96 = scmp.eq.s32.totalorder %s28, 0
      %p97 = por %p95, %p96
      %s99 = sadd.s32 %s98, 1
      %p102 = scmp.eq.s32.totalorder %s22, 1
      %p103 = scmp.ne.s32.totalorder %s98, %s100
      %p104 = scmp.eq.s32.totalorder %s22, 0
      %p105 = por %p103, %p104
      %p106 = scmp.ne.s32.totalorder %s98, %s100
      %p107 = scmp.eq.s32.totalorder %s27, 1
      %p108 = por %p106, %p107
      %p109 = scmp.ne.s32.totalorder %s100, %s101
      %p110 = scmp.eq.s32.totalorder %s27, 0
      %p111 = por %p109, %p110
      %p112 = scmp.ne.s32.totalorder %s100, %s101
      %p113 = scmp.eq.s32.totalorder %s28, 1
      %p114 = por %p112, %p113
      %p116 = scmp.ne.s32.totalorder %s101, %s115
      %p117 = scmp.eq.s32.totalorder %s28, 0
      %p118 = por %p116, %p117
      %s120 = sadd.s32 %s119, 1
      %p123 = scmp.eq.s32.totalorder %s22, 1
      %p124 = scmp.ne.s32.totalorder %s119, %s121
      %p125 = scmp.eq.s32.totalorder %s22, 0
      %p126 = por %p124, %p125
      %p127 = scmp.ne.s32.totalorder %s119, %s121
      %p128 = scmp.eq.s32.totalorder %s27, 1
      %p129 = por %p127, %p128
      %p130 = scmp.ne.s32.totalorder %s121, %s122
      %p131 = scmp.eq.s32.totalorder %s27, 0
      %p132 = por %p130, %p131
      %p133 = scmp.ne.s32.totalorder %s121, %s122
      %p134 = scmp.eq.s32.totalorder %s28, 1
      %p135 = por %p133, %p134
      %p137 = scmp.ne.s32.totalorder %s122, %s136
      %p138 = scmp.eq.s32.totalorder %s28, 0
      %p139 = por %p137, %p138
      %s141 = sadd.s32 %s140, 1
      %p144 = scmp.eq.s32.totalorder %s22, 1
      %p145 = scmp.ne.s32.totalorder %s140, %s142
      %p146 = scmp.eq.s32.totalorder %s22, 0
      %p147 = por %p145, %p146
      %p148 = scmp.ne.s32.totalorder %s140, %s142
      %p149 = scmp.eq.s32.totalorder %s27, 1
      %p150 = por %p148, %p149
      %p151 = scmp.ne.s32.totalorder %s142, %s143
      %p152 = scmp.eq.s32.totalorder %s27, 0
      %p153 = por %p151, %p152
      %p154 = scmp.ne.s32.totalorder %s142, %s143
      %p155 = scmp.eq.s32.totalorder %s28, 1
      %p156 = por %p154, %p155
      %p158 = scmp.ne.s32.totalorder %s143, %s157
      %p159 = scmp.eq.s32.totalorder %s28, 0
      %p160 = por %p158, %p159
      %s162 = sadd.s32 %s161, 1
      %p165 = scmp.eq.s32.totalorder %s22, 1
      %p166 = scmp.ne.s32.totalorder %s161, %s163
      %p167 = scmp.eq.s32.totalorder %s22, 0
      %p168 = por %p166, %p167
      %p169 = scmp.ne.s32.totalorder %s161, %s163
      %p170 = scmp.eq.s32.totalorder %s27, 1
      %p171 = por %p169, %p170
      %p172 = scmp.ne.s32.totalorder %s163, %s164
      %p173 = scmp.eq.s32.totalorder %s27, 0
      %p174 = por %p172, %p173
      %p175 = scmp.ne.s32.totalorder %s163, %s164
      %p176 = scmp.eq.s32.totalorder %s28, 1
      %p177 = por %p175, %p176
      %p179 = scmp.ne.s32.totalorder %s164, %s178
      %p180 = scmp.eq.s32.totalorder %s28, 0
      %p181 = por %p179, %p180
      %s182 = ssub.s32 %s22, %s29
      %p183 = scmp.eq.s32.totalorder %s182, 0
      %s185 = sadd.s32 %s184, 1
      %s186 = scalar_select %p183, %s184, %s185
      %p189 = pneg %p183
      %p190 = scmp.eq.s32.totalorder %s22, 1
      %p191 = por %p189, %p190
      %p192 = scmp.ne.s32.totalorder %s184, %s187
      %p193 = scmp.eq.s32.totalorder %s22, 0
      %p194 = por %p192, %p193
      %p195 = scmp.ne.s32.totalorder %s184, %s187
      %p196 = scmp.eq.s32.totalorder %s27, 1
      %p197 = por %p195, %p196
      %p198 = scmp.ne.s32.totalorder %s187, %s188
      %p199 = scmp.eq.s32.totalorder %s27, 0
      %p200 = por %p198, %p199
      %p201 = scmp.ne.s32.totalorder %s187, %s188
      %p202 = scmp.eq.s32.totalorder %s28, 1
      %p203 = por %p201, %p202
      %p205 = scmp.ne.s32.totalorder %s188, %s204
      %p206 = scmp.eq.s32.totalorder %s28, 0
      %p207 = por %p205, %p206
      %p208 = scmp.le.s32.totalorder 1, %s22
      %p209 = scmp.lt.s32.totalorder %s22, 3
      %p210 = pnand %p208, %p209
      %p211 = pneg %p210
      // Predicated region
      $region9: #{tpu_custom_call.1} parent=5 // pred_check
        _
      $region10: #{tpu_custom_call.1} parent=5 // pred_check_branch
        %213 = sbr.rel (%p210) target = $region12
      $region11: #{tpu_custom_call.1} parent=5 // pred_region
        %s214 = ssub.s32 %s22, 1
        // Predicated region
        $region13: #{tpu_custom_call.1} parent=11 // pred_check
          %p215 = pneg %p69
        $region14: #{tpu_custom_call.1} parent=11 // pred_check_branch
          %217 = sbr.rel (%p215) target = $region16
        $region15: #{tpu_custom_call.1} parent=11 // pred_region
          %s219 = ssub.s32 4096, 4096
          %220 = vsyncadd [#allocation6], %s219
          %s221 = sshll.u32 [#allocation5], 4
          %s222 = int_to_ptr.vmem [resolvable:$true] %s221
          %227 = dma.hbm_to_vmem [thread:$0]  %s1, 4096, %s222, [#allocation6], 128, 128, 8
        $region16: #{tpu_custom_call.1} parent=11 // pred_fallthru
          _
        // Predicated region
        $region17: #{tpu_custom_call.1} parent=11 // pred_check
          %p228 = pneg %p90
        $region18: #{tpu_custom_call.1} parent=11 // pred_check_branch
          %230 = sbr.rel (%p228) target = $region20
        $region19: #{tpu_custom_call.1} parent=11 // pred_region
          %s232 = ssub.s32 8192, 8192
          %233 = vsyncadd [#allocation6], %s232
          %s234 = sshll.u32 [#allocation7], 4
          %s235 = int_to_ptr.vmem [resolvable:$true] %s234
          %240 = dma.hbm_to_vmem [thread:$0]  %s2, 8192, %s235, [#allocation6], 256, 256, 16
        $region20: #{tpu_custom_call.1} parent=11 // pred_fallthru
          _
        // Predicated region
        $region21: #{tpu_custom_call.1} parent=11 // pred_check
          %p241 = pneg %p111
        $region22: #{tpu_custom_call.1} parent=11 // pred_check_branch
          %243 = sbr.rel (%p241) target = $region24
        $region23: #{tpu_custom_call.1} parent=11 // pred_region
          %s245 = ssub.s32 16384, 16384
          %246 = vsyncadd [#allocation9], %s245
          %s247 = sshll.u32 [#allocation8], 4
          %s248 = int_to_ptr.vmem [resolvable:$true] %s247
          %253 = dma.hbm_to_vmem [thread:$0]  %s3, 16384, %s248, [#allocation9], 256, 256, 16
        $region24: #{tpu_custom_call.1} parent=11 // pred_fallthru
          _
        // Predicated region
        $region25: #{tpu_custom_call.1} parent=11 // pred_check
          %p254 = pneg %p132
        $region26: #{tpu_custom_call.1} parent=11 // pred_check_branch
          %256 = sbr.rel (%p254) target = $region28
        $region27: #{tpu_custom_call.1} parent=11 // pred_region
          %s258 = ssub.s32 8192, 8192
          %259 = vsyncadd [#allocation9], %s258
          %s260 = sshll.u32 [#allocation10], 4
          %s261 = int_to_ptr.vmem [resolvable:$true] %s260
          %266 = dma.hbm_to_vmem [thread:$0]  %s4, 8192, %s261, [#allocation9], 128, 128, 8
        $region28: #{tpu_custom_call.1} parent=11 // pred_fallthru
          _
        // Predicated region
        $region29: #{tpu_custom_call.1} parent=11 // pred_check
          %p267 = pneg %p153
        $region30: #{tpu_custom_call.1} parent=11 // pred_check_branch
          %269 = sbr.rel (%p267) target = $region32
        $region31: #{tpu_custom_call.1} parent=11 // pred_region
          %s271 = ssub.s32 2048, 2048
          %272 = vsyncadd [#allocation12], %s271
          %s273 = sshll.u32 [#allocation11], 4
          %s274 = int_to_ptr.vmem [resolvable:$true] %s273
          %279 = dma.hbm_to_vmem [thread:$0]  %s5, 2048, %s274, [#allocation12], 64, 64, 4
        $region32: #{tpu_custom_call.1} parent=11 // pred_fallthru
          _
        // Predicated region
        $region33: #{tpu_custom_call.1} parent=11 // pred_check
          %p280 = pneg %p174
        $region34: #{tpu_custom_call.1} parent=11 // pred_check_branch
          %282 = sbr.rel (%p280) target = $region36
        $region35: #{tpu_custom_call.1} parent=11 // pred_region
          %s284 = ssub.s32 208, 208
          %285 = vsyncadd [#allocation12], %s284
          %s287 = sshll.u32 [#allocation13], 4
          %s288 = int_to_ptr.vmem [resolvable:$true] %s287
          %290 = dma.hbm_to_vmem [thread:$0]  %s6, 208, %s288, [#allocation12]
        $region36: #{tpu_custom_call.1} parent=11 // pred_fallthru
          _
      $region12: #{tpu_custom_call.1} parent=5 // pred_fallthru
        _
      %p291 = scmp.lt.s32.totalorder %s22, 2
      // Predicated region
      $region37: #{tpu_custom_call.1} parent=5 // pred_check
        %p292 = pneg %p291
      $region38: #{tpu_custom_call.1} parent=5 // pred_check_branch
        %294 = sbr.rel (%p292) target = $region40
      $region39: #{tpu_custom_call.1} parent=5 // pred_region
        // Predicated region
        $region41: #{tpu_custom_call.1} parent=39 // pred_check
          %p295 = pneg %p42
        $region42: #{tpu_custom_call.1} parent=39 // pred_check_branch
          %297 = sbr.rel (%p295) target = $region44
        $region43: #{tpu_custom_call.1} parent=39 // pred_region
          %s298 = sand.u32 %s32, 1
          %s299 = scalar_lea.sflag [#allocation3], %s298
          %s300 = sand.u32 %s32, 1
          %s301 = smul.addr %s300, 128
          %s302 = scalar_lea.vmem [#allocation2], %s301
          %s303 = smul.u32 16, %s22
          %s305 = ssub.s32 2048, 2048
          %306 = vsyncadd %s299, %s305
          %s307 = smul.addr %s303, 2
          %s308 = smul.addr %s307, 64
          %s309 = scalar_lea.hbm %s0, %s308
          %s310 = sshll.u32 %s302, 4
          %s311 = int_to_ptr.vmem [resolvable:$true] %s310
          %316 = dma.hbm_to_vmem [thread:$0]  %s309, 2048, %s311, %s299, 128, 128, 8
        $region44: #{tpu_custom_call.1} parent=39 // pred_fallthru
          _
      $region40: #{tpu_custom_call.1} parent=5 // pred_fallthru
        _
      %p317 = scmp.le.s32.totalorder 1, %s22
      %p318 = scmp.lt.s32.totalorder %s22, 3
      %p319 = pnand %p317, %p318
      %p320 = pneg %p319
      // Predicated region
      $region45: #{tpu_custom_call.1} parent=5 // pred_check
        _
      $region46: #{tpu_custom_call.1} parent=5 // pred_check_branch
        %322 = sbr.rel (%p319) target = $region48
      $region47: #{tpu_custom_call.1} parent=5 // pred_region
        %s323 = ssub.s32 %s22, 1
        %s324 = sand.u32 %s35, 1
        %s325 = scalar_lea.sflag [#allocation3], %s324
        %s326 = sand.u32 %s35, 1
        %s327 = smul.addr %s326, 128
        %s328 = scalar_lea.vmem [#allocation2], %s327
        // Predicated region
        $region49: #{tpu_custom_call.1} parent=47 // pred_check
          %p329 = pneg %p48
        $region50: #{tpu_custom_call.1} parent=47 // pred_check_branch
          %331 = sbr.rel (%p329) target = $region52
        $region51: #{tpu_custom_call.1} parent=47 // pred_region
          %332 = dma.done %s325, 2048
        $region52: #{tpu_custom_call.1} parent=47 // pred_fallthru
          _
        // Predicated region
        $region53: #{tpu_custom_call.1} parent=47 // pred_check
          %p333 = pneg %p69
        $region54: #{tpu_custom_call.1} parent=47 // pred_check_branch
          %335 = sbr.rel (%p333) target = $region56
        $region55: #{tpu_custom_call.1} parent=47 // pred_region
          %336 = dma.done [#allocation6], 4096
        $region56: #{tpu_custom_call.1} parent=47 // pred_fallthru
          _
        // Predicated region
        $region57: #{tpu_custom_call.1} parent=47 // pred_check
          %p337 = pneg %p90
        $region58: #{tpu_custom_call.1} parent=47 // pred_check_branch
          %339 = sbr.rel (%p337) target = $region60
        $region59: #{tpu_custom_call.1} parent=47 // pred_region
          %340 = dma.done [#allocation6], 8192
        $region60: #{tpu_custom_call.1} parent=47 // pred_fallthru
          _
        // Predicated region
        $region61: #{tpu_custom_call.1} parent=47 // pred_check
          %p341 = pneg %p111
        $region62: #{tpu_custom_call.1} parent=47 // pred_check_branch
          %343 = sbr.rel (%p341) target = $region64
        $region63: #{tpu_custom_call.1} parent=47 // pred_region
          %344 = dma.done [#allocation9], 16384
        $region64: #{tpu_custom_call.1} parent=47 // pred_fallthru
          _
        // Predicated region
        $region65: #{tpu_custom_call.1} parent=47 // pred_check
          %p345 = pneg %p132
        $region66: #{tpu_custom_call.1} parent=47 // pred_check_branch
          %347 = sbr.rel (%p345) target = $region68
        $region67: #{tpu_custom_call.1} parent=47 // pred_region
          %348 = dma.done [#allocation9], 8192
        $region68: #{tpu_custom_call.1} parent=47 // pred_fallthru
          _
        // Predicated region
        $region69: #{tpu_custom_call.1} parent=47 // pred_check
          %p349 = pneg %p153
        $region70: #{tpu_custom_call.1} parent=47 // pred_check_branch
          %351 = sbr.rel (%p349) target = $region72
        $region71: #{tpu_custom_call.1} parent=47 // pred_region
          %352 = dma.done [#allocation12], 2048
        $region72: #{tpu_custom_call.1} parent=47 // pred_fallthru
          _
        // Predicated region
        $region73: #{tpu_custom_call.1} parent=47 // pred_check
          %p353 = pneg %p174
        $region74: #{tpu_custom_call.1} parent=47 // pred_check_branch
          %355 = sbr.rel (%p353) target = $region76
        $region75: #{tpu_custom_call.1} parent=47 // pred_region
          %356 = dma.done [#allocation12], 208
        $region76: #{tpu_custom_call.1} parent=47 // pred_fallthru
          _
        %s357 = sand.u32 %s35, 1
        %s358 = scalar_lea.sflag [#allocation3], %s357
        %s359 = sand.u32 %s35, 1
        %s360 = smul.addr %s359, 128
        %s361 = scalar_lea.vmem [#allocation2], %s360
        %p362 = pneg %p48
        %p363 = pneg %p45
        %p364 = pneg %p69
        %p365 = pneg %p66
        %p366 = pneg %p90
        %p367 = pneg %p87
        %p368 = pneg %p111
        %p369 = pneg %p108
        %p370 = pneg %p132
        %p371 = pneg %p129
        %p372 = pneg %p153
        %p373 = pneg %p150
        %p374 = pneg %p174
        %p375 = pneg %p171
        %p376 = pneg %p200
        %p377 = pneg %p197
        %s378 = sand.u32 %s187, 1
        %s379 = scalar_lea.sflag [#allocation4], %s378
        %s380 = sand.u32 %s187, 1
        %s381 = smul.addr %s380, 128
        %s382 = scalar_lea.vmem [#allocation14], %s381
        %s383 = smul.u32 16, %s27
        %s384 = smul.u32 16, %s27
        %v386 = vld [vmem:[%s328] sm:$0xff]
        %v387 = vld [vmem:[%s328 + $0x8] sm:$0xff]
        %v388 = vld [vmem:[%s328 + $0x10] sm:$0xff]
        %v389 = vld [vmem:[%s328 + $0x18] sm:$0xff]
        %v390 = vld [vmem:[%s328 + $0x20] sm:$0xff]
        %v391 = vld [vmem:[%s328 + $0x28] sm:$0xff]
        %v392 = vld [vmem:[%s328 + $0x30] sm:$0xff]
        %v393 = vld [vmem:[%s328 + $0x38] sm:$0xff]
        %v394 = vld [vmem:[%s328 + $0x40] sm:$0xff]
        %v395 = vld [vmem:[%s328 + $0x48] sm:$0xff]
        %v396 = vld [vmem:[%s328 + $0x50] sm:$0xff]
        %v397 = vld [vmem:[%s328 + $0x58] sm:$0xff]
        %v398 = vld [vmem:[%s328 + $0x60] sm:$0xff]
        %v399 = vld [vmem:[%s328 + $0x68] sm:$0xff]
        %v400 = vld [vmem:[%s328 + $0x70] sm:$0xff]
        %v401 = vld [vmem:[%s328 + $0x78] sm:$0xff]
        %v402 = vld [vmem:[#allocation5] sm:$0xff]
        %v403 = vld [vmem:[#allocation5 + $0x8] sm:$0xff]
        %v404 = vld [vmem:[#allocation5 + $0x10] sm:$0xff]
        %v405 = vld [vmem:[#allocation5 + $0x18] sm:$0xff]
        %v406 = vld [vmem:[#allocation5 + $0x20] sm:$0xff]
        %v407 = vld [vmem:[#allocation5 + $0x28] sm:$0xff]
        %v408 = vld [vmem:[#allocation5 + $0x30] sm:$0xff]
        %v409 = vld [vmem:[#allocation5 + $0x38] sm:$0xff]
        %v410 = vld [vmem:[#allocation5 + $0x40] sm:$0xff]
        %v411 = vld [vmem:[#allocation5 + $0x48] sm:$0xff]
        %v412 = vld [vmem:[#allocation5 + $0x50] sm:$0xff]
        %v413 = vld [vmem:[#allocation5 + $0x58] sm:$0xff]
        %v414 = vld [vmem:[#allocation5 + $0x60] sm:$0xff]
        %v415 = vld [vmem:[#allocation5 + $0x68] sm:$0xff]
        %v416 = vld [vmem:[#allocation5 + $0x70] sm:$0xff]
        %v417 = vld [vmem:[#allocation5 + $0x78] sm:$0xff]
        %v418 = vld [vmem:[#allocation5 + $0x80] sm:$0xff]
        %v419 = vld [vmem:[#allocation5 + $0x88] sm:$0xff]
        %v420 = vld [vmem:[#allocation5 + $0x90] sm:$0xff]
        %v421 = vld [vmem:[#allocation5 + $0x98] sm:$0xff]
        %v422 = vld [vmem:[#allocation5 + $0xa0] sm:$0xff]
        %v423 = vld [vmem:[#allocation5 + $0xa8] sm:$0xff]
        %v424 = vld [vmem:[#allocation5 + $0xb0] sm:$0xff]
        %v425 = vld [vmem:[#allocation5 + $0xb8] sm:$0xff]
        %v426 = vld [vmem:[#allocation5 + $0xc0] sm:$0xff]
        %v427 = vld [vmem:[#allocation5 + $0xc8] sm:$0xff]
        %v428 = vld [vmem:[#allocation5 + $0xd0] sm:$0xff]
        %v429 = vld [vmem:[#allocation5 + $0xd8] sm:$0xff]
        %v430 = vld [vmem:[#allocation5 + $0xe0] sm:$0xff]
        %v431 = vld [vmem:[#allocation5 + $0xe8] sm:$0xff]
        %v432 = vld [vmem:[#allocation5 + $0xf0] sm:$0xff]
        %v433 = vld [vmem:[#allocation5 + $0xf8] sm:$0xff]
        %v434 = vld [vmem:[#allocation13] sm:$0x3]
        %v436 = vlaneseq
        %v437 = vshrl.u32 %v436, 7
        %v438 = vsub.s32 0, %v437
        %v439 = vrot.slane %v434, %v438
        %v440 = vlaneseq
        %v441 = vshrl.u32 %v440, 7
        %v442 = vsub.s32 1, %v441
        %v443 = vrot.slane %v434, %v442
        %v462 = vunpack.c.l.b16 %v386
        %v463 = vunpack.c.h.b16 %v386
        %v464 = vunpack.c.l.b16 %v387
        %v465 = vunpack.c.h.b16 %v387
        %v466 = vunpack.c.l.b16 %v388
        %v467 = vunpack.c.h.b16 %v388
        %v468 = vunpack.c.l.b16 %v389
        %v469 = vunpack.c.h.b16 %v389
        %v470 = vunpack.c.l.b16 %v390
        %v471 = vunpack.c.h.b16 %v390
        %v472 = vunpack.c.l.b16 %v391
        %v473 = vunpack.c.h.b16 %v391
        %v474 = vunpack.c.l.b16 %v392
        %v475 = vunpack.c.h.b16 %v392
        %v476 = vunpack.c.l.b16 %v393
        %v477 = vunpack.c.h.b16 %v393
        %v478 = vunpack.c.l.b16 %v394
        %v479 = vunpack.c.h.b16 %v394
        %v480 = vunpack.c.l.b16 %v395
        %v481 = vunpack.c.h.b16 %v395
        %v482 = vunpack.c.l.b16 %v396
        %v483 = vunpack.c.h.b16 %v396
        %v484 = vunpack.c.l.b16 %v397
        %v485 = vunpack.c.h.b16 %v397
        %v486 = vunpack.c.l.b16 %v398
        %v487 = vunpack.c.h.b16 %v398
        %v488 = vunpack.c.l.b16 %v399
        %v489 = vunpack.c.h.b16 %v399
        %v490 = vunpack.c.l.b16 %v400
        %v491 = vunpack.c.h.b16 %v400
        %v492 = vunpack.c.l.b16 %v401
        %v493 = vunpack.c.h.b16 %v401
        %v494 = vpack.c.b16 %v464, %v462
        %v495 = vpack.c.b16 %v465, %v463
        %v496 = vpack.c.b16 %v468, %v466
        %v497 = vpack.c.b16 %v469, %v467
        %v498 = vpack.c.b16 %v472, %v470
        %v499 = vpack.c.b16 %v473, %v471
        %v500 = vpack.c.b16 %v476, %v474
        %v501 = vpack.c.b16 %v477, %v475
        %v502 = vpack.c.b16 %v480, %v478
        %v503 = vpack.c.b16 %v481, %v479
        %v504 = vpack.c.b16 %v484, %v482
        %v505 = vpack.c.b16 %v485, %v483
        %v506 = vpack.c.b16 %v488, %v486
        %v507 = vpack.c.b16 %v489, %v487
        %v508 = vpack.c.b16 %v492, %v490
        %v509 = vpack.c.b16 %v493, %v491
        %v558 = vunpack.c.l.b16 %v402
        %v559 = vunpack.c.h.b16 %v402
        %v560 = vunpack.c.l.b16 %v403
        %v561 = vunpack.c.h.b16 %v403
        %v562 = vunpack.c.l.b16 %v404
        %v563 = vunpack.c.h.b16 %v404
        %v564 = vunpack.c.l.b16 %v405
        %v565 = vunpack.c.h.b16 %v405
        %v566 = vunpack.c.l.b16 %v406
        %v567 = vunpack.c.h.b16 %v406
        %v568 = vunpack.c.l.b16 %v407
        %v569 = vunpack.c.h.b16 %v407
        %v570 = vunpack.c.l.b16 %v408
        %v571 = vunpack.c.h.b16 %v408
        %v572 = vunpack.c.l.b16 %v409
        %v573 = vunpack.c.h.b16 %v409
        %v574 = vunpack.c.l.b16 %v410
        %v575 = vunpack.c.h.b16 %v410
        %v576 = vunpack.c.l.b16 %v411
        %v577 = vunpack.c.h.b16 %v411
        %v578 = vunpack.c.l.b16 %v412
        %v579 = vunpack.c.h.b16 %v412
        %v580 = vunpack.c.l.b16 %v413
        %v581 = vunpack.c.h.b16 %v413
        %v582 = vunpack.c.l.b16 %v414
        %v583 = vunpack.c.h.b16 %v414
        %v584 = vunpack.c.l.b16 %v415
        %v585 = vunpack.c.h.b16 %v415
        %v586 = vunpack.c.l.b16 %v416
        %v587 = vunpack.c.h.b16 %v416
        %v588 = vunpack.c.l.b16 %v417
        %v589 = vunpack.c.h.b16 %v417
        %v590 = vunpack.c.l.b16 %v418
        %v591 = vunpack.c.h.b16 %v418
        %v592 = vunpack.c.l.b16 %v419
        %v593 = vunpack.c.h.b16 %v419
        %v594 = vunpack.c.l.b16 %v420
        %v595 = vunpack.c.h.b16 %v420
        %v596 = vunpack.c.l.b16 %v421
        %v597 = vunpack.c.h.b16 %v421
        %v598 = vunpack.c.l.b16 %v422
        %v599 = vunpack.c.h.b16 %v422
        %v600 = vunpack.c.l.b16 %v423
        %v601 = vunpack.c.h.b16 %v423
        %v602 = vunpack.c.l.b16 %v424
        %v603 = vunpack.c.h.b16 %v424
        %v604 = vunpack.c.l.b16 %v425
        %v605 = vunpack.c.h.b16 %v425
        %v606 = vunpack.c.l.b16 %v426
        %v607 = vunpack.c.h.b16 %v426
        %v608 = vunpack.c.l.b16 %v427
        %v609 = vunpack.c.h.b16 %v427
        %v610 = vunpack.c.l.b16 %v428
        %v611 = vunpack.c.h.b16 %v428
        %v612 = vunpack.c.l.b16 %v429
        %v613 = vunpack.c.h.b16 %v429
        %v614 = vunpack.c.l.b16 %v430
        %v615 = vunpack.c.h.b16 %v430
        %v616 = vunpack.c.l.b16 %v431
        %v617 = vunpack.c.h.b16 %v431
        %v618 = vunpack.c.l.b16 %v432
        %v619 = vunpack.c.h.b16 %v432
        %v620 = vunpack.c.l.b16 %v433
        %v621 = vunpack.c.h.b16 %v433
        %v622 = vpack.c.b16 %v560, %v558
        %v623 = vpack.c.b16 %v561, %v559
        %v624 = vpack.c.b16 %v564, %v562
        %v625 = vpack.c.b16 %v565, %v563
        %v626 = vpack.c.b16 %v568, %v566
        %v627 = vpack.c.b16 %v569, %v567
        %v628 = vpack.c.b16 %v572, %v570
        %v629 = vpack.c.b16 %v573, %v571
        %v630 = vpack.c.b16 %v576, %v574
        %v631 = vpack.c.b16 %v577, %v575
        %v632 = vpack.c.b16 %v580, %v578
        %v633 = vpack.c.b16 %v581, %v579
        %v634 = vpack.c.b16 %v584, %v582
        %v635 = vpack.c.b16 %v585, %v583
        %v636 = vpack.c.b16 %v588, %v586
        %v637 = vpack.c.b16 %v589, %v587
        %v638 = vpack.c.b16 %v592, %v590
        %v639 = vpack.c.b16 %v593, %v591
        %v640 = vpack.c.b16 %v596, %v594
        %v641 = vpack.c.b16 %v597, %v595
        %v642 = vpack.c.b16 %v600, %v598
        %v643 = vpack.c.b16 %v601, %v599
        %v644 = vpack.c.b16 %v604, %v602
        %v645 = vpack.c.b16 %v605, %v603
        %v646 = vpack.c.b16 %v608, %v606
        %v647 = vpack.c.b16 %v609, %v607
        %v648 = vpack.c.b16 %v612, %v610
        %v649 = vpack.c.b16 %v613, %v611
        %v650 = vpack.c.b16 %v616, %v614
        %v651 = vpack.c.b16 %v617, %v615
        %v652 = vpack.c.b16 %v620, %v618
        %v653 = vpack.c.b16 %v621, %v619
        %686 = vmatprep.subr.bf16.mxu0 %v637
        %687 = vmatpush1.bf16.msra.mxu0 %v636
        %688 = vmatprep.subr.bf16.mxu0 %v635
        %689 = vmatpush1.bf16.msra.mxu0 %v634
        %690 = vmatprep.subr.bf16.mxu0 %v633
        %691 = vmatpush1.bf16.msra.mxu0 %v632
        %692 = vmatprep.subr.bf16.mxu0 %v631
        %693 = vmatpush1.bf16.msra.mxu0 %v630
        %694 = vmatprep.subr.bf16.mxu0 %v629
        %695 = vmatpush1.bf16.msra.mxu0 %v628
        %696 = vmatprep.subr.bf16.mxu0 %v627
        %697 = vmatpush1.bf16.msra.mxu0 %v626
        %698 = vmatprep.subr.bf16.mxu0 %v625
        %699 = vmatpush1.bf16.msra.mxu0 %v624
        %700 = vmatprep.subr.bf16.mxu0 %v623
        %701 = vmatpush1.bf16.msra.mxu0 %v622
        %702 = vmatprep.subr.bf16.mxu0 %v653
        %703 = vmatpush2.bf16.msra.mxu0 %v652
        %704 = vmatprep.subr.bf16.mxu0 %v651
        %705 = vmatpush2.bf16.msra.mxu0 %v650
        %706 = vmatprep.subr.bf16.mxu0 %v649
        %707 = vmatpush2.bf16.msra.mxu0 %v648
        %708 = vmatprep.subr.bf16.mxu0 %v647
        %709 = vmatpush2.bf16.msra.mxu0 %v646
        %710 = vmatprep.subr.bf16.mxu0 %v645
        %711 = vmatpush2.bf16.msra.mxu0 %v644
        %712 = vmatprep.subr.bf16.mxu0 %v643
        %713 = vmatpush2.bf16.msra.mxu0 %v642
        %714 = vmatprep.subr.bf16.mxu0 %v641
        %715 = vmatpush2.bf16.msra.mxu0 %v640
        %716 = vmatprep.subr.bf16.mxu0 %v639
        %717 = vmatpush2.bf16.msra.mxu0 %v638
        %718 = vmatprep.mubr.bf16.mxu0 %v495
        %719 = vmatmul.mubr.bf16.gmra.mxu0 %v494
        %v720 = vpop.f32.mrf.mxu0
        %v721 = vadd.f32 %v439, %v720
        %v722 = vpop.f32.mrf.mxu0
        %v723 = vadd.f32 %v443, %v722
        %v724 = vpop.f32.mrf.mxu0
        %v725 = vadd.f32 %v439, %v724
        %v726 = vpop.f32.mrf.mxu0
        %v727 = vadd.f32 %v443, %v726
        %728 = vmatprep.mubr.bf16.mxu0 %v497
        %729 = vmatmul.mubr.bf16.gmra.mxu0 %v496
        %v730 = vpop.f32.mrf.mxu0
        %v731 = vadd.f32 %v439, %v730
        %v732 = vpop.f32.mrf.mxu0
        %v733 = vadd.f32 %v443, %v732
        %v734 = vpop.f32.mrf.mxu0
        %v735 = vadd.f32 %v439, %v734
        %v736 = vpop.f32.mrf.mxu0
        %v737 = vadd.f32 %v443, %v736
        %738 = vmatprep.mubr.bf16.mxu0 %v499
        %739 = vmatmul.mubr.bf16.gmra.mxu0 %v498
        %v740 = vpop.f32.mrf.mxu0
        %v741 = vadd.f32 %v439, %v740
        %v742 = vpop.f32.mrf.mxu0
        %v743 = vadd.f32 %v443, %v742
        %v744 = vpop.f32.mrf.mxu0
        %v745 = vadd.f32 %v439, %v744
        %v746 = vpop.f32.mrf.mxu0
        %v747 = vadd.f32 %v443, %v746
        %748 = vmatprep.mubr.bf16.mxu0 %v501
        %749 = vmatmul.mubr.bf16.gmra.mxu0 %v500
        %v750 = vpop.f32.mrf.mxu0
        %v751 = vadd.f32 %v439, %v750
        %v752 = vpop.f32.mrf.mxu0
        %v753 = vadd.f32 %v443, %v752
        %v754 = vpop.f32.mrf.mxu0
        %v755 = vadd.f32 %v439, %v754
        %v756 = vpop.f32.mrf.mxu0
        %v757 = vadd.f32 %v443, %v756
        %758 = vmatprep.mubr.bf16.mxu0 %v503
        %759 = vmatmul.mubr.bf16.gmra.mxu0 %v502
        %v760 = vpop.f32.mrf.mxu0
        %v761 = vadd.f32 %v439, %v760
        %v762 = vpop.f32.mrf.mxu0
        %v763 = vadd.f32 %v443, %v762
        %v764 = vpop.f32.mrf.mxu0
        %v765 = vadd.f32 %v439, %v764
        %v766 = vpop.f32.mrf.mxu0
        %v767 = vadd.f32 %v443, %v766
        %768 = vmatprep.mubr.bf16.mxu0 %v505
        %769 = vmatmul.mubr.bf16.gmra.mxu0 %v504
        %v770 = vpop.f32.mrf.mxu0
        %v771 = vadd.f32 %v439, %v770
        %v772 = vpop.f32.mrf.mxu0
        %v773 = vadd.f32 %v443, %v772
        %v774 = vpop.f32.mrf.mxu0
        %v775 = vadd.f32 %v439, %v774
        %v776 = vpop.f32.mrf.mxu0
        %v777 = vadd.f32 %v443, %v776
        %778 = vmatprep.mubr.bf16.mxu0 %v507
        %779 = vmatmul.mubr.bf16.gmra.mxu0 %v506
        %v780 = vpop.f32.mrf.mxu0
        %v781 = vadd.f32 %v439, %v780
        %v782 = vpop.f32.mrf.mxu0
        %v783 = vadd.f32 %v443, %v782
        %v784 = vpop.f32.mrf.mxu0
        %v785 = vadd.f32 %v439, %v784
        %v786 = vpop.f32.mrf.mxu0
        %v787 = vadd.f32 %v443, %v786
        %788 = vmatprep.mubr.bf16.mxu0 %v509
        %789 = vmatmul.mubr.bf16.gmra.mxu0 %v508
        %v790 = vpop.f32.mrf.mxu0
        %v791 = vadd.f32 %v439, %v790
        %v792 = vpop.f32.mrf.mxu0
        %v793 = vadd.f32 %v443, %v792
        %v794 = vpop.f32.mrf.mxu0
        %v795 = vadd.f32 %v439, %v794
        %v796 = vpop.f32.mrf.mxu0
        %v797 = vadd.f32 %v443, %v796
        %798 = vdwg.mxu0
        %v799 = vmax.f32 %v721, 0.0
        %v800 = vmax.f32 %v723, 0.0
        %v801 = vmax.f32 %v725, 0.0
        %v802 = vmax.f32 %v727, 0.0
        %v803 = vmax.f32 %v731, 0.0
        %v804 = vmax.f32 %v733, 0.0
        %v805 = vmax.f32 %v735, 0.0
        %v806 = vmax.f32 %v737, 0.0
        %v807 = vmax.f32 %v741, 0.0
        %v808 = vmax.f32 %v743, 0.0
        %v809 = vmax.f32 %v745, 0.0
        %v810 = vmax.f32 %v747, 0.0
        %v811 = vmax.f32 %v751, 0.0
        %v812 = vmax.f32 %v753, 0.0
        %v813 = vmax.f32 %v755, 0.0
        %v814 = vmax.f32 %v757, 0.0
        %v815 = vmax.f32 %v761, 0.0
        %v816 = vmax.f32 %v763, 0.0
        %v817 = vmax.f32 %v765, 0.0
        %v818 = vmax.f32 %v767, 0.0
        %v819 = vmax.f32 %v771, 0.0
        %v820 = vmax.f32 %v773, 0.0
        %v821 = vmax.f32 %v775, 0.0
        %v822 = vmax.f32 %v777, 0.0
        %v823 = vmax.f32 %v781, 0.0
        %v824 = vmax.f32 %v783, 0.0
        %v825 = vmax.f32 %v785, 0.0
        %v826 = vmax.f32 %v787, 0.0
        %v827 = vmax.f32 %v791, 0.0
        %v828 = vmax.f32 %v793, 0.0
        %v829 = vmax.f32 %v795, 0.0
        %v830 = vmax.f32 %v797, 0.0
        %v831 = vpack.c.bf16 %v801, %v799
        %v832 = vpack.c.bf16 %v802, %v800
        %v833 = vpack.c.bf16 %v805, %v803
        %v834 = vpack.c.bf16 %v806, %v804
        %v835 = vpack.c.bf16 %v809, %v807
        %v836 = vpack.c.bf16 %v810, %v808
        %v837 = vpack.c.bf16 %v813, %v811
        %v838 = vpack.c.bf16 %v814, %v812
        %v839 = vpack.c.bf16 %v817, %v815
        %v840 = vpack.c.bf16 %v818, %v816
        %v841 = vpack.c.bf16 %v821, %v819
        %v842 = vpack.c.bf16 %v822, %v820
        %v843 = vpack.c.bf16 %v825, %v823
        %v844 = vpack.c.bf16 %v826, %v824
        %v845 = vpack.c.bf16 %v829, %v827
        %v846 = vpack.c.bf16 %v830, %v828
        %v847 = vld [vmem:[#allocation7] sm:$0xff]
        %v848 = vld [vmem:[#allocation7 + $0x8] sm:$0xff]
        %v849 = vld [vmem:[#allocation7 + $0x10] sm:$0xff]
        %v850 = vld [vmem:[#allocation7 + $0x18] sm:$0xff]
        %v851 = vld [vmem:[#allocation7 + $0x20] sm:$0xff]
        %v852 = vld [vmem:[#allocation7 + $0x28] sm:$0xff]
        %v853 = vld [vmem:[#allocation7 + $0x30] sm:$0xff]
        %v854 = vld [vmem:[#allocation7 + $0x38] sm:$0xff]
        %v855 = vld [vmem:[#allocation7 + $0x40] sm:$0xff]
        %v856 = vld [vmem:[#allocation7 + $0x48] sm:$0xff]
        %v857 = vld [vmem:[#allocation7 + $0x50] sm:$0xff]
        %v858 = vld [vmem:[#allocation7 + $0x58] sm:$0xff]
        %v859 = vld [vmem:[#allocation7 + $0x60] sm:$0xff]
        %v860 = vld [vmem:[#allocation7 + $0x68] sm:$0xff]
        %v861 = vld [vmem:[#allocation7 + $0x70] sm:$0xff]
        %v862 = vld [vmem:[#allocation7 + $0x78] sm:$0xff]
        %v863 = vld [vmem:[#allocation7 + $0x80] sm:$0xff]
        %v864 = vld [vmem:[#allocation7 + $0x88] sm:$0xff]
        %v865 = vld [vmem:[#allocation7 + $0x90] sm:$0xff]
        %v866 = vld [vmem:[#allocation7 + $0x98] sm:$0xff]
        %v867 = vld [vmem:[#allocation7 + $0xa0] sm:$0xff]
        %v868 = vld [vmem:[#allocation7 + $0xa8] sm:$0xff]
        %v869 = vld [vmem:[#allocation7 + $0xb0] sm:$0xff]
        %v870 = vld [vmem:[#allocation7 + $0xb8] sm:$0xff]
        %v871 = vld [vmem:[#allocation7 + $0xc0] sm:$0xff]
        %v872 = vld [vmem:[#allocation7 + $0xc8] sm:$0xff]
        %v873 = vld [vmem:[#allocation7 + $0xd0] sm:$0xff]
        %v874 = vld [vmem:[#allocation7 + $0xd8] sm:$0xff]
        %v875 = vld [vmem:[#allocation7 + $0xe0] sm:$0xff]
        %v876 = vld [vmem:[#allocation7 + $0xe8] sm:$0xff]
        %v877 = vld [vmem:[#allocation7 + $0xf0] sm:$0xff]
        %v878 = vld [vmem:[#allocation7 + $0xf8] sm:$0xff]
        %v879 = vld [vmem:[#allocation7 + $0x100] sm:$0xff]
        %v880 = vld [vmem:[#allocation7 + $0x108] sm:$0xff]
        %v881 = vld [vmem:[#allocation7 + $0x110] sm:$0xff]
        %v882 = vld [vmem:[#allocation7 + $0x118] sm:$0xff]
        %v883 = vld [vmem:[#allocation7 + $0x120] sm:$0xff]
        %v884 = vld [vmem:[#allocation7 + $0x128] sm:$0xff]
        %v885 = vld [vmem:[#allocation7 + $0x130] sm:$0xff]
        %v886 = vld [vmem:[#allocation7 + $0x138] sm:$0xff]
        %v887 = vld [vmem:[#allocation7 + $0x140] sm:$0xff]
        %v888 = vld [vmem:[#allocation7 + $0x148] sm:$0xff]
        %v889 = vld [vmem:[#allocation7 + $0x150] sm:$0xff]
        %v890 = vld [vmem:[#allocation7 + $0x158] sm:$0xff]
        %v891 = vld [vmem:[#allocation7 + $0x160] sm:$0xff]
        %v892 = vld [vmem:[#allocation7 + $0x168] sm:$0xff]
        %v893 = vld [vmem:[#allocation7 + $0x170] sm:$0xff]
        %v894 = vld [vmem:[#allocation7 + $0x178] sm:$0xff]
        %v895 = vld [vmem:[#allocation7 + $0x180] sm:$0xff]
        %v896 = vld [vmem:[#allocation7 + $0x188] sm:$0xff]
        %v897 = vld [vmem:[#allocation7 + $0x190] sm:$0xff]
        %v898 = vld [vmem:[#allocation7 + $0x198] sm:$0xff]
        %v899 = vld [vmem:[#allocation7 + $0x1a0] sm:$0xff]
        %v900 = vld [vmem:[#allocation7 + $0x1a8] sm:$0xff]
        %v901 = vld [vmem:[#allocation7 + $0x1b0] sm:$0xff]
        %v902 = vld [vmem:[#allocation7 + $0x1b8] sm:$0xff]
        %v903 = vld [vmem:[#allocation7 + $0x1c0] sm:$0xff]
        %v904 = vld [vmem:[#allocation7 + $0x1c8] sm:$0xff]
        %v905 = vld [vmem:[#allocation7 + $0x1d0] sm:$0xff]
        %v906 = vld [vmem:[#allocation7 + $0x1d8] sm:$0xff]
        %v907 = vld [vmem:[#allocation7 + $0x1e0] sm:$0xff]
        %v908 = vld [vmem:[#allocation7 + $0x1e8] sm:$0xff]
        %v909 = vld [vmem:[#allocation7 + $0x1f0] sm:$0xff]
        %v910 = vld [vmem:[#allocation7 + $0x1f8] sm:$0xff]
        %v911 = vld [vmem:[#allocation13 + $0x2] sm:$0xf]
        %v913 = vlaneseq
        %v914 = vshrl.u32 %v913, 7
        %v915 = vsub.s32 0, %v914
        %v916 = vrot.slane %v911, %v915
        %v917 = vlaneseq
        %v918 = vshrl.u32 %v917, 7
        %v919 = vsub.s32 1, %v918
        %v920 = vrot.slane %v911, %v919
        %v921 = vlaneseq
        %v922 = vshrl.u32 %v921, 7
        %v923 = vsub.s32 2, %v922
        %v924 = vrot.slane %v911, %v923
        %v925 = vlaneseq
        %v926 = vshrl.u32 %v925, 7
        %v927 = vsub.s32 3, %v926
        %v928 = vrot.slane %v911, %v927
        %v997 = vunpack.c.l.b16 %v847
        %v998 = vunpack.c.h.b16 %v847
        %v999 = vunpack.c.l.b16 %v848
        %v1000 = vunpack.c.h.b16 %v848
        %v1001 = vunpack.c.l.b16 %v849
        %v1002 = vunpack.c.h.b16 %v849
        %v1003 = vunpack.c.l.b16 %v850
        %v1004 = vunpack.c.h.b16 %v850
        %v1005 = vunpack.c.l.b16 %v851
        %v1006 = vunpack.c.h.b16 %v851
        %v1007 = vunpack.c.l.b16 %v852
        %v1008 = vunpack.c.h.b16 %v852
        %v1009 = vunpack.c.l.b16 %v853
        %v1010 = vunpack.c.h.b16 %v853
        %v1011 = vunpack.c.l.b16 %v854
        %v1012 = vunpack.c.h.b16 %v854
        %v1013 = vunpack.c.l.b16 %v855
        %v1014 = vunpack.c.h.b16 %v855
        %v1015 = vunpack.c.l.b16 %v856
        %v1016 = vunpack.c.h.b16 %v856
        %v1017 = vunpack.c.l.b16 %v857
        %v1018 = vunpack.c.h.b16 %v857
        %v1019 = vunpack.c.l.b16 %v858
        %v1020 = vunpack.c.h.b16 %v858
        %v1021 = vunpack.c.l.b16 %v859
        %v1022 = vunpack.c.h.b16 %v859
        %v1023 = vunpack.c.l.b16 %v860
        %v1024 = vunpack.c.h.b16 %v860
        %v1025 = vunpack.c.l.b16 %v861
        %v1026 = vunpack.c.h.b16 %v861
        %v1027 = vunpack.c.l.b16 %v862
        %v1028 = vunpack.c.h.b16 %v862
        %v1029 = vunpack.c.l.b16 %v863
        %v1030 = vunpack.c.h.b16 %v863
        %v1031 = vunpack.c.l.b16 %v864
        %v1032 = vunpack.c.h.b16 %v864
        %v1033 = vunpack.c.l.b16 %v865
        %v1034 = vunpack.c.h.b16 %v865
        %v1035 = vunpack.c.l.b16 %v866
        %v1036 = vunpack.c.h.b16 %v866
        %v1037 = vunpack.c.l.b16 %v867
        %v1038 = vunpack.c.h.b16 %v867
        %v1039 = vunpack.c.l.b16 %v868
        %v1040 = vunpack.c.h.b16 %v868
        %v1041 = vunpack.c.l.b16 %v869
        %v1042 = vunpack.c.h.b16 %v869
        %v1043 = vunpack.c.l.b16 %v870
        %v1044 = vunpack.c.h.b16 %v870
        %v1045 = vunpack.c.l.b16 %v871
        %v1046 = vunpack.c.h.b16 %v871
        %v1047 = vunpack.c.l.b16 %v872
        %v1048 = vunpack.c.h.b16 %v872
        %v1049 = vunpack.c.l.b16 %v873
        %v1050 = vunpack.c.h.b16 %v873
        %v1051 = vunpack.c.l.b16 %v874
        %v1052 = vunpack.c.h.b16 %v874
        %v1053 = vunpack.c.l.b16 %v875
        %v1054 = vunpack.c.h.b16 %v875
        %v1055 = vunpack.c.l.b16 %v876
        %v1056 = vunpack.c.h.b16 %v876
        %v1057 = vunpack.c.l.b16 %v877
        %v1058 = vunpack.c.h.b16 %v877
        %v1059 = vunpack.c.l.b16 %v878
        %v1060 = vunpack.c.h.b16 %v878
        %v1061 = vunpack.c.l.b16 %v879
        %v1062 = vunpack.c.h.b16 %v879
        %v1063 = vunpack.c.l.b16 %v880
        %v1064 = vunpack.c.h.b16 %v880
        %v1065 = vunpack.c.l.b16 %v881
        %v1066 = vunpack.c.h.b16 %v881
        %v1067 = vunpack.c.l.b16 %v882
        %v1068 = vunpack.c.h.b16 %v882
        %v1069 = vunpack.c.l.b16 %v883
        %v1070 = vunpack.c.h.b16 %v883
        %v1071 = vunpack.c.l.b16 %v884
        %v1072 = vunpack.c.h.b16 %v884
        %v1073 = vunpack.c.l.b16 %v885
        %v1074 = vunpack.c.h.b16 %v885
        %v1075 = vunpack.c.l.b16 %v886
        %v1076 = vunpack.c.h.b16 %v886
        %v1077 = vunpack.c.l.b16 %v887
        %v1078 = vunpack.c.h.b16 %v887
        %v1079 = vunpack.c.l.b16 %v888
        %v1080 = vunpack.c.h.b16 %v888
        %v1081 = vunpack.c.l.b16 %v889
        %v1082 = vunpack.c.h.b16 %v889
        %v1083 = vunpack.c.l.b16 %v890
        %v1084 = vunpack.c.h.b16 %v890
        %v1085 = vunpack.c.l.b16 %v891
        %v1086 = vunpack.c.h.b16 %v891
        %v1087 = vunpack.c.l.b16 %v892
        %v1088 = vunpack.c.h.b16 %v892
        %v1089 = vunpack.c.l.b16 %v893
        %v1090 = vunpack.c.h.b16 %v893
        %v1091 = vunpack.c.l.b16 %v894
        %v1092 = vunpack.c.h.b16 %v894
        %v1093 = vunpack.c.l.b16 %v895
        %v1094 = vunpack.c.h.b16 %v895
        %v1095 = vunpack.c.l.b16 %v896
        %v1096 = vunpack.c.h.b16 %v896
        %v1097 = vunpack.c.l.b16 %v897
        %v1098 = vunpack.c.h.b16 %v897
        %v1099 = vunpack.c.l.b16 %v898
        %v1100 = vunpack.c.h.b16 %v898
        %v1101 = vunpack.c.l.b16 %v899
        %v1102 = vunpack.c.h.b16 %v899
        %v1103 = vunpack.c.l.b16 %v900
        %v1104 = vunpack.c.h.b16 %v900
        %v1105 = vunpack.c.l.b16 %v901
        %v1106 = vunpack.c.h.b16 %v901
        %v1107 = vunpack.c.l.b16 %v902
        %v1108 = vunpack.c.h.b16 %v902
        %v1109 = vunpack.c.l.b16 %v903
        %v1110 = vunpack.c.h.b16 %v903
        %v1111 = vunpack.c.l.b16 %v904
        %v1112 = vunpack.c.h.b16 %v904
        %v1113 = vunpack.c.l.b16 %v905
        %v1114 = vunpack.c.h.b16 %v905
        %v1115 = vunpack.c.l.b16 %v906
        %v1116 = vunpack.c.h.b16 %v906
        %v1117 = vunpack.c.l.b16 %v907
        %v1118 = vunpack.c.h.b16 %v907
        %v1119 = vunpack.c.l.b16 %v908
        %v1120 = vunpack.c.h.b16 %v908
        %v1121 = vunpack.c.l.b16 %v909
        %v1122 = vunpack.c.h.b16 %v909
        %v1123 = vunpack.c.l.b16 %v910
        %v1124 = vunpack.c.h.b16 %v910
        %v1125 = vpack.c.b16 %v1001, %v997
        %v1126 = vpack.c.b16 %v1002, %v998
        %v1127 = vpack.c.b16 %v1003, %v999
        %v1128 = vpack.c.b16 %v1004, %v1000
        %v1129 = vpack.c.b16 %v1009, %v1005
        %v1130 = vpack.c.b16 %v1010, %v1006
        %v1131 = vpack.c.b16 %v1011, %v1007
        %v1132 = vpack.c.b16 %v1012, %v1008
        %v1133 = vpack.c.b16 %v1017, %v1013
        %v1134 = vpack.c.b16 %v1018, %v1014
        %v1135 = vpack.c.b16 %v1019, %v1015
        %v1136 = vpack.c.b16 %v1020, %v1016
        %v1137 = vpack.c.b16 %v1025, %v1021
        %v1138 = vpack.c.b16 %v1026, %v1022
        %v1139 = vpack.c.b16 %v1027, %v1023
        %v1140 = vpack.c.b16 %v1028, %v1024
        %v1141 = vpack.c.b16 %v1033, %v1029
        %v1142 = vpack.c.b16 %v1034, %v1030
        %v1143 = vpack.c.b16 %v1035, %v1031
        %v1144 = vpack.c.b16 %v1036, %v1032
        %v1145 = vpack.c.b16 %v1041, %v1037
        %v1146 = vpack.c.b16 %v1042, %v1038
        %v1147 = vpack.c.b16 %v1043, %v1039
        %v1148 = vpack.c.b16 %v1044, %v1040
        %v1149 = vpack.c.b16 %v1049, %v1045
        %v1150 = vpack.c.b16 %v1050, %v1046
        %v1151 = vpack.c.b16 %v1051, %v1047
        %v1152 = vpack.c.b16 %v1052, %v1048
        %v1153 = vpack.c.b16 %v1057, %v1053
        %v1154 = vpack.c.b16 %v1058, %v1054
        %v1155 = vpack.c.b16 %v1059, %v1055
        %v1156 = vpack.c.b16 %v1060, %v1056
        %v1157 = vpack.c.b16 %v1065, %v1061
        %v1158 = vpack.c.b16 %v1066, %v1062
        %v1159 = vpack.c.b16 %v1067, %v1063
        %v1160 = vpack.c.b16 %v1068, %v1064
        %v1161 = vpack.c.b16 %v1073, %v1069
        %v1162 = vpack.c.b16 %v1074, %v1070
        %v1163 = vpack.c.b16 %v1075, %v1071
        %v1164 = vpack.c.b16 %v1076, %v1072
        %v1165 = vpack.c.b16 %v1081, %v1077
        %v1166 = vpack.c.b16 %v1082, %v1078
        %v1167 = vpack.c.b16 %v1083, %v1079
        %v1168 = vpack.c.b16 %v1084, %v1080
        %v1169 = vpack.c.b16 %v1089, %v1085
        %v1170 = vpack.c.b16 %v1090, %v1086
        %v1171 = vpack.c.b16 %v1091, %v1087
        %v1172 = vpack.c.b16 %v1092, %v1088
        %v1173 = vpack.c.b16 %v1097, %v1093
        %v1174 = vpack.c.b16 %v1098, %v1094
        %v1175 = vpack.c.b16 %v1099, %v1095
        %v1176 = vpack.c.b16 %v1100, %v1096
        %v1177 = vpack.c.b16 %v1105, %v1101
        %v1178 = vpack.c.b16 %v1106, %v1102
        %v1179 = vpack.c.b16 %v1107, %v1103
        %v1180 = vpack.c.b16 %v1108, %v1104
        %v1181 = vpack.c.b16 %v1113, %v1109
        %v1182 = vpack.c.b16 %v1114, %v1110
        %v1183 = vpack.c.b16 %v1115, %v1111
        %v1184 = vpack.c.b16 %v1116, %v1112
        %v1185 = vpack.c.b16 %v1121, %v1117
        %v1186 = vpack.c.b16 %v1122, %v1118
        %v1187 = vpack.c.b16 %v1123, %v1119
        %v1188 = vpack.c.b16 %v1124, %v1120
        %1253 = vmatprep.subr.bf16.mxu0 %v1154
        %1254 = vmatpush1.bf16.msra.mxu0 %v1153
        %1255 = vmatprep.subr.bf16.mxu0 %v1150
        %1256 = vmatpush1.bf16.msra.mxu0 %v1149
        %1257 = vmatprep.subr.bf16.mxu0 %v1146
        %1258 = vmatpush1.bf16.msra.mxu0 %v1145
        %1259 = vmatprep.subr.bf16.mxu0 %v1142
        %1260 = vmatpush1.bf16.msra.mxu0 %v1141
        %1261 = vmatprep.subr.bf16.mxu0 %v1138
        %1262 = vmatpush1.bf16.msra.mxu0 %v1137
        %1263 = vmatprep.subr.bf16.mxu0 %v1134
        %1264 = vmatpush1.bf16.msra.mxu0 %v1133
        %1265 = vmatprep.subr.bf16.mxu0 %v1130
        %1266 = vmatpush1.bf16.msra.mxu0 %v1129
        %1267 = vmatprep.subr.bf16.mxu0 %v1126
        %1268 = vmatpush1.bf16.msra.mxu0 %v1125
        %1269 = vmatprep.subr.bf16.mxu0 %v1186
        %1270 = vmatpush2.bf16.msra.mxu0 %v1185
        %1271 = vmatprep.subr.bf16.mxu0 %v1182
        %1272 = vmatpush2.bf16.msra.mxu0 %v1181
        %1273 = vmatprep.subr.bf16.mxu0 %v1178
        %1274 = vmatpush2.bf16.msra.mxu0 %v1177
        %1275 = vmatprep.subr.bf16.mxu0 %v1174
        %1276 = vmatpush2.bf16.msra.mxu0 %v1173
        %1277 = vmatprep.subr.bf16.mxu0 %v1170
        %1278 = vmatpush2.bf16.msra.mxu0 %v1169
        %1279 = vmatprep.subr.bf16.mxu0 %v1166
        %1280 = vmatpush2.bf16.msra.mxu0 %v1165
        %1281 = vmatprep.subr.bf16.mxu0 %v1162
        %1282 = vmatpush2.bf16.msra.mxu0 %v1161
        %1283 = vmatprep.subr.bf16.mxu0 %v1158
        %1284 = vmatpush2.bf16.msra.mxu0 %v1157
        %1285 = vmatprep.mubr.bf16.mxu0 %v832
        %1286 = vmatmul.mubr.bf16.gmra.mxu0 %v831
        %v1287 = vpop.f32.mrf.mxu0
        %v1288 = vadd.f32 %v916, %v1287
        %v1289 = vpop.f32.mrf.mxu0
        %v1290 = vadd.f32 %v920, %v1289
        %v1291 = vpop.f32.mrf.mxu0
        %v1292 = vadd.f32 %v916, %v1291
        %v1293 = vpop.f32.mrf.mxu0
        %v1294 = vadd.f32 %v920, %v1293
        %1295 = vmatprep.mubr.bf16.mxu0 %v834
        %1296 = vmatmul.mubr.bf16.gmra.mxu0 %v833
        %v1297 = vpop.f32.mrf.mxu0
        %v1298 = vadd.f32 %v916, %v1297
        %v1299 = vpop.f32.mrf.mxu0
        %v1300 = vadd.f32 %v920, %v1299
        %v1301 = vpop.f32.mrf.mxu0
        %v1302 = vadd.f32 %v916, %v1301
        %v1303 = vpop.f32.mrf.mxu0
        %v1304 = vadd.f32 %v920, %v1303
        %1305 = vmatprep.mubr.bf16.mxu0 %v836
        %1306 = vmatmul.mubr.bf16.gmra.mxu0 %v835
        %v1307 = vpop.f32.mrf.mxu0
        %v1308 = vadd.f32 %v916, %v1307
        %v1309 = vpop.f32.mrf.mxu0
        %v1310 = vadd.f32 %v920, %v1309
        %v1311 = vpop.f32.mrf.mxu0
        %v1312 = vadd.f32 %v916, %v1311
        %v1313 = vpop.f32.mrf.mxu0
        %v1314 = vadd.f32 %v920, %v1313
        %1315 = vmatprep.mubr.bf16.mxu0 %v838
        %1316 = vmatmul.mubr.bf16.gmra.mxu0 %v837
        %v1317 = vpop.f32.mrf.mxu0
        %v1318 = vadd.f32 %v916, %v1317
        %v1319 = vpop.f32.mrf.mxu0
        %v1320 = vadd.f32 %v920, %v1319
        %v1321 = vpop.f32.mrf.mxu0
        %v1322 = vadd.f32 %v916, %v1321
        %v1323 = vpop.f32.mrf.mxu0
        %v1324 = vadd.f32 %v920, %v1323
        %1325 = vmatprep.mubr.bf16.mxu0 %v840
        %1326 = vmatmul.mubr.bf16.gmra.mxu0 %v839
        %v1327 = vpop.f32.mrf.mxu0
        %v1328 = vadd.f32 %v916, %v1327
        %v1329 = vpop.f32.mrf.mxu0
        %v1330 = vadd.f32 %v920, %v1329
        %v1331 = vpop.f32.mrf.mxu0
        %v1332 = vadd.f32 %v916, %v1331
        %v1333 = vpop.f32.mrf.mxu0
        %v1334 = vadd.f32 %v920, %v1333
        %1335 = vmatprep.mubr.bf16.mxu0 %v842
        %1336 = vmatmul.mubr.bf16.gmra.mxu0 %v841
        %v1337 = vpop.f32.mrf.mxu0
        %v1338 = vadd.f32 %v916, %v1337
        %v1339 = vpop.f32.mrf.mxu0
        %v1340 = vadd.f32 %v920, %v1339
        %v1341 = vpop.f32.mrf.mxu0
        %v1342 = vadd.f32 %v916, %v1341
        %v1343 = vpop.f32.mrf.mxu0
        %v1344 = vadd.f32 %v920, %v1343
        %1345 = vmatprep.mubr.bf16.mxu0 %v844
        %1346 = vmatmul.mubr.bf16.gmra.mxu0 %v843
        %v1347 = vpop.f32.mrf.mxu0
        %v1348 = vadd.f32 %v916, %v1347
        %v1349 = vpop.f32.mrf.mxu0
        %v1350 = vadd.f32 %v920, %v1349
        %v1351 = vpop.f32.mrf.mxu0
        %v1352 = vadd.f32 %v916, %v1351
        %v1353 = vpop.f32.mrf.mxu0
        %v1354 = vadd.f32 %v920, %v1353
        %1355 = vmatprep.mubr.bf16.mxu0 %v846
        %1356 = vmatmul.mubr.bf16.gmra.mxu0 %v845
        %v1357 = vpop.f32.mrf.mxu0
        %v1358 = vadd.f32 %v916, %v1357
        %v1359 = vpop.f32.mrf.mxu0
        %v1360 = vadd.f32 %v920, %v1359
        %v1361 = vpop.f32.mrf.mxu0
        %v1362 = vadd.f32 %v916, %v1361
        %v1363 = vpop.f32.mrf.mxu0
        %v1364 = vadd.f32 %v920, %v1363
        %1365 = vdwg.mxu0
        %1366 = vmatprep.subr.bf16.mxu0 %v1156
        %1367 = vmatpush1.bf16.msra.mxu0 %v1155
        %1368 = vmatprep.subr.bf16.mxu0 %v1152
        %1369 = vmatpush1.bf16.msra.mxu0 %v1151
        %1370 = vmatprep.subr.bf16.mxu0 %v1148
        %1371 = vmatpush1.bf16.msra.mxu0 %v1147
        %1372 = vmatprep.subr.bf16.mxu0 %v1144
        %1373 = vmatpush1.bf16.msra.mxu0 %v1143
        %1374 = vmatprep.subr.bf16.mxu0 %v1140
        %1375 = vmatpush1.bf16.msra.mxu0 %v1139
        %1376 = vmatprep.subr.bf16.mxu0 %v1136
        %1377 = vmatpush1.bf16.msra.mxu0 %v1135
        %1378 = vmatprep.subr.bf16.mxu0 %v1132
        %1379 = vmatpush1.bf16.msra.mxu0 %v1131
        %1380 = vmatprep.subr.bf16.mxu0 %v1128
        %1381 = vmatpush1.bf16.msra.mxu0 %v1127
        %1382 = vmatprep.subr.bf16.mxu0 %v1188
        %1383 = vmatpush2.bf16.msra.mxu0 %v1187
        %1384 = vmatprep.subr.bf16.mxu0 %v1184
        %1385 = vmatpush2.bf16.msra.mxu0 %v1183
        %1386 = vmatprep.subr.bf16.mxu0 %v1180
        %1387 = vmatpush2.bf16.msra.mxu0 %v1179
        %1388 = vmatprep.subr.bf16.mxu0 %v1176
        %1389 = vmatpush2.bf16.msra.mxu0 %v1175
        %1390 = vmatprep.subr.bf16.mxu0 %v1172
        %1391 = vmatpush2.bf16.msra.mxu0 %v1171
        %1392 = vmatprep.subr.bf16.mxu0 %v1168
        %1393 = vmatpush2.bf16.msra.mxu0 %v1167
        %1394 = vmatprep.subr.bf16.mxu0 %v1164
        %1395 = vmatpush2.bf16.msra.mxu0 %v1163
        %1396 = vmatprep.subr.bf16.mxu0 %v1160
        %1397 = vmatpush2.bf16.msra.mxu0 %v1159
        %1398 = vmatprep.mubr.bf16.mxu0 %v832
        %1399 = vmatmul.mubr.bf16.gmra.mxu0 %v831
        %v1400 = vpop.f32.mrf.mxu0
        %v1401 = vadd.f32 %v924, %v1400
        %v1402 = vpop.f32.mrf.mxu0
        %v1403 = vadd.f32 %v928, %v1402
        %v1404 = vpop.f32.mrf.mxu0
        %v1405 = vadd.f32 %v924, %v1404
        %v1406 = vpop.f32.mrf.mxu0
        %v1407 = vadd.f32 %v928, %v1406
        %1408 = vmatprep.mubr.bf16.mxu0 %v834
        %1409 = vmatmul.mubr.bf16.gmra.mxu0 %v833
        %v1410 = vpop.f32.mrf.mxu0
        %v1411 = vadd.f32 %v924, %v1410
        %v1412 = vpop.f32.mrf.mxu0
        %v1413 = vadd.f32 %v928, %v1412
        %v1414 = vpop.f32.mrf.mxu0
        %v1415 = vadd.f32 %v924, %v1414
        %v1416 = vpop.f32.mrf.mxu0
        %v1417 = vadd.f32 %v928, %v1416
        %1418 = vmatprep.mubr.bf16.mxu0 %v836
        %1419 = vmatmul.mubr.bf16.gmra.mxu0 %v835
        %v1420 = vpop.f32.mrf.mxu0
        %v1421 = vadd.f32 %v924, %v1420
        %v1422 = vpop.f32.mrf.mxu0
        %v1423 = vadd.f32 %v928, %v1422
        %v1424 = vpop.f32.mrf.mxu0
        %v1425 = vadd.f32 %v924, %v1424
        %v1426 = vpop.f32.mrf.mxu0
        %v1427 = vadd.f32 %v928, %v1426
        %1428 = vmatprep.mubr.bf16.mxu0 %v838
        %1429 = vmatmul.mubr.bf16.gmra.mxu0 %v837
        %v1430 = vpop.f32.mrf.mxu0
        %v1431 = vadd.f32 %v924, %v1430
        %v1432 = vpop.f32.mrf.mxu0
        %v1433 = vadd.f32 %v928, %v1432
        %v1434 = vpop.f32.mrf.mxu0
        %v1435 = vadd.f32 %v924, %v1434
        %v1436 = vpop.f32.mrf.mxu0
        %v1437 = vadd.f32 %v928, %v1436
        %1438 = vmatprep.mubr.bf16.mxu0 %v840
        %1439 = vmatmul.mubr.bf16.gmra.mxu0 %v839
        %v1440 = vpop.f32.mrf.mxu0
        %v1441 = vadd.f32 %v924, %v1440
        %v1442 = vpop.f32.mrf.mxu0
        %v1443 = vadd.f32 %v928, %v1442
        %v1444 = vpop.f32.mrf.mxu0
        %v1445 = vadd.f32 %v924, %v1444
        %v1446 = vpop.f32.mrf.mxu0
        %v1447 = vadd.f32 %v928, %v1446
        %1448 = vmatprep.mubr.bf16.mxu0 %v842
        %1449 = vmatmul.mubr.bf16.gmra.mxu0 %v841
        %v1450 = vpop.f32.mrf.mxu0
        %v1451 = vadd.f32 %v924, %v1450
        %v1452 = vpop.f32.mrf.mxu0
        %v1453 = vadd.f32 %v928, %v1452
        %v1454 = vpop.f32.mrf.mxu0
        %v1455 = vadd.f32 %v924, %v1454
        %v1456 = vpop.f32.mrf.mxu0
        %v1457 = vadd.f32 %v928, %v1456
        %1458 = vmatprep.mubr.bf16.mxu0 %v844
        %1459 = vmatmul.mubr.bf16.gmra.mxu0 %v843
        %v1460 = vpop.f32.mrf.mxu0
        %v1461 = vadd.f32 %v924, %v1460
        %v1462 = vpop.f32.mrf.mxu0
        %v1463 = vadd.f32 %v928, %v1462
        %v1464 = vpop.f32.mrf.mxu0
        %v1465 = vadd.f32 %v924, %v1464
        %v1466 = vpop.f32.mrf.mxu0
        %v1467 = vadd.f32 %v928, %v1466
        %1468 = vmatprep.mubr.bf16.mxu0 %v846
        %1469 = vmatmul.mubr.bf16.gmra.mxu0 %v845
        %v1470 = vpop.f32.mrf.mxu0
        %v1471 = vadd.f32 %v924, %v1470
        %v1472 = vpop.f32.mrf.mxu0
        %v1473 = vadd.f32 %v928, %v1472
        %v1474 = vpop.f32.mrf.mxu0
        %v1475 = vadd.f32 %v924, %v1474
        %v1476 = vpop.f32.mrf.mxu0
        %v1477 = vadd.f32 %v928, %v1476
        %1478 = vdwg.mxu0
        %v1479 = vmax.f32 %v1288, 0.0
        %v1480 = vmax.f32 %v1290, 0.0
        %v1481 = vmax.f32 %v1401, 0.0
        %v1482 = vmax.f32 %v1403, 0.0
        %v1483 = vmax.f32 %v1292, 0.0
        %v1484 = vmax.f32 %v1294, 0.0
        %v1485 = vmax.f32 %v1405, 0.0
        %v1486 = vmax.f32 %v1407, 0.0
        %v1487 = vmax.f32 %v1298, 0.0
        %v1488 = vmax.f32 %v1300, 0.0
        %v1489 = vmax.f32 %v1411, 0.0
        %v1490 = vmax.f32 %v1413, 0.0
        %v1491 = vmax.f32 %v1302, 0.0
        %v1492 = vmax.f32 %v1304, 0.0
        %v1493 = vmax.f32 %v1415, 0.0
        %v1494 = vmax.f32 %v1417, 0.0
        %v1495 = vmax.f32 %v1308, 0.0
        %v1496 = vmax.f32 %v1310, 0.0
        %v1497 = vmax.f32 %v1421, 0.0
        %v1498 = vmax.f32 %v1423, 0.0
        %v1499 = vmax.f32 %v1312, 0.0
        %v1500 = vmax.f32 %v1314, 0.0
        %v1501 = vmax.f32 %v1425, 0.0
        %v1502 = vmax.f32 %v1427, 0.0
        %v1503 = vmax.f32 %v1318, 0.0
        %v1504 = vmax.f32 %v1320, 0.0
        %v1505 = vmax.f32 %v1431, 0.0
        %v1506 = vmax.f32 %v1433, 0.0
        %v1507 = vmax.f32 %v1322, 0.0
        %v1508 = vmax.f32 %v1324, 0.0
        %v1509 = vmax.f32 %v1435, 0.0
        %v1510 = vmax.f32 %v1437, 0.0
        %v1511 = vmax.f32 %v1328, 0.0
        %v1512 = vmax.f32 %v1330, 0.0
        %v1513 = vmax.f32 %v1441, 0.0
        %v1514 = vmax.f32 %v1443, 0.0
        %v1515 = vmax.f32 %v1332, 0.0
        %v1516 = vmax.f32 %v1334, 0.0
        %v1517 = vmax.f32 %v1445, 0.0
        %v1518 = vmax.f32 %v1447, 0.0
        %v1519 = vmax.f32 %v1338, 0.0
        %v1520 = vmax.f32 %v1340, 0.0
        %v1521 = vmax.f32 %v1451, 0.0
        %v1522 = vmax.f32 %v1453, 0.0
        %v1523 = vmax.f32 %v1342, 0.0
        %v1524 = vmax.f32 %v1344, 0.0
        %v1525 = vmax.f32 %v1455, 0.0
        %v1526 = vmax.f32 %v1457, 0.0
        %v1527 = vmax.f32 %v1348, 0.0
        %v1528 = vmax.f32 %v1350, 0.0
        %v1529 = vmax.f32 %v1461, 0.0
        %v1530 = vmax.f32 %v1463, 0.0
        %v1531 = vmax.f32 %v1352, 0.0
        %v1532 = vmax.f32 %v1354, 0.0
        %v1533 = vmax.f32 %v1465, 0.0
        %v1534 = vmax.f32 %v1467, 0.0
        %v1535 = vmax.f32 %v1358, 0.0
        %v1536 = vmax.f32 %v1360, 0.0
        %v1537 = vmax.f32 %v1471, 0.0
        %v1538 = vmax.f32 %v1473, 0.0
        %v1539 = vmax.f32 %v1362, 0.0
        %v1540 = vmax.f32 %v1364, 0.0
        %v1541 = vmax.f32 %v1475, 0.0
        %v1542 = vmax.f32 %v1477, 0.0
        %v1543 = vpack.c.bf16 %v1483, %v1479
        %v1544 = vpack.c.bf16 %v1484, %v1480
        %v1545 = vpack.c.bf16 %v1485, %v1481
        %v1546 = vpack.c.bf16 %v1486, %v1482
        %v1547 = vpack.c.bf16 %v1491, %v1487
        %v1548 = vpack.c.bf16 %v1492, %v1488
        %v1549 = vpack.c.bf16 %v1493, %v1489
        %v1550 = vpack.c.bf16 %v1494, %v1490
        %v1551 = vpack.c.bf16 %v1499, %v1495
        %v1552 = vpack.c.bf16 %v1500, %v1496
        %v1553 = vpack.c.bf16 %v1501, %v1497
        %v1554 = vpack.c.bf16 %v1502, %v1498
        %v1555 = vpack.c.bf16 %v1507, %v1503
        %v1556 = vpack.c.bf16 %v1508, %v1504
        %v1557 = vpack.c.bf16 %v1509, %v1505
        %v1558 = vpack.c.bf16 %v1510, %v1506
        %v1559 = vpack.c.bf16 %v1515, %v1511
        %v1560 = vpack.c.bf16 %v1516, %v1512
        %v1561 = vpack.c.bf16 %v1517, %v1513
        %v1562 = vpack.c.bf16 %v1518, %v1514
        %v1563 = vpack.c.bf16 %v1523, %v1519
        %v1564 = vpack.c.bf16 %v1524, %v1520
        %v1565 = vpack.c.bf16 %v1525, %v1521
        %v1566 = vpack.c.bf16 %v1526, %v1522
        %v1567 = vpack.c.bf16 %v1531, %v1527
        %v1568 = vpack.c.bf16 %v1532, %v1528
        %v1569 = vpack.c.bf16 %v1533, %v1529
        %v1570 = vpack.c.bf16 %v1534, %v1530
        %v1571 = vpack.c.bf16 %v1539, %v1535
        %v1572 = vpack.c.bf16 %v1540, %v1536
        %v1573 = vpack.c.bf16 %v1541, %v1537
        %v1574 = vpack.c.bf16 %v1542, %v1538
        %v1575 = vld [vmem:[#allocation8] sm:$0xff]
        %v1576 = vld [vmem:[#allocation8 + $0x8] sm:$0xff]
        %v1577 = vld [vmem:[#allocation8 + $0x10] sm:$0xff]
        %v1578 = vld [vmem:[#allocation8 + $0x18] sm:$0xff]
        %v1579 = vld [vmem:[#allocation8 + $0x20] sm:$0xff]
        %v1580 = vld [vmem:[#allocation8 + $0x28] sm:$0xff]
        %v1581 = vld [vmem:[#allocation8 + $0x30] sm:$0xff]
        %v1582 = vld [vmem:[#allocation8 + $0x38] sm:$0xff]
        %v1583 = vld [vmem:[#allocation8 + $0x40] sm:$0xff]
        %v1584 = vld [vmem:[#allocation8 + $0x48] sm:$0xff]
        %v1585 = vld [vmem:[#allocation8 + $0x50] sm:$0xff]
        %v1586 = vld [vmem:[#allocation8 + $0x58] sm:$0xff]
        %v1587 = vld [vmem:[#allocation8 + $0x60] sm:$0xff]
        %v1588 = vld [vmem:[#allocation8 + $0x68] sm:$0xff]
        %v1589 = vld [vmem:[#allocation8 + $0x70] sm:$0xff]
        %v1590 = vld [vmem:[#allocation8 + $0x78] sm:$0xff]
        %v1591 = vld [vmem:[#allocation8 + $0x80] sm:$0xff]
        %v1592 = vld [vmem:[#allocation8 + $0x88] sm:$0xff]
        %v1593 = vld [vmem:[#allocation8 + $0x90] sm:$0xff]
        %v1594 = vld [vmem:[#allocation8 + $0x98] sm:$0xff]
        %v1595 = vld [vmem:[#allocation8 + $0xa0] sm:$0xff]
        %v1596 = vld [vmem:[#allocation8 + $0xa8] sm:$0xff]
        %v1597 = vld [vmem:[#allocation8 + $0xb0] sm:$0xff]
        %v1598 = vld [vmem:[#allocation8 + $0xb8] sm:$0xff]
        %v1599 = vld [vmem:[#allocation8 + $0xc0] sm:$0xff]
        %v1600 = vld [vmem:[#allocation8 + $0xc8] sm:$0xff]
        %v1601 = vld [vmem:[#allocation8 + $0xd0] sm:$0xff]
        %v1602 = vld [vmem:[#allocation8 + $0xd8] sm:$0xff]
        %v1603 = vld [vmem:[#allocation8 + $0xe0] sm:$0xff]
        %v1604 = vld [vmem:[#allocation8 + $0xe8] sm:$0xff]
        %v1605 = vld [vmem:[#allocation8 + $0xf0] sm:$0xff]
        %v1606 = vld [vmem:[#allocation8 + $0xf8] sm:$0xff]
        %v1607 = vld [vmem:[#allocation8 + $0x100] sm:$0xff]
        %v1608 = vld [vmem:[#allocation8 + $0x108] sm:$0xff]
        %v1609 = vld [vmem:[#allocation8 + $0x110] sm:$0xff]
        %v1610 = vld [vmem:[#allocation8 + $0x118] sm:$0xff]
        %v1611 = vld [vmem:[#allocation8 + $0x120] sm:$0xff]
        %v1612 = vld [vmem:[#allocation8 + $0x128] sm:$0xff]
        %v1613 = vld [vmem:[#allocation8 + $0x130] sm:$0xff]
        %v1614 = vld [vmem:[#allocation8 + $0x138] sm:$0xff]
        %v1615 = vld [vmem:[#allocation8 + $0x140] sm:$0xff]
        %v1616 = vld [vmem:[#allocation8 + $0x148] sm:$0xff]
        %v1617 = vld [vmem:[#allocation8 + $0x150] sm:$0xff]
        %v1618 = vld [vmem:[#allocation8 + $0x158] sm:$0xff]
        %v1619 = vld [vmem:[#allocation8 + $0x160] sm:$0xff]
        %v1620 = vld [vmem:[#allocation8 + $0x168] sm:$0xff]
        %v1621 = vld [vmem:[#allocation8 + $0x170] sm:$0xff]
        %v1622 = vld [vmem:[#allocation8 + $0x178] sm:$0xff]
        %v1623 = vld [vmem:[#allocation8 + $0x180] sm:$0xff]
        %v1624 = vld [vmem:[#allocation8 + $0x188] sm:$0xff]
        %v1625 = vld [vmem:[#allocation8 + $0x190] sm:$0xff]
        %v1626 = vld [vmem:[#allocation8 + $0x198] sm:$0xff]
        %v1627 = vld [vmem:[#allocation8 + $0x1a0] sm:$0xff]
        %v1628 = vld [vmem:[#allocation8 + $0x1a8] sm:$0xff]
        %v1629 = vld [vmem:[#allocation8 + $0x1b0] sm:$0xff]
        %v1630 = vld [vmem:[#allocation8 + $0x1b8] sm:$0xff]
        %v1631 = vld [vmem:[#allocation8 + $0x1c0] sm:$0xff]
        %v1632 = vld [vmem:[#allocation8 + $0x1c8] sm:$0xff]
        %v1633 = vld [vmem:[#allocation8 + $0x1d0] sm:$0xff]
        %v1634 = vld [vmem:[#allocation8 + $0x1d8] sm:$0xff]
        %v1635 = vld [vmem:[#allocation8 + $0x1e0] sm:$0xff]
        %v1636 = vld [vmem:[#allocation8 + $0x1e8] sm:$0xff]
        %v1637 = vld [vmem:[#allocation8 + $0x1f0] sm:$0xff]
        %v1638 = vld [vmem:[#allocation8 + $0x1f8] sm:$0xff]
        %v1639 = vld [vmem:[#allocation8 + $0x200] sm:$0xff]
        %v1640 = vld [vmem:[#allocation8 + $0x208] sm:$0xff]
        %v1641 = vld [vmem:[#allocation8 + $0x210] sm:$0xff]
        %v1642 = vld [vmem:[#allocation8 + $0x218] sm:$0xff]
        %v1643 = vld [vmem:[#allocation8 + $0x220] sm:$0xff]
        %v1644 = vld [vmem:[#allocation8 + $0x228] sm:$0xff]
        %v1645 = vld [vmem:[#allocation8 + $0x230] sm:$0xff]
        %v1646 = vld [vmem:[#allocation8 + $0x238] sm:$0xff]
        %v1647 = vld [vmem:[#allocation8 + $0x240] sm:$0xff]
        %v1648 = vld [vmem:[#allocation8 + $0x248] sm:$0xff]
        %v1649 = vld [vmem:[#allocation8 + $0x250] sm:$0xff]
        %v1650 = vld [vmem:[#allocation8 + $0x258] sm:$0xff]
        %v1651 = vld [vmem:[#allocation8 + $0x260] sm:$0xff]
        %v1652 = vld [vmem:[#allocation8 + $0x268] sm:$0xff]
        %v1653 = vld [vmem:[#allocation8 + $0x270] sm:$0xff]
        %v1654 = vld [vmem:[#allocation8 + $0x278] sm:$0xff]
        %v1655 = vld [vmem:[#allocation8 + $0x280] sm:$0xff]
        %v1656 = vld [vmem:[#allocation8 + $0x288] sm:$0xff]
        %v1657 = vld [vmem:[#allocation8 + $0x290] sm:$0xff]
        %v1658 = vld [vmem:[#allocation8 + $0x298] sm:$0xff]
        %v1659 = vld [vmem:[#allocation8 + $0x2a0] sm:$0xff]
        %v1660 = vld [vmem:[#allocation8 + $0x2a8] sm:$0xff]
        %v1661 = vld [vmem:[#allocation8 + $0x2b0] sm:$0xff]
        %v1662 = vld [vmem:[#allocation8 + $0x2b8] sm:$0xff]
        %v1663 = vld [vmem:[#allocation8 + $0x2c0] sm:$0xff]
        %v1664 = vld [vmem:[#allocation8 + $0x2c8] sm:$0xff]
        %v1665 = vld [vmem:[#allocation8 + $0x2d0] sm:$0xff]
        %v1666 = vld [vmem:[#allocation8 + $0x2d8] sm:$0xff]
        %v1667 = vld [vmem:[#allocation8 + $0x2e0] sm:$0xff]
        %v1668 = vld [vmem:[#allocation8 + $0x2e8] sm:$0xff]
        %v1669 = vld [vmem:[#allocation8 + $0x2f0] sm:$0xff]
        %v1670 = vld [vmem:[#allocation8 + $0x2f8] sm:$0xff]
        %v1671 = vld [vmem:[#allocation8 + $0x300] sm:$0xff]
        %v1672 = vld [vmem:[#allocation8 + $0x308] sm:$0xff]
        %v1673 = vld [vmem:[#allocation8 + $0x310] sm:$0xff]
        %v1674 = vld [vmem:[#allocation8 + $0x318] sm:$0xff]
        %v1675 = vld [vmem:[#allocation8 + $0x320] sm:$0xff]
        %v1676 = vld [vmem:[#allocation8 + $0x328] sm:$0xff]
        %v1677 = vld [vmem:[#allocation8 + $0x330] sm:$0xff]
        %v1678 = vld [vmem:[#allocation8 + $0x338] sm:$0xff]
        %v1679 = vld [vmem:[#allocation8 + $0x340] sm:$0xff]
        %v1680 = vld [vmem:[#allocation8 + $0x348] sm:$0xff]
        %v1681 = vld [vmem:[#allocation8 + $0x350] sm:$0xff]
        %v1682 = vld [vmem:[#allocation8 + $0x358] sm:$0xff]
        %v1683 = vld [vmem:[#allocation8 + $0x360] sm:$0xff]
        %v1684 = vld [vmem:[#allocation8 + $0x368] sm:$0xff]
        %v1685 = vld [vmem:[#allocation8 + $0x370] sm:$0xff]
        %v1686 = vld [vmem:[#allocation8 + $0x378] sm:$0xff]
        %v1687 = vld [vmem:[#allocation8 + $0x380] sm:$0xff]
        %v1688 = vld [vmem:[#allocation8 + $0x388] sm:$0xff]
        %v1689 = vld [vmem:[#allocation8 + $0x390] sm:$0xff]
        %v1690 = vld [vmem:[#allocation8 + $0x398] sm:$0xff]
        %v1691 = vld [vmem:[#allocation8 + $0x3a0] sm:$0xff]
        %v1692 = vld [vmem:[#allocation8 + $0x3a8] sm:$0xff]
        %v1693 = vld [vmem:[#allocation8 + $0x3b0] sm:$0xff]
        %v1694 = vld [vmem:[#allocation8 + $0x3b8] sm:$0xff]
        %v1695 = vld [vmem:[#allocation8 + $0x3c0] sm:$0xff]
        %v1696 = vld [vmem:[#allocation8 + $0x3c8] sm:$0xff]
        %v1697 = vld [vmem:[#allocation8 + $0x3d0] sm:$0xff]
        %v1698 = vld [vmem:[#allocation8 + $0x3d8] sm:$0xff]
        %v1699 = vld [vmem:[#allocation8 + $0x3e0] sm:$0xff]
        %v1700 = vld [vmem:[#allocation8 + $0x3e8] sm:$0xff]
        %v1701 = vld [vmem:[#allocation8 + $0x3f0] sm:$0xff]
        %v1702 = vld [vmem:[#allocation8 + $0x3f8] sm:$0xff]
        %v1703 = vld [vmem:[#allocation13 + $0x6] sm:$0xf]
        %v1705 = vlaneseq
        %v1706 = vshrl.u32 %v1705, 7
        %v1707 = vsub.s32 0, %v1706
        %v1708 = vrot.slane %v1703, %v1707
        %v1709 = vlaneseq
        %v1710 = vshrl.u32 %v1709, 7
        %v1711 = vsub.s32 1, %v1710
        %v1712 = vrot.slane %v1703, %v1711
        %v1713 = vlaneseq
        %v1714 = vshrl.u32 %v1713, 7
        %v1715 = vsub.s32 2, %v1714
        %v1716 = vrot.slane %v1703, %v1715
        %v1717 = vlaneseq
        %v1718 = vshrl.u32 %v1717, 7
        %v1719 = vsub.s32 3, %v1718
        %v1720 = vrot.slane %v1703, %v1719
        %v1853 = vunpack.c.l.b16 %v1575
        %v1854 = vunpack.c.h.b16 %v1575
        %v1855 = vunpack.c.l.b16 %v1576
        %v1856 = vunpack.c.h.b16 %v1576
        %v1857 = vunpack.c.l.b16 %v1577
        %v1858 = vunpack.c.h.b16 %v1577
        %v1859 = vunpack.c.l.b16 %v1578
        %v1860 = vunpack.c.h.b16 %v1578
        %v1861 = vunpack.c.l.b16 %v1579
        %v1862 = vunpack.c.h.b16 %v1579
        %v1863 = vunpack.c.l.b16 %v1580
        %v1864 = vunpack.c.h.b16 %v1580
        %v1865 = vunpack.c.l.b16 %v1581
        %v1866 = vunpack.c.h.b16 %v1581
        %v1867 = vunpack.c.l.b16 %v1582
        %v1868 = vunpack.c.h.b16 %v1582
        %v1869 = vunpack.c.l.b16 %v1583
        %v1870 = vunpack.c.h.b16 %v1583
        %v1871 = vunpack.c.l.b16 %v1584
        %v1872 = vunpack.c.h.b16 %v1584
        %v1873 = vunpack.c.l.b16 %v1585
        %v1874 = vunpack.c.h.b16 %v1585
        %v1875 = vunpack.c.l.b16 %v1586
        %v1876 = vunpack.c.h.b16 %v1586
        %v1877 = vunpack.c.l.b16 %v1587
        %v1878 = vunpack.c.h.b16 %v1587
        %v1879 = vunpack.c.l.b16 %v1588
        %v1880 = vunpack.c.h.b16 %v1588
        %v1881 = vunpack.c.l.b16 %v1589
        %v1882 = vunpack.c.h.b16 %v1589
        %v1883 = vunpack.c.l.b16 %v1590
        %v1884 = vunpack.c.h.b16 %v1590
        %v1885 = vunpack.c.l.b16 %v1591
        %v1886 = vunpack.c.h.b16 %v1591
        %v1887 = vunpack.c.l.b16 %v1592
        %v1888 = vunpack.c.h.b16 %v1592
        %v1889 = vunpack.c.l.b16 %v1593
        %v1890 = vunpack.c.h.b16 %v1593
        %v1891 = vunpack.c.l.b16 %v1594
        %v1892 = vunpack.c.h.b16 %v1594
        %v1893 = vunpack.c.l.b16 %v1595
        %v1894 = vunpack.c.h.b16 %v1595
        %v1895 = vunpack.c.l.b16 %v1596
        %v1896 = vunpack.c.h.b16 %v1596
        %v1897 = vunpack.c.l.b16 %v1597
        %v1898 = vunpack.c.h.b16 %v1597
        %v1899 = vunpack.c.l.b16 %v1598
        %v1900 = vunpack.c.h.b16 %v1598
        %v1901 = vunpack.c.l.b16 %v1599
        %v1902 = vunpack.c.h.b16 %v1599
        %v1903 = vunpack.c.l.b16 %v1600
        %v1904 = vunpack.c.h.b16 %v1600
        %v1905 = vunpack.c.l.b16 %v1601
        %v1906 = vunpack.c.h.b16 %v1601
        %v1907 = vunpack.c.l.b16 %v1602
        %v1908 = vunpack.c.h.b16 %v1602
        %v1909 = vunpack.c.l.b16 %v1603
        %v1910 = vunpack.c.h.b16 %v1603
        %v1911 = vunpack.c.l.b16 %v1604
        %v1912 = vunpack.c.h.b16 %v1604
        %v1913 = vunpack.c.l.b16 %v1605
        %v1914 = vunpack.c.h.b16 %v1605
        %v1915 = vunpack.c.l.b16 %v1606
        %v1916 = vunpack.c.h.b16 %v1606
        %v1917 = vunpack.c.l.b16 %v1607
        %v1918 = vunpack.c.h.b16 %v1607
        %v1919 = vunpack.c.l.b16 %v1608
        %v1920 = vunpack.c.h.b16 %v1608
        %v1921 = vunpack.c.l.b16 %v1609
        %v1922 = vunpack.c.h.b16 %v1609
        %v1923 = vunpack.c.l.b16 %v1610
        %v1924 = vunpack.c.h.b16 %v1610
        %v1925 = vunpack.c.l.b16 %v1611
        %v1926 = vunpack.c.h.b16 %v1611
        %v1927 = vunpack.c.l.b16 %v1612
        %v1928 = vunpack.c.h.b16 %v1612
        %v1929 = vunpack.c.l.b16 %v1613
        %v1930 = vunpack.c.h.b16 %v1613
        %v1931 = vunpack.c.l.b16 %v1614
        %v1932 = vunpack.c.h.b16 %v1614
        %v1933 = vunpack.c.l.b16 %v1615
        %v1934 = vunpack.c.h.b16 %v1615
        %v1935 = vunpack.c.l.b16 %v1616
        %v1936 = vunpack.c.h.b16 %v1616
        %v1937 = vunpack.c.l.b16 %v1617
        %v1938 = vunpack.c.h.b16 %v1617
        %v1939 = vunpack.c.l.b16 %v1618
        %v1940 = vunpack.c.h.b16 %v1618
        %v1941 = vunpack.c.l.b16 %v1619
        %v1942 = vunpack.c.h.b16 %v1619
        %v1943 = vunpack.c.l.b16 %v1620
        %v1944 = vunpack.c.h.b16 %v1620
        %v1945 = vunpack.c.l.b16 %v1621
        %v1946 = vunpack.c.h.b16 %v1621
        %v1947 = vunpack.c.l.b16 %v1622
        %v1948 = vunpack.c.h.b16 %v1622
        %v1949 = vunpack.c.l.b16 %v1623
        %v1950 = vunpack.c.h.b16 %v1623
        %v1951 = vunpack.c.l.b16 %v1624
        %v1952 = vunpack.c.h.b16 %v1624
        %v1953 = vunpack.c.l.b16 %v1625
        %v1954 = vunpack.c.h.b16 %v1625
        %v1955 = vunpack.c.l.b16 %v1626
        %v1956 = vunpack.c.h.b16 %v1626
        %v1957 = vunpack.c.l.b16 %v1627
        %v1958 = vunpack.c.h.b16 %v1627
        %v1959 = vunpack.c.l.b16 %v1628
        %v1960 = vunpack.c.h.b16 %v1628
        %v1961 = vunpack.c.l.b16 %v1629
        %v1962 = vunpack.c.h.b16 %v1629
        %v1963 = vunpack.c.l.b16 %v1630
        %v1964 = vunpack.c.h.b16 %v1630
        %v1965 = vunpack.c.l.b16 %v1631
        %v1966 = vunpack.c.h.b16 %v1631
        %v1967 = vunpack.c.l.b16 %v1632
        %v1968 = vunpack.c.h.b16 %v1632
        %v1969 = vunpack.c.l.b16 %v1633
        %v1970 = vunpack.c.h.b16 %v1633
        %v1971 = vunpack.c.l.b16 %v1634
        %v1972 = vunpack.c.h.b16 %v1634
        %v1973 = vunpack.c.l.b16 %v1635
        %v1974 = vunpack.c.h.b16 %v1635
        %v1975 = vunpack.c.l.b16 %v1636
        %v1976 = vunpack.c.h.b16 %v1636
        %v1977 = vunpack.c.l.b16 %v1637
        %v1978 = vunpack.c.h.b16 %v1637
        %v1979 = vunpack.c.l.b16 %v1638
        %v1980 = vunpack.c.h.b16 %v1638
        %v1981 = vunpack.c.l.b16 %v1639
        %v1982 = vunpack.c.h.b16 %v1639
        %v1983 = vunpack.c.l.b16 %v1640
        %v1984 = vunpack.c.h.b16 %v1640
        %v1985 = vunpack.c.l.b16 %v1641
        %v1986 = vunpack.c.h.b16 %v1641
        %v1987 = vunpack.c.l.b16 %v1642
        %v1988 = vunpack.c.h.b16 %v1642
        %v1989 = vunpack.c.l.b16 %v1643
        %v1990 = vunpack.c.h.b16 %v1643
        %v1991 = vunpack.c.l.b16 %v1644
        %v1992 = vunpack.c.h.b16 %v1644
        %v1993 = vunpack.c.l.b16 %v1645
        %v1994 = vunpack.c.h.b16 %v1645
        %v1995 = vunpack.c.l.b16 %v1646
        %v1996 = vunpack.c.h.b16 %v1646
        %v1997 = vunpack.c.l.b16 %v1647
        %v1998 = vunpack.c.h.b16 %v1647
        %v1999 = vunpack.c.l.b16 %v1648
        %v2000 = vunpack.c.h.b16 %v1648
        %v2001 = vunpack.c.l.b16 %v1649
        %v2002 = vunpack.c.h.b16 %v1649
        %v2003 = vunpack.c.l.b16 %v1650
        %v2004 = vunpack.c.h.b16 %v1650
        %v2005 = vunpack.c.l.b16 %v1651
        %v2006 = vunpack.c.h.b16 %v1651
        %v2007 = vunpack.c.l.b16 %v1652
        %v2008 = vunpack.c.h.b16 %v1652
        %v2009 = vunpack.c.l.b16 %v1653
        %v2010 = vunpack.c.h.b16 %v1653
        %v2011 = vunpack.c.l.b16 %v1654
        %v2012 = vunpack.c.h.b16 %v1654
        %v2013 = vunpack.c.l.b16 %v1655
        %v2014 = vunpack.c.h.b16 %v1655
        %v2015 = vunpack.c.l.b16 %v1656
        %v2016 = vunpack.c.h.b16 %v1656
        %v2017 = vunpack.c.l.b16 %v1657
        %v2018 = vunpack.c.h.b16 %v1657
        %v2019 = vunpack.c.l.b16 %v1658
        %v2020 = vunpack.c.h.b16 %v1658
        %v2021 = vunpack.c.l.b16 %v1659
        %v2022 = vunpack.c.h.b16 %v1659
        %v2023 = vunpack.c.l.b16 %v1660
        %v2024 = vunpack.c.h.b16 %v1660
        %v2025 = vunpack.c.l.b16 %v1661
        %v2026 = vunpack.c.h.b16 %v1661
        %v2027 = vunpack.c.l.b16 %v1662
        %v2028 = vunpack.c.h.b16 %v1662
        %v2029 = vunpack.c.l.b16 %v1663
        %v2030 = vunpack.c.h.b16 %v1663
        %v2031 = vunpack.c.l.b16 %v1664
        %v2032 = vunpack.c.h.b16 %v1664
        %v2033 = vunpack.c.l.b16 %v1665
        %v2034 = vunpack.c.h.b16 %v1665
        %v2035 = vunpack.c.l.b16 %v1666
        %v2036 = vunpack.c.h.b16 %v1666
        %v2037 = vunpack.c.l.b16 %v1667
        %v2038 = vunpack.c.h.b16 %v1667
        %v2039 = vunpack.c.l.b16 %v1668
        %v2040 = vunpack.c.h.b16 %v1668
        %v2041 = vunpack.c.l.b16 %v1669
        %v2042 = vunpack.c.h.b16 %v1669
        %v2043 = vunpack.c.l.b16 %v1670
        %v2044 = vunpack.c.h.b16 %v1670
        %v2045 = vunpack.c.l.b16 %v1671
        %v2046 = vunpack.c.h.b16 %v1671
        %v2047 = vunpack.c.l.b16 %v1672
        %v2048 = vunpack.c.h.b16 %v1672
        %v2049 = vunpack.c.l.b16 %v1673
        %v2050 = vunpack.c.h.b16 %v1673
        %v2051 = vunpack.c.l.b16 %v1674
        %v2052 = vunpack.c.h.b16 %v1674
        %v2053 = vunpack.c.l.b16 %v1675
        %v2054 = vunpack.c.h.b16 %v1675
        %v2055 = vunpack.c.l.b16 %v1676
        %v2056 = vunpack.c.h.b16 %v1676
        %v2057 = vunpack.c.l.b16 %v1677
        %v2058 = vunpack.c.h.b16 %v1677
        %v2059 = vunpack.c.l.b16 %v1678
        %v2060 = vunpack.c.h.b16 %v1678
        %v2061 = vunpack.c.l.b16 %v1679
        %v2062 = vunpack.c.h.b16 %v1679
        %v2063 = vunpack.c.l.b16 %v1680
        %v2064 = vunpack.c.h.b16 %v1680
        %v2065 = vunpack.c.l.b16 %v1681
        %v2066 = vunpack.c.h.b16 %v1681
        %v2067 = vunpack.c.l.b16 %v1682
        %v2068 = vunpack.c.h.b16 %v1682
        %v2069 = vunpack.c.l.b16 %v1683
        %v2070 = vunpack.c.h.b16 %v1683
        %v2071 = vunpack.c.l.b16 %v1684
        %v2072 = vunpack.c.h.b16 %v1684
        %v2073 = vunpack.c.l.b16 %v1685
        %v2074 = vunpack.c.h.b16 %v1685
        %v2075 = vunpack.c.l.b16 %v1686
        %v2076 = vunpack.c.h.b16 %v1686
        %v2077 = vunpack.c.l.b16 %v1687
        %v2078 = vunpack.c.h.b16 %v1687
        %v2079 = vunpack.c.l.b16 %v1688
        %v2080 = vunpack.c.h.b16 %v1688
        %v2081 = vunpack.c.l.b16 %v1689
        %v2082 = vunpack.c.h.b16 %v1689
        %v2083 = vunpack.c.l.b16 %v1690
        %v2084 = vunpack.c.h.b16 %v1690
        %v2085 = vunpack.c.l.b16 %v1691
        %v2086 = vunpack.c.h.b16 %v1691
        %v2087 = vunpack.c.l.b16 %v1692
        %v2088 = vunpack.c.h.b16 %v1692
        %v2089 = vunpack.c.l.b16 %v1693
        %v2090 = vunpack.c.h.b16 %v1693
        %v2091 = vunpack.c.l.b16 %v1694
        %v2092 = vunpack.c.h.b16 %v1694
        %v2093 = vunpack.c.l.b16 %v1695
        %v2094 = vunpack.c.h.b16 %v1695
        %v2095 = vunpack.c.l.b16 %v1696
        %v2096 = vunpack.c.h.b16 %v1696
        %v2097 = vunpack.c.l.b16 %v1697
        %v2098 = vunpack.c.h.b16 %v1697
        %v2099 = vunpack.c.l.b16 %v1698
        %v2100 = vunpack.c.h.b16 %v1698
        %v2101 = vunpack.c.l.b16 %v1699
        %v2102 = vunpack.c.h.b16 %v1699
        %v2103 = vunpack.c.l.b16 %v1700
        %v2104 = vunpack.c.h.b16 %v1700
        %v2105 = vunpack.c.l.b16 %v1701
        %v2106 = vunpack.c.h.b16 %v1701
        %v2107 = vunpack.c.l.b16 %v1702
        %v2108 = vunpack.c.h.b16 %v1702
        %v2109 = vpack.c.b16 %v1857, %v1853
        %v2110 = vpack.c.b16 %v1858, %v1854
        %v2111 = vpack.c.b16 %v1859, %v1855
        %v2112 = vpack.c.b16 %v1860, %v1856
        %v2113 = vpack.c.b16 %v1865, %v1861
        %v2114 = vpack.c.b16 %v1866, %v1862
        %v2115 = vpack.c.b16 %v1867, %v1863
        %v2116 = vpack.c.b16 %v1868, %v1864
        %v2117 = vpack.c.b16 %v1873, %v1869
        %v2118 = vpack.c.b16 %v1874, %v1870
        %v2119 = vpack.c.b16 %v1875, %v1871
        %v2120 = vpack.c.b16 %v1876, %v1872
        %v2121 = vpack.c.b16 %v1881, %v1877
        %v2122 = vpack.c.b16 %v1882, %v1878
        %v2123 = vpack.c.b16 %v1883, %v1879
        %v2124 = vpack.c.b16 %v1884, %v1880
        %v2125 = vpack.c.b16 %v1889, %v1885
        %v2126 = vpack.c.b16 %v1890, %v1886
        %v2127 = vpack.c.b16 %v1891, %v1887
        %v2128 = vpack.c.b16 %v1892, %v1888
        %v2129 = vpack.c.b16 %v1897, %v1893
        %v2130 = vpack.c.b16 %v1898, %v1894
        %v2131 = vpack.c.b16 %v1899, %v1895
        %v2132 = vpack.c.b16 %v1900, %v1896
        %v2133 = vpack.c.b16 %v1905, %v1901
        %v2134 = vpack.c.b16 %v1906, %v1902
        %v2135 = vpack.c.b16 %v1907, %v1903
        %v2136 = vpack.c.b16 %v1908, %v1904
        %v2137 = vpack.c.b16 %v1913, %v1909
        %v2138 = vpack.c.b16 %v1914, %v1910
        %v2139 = vpack.c.b16 %v1915, %v1911
        %v2140 = vpack.c.b16 %v1916, %v1912
        %v2141 = vpack.c.b16 %v1921, %v1917
        %v2142 = vpack.c.b16 %v1922, %v1918
        %v2143 = vpack.c.b16 %v1923, %v1919
        %v2144 = vpack.c.b16 %v1924, %v1920
        %v2145 = vpack.c.b16 %v1929, %v1925
        %v2146 = vpack.c.b16 %v1930, %v1926
        %v2147 = vpack.c.b16 %v1931, %v1927
        %v2148 = vpack.c.b16 %v1932, %v1928
        %v2149 = vpack.c.b16 %v1937, %v1933
        %v2150 = vpack.c.b16 %v1938, %v1934
        %v2151 = vpack.c.b16 %v1939, %v1935
        %v2152 = vpack.c.b16 %v1940, %v1936
        %v2153 = vpack.c.b16 %v1945, %v1941
        %v2154 = vpack.c.b16 %v1946, %v1942
        %v2155 = vpack.c.b16 %v1947, %v1943
        %v2156 = vpack.c.b16 %v1948, %v1944
        %v2157 = vpack.c.b16 %v1953, %v1949
        %v2158 = vpack.c.b16 %v1954, %v1950
        %v2159 = vpack.c.b16 %v1955, %v1951
        %v2160 = vpack.c.b16 %v1956, %v1952
        %v2161 = vpack.c.b16 %v1961, %v1957
        %v2162 = vpack.c.b16 %v1962, %v1958
        %v2163 = vpack.c.b16 %v1963, %v1959
        %v2164 = vpack.c.b16 %v1964, %v1960
        %v2165 = vpack.c.b16 %v1969, %v1965
        %v2166 = vpack.c.b16 %v1970, %v1966
        %v2167 = vpack.c.b16 %v1971, %v1967
        %v2168 = vpack.c.b16 %v1972, %v1968
        %v2169 = vpack.c.b16 %v1977, %v1973
        %v2170 = vpack.c.b16 %v1978, %v1974
        %v2171 = vpack.c.b16 %v1979, %v1975
        %v2172 = vpack.c.b16 %v1980, %v1976
        %v2173 = vpack.c.b16 %v1985, %v1981
        %v2174 = vpack.c.b16 %v1986, %v1982
        %v2175 = vpack.c.b16 %v1987, %v1983
        %v2176 = vpack.c.b16 %v1988, %v1984
        %v2177 = vpack.c.b16 %v1993, %v1989
        %v2178 = vpack.c.b16 %v1994, %v1990
        %v2179 = vpack.c.b16 %v1995, %v1991
        %v2180 = vpack.c.b16 %v1996, %v1992
        %v2181 = vpack.c.b16 %v2001, %v1997
        %v2182 = vpack.c.b16 %v2002, %v1998
        %v2183 = vpack.c.b16 %v2003, %v1999
        %v2184 = vpack.c.b16 %v2004, %v2000
        %v2185 = vpack.c.b16 %v2009, %v2005
        %v2186 = vpack.c.b16 %v2010, %v2006
        %v2187 = vpack.c.b16 %v2011, %v2007
        %v2188 = vpack.c.b16 %v2012, %v2008
        %v2189 = vpack.c.b16 %v2017, %v2013
        %v2190 = vpack.c.b16 %v2018, %v2014
        %v2191 = vpack.c.b16 %v2019, %v2015
        %v2192 = vpack.c.b16 %v2020, %v2016
        %v2193 = vpack.c.b16 %v2025, %v2021
        %v2194 = vpack.c.b16 %v2026, %v2022
        %v2195 = vpack.c.b16 %v2027, %v2023
        %v2196 = vpack.c.b16 %v2028, %v2024
        %v2197 = vpack.c.b16 %v2033, %v2029
        %v2198 = vpack.c.b16 %v2034, %v2030
        %v2199 = vpack.c.b16 %v2035, %v2031
        %v2200 = vpack.c.b16 %v2036, %v2032
        %v2201 = vpack.c.b16 %v2041, %v2037
        %v2202 = vpack.c.b16 %v2042, %v2038
        %v2203 = vpack.c.b16 %v2043, %v2039
        %v2204 = vpack.c.b16 %v2044, %v2040
        %v2205 = vpack.c.b16 %v2049, %v2045
        %v2206 = vpack.c.b16 %v2050, %v2046
        %v2207 = vpack.c.b16 %v2051, %v2047
        %v2208 = vpack.c.b16 %v2052, %v2048
        %v2209 = vpack.c.b16 %v2057, %v2053
        %v2210 = vpack.c.b16 %v2058, %v2054
        %v2211 = vpack.c.b16 %v2059, %v2055
        %v2212 = vpack.c.b16 %v2060, %v2056
        %v2213 = vpack.c.b16 %v2065, %v2061
        %v2214 = vpack.c.b16 %v2066, %v2062
        %v2215 = vpack.c.b16 %v2067, %v2063
        %v2216 = vpack.c.b16 %v2068, %v2064
        %v2217 = vpack.c.b16 %v2073, %v2069
        %v2218 = vpack.c.b16 %v2074, %v2070
        %v2219 = vpack.c.b16 %v2075, %v2071
        %v2220 = vpack.c.b16 %v2076, %v2072
        %v2221 = vpack.c.b16 %v2081, %v2077
        %v2222 = vpack.c.b16 %v2082, %v2078
        %v2223 = vpack.c.b16 %v2083, %v2079
        %v2224 = vpack.c.b16 %v2084, %v2080
        %v2225 = vpack.c.b16 %v2089, %v2085
        %v2226 = vpack.c.b16 %v2090, %v2086
        %v2227 = vpack.c.b16 %v2091, %v2087
        %v2228 = vpack.c.b16 %v2092, %v2088
        %v2229 = vpack.c.b16 %v2097, %v2093
        %v2230 = vpack.c.b16 %v2098, %v2094
        %v2231 = vpack.c.b16 %v2099, %v2095
        %v2232 = vpack.c.b16 %v2100, %v2096
        %v2233 = vpack.c.b16 %v2105, %v2101
        %v2234 = vpack.c.b16 %v2106, %v2102
        %v2235 = vpack.c.b16 %v2107, %v2103
        %v2236 = vpack.c.b16 %v2108, %v2104
        %2365 = vmatprep.subr.bf16.mxu0 %v2138
        %2366 = vmatpush1.bf16.msra.mxu0 %v2137
        %2367 = vmatprep.subr.bf16.mxu0 %v2134
        %2368 = vmatpush1.bf16.msra.mxu0 %v2133
        %2369 = vmatprep.subr.bf16.mxu0 %v2130
        %2370 = vmatpush1.bf16.msra.mxu0 %v2129
        %2371 = vmatprep.subr.bf16.mxu0 %v2126
        %2372 = vmatpush1.bf16.msra.mxu0 %v2125
        %2373 = vmatprep.subr.bf16.mxu0 %v2122
        %2374 = vmatpush1.bf16.msra.mxu0 %v2121
        %2375 = vmatprep.subr.bf16.mxu0 %v2118
        %2376 = vmatpush1.bf16.msra.mxu0 %v2117
        %2377 = vmatprep.subr.bf16.mxu0 %v2114
        %2378 = vmatpush1.bf16.msra.mxu0 %v2113
        %2379 = vmatprep.subr.bf16.mxu0 %v2110
        %2380 = vmatpush1.bf16.msra.mxu0 %v2109
        %2381 = vmatprep.subr.bf16.mxu0 %v2170
        %2382 = vmatpush2.bf16.msra.mxu0 %v2169
        %2383 = vmatprep.subr.bf16.mxu0 %v2166
        %2384 = vmatpush2.bf16.msra.mxu0 %v2165
        %2385 = vmatprep.subr.bf16.mxu0 %v2162
        %2386 = vmatpush2.bf16.msra.mxu0 %v2161
        %2387 = vmatprep.subr.bf16.mxu0 %v2158
        %2388 = vmatpush2.bf16.msra.mxu0 %v2157
        %2389 = vmatprep.subr.bf16.mxu0 %v2154
        %2390 = vmatpush2.bf16.msra.mxu0 %v2153
        %2391 = vmatprep.subr.bf16.mxu0 %v2150
        %2392 = vmatpush2.bf16.msra.mxu0 %v2149
        %2393 = vmatprep.subr.bf16.mxu0 %v2146
        %2394 = vmatpush2.bf16.msra.mxu0 %v2145
        %2395 = vmatprep.subr.bf16.mxu0 %v2142
        %2396 = vmatpush2.bf16.msra.mxu0 %v2141
        %2397 = vmatprep.mubr.bf16.mxu0 %v1544
        %2398 = vmatmul.mubr.bf16.gmra.mxu0 %v1543
        %v2399 = vpop.f32.mrf.mxu0
        %v2400 = vadd.f32 %v1708, %v2399
        %v2401 = vpop.f32.mrf.mxu0
        %v2402 = vadd.f32 %v1712, %v2401
        %v2403 = vpop.f32.mrf.mxu0
        %v2404 = vadd.f32 %v1708, %v2403
        %v2405 = vpop.f32.mrf.mxu0
        %v2406 = vadd.f32 %v1712, %v2405
        %2407 = vmatprep.mubr.bf16.mxu0 %v1548
        %2408 = vmatmul.mubr.bf16.gmra.mxu0 %v1547
        %v2409 = vpop.f32.mrf.mxu0
        %v2410 = vadd.f32 %v1708, %v2409
        %v2411 = vpop.f32.mrf.mxu0
        %v2412 = vadd.f32 %v1712, %v2411
        %v2413 = vpop.f32.mrf.mxu0
        %v2414 = vadd.f32 %v1708, %v2413
        %v2415 = vpop.f32.mrf.mxu0
        %v2416 = vadd.f32 %v1712, %v2415
        %2417 = vmatprep.mubr.bf16.mxu0 %v1552
        %2418 = vmatmul.mubr.bf16.gmra.mxu0 %v1551
        %v2419 = vpop.f32.mrf.mxu0
        %v2420 = vadd.f32 %v1708, %v2419
        %v2421 = vpop.f32.mrf.mxu0
        %v2422 = vadd.f32 %v1712, %v2421
        %v2423 = vpop.f32.mrf.mxu0
        %v2424 = vadd.f32 %v1708, %v2423
        %v2425 = vpop.f32.mrf.mxu0
        %v2426 = vadd.f32 %v1712, %v2425
        %2427 = vmatprep.mubr.bf16.mxu0 %v1556
        %2428 = vmatmul.mubr.bf16.gmra.mxu0 %v1555
        %v2429 = vpop.f32.mrf.mxu0
        %v2430 = vadd.f32 %v1708, %v2429
        %v2431 = vpop.f32.mrf.mxu0
        %v2432 = vadd.f32 %v1712, %v2431
        %v2433 = vpop.f32.mrf.mxu0
        %v2434 = vadd.f32 %v1708, %v2433
        %v2435 = vpop.f32.mrf.mxu0
        %v2436 = vadd.f32 %v1712, %v2435
        %2437 = vmatprep.mubr.bf16.mxu0 %v1560
        %2438 = vmatmul.mubr.bf16.gmra.mxu0 %v1559
        %v2439 = vpop.f32.mrf.mxu0
        %v2440 = vadd.f32 %v1708, %v2439
        %v2441 = vpop.f32.mrf.mxu0
        %v2442 = vadd.f32 %v1712, %v2441
        %v2443 = vpop.f32.mrf.mxu0
        %v2444 = vadd.f32 %v1708, %v2443
        %v2445 = vpop.f32.mrf.mxu0
        %v2446 = vadd.f32 %v1712, %v2445
        %2447 = vmatprep.mubr.bf16.mxu0 %v1564
        %2448 = vmatmul.mubr.bf16.gmra.mxu0 %v1563
        %v2449 = vpop.f32.mrf.mxu0
        %v2450 = vadd.f32 %v1708, %v2449
        %v2451 = vpop.f32.mrf.mxu0
        %v2452 = vadd.f32 %v1712, %v2451
        %v2453 = vpop.f32.mrf.mxu0
        %v2454 = vadd.f32 %v1708, %v2453
        %v2455 = vpop.f32.mrf.mxu0
        %v2456 = vadd.f32 %v1712, %v2455
        %2457 = vmatprep.mubr.bf16.mxu0 %v1568
        %2458 = vmatmul.mubr.bf16.gmra.mxu0 %v1567
        %v2459 = vpop.f32.mrf.mxu0
        %v2460 = vadd.f32 %v1708, %v2459
        %v2461 = vpop.f32.mrf.mxu0
        %v2462 = vadd.f32 %v1712, %v2461
        %v2463 = vpop.f32.mrf.mxu0
        %v2464 = vadd.f32 %v1708, %v2463
        %v2465 = vpop.f32.mrf.mxu0
        %v2466 = vadd.f32 %v1712, %v2465
        %2467 = vmatprep.mubr.bf16.mxu0 %v1572
        %2468 = vmatmul.mubr.bf16.gmra.mxu0 %v1571
        %v2469 = vpop.f32.mrf.mxu0
        %v2470 = vadd.f32 %v1708, %v2469
        %v2471 = vpop.f32.mrf.mxu0
        %v2472 = vadd.f32 %v1712, %v2471
        %v2473 = vpop.f32.mrf.mxu0
        %v2474 = vadd.f32 %v1708, %v2473
        %v2475 = vpop.f32.mrf.mxu0
        %v2476 = vadd.f32 %v1712, %v2475
        %2477 = vdwg.mxu0
        %2478 = vmatprep.subr.bf16.mxu0 %v2202
        %2479 = vmatpush1.bf16.msra.mxu0 %v2201
        %2480 = vmatprep.subr.bf16.mxu0 %v2198
        %2481 = vmatpush1.bf16.msra.mxu0 %v2197
        %2482 = vmatprep.subr.bf16.mxu0 %v2194
        %2483 = vmatpush1.bf16.msra.mxu0 %v2193
        %2484 = vmatprep.subr.bf16.mxu0 %v2190
        %2485 = vmatpush1.bf16.msra.mxu0 %v2189
        %2486 = vmatprep.subr.bf16.mxu0 %v2186
        %2487 = vmatpush1.bf16.msra.mxu0 %v2185
        %2488 = vmatprep.subr.bf16.mxu0 %v2182
        %2489 = vmatpush1.bf16.msra.mxu0 %v2181
        %2490 = vmatprep.subr.bf16.mxu0 %v2178
        %2491 = vmatpush1.bf16.msra.mxu0 %v2177
        %2492 = vmatprep.subr.bf16.mxu0 %v2174
        %2493 = vmatpush1.bf16.msra.mxu0 %v2173
        %2494 = vmatprep.subr.bf16.mxu0 %v2234
        %2495 = vmatpush2.bf16.msra.mxu0 %v2233
        %2496 = vmatprep.subr.bf16.mxu0 %v2230
        %2497 = vmatpush2.bf16.msra.mxu0 %v2229
        %2498 = vmatprep.subr.bf16.mxu0 %v2226
        %2499 = vmatpush2.bf16.msra.mxu0 %v2225
        %2500 = vmatprep.subr.bf16.mxu0 %v2222
        %2501 = vmatpush2.bf16.msra.mxu0 %v2221
        %2502 = vmatprep.subr.bf16.mxu0 %v2218
        %2503 = vmatpush2.bf16.msra.mxu0 %v2217
        %2504 = vmatprep.subr.bf16.mxu0 %v2214
        %2505 = vmatpush2.bf16.msra.mxu0 %v2213
        %2506 = vmatprep.subr.bf16.mxu0 %v2210
        %2507 = vmatpush2.bf16.msra.mxu0 %v2209
        %2508 = vmatprep.subr.bf16.mxu0 %v2206
        %2509 = vmatpush2.bf16.msra.mxu0 %v2205
        %2510 = vmatprep.mubr.bf16.mxu0 %v1546
        %2511 = vmatmul.mubr.bf16.gmra.mxu0 %v1545
        %v2512 = vpop.f32.mrf.mxu0
        %v2513 = vadd.f32 %v2400, %v2512
        %v2514 = vpop.f32.mrf.mxu0
        %v2515 = vadd.f32 %v2402, %v2514
        %v2516 = vpop.f32.mrf.mxu0
        %v2517 = vadd.f32 %v2404, %v2516
        %v2518 = vpop.f32.mrf.mxu0
        %v2519 = vadd.f32 %v2406, %v2518
        %2520 = vmatprep.mubr.bf16.mxu0 %v1550
        %2521 = vmatmul.mubr.bf16.gmra.mxu0 %v1549
        %v2522 = vpop.f32.mrf.mxu0
        %v2523 = vadd.f32 %v2410, %v2522
        %v2524 = vpop.f32.mrf.mxu0
        %v2525 = vadd.f32 %v2412, %v2524
        %v2526 = vpop.f32.mrf.mxu0
        %v2527 = vadd.f32 %v2414, %v2526
        %v2528 = vpop.f32.mrf.mxu0
        %v2529 = vadd.f32 %v2416, %v2528
        %2530 = vmatprep.mubr.bf16.mxu0 %v1554
        %2531 = vmatmul.mubr.bf16.gmra.mxu0 %v1553
        %v2532 = vpop.f32.mrf.mxu0
        %v2533 = vadd.f32 %v2420, %v2532
        %v2534 = vpop.f32.mrf.mxu0
        %v2535 = vadd.f32 %v2422, %v2534
        %v2536 = vpop.f32.mrf.mxu0
        %v2537 = vadd.f32 %v2424, %v2536
        %v2538 = vpop.f32.mrf.mxu0
        %v2539 = vadd.f32 %v2426, %v2538
        %2540 = vmatprep.mubr.bf16.mxu0 %v1558
        %2541 = vmatmul.mubr.bf16.gmra.mxu0 %v1557
        %v2542 = vpop.f32.mrf.mxu0
        %v2543 = vadd.f32 %v2430, %v2542
        %v2544 = vpop.f32.mrf.mxu0
        %v2545 = vadd.f32 %v2432, %v2544
        %v2546 = vpop.f32.mrf.mxu0
        %v2547 = vadd.f32 %v2434, %v2546
        %v2548 = vpop.f32.mrf.mxu0
        %v2549 = vadd.f32 %v2436, %v2548
        %2550 = vmatprep.mubr.bf16.mxu0 %v1562
        %2551 = vmatmul.mubr.bf16.gmra.mxu0 %v1561
        %v2552 = vpop.f32.mrf.mxu0
        %v2553 = vadd.f32 %v2440, %v2552
        %v2554 = vpop.f32.mrf.mxu0
        %v2555 = vadd.f32 %v2442, %v2554
        %v2556 = vpop.f32.mrf.mxu0
        %v2557 = vadd.f32 %v2444, %v2556
        %v2558 = vpop.f32.mrf.mxu0
        %v2559 = vadd.f32 %v2446, %v2558
        %2560 = vmatprep.mubr.bf16.mxu0 %v1566
        %2561 = vmatmul.mubr.bf16.gmra.mxu0 %v1565
        %v2562 = vpop.f32.mrf.mxu0
        %v2563 = vadd.f32 %v2450, %v2562
        %v2564 = vpop.f32.mrf.mxu0
        %v2565 = vadd.f32 %v2452, %v2564
        %v2566 = vpop.f32.mrf.mxu0
        %v2567 = vadd.f32 %v2454, %v2566
        %v2568 = vpop.f32.mrf.mxu0
        %v2569 = vadd.f32 %v2456, %v2568
        %2570 = vmatprep.mubr.bf16.mxu0 %v1570
        %2571 = vmatmul.mubr.bf16.gmra.mxu0 %v1569
        %v2572 = vpop.f32.mrf.mxu0
        %v2573 = vadd.f32 %v2460, %v2572
        %v2574 = vpop.f32.mrf.mxu0
        %v2575 = vadd.f32 %v2462, %v2574
        %v2576 = vpop.f32.mrf.mxu0
        %v2577 = vadd.f32 %v2464, %v2576
        %v2578 = vpop.f32.mrf.mxu0
        %v2579 = vadd.f32 %v2466, %v2578
        %2580 = vmatprep.mubr.bf16.mxu0 %v1574
        %2581 = vmatmul.mubr.bf16.gmra.mxu0 %v1573
        %v2582 = vpop.f32.mrf.mxu0
        %v2583 = vadd.f32 %v2470, %v2582
        %v2584 = vpop.f32.mrf.mxu0
        %v2585 = vadd.f32 %v2472, %v2584
        %v2586 = vpop.f32.mrf.mxu0
        %v2587 = vadd.f32 %v2474, %v2586
        %v2588 = vpop.f32.mrf.mxu0
        %v2589 = vadd.f32 %v2476, %v2588
        %2590 = vdwg.mxu0
        %2591 = vmatprep.subr.bf16.mxu0 %v2140
        %2592 = vmatpush1.bf16.msra.mxu0 %v2139
        %2593 = vmatprep.subr.bf16.mxu0 %v2136
        %2594 = vmatpush1.bf16.msra.mxu0 %v2135
        %2595 = vmatprep.subr.bf16.mxu0 %v2132
        %2596 = vmatpush1.bf16.msra.mxu0 %v2131
        %2597 = vmatprep.subr.bf16.mxu0 %v2128
        %2598 = vmatpush1.bf16.msra.mxu0 %v2127
        %2599 = vmatprep.subr.bf16.mxu0 %v2124
        %2600 = vmatpush1.bf16.msra.mxu0 %v2123
        %2601 = vmatprep.subr.bf16.mxu0 %v2120
        %2602 = vmatpush1.bf16.msra.mxu0 %v2119
        %2603 = vmatprep.subr.bf16.mxu0 %v2116
        %2604 = vmatpush1.bf16.msra.mxu0 %v2115
        %2605 = vmatprep.subr.bf16.mxu0 %v2112
        %2606 = vmatpush1.bf16.msra.mxu0 %v2111
        %2607 = vmatprep.subr.bf16.mxu0 %v2172
        %2608 = vmatpush2.bf16.msra.mxu0 %v2171
        %2609 = vmatprep.subr.bf16.mxu0 %v2168
        %2610 = vmatpush2.bf16.msra.mxu0 %v2167
        %2611 = vmatprep.subr.bf16.mxu0 %v2164
        %2612 = vmatpush2.bf16.msra.mxu0 %v2163
        %2613 = vmatprep.subr.bf16.mxu0 %v2160
        %2614 = vmatpush2.bf16.msra.mxu0 %v2159
        %2615 = vmatprep.subr.bf16.mxu0 %v2156
        %2616 = vmatpush2.bf16.msra.mxu0 %v2155
        %2617 = vmatprep.subr.bf16.mxu0 %v2152
        %2618 = vmatpush2.bf16.msra.mxu0 %v2151
        %2619 = vmatprep.subr.bf16.mxu0 %v2148
        %2620 = vmatpush2.bf16.msra.mxu0 %v2147
        %2621 = vmatprep.subr.bf16.mxu0 %v2144
        %2622 = vmatpush2.bf16.msra.mxu0 %v2143
        %2623 = vmatprep.mubr.bf16.mxu0 %v1544
        %2624 = vmatmul.mubr.bf16.gmra.mxu0 %v1543
        %v2625 = vpop.f32.mrf.mxu0
        %v2626 = vadd.f32 %v1716, %v2625
        %v2627 = vpop.f32.mrf.mxu0
        %v2628 = vadd.f32 %v1720, %v2627
        %v2629 = vpop.f32.mrf.mxu0
        %v2630 = vadd.f32 %v1716, %v2629
        %v2631 = vpop.f32.mrf.mxu0
        %v2632 = vadd.f32 %v1720, %v2631
        %2633 = vmatprep.mubr.bf16.mxu0 %v1548
        %2634 = vmatmul.mubr.bf16.gmra.mxu0 %v1547
        %v2635 = vpop.f32.mrf.mxu0
        %v2636 = vadd.f32 %v1716, %v2635
        %v2637 = vpop.f32.mrf.mxu0
        %v2638 = vadd.f32 %v1720, %v2637
        %v2639 = vpop.f32.mrf.mxu0
        %v2640 = vadd.f32 %v1716, %v2639
        %v2641 = vpop.f32.mrf.mxu0
        %v2642 = vadd.f32 %v1720, %v2641
        %2643 = vmatprep.mubr.bf16.mxu0 %v1552
        %2644 = vmatmul.mubr.bf16.gmra.mxu0 %v1551
        %v2645 = vpop.f32.mrf.mxu0
        %v2646 = vadd.f32 %v1716, %v2645
        %v2647 = vpop.f32.mrf.mxu0
        %v2648 = vadd.f32 %v1720, %v2647
        %v2649 = vpop.f32.mrf.mxu0
        %v2650 = vadd.f32 %v1716, %v2649
        %v2651 = vpop.f32.mrf.mxu0
        %v2652 = vadd.f32 %v1720, %v2651
        %2653 = vmatprep.mubr.bf16.mxu0 %v1556
        %2654 = vmatmul.mubr.bf16.gmra.mxu0 %v1555
        %v2655 = vpop.f32.mrf.mxu0
        %v2656 = vadd.f32 %v1716, %v2655
        %v2657 = vpop.f32.mrf.mxu0
        %v2658 = vadd.f32 %v1720, %v2657
        %v2659 = vpop.f32.mrf.mxu0
        %v2660 = vadd.f32 %v1716, %v2659
        %v2661 = vpop.f32.mrf.mxu0
        %v2662 = vadd.f32 %v1720, %v2661
        %2663 = vmatprep.mubr.bf16.mxu0 %v1560
        %2664 = vmatmul.mubr.bf16.gmra.mxu0 %v1559
        %v2665 = vpop.f32.mrf.mxu0
        %v2666 = vadd.f32 %v1716, %v2665
        %v2667 = vpop.f32.mrf.mxu0
        %v2668 = vadd.f32 %v1720, %v2667
        %v2669 = vpop.f32.mrf.mxu0
        %v2670 = vadd.f32 %v1716, %v2669
        %v2671 = vpop.f32.mrf.mxu0
        %v2672 = vadd.f32 %v1720, %v2671
        %2673 = vmatprep.mubr.bf16.mxu0 %v1564
        %2674 = vmatmul.mubr.bf16.gmra.mxu0 %v1563
        %v2675 = vpop.f32.mrf.mxu0
        %v2676 = vadd.f32 %v1716, %v2675
        %v2677 = vpop.f32.mrf.mxu0
        %v2678 = vadd.f32 %v1720, %v2677
        %v2679 = vpop.f32.mrf.mxu0
        %v2680 = vadd.f32 %v1716, %v2679
        %v2681 = vpop.f32.mrf.mxu0
        %v2682 = vadd.f32 %v1720, %v2681
        %2683 = vmatprep.mubr.bf16.mxu0 %v1568
        %2684 = vmatmul.mubr.bf16.gmra.mxu0 %v1567
        %v2685 = vpop.f32.mrf.mxu0
        %v2686 = vadd.f32 %v1716, %v2685
        %v2687 = vpop.f32.mrf.mxu0
        %v2688 = vadd.f32 %v1720, %v2687
        %v2689 = vpop.f32.mrf.mxu0
        %v2690 = vadd.f32 %v1716, %v2689
        %v2691 = vpop.f32.mrf.mxu0
        %v2692 = vadd.f32 %v1720, %v2691
        %2693 = vmatprep.mubr.bf16.mxu0 %v1572
        %2694 = vmatmul.mubr.bf16.gmra.mxu0 %v1571
        %v2695 = vpop.f32.mrf.mxu0
        %v2696 = vadd.f32 %v1716, %v2695
        %v2697 = vpop.f32.mrf.mxu0
        %v2698 = vadd.f32 %v1720, %v2697
        %v2699 = vpop.f32.mrf.mxu0
        %v2700 = vadd.f32 %v1716, %v2699
        %v2701 = vpop.f32.mrf.mxu0
        %v2702 = vadd.f32 %v1720, %v2701
        %2703 = vdwg.mxu0
        %2704 = vmatprep.subr.bf16.mxu0 %v2204
        %2705 = vmatpush1.bf16.msra.mxu0 %v2203
        %2706 = vmatprep.subr.bf16.mxu0 %v2200
        %2707 = vmatpush1.bf16.msra.mxu0 %v2199
        %2708 = vmatprep.subr.bf16.mxu0 %v2196
        %2709 = vmatpush1.bf16.msra.mxu0 %v2195
        %2710 = vmatprep.subr.bf16.mxu0 %v2192
        %2711 = vmatpush1.bf16.msra.mxu0 %v2191
        %2712 = vmatprep.subr.bf16.mxu0 %v2188
        %2713 = vmatpush1.bf16.msra.mxu0 %v2187
        %2714 = vmatprep.subr.bf16.mxu0 %v2184
        %2715 = vmatpush1.bf16.msra.mxu0 %v2183
        %2716 = vmatprep.subr.bf16.mxu0 %v2180
        %2717 = vmatpush1.bf16.msra.mxu0 %v2179
        %2718 = vmatprep.subr.bf16.mxu0 %v2176
        %2719 = vmatpush1.bf16.msra.mxu0 %v2175
        %2720 = vmatprep.subr.bf16.mxu0 %v2236
        %2721 = vmatpush2.bf16.msra.mxu0 %v2235
        %2722 = vmatprep.subr.bf16.mxu0 %v2232
        %2723 = vmatpush2.bf16.msra.mxu0 %v2231
        %2724 = vmatprep.subr.bf16.mxu0 %v2228
        %2725 = vmatpush2.bf16.msra.mxu0 %v2227
        %2726 = vmatprep.subr.bf16.mxu0 %v2224
        %2727 = vmatpush2.bf16.msra.mxu0 %v2223
        %2728 = vmatprep.subr.bf16.mxu0 %v2220
        %2729 = vmatpush2.bf16.msra.mxu0 %v2219
        %2730 = vmatprep.subr.bf16.mxu0 %v2216
        %2731 = vmatpush2.bf16.msra.mxu0 %v2215
        %2732 = vmatprep.subr.bf16.mxu0 %v2212
        %2733 = vmatpush2.bf16.msra.mxu0 %v2211
        %2734 = vmatprep.subr.bf16.mxu0 %v2208
        %2735 = vmatpush2.bf16.msra.mxu0 %v2207
        %2736 = vmatprep.mubr.bf16.mxu0 %v1546
        %2737 = vmatmul.mubr.bf16.gmra.mxu0 %v1545
        %v2738 = vpop.f32.mrf.mxu0
        %v2739 = vadd.f32 %v2626, %v2738
        %v2740 = vpop.f32.mrf.mxu0
        %v2741 = vadd.f32 %v2628, %v2740
        %v2742 = vpop.f32.mrf.mxu0
        %v2743 = vadd.f32 %v2630, %v2742
        %v2744 = vpop.f32.mrf.mxu0
        %v2745 = vadd.f32 %v2632, %v2744
        %2746 = vmatprep.mubr.bf16.mxu0 %v1550
        %2747 = vmatmul.mubr.bf16.gmra.mxu0 %v1549
        %v2748 = vpop.f32.mrf.mxu0
        %v2749 = vadd.f32 %v2636, %v2748
        %v2750 = vpop.f32.mrf.mxu0
        %v2751 = vadd.f32 %v2638, %v2750
        %v2752 = vpop.f32.mrf.mxu0
        %v2753 = vadd.f32 %v2640, %v2752
        %v2754 = vpop.f32.mrf.mxu0
        %v2755 = vadd.f32 %v2642, %v2754
        %2756 = vmatprep.mubr.bf16.mxu0 %v1554
        %2757 = vmatmul.mubr.bf16.gmra.mxu0 %v1553
        %v2758 = vpop.f32.mrf.mxu0
        %v2759 = vadd.f32 %v2646, %v2758
        %v2760 = vpop.f32.mrf.mxu0
        %v2761 = vadd.f32 %v2648, %v2760
        %v2762 = vpop.f32.mrf.mxu0
        %v2763 = vadd.f32 %v2650, %v2762
        %v2764 = vpop.f32.mrf.mxu0
        %v2765 = vadd.f32 %v2652, %v2764
        %2766 = vmatprep.mubr.bf16.mxu0 %v1558
        %2767 = vmatmul.mubr.bf16.gmra.mxu0 %v1557
        %v2768 = vpop.f32.mrf.mxu0
        %v2769 = vadd.f32 %v2656, %v2768
        %v2770 = vpop.f32.mrf.mxu0
        %v2771 = vadd.f32 %v2658, %v2770
        %v2772 = vpop.f32.mrf.mxu0
        %v2773 = vadd.f32 %v2660, %v2772
        %v2774 = vpop.f32.mrf.mxu0
        %v2775 = vadd.f32 %v2662, %v2774
        %2776 = vmatprep.mubr.bf16.mxu0 %v1562
        %2777 = vmatmul.mubr.bf16.gmra.mxu0 %v1561
        %v2778 = vpop.f32.mrf.mxu0
        %v2779 = vadd.f32 %v2666, %v2778
        %v2780 = vpop.f32.mrf.mxu0
        %v2781 = vadd.f32 %v2668, %v2780
        %v2782 = vpop.f32.mrf.mxu0
        %v2783 = vadd.f32 %v2670, %v2782
        %v2784 = vpop.f32.mrf.mxu0
        %v2785 = vadd.f32 %v2672, %v2784
        %2786 = vmatprep.mubr.bf16.mxu0 %v1566
        %2787 = vmatmul.mubr.bf16.gmra.mxu0 %v1565
        %v2788 = vpop.f32.mrf.mxu0
        %v2789 = vadd.f32 %v2676, %v2788
        %v2790 = vpop.f32.mrf.mxu0
        %v2791 = vadd.f32 %v2678, %v2790
        %v2792 = vpop.f32.mrf.mxu0
        %v2793 = vadd.f32 %v2680, %v2792
        %v2794 = vpop.f32.mrf.mxu0
        %v2795 = vadd.f32 %v2682, %v2794
        %2796 = vmatprep.mubr.bf16.mxu0 %v1570
        %2797 = vmatmul.mubr.bf16.gmra.mxu0 %v1569
        %v2798 = vpop.f32.mrf.mxu0
        %v2799 = vadd.f32 %v2686, %v2798
        %v2800 = vpop.f32.mrf.mxu0
        %v2801 = vadd.f32 %v2688, %v2800
        %v2802 = vpop.f32.mrf.mxu0
        %v2803 = vadd.f32 %v2690, %v2802
        %v2804 = vpop.f32.mrf.mxu0
        %v2805 = vadd.f32 %v2692, %v2804
        %2806 = vmatprep.mubr.bf16.mxu0 %v1574
        %2807 = vmatmul.mubr.bf16.gmra.mxu0 %v1573
        %v2808 = vpop.f32.mrf.mxu0
        %v2809 = vadd.f32 %v2696, %v2808
        %v2810 = vpop.f32.mrf.mxu0
        %v2811 = vadd.f32 %v2698, %v2810
        %v2812 = vpop.f32.mrf.mxu0
        %v2813 = vadd.f32 %v2700, %v2812
        %v2814 = vpop.f32.mrf.mxu0
        %v2815 = vadd.f32 %v2702, %v2814
        %2816 = vdwg.mxu0
        %v2817 = vmax.f32 %v2513, 0.0
        %v2818 = vmax.f32 %v2515, 0.0
        %v2819 = vmax.f32 %v2739, 0.0
        %v2820 = vmax.f32 %v2741, 0.0
        %v2821 = vmax.f32 %v2517, 0.0
        %v2822 = vmax.f32 %v2519, 0.0
        %v2823 = vmax.f32 %v2743, 0.0
        %v2824 = vmax.f32 %v2745, 0.0
        %v2825 = vmax.f32 %v2523, 0.0
        %v2826 = vmax.f32 %v2525, 0.0
        %v2827 = vmax.f32 %v2749, 0.0
        %v2828 = vmax.f32 %v2751, 0.0
        %v2829 = vmax.f32 %v2527, 0.0
        %v2830 = vmax.f32 %v2529, 0.0
        %v2831 = vmax.f32 %v2753, 0.0
        %v2832 = vmax.f32 %v2755, 0.0
        %v2833 = vmax.f32 %v2533, 0.0
        %v2834 = vmax.f32 %v2535, 0.0
        %v2835 = vmax.f32 %v2759, 0.0
        %v2836 = vmax.f32 %v2761, 0.0
        %v2837 = vmax.f32 %v2537, 0.0
        %v2838 = vmax.f32 %v2539, 0.0
        %v2839 = vmax.f32 %v2763, 0.0
        %v2840 = vmax.f32 %v2765, 0.0
        %v2841 = vmax.f32 %v2543, 0.0
        %v2842 = vmax.f32 %v2545, 0.0
        %v2843 = vmax.f32 %v2769, 0.0
        %v2844 = vmax.f32 %v2771, 0.0
        %v2845 = vmax.f32 %v2547, 0.0
        %v2846 = vmax.f32 %v2549, 0.0
        %v2847 = vmax.f32 %v2773, 0.0
        %v2848 = vmax.f32 %v2775, 0.0
        %v2849 = vmax.f32 %v2553, 0.0
        %v2850 = vmax.f32 %v2555, 0.0
        %v2851 = vmax.f32 %v2779, 0.0
        %v2852 = vmax.f32 %v2781, 0.0
        %v2853 = vmax.f32 %v2557, 0.0
        %v2854 = vmax.f32 %v2559, 0.0
        %v2855 = vmax.f32 %v2783, 0.0
        %v2856 = vmax.f32 %v2785, 0.0
        %v2857 = vmax.f32 %v2563, 0.0
        %v2858 = vmax.f32 %v2565, 0.0
        %v2859 = vmax.f32 %v2789, 0.0
        %v2860 = vmax.f32 %v2791, 0.0
        %v2861 = vmax.f32 %v2567, 0.0
        %v2862 = vmax.f32 %v2569, 0.0
        %v2863 = vmax.f32 %v2793, 0.0
        %v2864 = vmax.f32 %v2795, 0.0
        %v2865 = vmax.f32 %v2573, 0.0
        %v2866 = vmax.f32 %v2575, 0.0
        %v2867 = vmax.f32 %v2799, 0.0
        %v2868 = vmax.f32 %v2801, 0.0
        %v2869 = vmax.f32 %v2577, 0.0
        %v2870 = vmax.f32 %v2579, 0.0
        %v2871 = vmax.f32 %v2803, 0.0
        %v2872 = vmax.f32 %v2805, 0.0
        %v2873 = vmax.f32 %v2583, 0.0
        %v2874 = vmax.f32 %v2585, 0.0
        %v2875 = vmax.f32 %v2809, 0.0
        %v2876 = vmax.f32 %v2811, 0.0
        %v2877 = vmax.f32 %v2587, 0.0
        %v2878 = vmax.f32 %v2589, 0.0
        %v2879 = vmax.f32 %v2813, 0.0
        %v2880 = vmax.f32 %v2815, 0.0
        %v2881 = vpack.c.bf16 %v2821, %v2817
        %v2882 = vpack.c.bf16 %v2822, %v2818
        %v2883 = vpack.c.bf16 %v2823, %v2819
        %v2884 = vpack.c.bf16 %v2824, %v2820
        %v2885 = vpack.c.bf16 %v2829, %v2825
        %v2886 = vpack.c.bf16 %v2830, %v2826
        %v2887 = vpack.c.bf16 %v2831, %v2827
        %v2888 = vpack.c.bf16 %v2832, %v2828
        %v2889 = vpack.c.bf16 %v2837, %v2833
        %v2890 = vpack.c.bf16 %v2838, %v2834
        %v2891 = vpack.c.bf16 %v2839, %v2835
        %v2892 = vpack.c.bf16 %v2840, %v2836
        %v2893 = vpack.c.bf16 %v2845, %v2841
        %v2894 = vpack.c.bf16 %v2846, %v2842
        %v2895 = vpack.c.bf16 %v2847, %v2843
        %v2896 = vpack.c.bf16 %v2848, %v2844
        %v2897 = vpack.c.bf16 %v2853, %v2849
        %v2898 = vpack.c.bf16 %v2854, %v2850
        %v2899 = vpack.c.bf16 %v2855, %v2851
        %v2900 = vpack.c.bf16 %v2856, %v2852
        %v2901 = vpack.c.bf16 %v2861, %v2857
        %v2902 = vpack.c.bf16 %v2862, %v2858
        %v2903 = vpack.c.bf16 %v2863, %v2859
        %v2904 = vpack.c.bf16 %v2864, %v2860
        %v2905 = vpack.c.bf16 %v2869, %v2865
        %v2906 = vpack.c.bf16 %v2870, %v2866
        %v2907 = vpack.c.bf16 %v2871, %v2867
        %v2908 = vpack.c.bf16 %v2872, %v2868
        %v2909 = vpack.c.bf16 %v2877, %v2873
        %v2910 = vpack.c.bf16 %v2878, %v2874
        %v2911 = vpack.c.bf16 %v2879, %v2875
        %v2912 = vpack.c.bf16 %v2880, %v2876
        %v2913 = vld [vmem:[#allocation10] sm:$0xff]
        %v2914 = vld [vmem:[#allocation10 + $0x8] sm:$0xff]
        %v2915 = vld [vmem:[#allocation10 + $0x10] sm:$0xff]
        %v2916 = vld [vmem:[#allocation10 + $0x18] sm:$0xff]
        %v2917 = vld [vmem:[#allocation10 + $0x20] sm:$0xff]
        %v2918 = vld [vmem:[#allocation10 + $0x28] sm:$0xff]
        %v2919 = vld [vmem:[#allocation10 + $0x30] sm:$0xff]
        %v2920 = vld [vmem:[#allocation10 + $0x38] sm:$0xff]
        %v2921 = vld [vmem:[#allocation10 + $0x40] sm:$0xff]
        %v2922 = vld [vmem:[#allocation10 + $0x48] sm:$0xff]
        %v2923 = vld [vmem:[#allocation10 + $0x50] sm:$0xff]
        %v2924 = vld [vmem:[#allocation10 + $0x58] sm:$0xff]
        %v2925 = vld [vmem:[#allocation10 + $0x60] sm:$0xff]
        %v2926 = vld [vmem:[#allocation10 + $0x68] sm:$0xff]
        %v2927 = vld [vmem:[#allocation10 + $0x70] sm:$0xff]
        %v2928 = vld [vmem:[#allocation10 + $0x78] sm:$0xff]
        %v2929 = vld [vmem:[#allocation10 + $0x80] sm:$0xff]
        %v2930 = vld [vmem:[#allocation10 + $0x88] sm:$0xff]
        %v2931 = vld [vmem:[#allocation10 + $0x90] sm:$0xff]
        %v2932 = vld [vmem:[#allocation10 + $0x98] sm:$0xff]
        %v2933 = vld [vmem:[#allocation10 + $0xa0] sm:$0xff]
        %v2934 = vld [vmem:[#allocation10 + $0xa8] sm:$0xff]
        %v2935 = vld [vmem:[#allocation10 + $0xb0] sm:$0xff]
        %v2936 = vld [vmem:[#allocation10 + $0xb8] sm:$0xff]
        %v2937 = vld [vmem:[#allocation10 + $0xc0] sm:$0xff]
        %v2938 = vld [vmem:[#allocation10 + $0xc8] sm:$0xff]
        %v2939 = vld [vmem:[#allocation10 + $0xd0] sm:$0xff]
        %v2940 = vld [vmem:[#allocation10 + $0xd8] sm:$0xff]
        %v2941 = vld [vmem:[#allocation10 + $0xe0] sm:$0xff]
        %v2942 = vld [vmem:[#allocation10 + $0xe8] sm:$0xff]
        %v2943 = vld [vmem:[#allocation10 + $0xf0] sm:$0xff]
        %v2944 = vld [vmem:[#allocation10 + $0xf8] sm:$0xff]
        %v2945 = vld [vmem:[#allocation10 + $0x100] sm:$0xff]
        %v2946 = vld [vmem:[#allocation10 + $0x108] sm:$0xff]
        %v2947 = vld [vmem:[#allocation10 + $0x110] sm:$0xff]
        %v2948 = vld [vmem:[#allocation10 + $0x118] sm:$0xff]
        %v2949 = vld [vmem:[#allocation10 + $0x120] sm:$0xff]
        %v2950 = vld [vmem:[#allocation10 + $0x128] sm:$0xff]
        %v2951 = vld [vmem:[#allocation10 + $0x130] sm:$0xff]
        %v2952 = vld [vmem:[#allocation10 + $0x138] sm:$0xff]
        %v2953 = vld [vmem:[#allocation10 + $0x140] sm:$0xff]
        %v2954 = vld [vmem:[#allocation10 + $0x148] sm:$0xff]
        %v2955 = vld [vmem:[#allocation10 + $0x150] sm:$0xff]
        %v2956 = vld [vmem:[#allocation10 + $0x158] sm:$0xff]
        %v2957 = vld [vmem:[#allocation10 + $0x160] sm:$0xff]
        %v2958 = vld [vmem:[#allocation10 + $0x168] sm:$0xff]
        %v2959 = vld [vmem:[#allocation10 + $0x170] sm:$0xff]
        %v2960 = vld [vmem:[#allocation10 + $0x178] sm:$0xff]
        %v2961 = vld [vmem:[#allocation10 + $0x180] sm:$0xff]
        %v2962 = vld [vmem:[#allocation10 + $0x188] sm:$0xff]
        %v2963 = vld [vmem:[#allocation10 + $0x190] sm:$0xff]
        %v2964 = vld [vmem:[#allocation10 + $0x198] sm:$0xff]
        %v2965 = vld [vmem:[#allocation10 + $0x1a0] sm:$0xff]
        %v2966 = vld [vmem:[#allocation10 + $0x1a8] sm:$0xff]
        %v2967 = vld [vmem:[#allocation10 + $0x1b0] sm:$0xff]
        %v2968 = vld [vmem:[#allocation10 + $0x1b8] sm:$0xff]
        %v2969 = vld [vmem:[#allocation10 + $0x1c0] sm:$0xff]
        %v2970 = vld [vmem:[#allocation10 + $0x1c8] sm:$0xff]
        %v2971 = vld [vmem:[#allocation10 + $0x1d0] sm:$0xff]
        %v2972 = vld [vmem:[#allocation10 + $0x1d8] sm:$0xff]
        %v2973 = vld [vmem:[#allocation10 + $0x1e0] sm:$0xff]
        %v2974 = vld [vmem:[#allocation10 + $0x1e8] sm:$0xff]
        %v2975 = vld [vmem:[#allocation10 + $0x1f0] sm:$0xff]
        %v2976 = vld [vmem:[#allocation10 + $0x1f8] sm:$0xff]
        %v2977 = vld [vmem:[#allocation13 + $0xa] sm:$0x3]
        %v2979 = vlaneseq
        %v2980 = vshrl.u32 %v2979, 7
        %v2981 = vsub.s32 0, %v2980
        %v2982 = vrot.slane %v2977, %v2981
        %v2983 = vlaneseq
        %v2984 = vshrl.u32 %v2983, 7
        %v2985 = vsub.s32 1, %v2984
        %v2986 = vrot.slane %v2977, %v2985
        %v3053 = vunpack.c.l.b16 %v2913
        %v3054 = vunpack.c.h.b16 %v2913
        %v3055 = vunpack.c.l.b16 %v2914
        %v3056 = vunpack.c.h.b16 %v2914
        %v3057 = vunpack.c.l.b16 %v2915
        %v3058 = vunpack.c.h.b16 %v2915
        %v3059 = vunpack.c.l.b16 %v2916
        %v3060 = vunpack.c.h.b16 %v2916
        %v3061 = vunpack.c.l.b16 %v2917
        %v3062 = vunpack.c.h.b16 %v2917
        %v3063 = vunpack.c.l.b16 %v2918
        %v3064 = vunpack.c.h.b16 %v2918
        %v3065 = vunpack.c.l.b16 %v2919
        %v3066 = vunpack.c.h.b16 %v2919
        %v3067 = vunpack.c.l.b16 %v2920
        %v3068 = vunpack.c.h.b16 %v2920
        %v3069 = vunpack.c.l.b16 %v2921
        %v3070 = vunpack.c.h.b16 %v2921
        %v3071 = vunpack.c.l.b16 %v2922
        %v3072 = vunpack.c.h.b16 %v2922
        %v3073 = vunpack.c.l.b16 %v2923
        %v3074 = vunpack.c.h.b16 %v2923
        %v3075 = vunpack.c.l.b16 %v2924
        %v3076 = vunpack.c.h.b16 %v2924
        %v3077 = vunpack.c.l.b16 %v2925
        %v3078 = vunpack.c.h.b16 %v2925
        %v3079 = vunpack.c.l.b16 %v2926
        %v3080 = vunpack.c.h.b16 %v2926
        %v3081 = vunpack.c.l.b16 %v2927
        %v3082 = vunpack.c.h.b16 %v2927
        %v3083 = vunpack.c.l.b16 %v2928
        %v3084 = vunpack.c.h.b16 %v2928
        %v3085 = vunpack.c.l.b16 %v2929
        %v3086 = vunpack.c.h.b16 %v2929
        %v3087 = vunpack.c.l.b16 %v2930
        %v3088 = vunpack.c.h.b16 %v2930
        %v3089 = vunpack.c.l.b16 %v2931
        %v3090 = vunpack.c.h.b16 %v2931
        %v3091 = vunpack.c.l.b16 %v2932
        %v3092 = vunpack.c.h.b16 %v2932
        %v3093 = vunpack.c.l.b16 %v2933
        %v3094 = vunpack.c.h.b16 %v2933
        %v3095 = vunpack.c.l.b16 %v2934
        %v3096 = vunpack.c.h.b16 %v2934
        %v3097 = vunpack.c.l.b16 %v2935
        %v3098 = vunpack.c.h.b16 %v2935
        %v3099 = vunpack.c.l.b16 %v2936
        %v3100 = vunpack.c.h.b16 %v2936
        %v3101 = vunpack.c.l.b16 %v2937
        %v3102 = vunpack.c.h.b16 %v2937
        %v3103 = vunpack.c.l.b16 %v2938
        %v3104 = vunpack.c.h.b16 %v2938
        %v3105 = vunpack.c.l.b16 %v2939
        %v3106 = vunpack.c.h.b16 %v2939
        %v3107 = vunpack.c.l.b16 %v2940
        %v3108 = vunpack.c.h.b16 %v2940
        %v3109 = vunpack.c.l.b16 %v2941
        %v3110 = vunpack.c.h.b16 %v2941
        %v3111 = vunpack.c.l.b16 %v2942
        %v3112 = vunpack.c.h.b16 %v2942
        %v3113 = vunpack.c.l.b16 %v2943
        %v3114 = vunpack.c.h.b16 %v2943
        %v3115 = vunpack.c.l.b16 %v2944
        %v3116 = vunpack.c.h.b16 %v2944
        %v3117 = vunpack.c.l.b16 %v2945
        %v3118 = vunpack.c.h.b16 %v2945
        %v3119 = vunpack.c.l.b16 %v2946
        %v3120 = vunpack.c.h.b16 %v2946
        %v3121 = vunpack.c.l.b16 %v2947
        %v3122 = vunpack.c.h.b16 %v2947
        %v3123 = vunpack.c.l.b16 %v2948
        %v3124 = vunpack.c.h.b16 %v2948
        %v3125 = vunpack.c.l.b16 %v2949
        %v3126 = vunpack.c.h.b16 %v2949
        %v3127 = vunpack.c.l.b16 %v2950
        %v3128 = vunpack.c.h.b16 %v2950
        %v3129 = vunpack.c.l.b16 %v2951
        %v3130 = vunpack.c.h.b16 %v2951
        %v3131 = vunpack.c.l.b16 %v2952
        %v3132 = vunpack.c.h.b16 %v2952
        %v3133 = vunpack.c.l.b16 %v2953
        %v3134 = vunpack.c.h.b16 %v2953
        %v3135 = vunpack.c.l.b16 %v2954
        %v3136 = vunpack.c.h.b16 %v2954
        %v3137 = vunpack.c.l.b16 %v2955
        %v3138 = vunpack.c.h.b16 %v2955
        %v3139 = vunpack.c.l.b16 %v2956
        %v3140 = vunpack.c.h.b16 %v2956
        %v3141 = vunpack.c.l.b16 %v2957
        %v3142 = vunpack.c.h.b16 %v2957
        %v3143 = vunpack.c.l.b16 %v2958
        %v3144 = vunpack.c.h.b16 %v2958
        %v3145 = vunpack.c.l.b16 %v2959
        %v3146 = vunpack.c.h.b16 %v2959
        %v3147 = vunpack.c.l.b16 %v2960
        %v3148 = vunpack.c.h.b16 %v2960
        %v3149 = vunpack.c.l.b16 %v2961
        %v3150 = vunpack.c.h.b16 %v2961
        %v3151 = vunpack.c.l.b16 %v2962
        %v3152 = vunpack.c.h.b16 %v2962
        %v3153 = vunpack.c.l.b16 %v2963
        %v3154 = vunpack.c.h.b16 %v2963
        %v3155 = vunpack.c.l.b16 %v2964
        %v3156 = vunpack.c.h.b16 %v2964
        %v3157 = vunpack.c.l.b16 %v2965
        %v3158 = vunpack.c.h.b16 %v2965
        %v3159 = vunpack.c.l.b16 %v2966
        %v3160 = vunpack.c.h.b16 %v2966
        %v3161 = vunpack.c.l.b16 %v2967
        %v3162 = vunpack.c.h.b16 %v2967
        %v3163 = vunpack.c.l.b16 %v2968
        %v3164 = vunpack.c.h.b16 %v2968
        %v3165 = vunpack.c.l.b16 %v2969
        %v3166 = vunpack.c.h.b16 %v2969
        %v3167 = vunpack.c.l.b16 %v2970
        %v3168 = vunpack.c.h.b16 %v2970
        %v3169 = vunpack.c.l.b16 %v2971
        %v3170 = vunpack.c.h.b16 %v2971
        %v3171 = vunpack.c.l.b16 %v2972
        %v3172 = vunpack.c.h.b16 %v2972
        %v3173 = vunpack.c.l.b16 %v2973
        %v3174 = vunpack.c.h.b16 %v2973
        %v3175 = vunpack.c.l.b16 %v2974
        %v3176 = vunpack.c.h.b16 %v2974
        %v3177 = vunpack.c.l.b16 %v2975
        %v3178 = vunpack.c.h.b16 %v2975
        %v3179 = vunpack.c.l.b16 %v2976
        %v3180 = vunpack.c.h.b16 %v2976
        %v3181 = vpack.c.b16 %v3055, %v3053
        %v3182 = vpack.c.b16 %v3056, %v3054
        %v3183 = vpack.c.b16 %v3059, %v3057
        %v3184 = vpack.c.b16 %v3060, %v3058
        %v3185 = vpack.c.b16 %v3063, %v3061
        %v3186 = vpack.c.b16 %v3064, %v3062
        %v3187 = vpack.c.b16 %v3067, %v3065
        %v3188 = vpack.c.b16 %v3068, %v3066
        %v3189 = vpack.c.b16 %v3071, %v3069
        %v3190 = vpack.c.b16 %v3072, %v3070
        %v3191 = vpack.c.b16 %v3075, %v3073
        %v3192 = vpack.c.b16 %v3076, %v3074
        %v3193 = vpack.c.b16 %v3079, %v3077
        %v3194 = vpack.c.b16 %v3080, %v3078
        %v3195 = vpack.c.b16 %v3083, %v3081
        %v3196 = vpack.c.b16 %v3084, %v3082
        %v3197 = vpack.c.b16 %v3087, %v3085
        %v3198 = vpack.c.b16 %v3088, %v3086
        %v3199 = vpack.c.b16 %v3091, %v3089
        %v3200 = vpack.c.b16 %v3092, %v3090
        %v3201 = vpack.c.b16 %v3095, %v3093
        %v3202 = vpack.c.b16 %v3096, %v3094
        %v3203 = vpack.c.b16 %v3099, %v3097
        %v3204 = vpack.c.b16 %v3100, %v3098
        %v3205 = vpack.c.b16 %v3103, %v3101
        %v3206 = vpack.c.b16 %v3104, %v3102
        %v3207 = vpack.c.b16 %v3107, %v3105
        %v3208 = vpack.c.b16 %v3108, %v3106
        %v3209 = vpack.c.b16 %v3111, %v3109
        %v3210 = vpack.c.b16 %v3112, %v3110
        %v3211 = vpack.c.b16 %v3115, %v3113
        %v3212 = vpack.c.b16 %v3116, %v3114
        %v3213 = vpack.c.b16 %v3119, %v3117
        %v3214 = vpack.c.b16 %v3120, %v3118
        %v3215 = vpack.c.b16 %v3123, %v3121
        %v3216 = vpack.c.b16 %v3124, %v3122
        %v3217 = vpack.c.b16 %v3127, %v3125
        %v3218 = vpack.c.b16 %v3128, %v3126
        %v3219 = vpack.c.b16 %v3131, %v3129
        %v3220 = vpack.c.b16 %v3132, %v3130
        %v3221 = vpack.c.b16 %v3135, %v3133
        %v3222 = vpack.c.b16 %v3136, %v3134
        %v3223 = vpack.c.b16 %v3139, %v3137
        %v3224 = vpack.c.b16 %v3140, %v3138
        %v3225 = vpack.c.b16 %v3143, %v3141
        %v3226 = vpack.c.b16 %v3144, %v3142
        %v3227 = vpack.c.b16 %v3147, %v3145
        %v3228 = vpack.c.b16 %v3148, %v3146
        %v3229 = vpack.c.b16 %v3151, %v3149
        %v3230 = vpack.c.b16 %v3152, %v3150
        %v3231 = vpack.c.b16 %v3155, %v3153
        %v3232 = vpack.c.b16 %v3156, %v3154
        %v3233 = vpack.c.b16 %v3159, %v3157
        %v3234 = vpack.c.b16 %v3160, %v3158
        %v3235 = vpack.c.b16 %v3163, %v3161
        %v3236 = vpack.c.b16 %v3164, %v3162
        %v3237 = vpack.c.b16 %v3167, %v3165
        %v3238 = vpack.c.b16 %v3168, %v3166
        %v3239 = vpack.c.b16 %v3171, %v3169
        %v3240 = vpack.c.b16 %v3172, %v3170
        %v3241 = vpack.c.b16 %v3175, %v3173
        %v3242 = vpack.c.b16 %v3176, %v3174
        %v3243 = vpack.c.b16 %v3179, %v3177
        %v3244 = vpack.c.b16 %v3180, %v3178
        %3309 = vmatprep.subr.bf16.mxu0 %v3196
        %3310 = vmatpush1.bf16.msra.mxu0 %v3195
        %3311 = vmatprep.subr.bf16.mxu0 %v3194
        %3312 = vmatpush1.bf16.msra.mxu0 %v3193
        %3313 = vmatprep.subr.bf16.mxu0 %v3192
        %3314 = vmatpush1.bf16.msra.mxu0 %v3191
        %3315 = vmatprep.subr.bf16.mxu0 %v3190
        %3316 = vmatpush1.bf16.msra.mxu0 %v3189
        %3317 = vmatprep.subr.bf16.mxu0 %v3188
        %3318 = vmatpush1.bf16.msra.mxu0 %v3187
        %3319 = vmatprep.subr.bf16.mxu0 %v3186
        %3320 = vmatpush1.bf16.msra.mxu0 %v3185
        %3321 = vmatprep.subr.bf16.mxu0 %v3184
        %3322 = vmatpush1.bf16.msra.mxu0 %v3183
        %3323 = vmatprep.subr.bf16.mxu0 %v3182
        %3324 = vmatpush1.bf16.msra.mxu0 %v3181
        %3325 = vmatprep.subr.bf16.mxu0 %v3212
        %3326 = vmatpush2.bf16.msra.mxu0 %v3211
        %3327 = vmatprep.subr.bf16.mxu0 %v3210
        %3328 = vmatpush2.bf16.msra.mxu0 %v3209
        %3329 = vmatprep.subr.bf16.mxu0 %v3208
        %3330 = vmatpush2.bf16.msra.mxu0 %v3207
        %3331 = vmatprep.subr.bf16.mxu0 %v3206
        %3332 = vmatpush2.bf16.msra.mxu0 %v3205
        %3333 = vmatprep.subr.bf16.mxu0 %v3204
        %3334 = vmatpush2.bf16.msra.mxu0 %v3203
        %3335 = vmatprep.subr.bf16.mxu0 %v3202
        %3336 = vmatpush2.bf16.msra.mxu0 %v3201
        %3337 = vmatprep.subr.bf16.mxu0 %v3200
        %3338 = vmatpush2.bf16.msra.mxu0 %v3199
        %3339 = vmatprep.subr.bf16.mxu0 %v3198
        %3340 = vmatpush2.bf16.msra.mxu0 %v3197
        %3341 = vmatprep.mubr.bf16.mxu0 %v2882
        %3342 = vmatmul.mubr.bf16.gmra.mxu0 %v2881
        %v3343 = vpop.f32.mrf.mxu0
        %v3344 = vadd.f32 %v2982, %v3343
        %v3345 = vpop.f32.mrf.mxu0
        %v3346 = vadd.f32 %v2986, %v3345
        %v3347 = vpop.f32.mrf.mxu0
        %v3348 = vadd.f32 %v2982, %v3347
        %v3349 = vpop.f32.mrf.mxu0
        %v3350 = vadd.f32 %v2986, %v3349
        %3351 = vmatprep.mubr.bf16.mxu0 %v2886
        %3352 = vmatmul.mubr.bf16.gmra.mxu0 %v2885
        %v3353 = vpop.f32.mrf.mxu0
        %v3354 = vadd.f32 %v2982, %v3353
        %v3355 = vpop.f32.mrf.mxu0
        %v3356 = vadd.f32 %v2986, %v3355
        %v3357 = vpop.f32.mrf.mxu0
        %v3358 = vadd.f32 %v2982, %v3357
        %v3359 = vpop.f32.mrf.mxu0
        %v3360 = vadd.f32 %v2986, %v3359
        %3361 = vmatprep.mubr.bf16.mxu0 %v2890
        %3362 = vmatmul.mubr.bf16.gmra.mxu0 %v2889
        %v3363 = vpop.f32.mrf.mxu0
        %v3364 = vadd.f32 %v2982, %v3363
        %v3365 = vpop.f32.mrf.mxu0
        %v3366 = vadd.f32 %v2986, %v3365
        %v3367 = vpop.f32.mrf.mxu0
        %v3368 = vadd.f32 %v2982, %v3367
        %v3369 = vpop.f32.mrf.mxu0
        %v3370 = vadd.f32 %v2986, %v3369
        %3371 = vmatprep.mubr.bf16.mxu0 %v2894
        %3372 = vmatmul.mubr.bf16.gmra.mxu0 %v2893
        %v3373 = vpop.f32.mrf.mxu0
        %v3374 = vadd.f32 %v2982, %v3373
        %v3375 = vpop.f32.mrf.mxu0
        %v3376 = vadd.f32 %v2986, %v3375
        %v3377 = vpop.f32.mrf.mxu0
        %v3378 = vadd.f32 %v2982, %v3377
        %v3379 = vpop.f32.mrf.mxu0
        %v3380 = vadd.f32 %v2986, %v3379
        %3381 = vmatprep.mubr.bf16.mxu0 %v2898
        %3382 = vmatmul.mubr.bf16.gmra.mxu0 %v2897
        %v3383 = vpop.f32.mrf.mxu0
        %v3384 = vadd.f32 %v2982, %v3383
        %v3385 = vpop.f32.mrf.mxu0
        %v3386 = vadd.f32 %v2986, %v3385
        %v3387 = vpop.f32.mrf.mxu0
        %v3388 = vadd.f32 %v2982, %v3387
        %v3389 = vpop.f32.mrf.mxu0
        %v3390 = vadd.f32 %v2986, %v3389
        %3391 = vmatprep.mubr.bf16.mxu0 %v2902
        %3392 = vmatmul.mubr.bf16.gmra.mxu0 %v2901
        %v3393 = vpop.f32.mrf.mxu0
        %v3394 = vadd.f32 %v2982, %v3393
        %v3395 = vpop.f32.mrf.mxu0
        %v3396 = vadd.f32 %v2986, %v3395
        %v3397 = vpop.f32.mrf.mxu0
        %v3398 = vadd.f32 %v2982, %v3397
        %v3399 = vpop.f32.mrf.mxu0
        %v3400 = vadd.f32 %v2986, %v3399
        %3401 = vmatprep.mubr.bf16.mxu0 %v2906
        %3402 = vmatmul.mubr.bf16.gmra.mxu0 %v2905
        %v3403 = vpop.f32.mrf.mxu0
        %v3404 = vadd.f32 %v2982, %v3403
        %v3405 = vpop.f32.mrf.mxu0
        %v3406 = vadd.f32 %v2986, %v3405
        %v3407 = vpop.f32.mrf.mxu0
        %v3408 = vadd.f32 %v2982, %v3407
        %v3409 = vpop.f32.mrf.mxu0
        %v3410 = vadd.f32 %v2986, %v3409
        %3411 = vmatprep.mubr.bf16.mxu0 %v2910
        %3412 = vmatmul.mubr.bf16.gmra.mxu0 %v2909
        %v3413 = vpop.f32.mrf.mxu0
        %v3414 = vadd.f32 %v2982, %v3413
        %v3415 = vpop.f32.mrf.mxu0
        %v3416 = vadd.f32 %v2986, %v3415
        %v3417 = vpop.f32.mrf.mxu0
        %v3418 = vadd.f32 %v2982, %v3417
        %v3419 = vpop.f32.mrf.mxu0
        %v3420 = vadd.f32 %v2986, %v3419
        %3421 = vdwg.mxu0
        %3422 = vmatprep.subr.bf16.mxu0 %v3228
        %3423 = vmatpush1.bf16.msra.mxu0 %v3227
        %3424 = vmatprep.subr.bf16.mxu0 %v3226
        %3425 = vmatpush1.bf16.msra.mxu0 %v3225
        %3426 = vmatprep.subr.bf16.mxu0 %v3224
        %3427 = vmatpush1.bf16.msra.mxu0 %v3223
        %3428 = vmatprep.subr.bf16.mxu0 %v3222
        %3429 = vmatpush1.bf16.msra.mxu0 %v3221
        %3430 = vmatprep.subr.bf16.mxu0 %v3220
        %3431 = vmatpush1.bf16.msra.mxu0 %v3219
        %3432 = vmatprep.subr.bf16.mxu0 %v3218
        %3433 = vmatpush1.bf16.msra.mxu0 %v3217
        %3434 = vmatprep.subr.bf16.mxu0 %v3216
        %3435 = vmatpush1.bf16.msra.mxu0 %v3215
        %3436 = vmatprep.subr.bf16.mxu0 %v3214
        %3437 = vmatpush1.bf16.msra.mxu0 %v3213
        %3438 = vmatprep.subr.bf16.mxu0 %v3244
        %3439 = vmatpush2.bf16.msra.mxu0 %v3243
        %3440 = vmatprep.subr.bf16.mxu0 %v3242
        %3441 = vmatpush2.bf16.msra.mxu0 %v3241
        %3442 = vmatprep.subr.bf16.mxu0 %v3240
        %3443 = vmatpush2.bf16.msra.mxu0 %v3239
        %3444 = vmatprep.subr.bf16.mxu0 %v3238
        %3445 = vmatpush2.bf16.msra.mxu0 %v3237
        %3446 = vmatprep.subr.bf16.mxu0 %v3236
        %3447 = vmatpush2.bf16.msra.mxu0 %v3235
        %3448 = vmatprep.subr.bf16.mxu0 %v3234
        %3449 = vmatpush2.bf16.msra.mxu0 %v3233
        %3450 = vmatprep.subr.bf16.mxu0 %v3232
        %3451 = vmatpush2.bf16.msra.mxu0 %v3231
        %3452 = vmatprep.subr.bf16.mxu0 %v3230
        %3453 = vmatpush2.bf16.msra.mxu0 %v3229
        %3454 = vmatprep.mubr.bf16.mxu0 %v2884
        %3455 = vmatmul.mubr.bf16.gmra.mxu0 %v2883
        %v3456 = vpop.f32.mrf.mxu0
        %v3457 = vadd.f32 %v3344, %v3456
        %v3458 = vpop.f32.mrf.mxu0
        %v3459 = vadd.f32 %v3346, %v3458
        %v3460 = vpop.f32.mrf.mxu0
        %v3461 = vadd.f32 %v3348, %v3460
        %v3462 = vpop.f32.mrf.mxu0
        %v3463 = vadd.f32 %v3350, %v3462
        %3464 = vmatprep.mubr.bf16.mxu0 %v2888
        %3465 = vmatmul.mubr.bf16.gmra.mxu0 %v2887
        %v3466 = vpop.f32.mrf.mxu0
        %v3467 = vadd.f32 %v3354, %v3466
        %v3468 = vpop.f32.mrf.mxu0
        %v3469 = vadd.f32 %v3356, %v3468
        %v3470 = vpop.f32.mrf.mxu0
        %v3471 = vadd.f32 %v3358, %v3470
        %v3472 = vpop.f32.mrf.mxu0
        %v3473 = vadd.f32 %v3360, %v3472
        %3474 = vmatprep.mubr.bf16.mxu0 %v2892
        %3475 = vmatmul.mubr.bf16.gmra.mxu0 %v2891
        %v3476 = vpop.f32.mrf.mxu0
        %v3477 = vadd.f32 %v3364, %v3476
        %v3478 = vpop.f32.mrf.mxu0
        %v3479 = vadd.f32 %v3366, %v3478
        %v3480 = vpop.f32.mrf.mxu0
        %v3481 = vadd.f32 %v3368, %v3480
        %v3482 = vpop.f32.mrf.mxu0
        %v3483 = vadd.f32 %v3370, %v3482
        %3484 = vmatprep.mubr.bf16.mxu0 %v2896
        %3485 = vmatmul.mubr.bf16.gmra.mxu0 %v2895
        %v3486 = vpop.f32.mrf.mxu0
        %v3487 = vadd.f32 %v3374, %v3486
        %v3488 = vpop.f32.mrf.mxu0
        %v3489 = vadd.f32 %v3376, %v3488
        %v3490 = vpop.f32.mrf.mxu0
        %v3491 = vadd.f32 %v3378, %v3490
        %v3492 = vpop.f32.mrf.mxu0
        %v3493 = vadd.f32 %v3380, %v3492
        %3494 = vmatprep.mubr.bf16.mxu0 %v2900
        %3495 = vmatmul.mubr.bf16.gmra.mxu0 %v2899
        %v3496 = vpop.f32.mrf.mxu0
        %v3497 = vadd.f32 %v3384, %v3496
        %v3498 = vpop.f32.mrf.mxu0
        %v3499 = vadd.f32 %v3386, %v3498
        %v3500 = vpop.f32.mrf.mxu0
        %v3501 = vadd.f32 %v3388, %v3500
        %v3502 = vpop.f32.mrf.mxu0
        %v3503 = vadd.f32 %v3390, %v3502
        %3504 = vmatprep.mubr.bf16.mxu0 %v2904
        %3505 = vmatmul.mubr.bf16.gmra.mxu0 %v2903
        %v3506 = vpop.f32.mrf.mxu0
        %v3507 = vadd.f32 %v3394, %v3506
        %v3508 = vpop.f32.mrf.mxu0
        %v3509 = vadd.f32 %v3396, %v3508
        %v3510 = vpop.f32.mrf.mxu0
        %v3511 = vadd.f32 %v3398, %v3510
        %v3512 = vpop.f32.mrf.mxu0
        %v3513 = vadd.f32 %v3400, %v3512
        %3514 = vmatprep.mubr.bf16.mxu0 %v2908
        %3515 = vmatmul.mubr.bf16.gmra.mxu0 %v2907
        %v3516 = vpop.f32.mrf.mxu0
        %v3517 = vadd.f32 %v3404, %v3516
        %v3518 = vpop.f32.mrf.mxu0
        %v3519 = vadd.f32 %v3406, %v3518
        %v3520 = vpop.f32.mrf.mxu0
        %v3521 = vadd.f32 %v3408, %v3520
        %v3522 = vpop.f32.mrf.mxu0
        %v3523 = vadd.f32 %v3410, %v3522
        %3524 = vmatprep.mubr.bf16.mxu0 %v2912
        %3525 = vmatmul.mubr.bf16.gmra.mxu0 %v2911
        %v3526 = vpop.f32.mrf.mxu0
        %v3527 = vadd.f32 %v3414, %v3526
        %v3528 = vpop.f32.mrf.mxu0
        %v3529 = vadd.f32 %v3416, %v3528
        %v3530 = vpop.f32.mrf.mxu0
        %v3531 = vadd.f32 %v3418, %v3530
        %v3532 = vpop.f32.mrf.mxu0
        %v3533 = vadd.f32 %v3420, %v3532
        %3534 = vdwg.mxu0
        %v3535 = vmax.f32 %v3457, 0.0
        %v3536 = vmax.f32 %v3459, 0.0
        %v3537 = vmax.f32 %v3461, 0.0
        %v3538 = vmax.f32 %v3463, 0.0
        %v3539 = vmax.f32 %v3467, 0.0
        %v3540 = vmax.f32 %v3469, 0.0
        %v3541 = vmax.f32 %v3471, 0.0
        %v3542 = vmax.f32 %v3473, 0.0
        %v3543 = vmax.f32 %v3477, 0.0
        %v3544 = vmax.f32 %v3479, 0.0
        %v3545 = vmax.f32 %v3481, 0.0
        %v3546 = vmax.f32 %v3483, 0.0
        %v3547 = vmax.f32 %v3487, 0.0
        %v3548 = vmax.f32 %v3489, 0.0
        %v3549 = vmax.f32 %v3491, 0.0
        %v3550 = vmax.f32 %v3493, 0.0
        %v3551 = vmax.f32 %v3497, 0.0
        %v3552 = vmax.f32 %v3499, 0.0
        %v3553 = vmax.f32 %v3501, 0.0
        %v3554 = vmax.f32 %v3503, 0.0
        %v3555 = vmax.f32 %v3507, 0.0
        %v3556 = vmax.f32 %v3509, 0.0
        %v3557 = vmax.f32 %v3511, 0.0
        %v3558 = vmax.f32 %v3513, 0.0
        %v3559 = vmax.f32 %v3517, 0.0
        %v3560 = vmax.f32 %v3519, 0.0
        %v3561 = vmax.f32 %v3521, 0.0
        %v3562 = vmax.f32 %v3523, 0.0
        %v3563 = vmax.f32 %v3527, 0.0
        %v3564 = vmax.f32 %v3529, 0.0
        %v3565 = vmax.f32 %v3531, 0.0
        %v3566 = vmax.f32 %v3533, 0.0
        %v3567 = vpack.c.bf16 %v3537, %v3535
        %v3568 = vpack.c.bf16 %v3538, %v3536
        %v3569 = vpack.c.bf16 %v3541, %v3539
        %v3570 = vpack.c.bf16 %v3542, %v3540
        %v3571 = vpack.c.bf16 %v3545, %v3543
        %v3572 = vpack.c.bf16 %v3546, %v3544
        %v3573 = vpack.c.bf16 %v3549, %v3547
        %v3574 = vpack.c.bf16 %v3550, %v3548
        %v3575 = vpack.c.bf16 %v3553, %v3551
        %v3576 = vpack.c.bf16 %v3554, %v3552
        %v3577 = vpack.c.bf16 %v3557, %v3555
        %v3578 = vpack.c.bf16 %v3558, %v3556
        %v3579 = vpack.c.bf16 %v3561, %v3559
        %v3580 = vpack.c.bf16 %v3562, %v3560
        %v3581 = vpack.c.bf16 %v3565, %v3563
        %v3582 = vpack.c.bf16 %v3566, %v3564
        %v3583 = vld [vmem:[#allocation11] sm:$0xf]
        %v3584 = vld [vmem:[#allocation11 + $0x4] sm:$0xf]
        %v3585 = vld [vmem:[#allocation11 + $0x8] sm:$0xf]
        %v3586 = vld [vmem:[#allocation11 + $0xc] sm:$0xf]
        %v3587 = vld [vmem:[#allocation11 + $0x10] sm:$0xf]
        %v3588 = vld [vmem:[#allocation11 + $0x14] sm:$0xf]
        %v3589 = vld [vmem:[#allocation11 + $0x18] sm:$0xf]
        %v3590 = vld [vmem:[#allocation11 + $0x1c] sm:$0xf]
        %v3591 = vld [vmem:[#allocation11 + $0x20] sm:$0xf]
        %v3592 = vld [vmem:[#allocation11 + $0x24] sm:$0xf]
        %v3593 = vld [vmem:[#allocation11 + $0x28] sm:$0xf]
        %v3594 = vld [vmem:[#allocation11 + $0x2c] sm:$0xf]
        %v3595 = vld [vmem:[#allocation11 + $0x30] sm:$0xf]
        %v3596 = vld [vmem:[#allocation11 + $0x34] sm:$0xf]
        %v3597 = vld [vmem:[#allocation11 + $0x38] sm:$0xf]
        %v3598 = vld [vmem:[#allocation11 + $0x3c] sm:$0xf]
        %v3599 = vld [vmem:[#allocation11 + $0x40] sm:$0xf]
        %v3600 = vld [vmem:[#allocation11 + $0x44] sm:$0xf]
        %v3601 = vld [vmem:[#allocation11 + $0x48] sm:$0xf]
        %v3602 = vld [vmem:[#allocation11 + $0x4c] sm:$0xf]
        %v3603 = vld [vmem:[#allocation11 + $0x50] sm:$0xf]
        %v3604 = vld [vmem:[#allocation11 + $0x54] sm:$0xf]
        %v3605 = vld [vmem:[#allocation11 + $0x58] sm:$0xf]
        %v3606 = vld [vmem:[#allocation11 + $0x5c] sm:$0xf]
        %v3607 = vld [vmem:[#allocation11 + $0x60] sm:$0xf]
        %v3608 = vld [vmem:[#allocation11 + $0x64] sm:$0xf]
        %v3609 = vld [vmem:[#allocation11 + $0x68] sm:$0xf]
        %v3610 = vld [vmem:[#allocation11 + $0x6c] sm:$0xf]
        %v3611 = vld [vmem:[#allocation11 + $0x70] sm:$0xf]
        %v3612 = vld [vmem:[#allocation11 + $0x74] sm:$0xf]
        %v3613 = vld [vmem:[#allocation11 + $0x78] sm:$0xf]
        %v3614 = vld [vmem:[#allocation11 + $0x7c] sm:$0xf]
        %v3615 = vld [vmem:[#allocation13 + $0xc] sm:$0x1]
        %v3617 = vlaneseq
        %v3618 = vshrl.u32 %v3617, 7
        %v3619 = vsub.s32 0, %v3618
        %v3620 = vrot.slane %v3615, %v3619
        %v3654 = vunpack.c.l.b16 %v3583
        %v3655 = vunpack.c.l.b16 %v3584
        %v3656 = vunpack.c.l.b16 %v3585
        %v3657 = vunpack.c.l.b16 %v3586
        %v3658 = vunpack.c.l.b16 %v3587
        %v3659 = vunpack.c.l.b16 %v3588
        %v3660 = vunpack.c.l.b16 %v3589
        %v3661 = vunpack.c.l.b16 %v3590
        %v3662 = vunpack.c.l.b16 %v3591
        %v3663 = vunpack.c.l.b16 %v3592
        %v3664 = vunpack.c.l.b16 %v3593
        %v3665 = vunpack.c.l.b16 %v3594
        %v3666 = vunpack.c.l.b16 %v3595
        %v3667 = vunpack.c.l.b16 %v3596
        %v3668 = vunpack.c.l.b16 %v3597
        %v3669 = vunpack.c.l.b16 %v3598
        %v3670 = vunpack.c.l.b16 %v3599
        %v3671 = vunpack.c.l.b16 %v3600
        %v3672 = vunpack.c.l.b16 %v3601
        %v3673 = vunpack.c.l.b16 %v3602
        %v3674 = vunpack.c.l.b16 %v3603
        %v3675 = vunpack.c.l.b16 %v3604
        %v3676 = vunpack.c.l.b16 %v3605
        %v3677 = vunpack.c.l.b16 %v3606
        %v3678 = vunpack.c.l.b16 %v3607
        %v3679 = vunpack.c.l.b16 %v3608
        %v3680 = vunpack.c.l.b16 %v3609
        %v3681 = vunpack.c.l.b16 %v3610
        %v3682 = vunpack.c.l.b16 %v3611
        %v3683 = vunpack.c.l.b16 %v3612
        %v3684 = vunpack.c.l.b16 %v3613
        %v3685 = vunpack.c.l.b16 %v3614
        %v3686 = vpack.c.b16 %v3655, %v3654
        %v3687 = vpack.c.b16 %v3657, %v3656
        %v3688 = vpack.c.b16 %v3659, %v3658
        %v3689 = vpack.c.b16 %v3661, %v3660
        %v3690 = vpack.c.b16 %v3663, %v3662
        %v3691 = vpack.c.b16 %v3665, %v3664
        %v3692 = vpack.c.b16 %v3667, %v3666
        %v3693 = vpack.c.b16 %v3669, %v3668
        %v3694 = vpack.c.b16 %v3671, %v3670
        %v3695 = vpack.c.b16 %v3673, %v3672
        %v3696 = vpack.c.b16 %v3675, %v3674
        %v3697 = vpack.c.b16 %v3677, %v3676
        %v3698 = vpack.c.b16 %v3679, %v3678
        %v3699 = vpack.c.b16 %v3681, %v3680
        %v3700 = vpack.c.b16 %v3683, %v3682
        %v3701 = vpack.c.b16 %v3685, %v3684
        %3718 = vmatprep.subr.bf16.mxu0 0
        %3719 = vmatpush1.bf16.msra.mxu0 %v3693
        %3720 = vmatprep.subr.bf16.mxu0 0
        %3721 = vmatpush1.bf16.msra.mxu0 %v3692
        %3722 = vmatprep.subr.bf16.mxu0 0
        %3723 = vmatpush1.bf16.msra.mxu0 %v3691
        %3724 = vmatprep.subr.bf16.mxu0 0
        %3725 = vmatpush1.bf16.msra.mxu0 %v3690
        %3726 = vmatprep.subr.bf16.mxu0 0
        %3727 = vmatpush1.bf16.msra.mxu0 %v3689
        %3728 = vmatprep.subr.bf16.mxu0 0
        %3729 = vmatpush1.bf16.msra.mxu0 %v3688
        %3730 = vmatprep.subr.bf16.mxu0 0
        %3731 = vmatpush1.bf16.msra.mxu0 %v3687
        %3732 = vmatprep.subr.bf16.mxu0 0
        %3733 = vmatpush1.bf16.msra.mxu0 %v3686
        %3734 = vmatprep.subr.bf16.mxu0 0
        %3735 = vmatpush2.bf16.msra.mxu0 %v3701
        %3736 = vmatprep.subr.bf16.mxu0 0
        %3737 = vmatpush2.bf16.msra.mxu0 %v3700
        %3738 = vmatprep.subr.bf16.mxu0 0
        %3739 = vmatpush2.bf16.msra.mxu0 %v3699
        %3740 = vmatprep.subr.bf16.mxu0 0
        %3741 = vmatpush2.bf16.msra.mxu0 %v3698
        %3742 = vmatprep.subr.bf16.mxu0 0
        %3743 = vmatpush2.bf16.msra.mxu0 %v3697
        %3744 = vmatprep.subr.bf16.mxu0 0
        %3745 = vmatpush2.bf16.msra.mxu0 %v3696
        %3746 = vmatprep.subr.bf16.mxu0 0
        %3747 = vmatpush2.bf16.msra.mxu0 %v3695
        %3748 = vmatprep.subr.bf16.mxu0 0
        %3749 = vmatpush2.bf16.msra.mxu0 %v3694
        %3750 = vmatprep.mubr.bf16.mxu0 %v3568
        %3751 = vmatmul.mubr.bf16.gmra.mxu0 %v3567
        %v3752 = vpop.f32.mrf.mxu0
        %v3753 = vadd.f32 %v3620, %v3752
        %v3754 = vpop.f32.mrf.mxu0
        %v3755 = vpop.f32.mrf.mxu0
        %v3756 = vadd.f32 %v3620, %v3755
        %v3757 = vpop.f32.mrf.mxu0
        %3758 = vmatprep.mubr.bf16.mxu0 %v3570
        %3759 = vmatmul.mubr.bf16.gmra.mxu0 %v3569
        %v3760 = vpop.f32.mrf.mxu0
        %v3761 = vadd.f32 %v3620, %v3760
        %v3762 = vpop.f32.mrf.mxu0
        %v3763 = vpop.f32.mrf.mxu0
        %v3764 = vadd.f32 %v3620, %v3763
        %v3765 = vpop.f32.mrf.mxu0
        %3766 = vmatprep.mubr.bf16.mxu0 %v3572
        %3767 = vmatmul.mubr.bf16.gmra.mxu0 %v3571
        %v3768 = vpop.f32.mrf.mxu0
        %v3769 = vadd.f32 %v3620, %v3768
        %v3770 = vpop.f32.mrf.mxu0
        %v3771 = vpop.f32.mrf.mxu0
        %v3772 = vadd.f32 %v3620, %v3771
        %v3773 = vpop.f32.mrf.mxu0
        %3774 = vmatprep.mubr.bf16.mxu0 %v3574
        %3775 = vmatmul.mubr.bf16.gmra.mxu0 %v3573
        %v3776 = vpop.f32.mrf.mxu0
        %v3777 = vadd.f32 %v3620, %v3776
        %v3778 = vpop.f32.mrf.mxu0
        %v3779 = vpop.f32.mrf.mxu0
        %v3780 = vadd.f32 %v3620, %v3779
        %v3781 = vpop.f32.mrf.mxu0
        %3782 = vmatprep.mubr.bf16.mxu0 %v3576
        %3783 = vmatmul.mubr.bf16.gmra.mxu0 %v3575
        %v3784 = vpop.f32.mrf.mxu0
        %v3785 = vadd.f32 %v3620, %v3784
        %v3786 = vpop.f32.mrf.mxu0
        %v3787 = vpop.f32.mrf.mxu0
        %v3788 = vadd.f32 %v3620, %v3787
        %v3789 = vpop.f32.mrf.mxu0
        %3790 = vmatprep.mubr.bf16.mxu0 %v3578
        %3791 = vmatmul.mubr.bf16.gmra.mxu0 %v3577
        %v3792 = vpop.f32.mrf.mxu0
        %v3793 = vadd.f32 %v3620, %v3792
        %v3794 = vpop.f32.mrf.mxu0
        %v3795 = vpop.f32.mrf.mxu0
        %v3796 = vadd.f32 %v3620, %v3795
        %v3797 = vpop.f32.mrf.mxu0
        %3798 = vmatprep.mubr.bf16.mxu0 %v3580
        %3799 = vmatmul.mubr.bf16.gmra.mxu0 %v3579
        %v3800 = vpop.f32.mrf.mxu0
        %v3801 = vadd.f32 %v3620, %v3800
        %v3802 = vpop.f32.mrf.mxu0
        %v3803 = vpop.f32.mrf.mxu0
        %v3804 = vadd.f32 %v3620, %v3803
        %v3805 = vpop.f32.mrf.mxu0
        %3806 = vmatprep.mubr.bf16.mxu0 %v3582
        %3807 = vmatmul.mubr.bf16.gmra.mxu0 %v3581
        %v3808 = vpop.f32.mrf.mxu0
        %v3809 = vadd.f32 %v3620, %v3808
        %v3810 = vpop.f32.mrf.mxu0
        %v3811 = vpop.f32.mrf.mxu0
        %v3812 = vadd.f32 %v3620, %v3811
        %v3813 = vpop.f32.mrf.mxu0
        %3814 = vdwg.mxu0
        %3815 = vst [vmem:[%s382] sm:$0xff] %v3753
        %3816 = vst [vmem:[%s382 + $0x8] sm:$0xff] %v3756
        %3817 = vst [vmem:[%s382 + $0x10] sm:$0xff] %v3761
        %3818 = vst [vmem:[%s382 + $0x18] sm:$0xff] %v3764
        %3819 = vst [vmem:[%s382 + $0x20] sm:$0xff] %v3769
        %3820 = vst [vmem:[%s382 + $0x28] sm:$0xff] %v3772
        %3821 = vst [vmem:[%s382 + $0x30] sm:$0xff] %v3777
        %3822 = vst [vmem:[%s382 + $0x38] sm:$0xff] %v3780
        %3823 = vst [vmem:[%s382 + $0x40] sm:$0xff] %v3785
        %3824 = vst [vmem:[%s382 + $0x48] sm:$0xff] %v3788
        %3825 = vst [vmem:[%s382 + $0x50] sm:$0xff] %v3793
        %3826 = vst [vmem:[%s382 + $0x58] sm:$0xff] %v3796
        %3827 = vst [vmem:[%s382 + $0x60] sm:$0xff] %v3801
        %3828 = vst [vmem:[%s382 + $0x68] sm:$0xff] %v3804
        %3829 = vst [vmem:[%s382 + $0x70] sm:$0xff] %v3809
        %3830 = vst [vmem:[%s382 + $0x78] sm:$0xff] %v3812
        %s3831 = sand.u32 %s187, 1
        %s3832 = scalar_lea.sflag [#allocation4], %s3831
        %s3833 = sand.u32 %s187, 1
        %s3834 = smul.addr %s3833, 128
        %s3835 = scalar_lea.vmem [#allocation14], %s3834
        // Predicated region
        $region77: #{tpu_custom_call.1} parent=47 // pred_check
          %p3836 = pneg %p197
        $region78: #{tpu_custom_call.1} parent=47 // pred_check_branch
          %3838 = sbr.rel (%p3836) target = $region80
        $region79: #{tpu_custom_call.1} parent=47 // pred_region
          %s3839 = smul.u32 16, %s27
          %s3841 = ssub.s32 2048, 2048
          %3842 = vsyncadd %s3832, %s3841
          %s3843 = smul.addr %s3839, 128
          %s3844 = scalar_lea.hbm %s7, %s3843
          %s3845 = sshll.u32 %s3835, 4
          %s3846 = int_to_ptr.vmem [resolvable:$true] %s3845
          %3851 = dma.vmem_to_hbm [thread:$0]  %s3846, 2048, %s3844, %s3832, 128, 128, 8
        $region80: #{tpu_custom_call.1} parent=47 // pred_fallthru
          _
      $region48: #{tpu_custom_call.1} parent=5 // pred_fallthru
        _
      %p3852 = scmp.le.s32.totalorder 2, %s22
      // Predicated region
      $region81: #{tpu_custom_call.1} parent=5 // pred_check
        %p3853 = pneg %p3852
      $region82: #{tpu_custom_call.1} parent=5 // pred_check_branch
        %3855 = sbr.rel (%p3853) target = $region84
      $region83: #{tpu_custom_call.1} parent=5 // pred_region
        %s3856 = ssub.s32 %s22, 2
        // Predicated region
        $region85: #{tpu_custom_call.1} parent=83 // pred_check
          %p3857 = pneg %p203
        $region86: #{tpu_custom_call.1} parent=83 // pred_check_branch
          %3859 = sbr.rel (%p3857) target = $region88
        $region87: #{tpu_custom_call.1} parent=83 // pred_region
          %s3860 = sand.u32 %s188, 1
          %s3861 = scalar_lea.sflag [#allocation4], %s3860
          %s3862 = sand.u32 %s188, 1
          %s3863 = smul.addr %s3862, 128
          %s3864 = scalar_lea.vmem [#allocation14], %s3863
          %3865 = dma.done %s3861, 2048
        $region88: #{tpu_custom_call.1} parent=83 // pred_fallthru
          _
      $region84: #{tpu_custom_call.1} parent=5 // pred_fallthru
        _
    $region6: #{tpu_custom_call.1} parent=1 // loop_footer
      %s26 = sadd.s32 1, %s22
    $region7: #{tpu_custom_call.1} parent=1 // loop_footer_branch
      %21 = sbr.rel target = $region3
    $region8: #{tpu_custom_call.1} parent=1 // loop_exit
      _
    %3866 = vsyncpa [#allocation3], 1
    %s3867 = scalar_lea.sflag [#allocation3], 1
    %3868 = vsyncpa %s3867, 1
    %3869 = vsyncpa [#allocation6], 1
    %3870 = vsyncpa [#allocation9], 1
    %3871 = vsyncpa [#allocation12], 1
    %3872 = vsyncpa [#allocation4], 1
    %s3873 = scalar_lea.sflag [#allocation4], 1
    %3874 = vsyncpa %s3873, 1

// kernel: tpu_custom_call.1
$region0: #{tpu_custom_call.1}
  #allocation0 [shape = 'u32[]', space=smem, size = 0x4, offset = 0x4, fixed_abs, tag = 'smem constant byte address 0x4 - core index']
  #allocation1 [shape = 'u32[144,128]{1,0:T(1,128)}', space=vmem, size = 0x12000, scoped, tag = 'internal scratch']
  %s0 = inlined_call_operand.hbm [shape: bf16[256,256], index: 0, kind: input, shape index: {}]
  %s1 = inlined_call_operand.hbm [shape: bf16[256,256], index: 1, kind: input, shape index: {}]
  %s2 = inlined_call_operand.hbm [shape: bf16[256,512], index: 2, kind: input, shape index: {}]
  %s3 = inlined_call_operand.hbm [shape: bf16[512,512], index: 3, kind: input, shape index: {}]
  %s4 = inlined_call_operand.hbm [shape: bf16[512,256], index: 4, kind: input, shape index: {}]
  %s5 = inlined_call_operand.hbm [shape: bf16[256,128], index: 5, kind: input, shape index: {}]
  %s6 = inlined_call_operand.hbm [shape: f32[1,1664], index: 6, kind: input, shape index: {}]
  %s7 = inlined_call_operand.hbm [shape: f32[256,128], index: 7, kind: output, shape index: {}]
  %s8 = sld [smem:[#allocation0]]
  $region89: #{tpu_custom_call.1} parent=0
    _
  %s10 = ssub.s32 1, %s8
  %s11 = scalar_select 0, %s10, %s8
  $region1: #{tpu_custom_call.1} parent=0
    #allocation2 [shape = 'u8[131072]{0}', space=vmem, size = 0x20000, scoped, tag = 'input window, operand 0']
    #allocation3 [shape = 's32[2]{0}', space=sflag, size = 0x8, scoped, tag = 'scoped memory for tpu_custom_call.1']
    #allocation4 [shape = 's32[2]{0}', space=sflag, size = 0x8, scoped, tag = 'scoped memory for tpu_custom_call.1']
    #allocation5 [shape = 'u8[131072]{0}', space=vmem, size = 0x20000, scoped, tag = 'input window, operand 1, single buffered']
    #allocation6 [shape = 's32[1]{0}', space=sflag, size = 0x4, scoped, tag = 'scoped memory for tpu_custom_call.1']
    #allocation7 [shape = 'u8[262144]{0}', space=vmem, size = 0x40000, scoped, tag = 'input window, operand 2, single buffered']
    #allocation8 [shape = 'u8[524288]{0}', space=vmem, size = 0x80000, scoped, tag = 'input window, operand 3, single buffered']
    #allocation9 [shape = 's32[1]{0}', space=sflag, size = 0x4, scoped, tag = 'scoped memory for tpu_custom_call.1']
    #allocation10 [shape = 'u8[262144]{0}', space=vmem, size = 0x40000, scoped, tag = 'input window, operand 4, single buffered']
    #allocation11 [shape = 'u8[65536]{0}', space=vmem, size = 0x10000, scoped, tag = 'input window, operand 5, single buffered']
    #allocation12 [shape = 's32[1]{0}', space=sflag, size = 0x4, scoped, tag = 'scoped memory for tpu_custom_call.1']
    #allocation13 [shape = 'u8[6656]{0}', space=vmem, size = 0x1c00, scoped, tag = 'input window, operand 6, single buffered']
    #allocation14 [shape = 'u8[131072]{0}', space=vmem, size = 0x20000, scoped, tag = 'output window, operand 0']
    %12 = vsyncpa [#allocation3], 0
    %s13 = scalar_lea.sflag [#allocation3], 1
    %14 = vsyncpa %s13, 0
    %15 = vsyncpa [#allocation6], 0
    %16 = vsyncpa [#allocation9], 0
    %17 = vsyncpa [#allocation12], 0
    %18 = vsyncpa [#allocation4], 0
    %s19 = scalar_lea.sflag [#allocation4], 1
    %20 = vsyncpa %s19, 0
    loop: start=0, step=1, limit=4
    $region2: #{tpu_custom_call.1} parent=1 // loop_pre_header
      _
    $region3: #{tpu_custom_call.1} parent=1 // loop_header
      %s22 = sphi 0, %s26
      %p23 = scmp.ge.s32.totalorder %s22, 4
      %s32 = sphi 0, %s34
      %s35 = sphi 0, %s32
      %s36 = sphi 0, %s35
      %s52 = sphi 0, %s36
      %s56 = sphi 0, %s56
      %s58 = sphi 0, %s56
      %s59 = sphi 0, %s58
      %s73 = sphi 0, %s59
      %s77 = sphi 0, %s77
      %s79 = sphi 0, %s77
      %s80 = sphi 0, %s79
      %s94 = sphi 0, %s80
      %s98 = sphi 0, %s98
      %s100 = sphi 0, %s98
      %s101 = sphi 0, %s100
      %s115 = sphi 0, %s101
      %s119 = sphi 0, %s119
      %s121 = sphi 0, %s119
      %s122 = sphi 0, %s121
      %s136 = sphi 0, %s122
      %s140 = sphi 0, %s140
      %s142 = sphi 0, %s140
      %s143 = sphi 0, %s142
      %s157 = sphi 0, %s143
      %s161 = sphi 0, %s161
      %s163 = sphi 0, %s161
      %s164 = sphi 0, %s163
      %s178 = sphi 0, %s164
      %s184 = sphi 0, %s186
      %s187 = sphi 0, %s184
      %s188 = sphi 0, %s187
      %s204 = sphi 0, %s188
    $region4: #{tpu_custom_call.1} parent=1 // loop_header_branch
      %25 = sbr.rel (%p23) target = $region8
    $region5: #{tpu_custom_call.1} parent=1 // loop_body
      %s27 = ssub.s32 %s22, 1
      %s28 = ssub.s32 %s22, 2
      %s29 = sadd.s32 %s22, 1
      %s30 = ssub.s32 %s22, %s29
      %p31 = scmp.eq.s32.totalorder %s30, 0
      %s33 = sadd.s32 %s32, 1
      %s34 = scalar_select %p31, %s32, %s33
      %p37 = pneg %p31
      %p38 = scmp.eq.s32.totalorder %s22, 1
      %p39 = por %p37, %p38
      %p40 = scmp.ne.s32.totalorder %s32, %s35
      %p41 = scmp.eq.s32.totalorder %s22, 0
      %p42 = por %p40, %p41
      %p43 = scmp.ne.s32.totalorder %s32, %s35
      %p44 = scmp.eq.s32.totalorder %s27, 1
      %p45 = por %p43, %p44
      %p46 = scmp.ne.s32.totalorder %s35, %s36
      %p47 = scmp.eq.s32.totalorder %s27, 0
      %p48 = por %p46, %p47
      %p49 = scmp.ne.s32.totalorder %s35, %s36
      %p50 = scmp.eq.s32.totalorder %s28, 1
      %p51 = por %p49, %p50
      %p53 = scmp.ne.s32.totalorder %s36, %s52
      %p54 = scmp.eq.s32.totalorder %s28, 0
      %p55 = por %p53, %p54
      %s57 = sadd.s32 %s56, 1
      %p60 = scmp.eq.s32.totalorder %s22, 1
      %p61 = scmp.ne.s32.totalorder %s56, %s58
      %p62 = scmp.eq.s32.totalorder %s22, 0
      %p63 = por %p61, %p62
      %p64 = scmp.ne.s32.totalorder %s56, %s58
      %p65 = scmp.eq.s32.totalorder %s27, 1
      %p66 = por %p64, %p65
      %p67 = scmp.ne.s32.totalorder %s58, %s59
      %p68 = scmp.eq.s32.totalorder %s27, 0
      %p69 = por %p67, %p68
      %p70 = scmp.ne.s32.totalorder %s58, %s59
      %p71 = scmp.eq.s32.totalorder %s28, 1
      %p72 = por %p70, %p71
      %p74 = scmp.ne.s32.totalorder %s59, %s73
      %p75 = scmp.eq.s32.totalorder %s28, 0
      %p76 = por %p74, %p75
      %s78 = sadd.s32 %s77, 1
      %p81 = scmp.eq.s32.totalorder %s22, 1
      %p82 = scmp.ne.s32.totalorder %s77, %s79
      %p83 = scmp.eq.s32.totalorder %s22, 0
      %p84 = por %p82, %p83
      %p85 = scmp.ne.s32.totalorder %s77, %s79
      %p86 = scmp.eq.s32.totalorder %s27, 1
      %p87 = por %p85, %p86
      %p88 = scmp.ne.s32.totalorder %s79, %s80
      %p89 = scmp.eq.s32.totalorder %s27, 0
      %p90 = por %p88, %p89
      %p91 = scmp.ne.s32.totalorder %s79, %s80
      %p92 = scmp.eq.s32.totalorder %s28, 1
      %p93 = por %p91, %p92
      %p95 = scmp.ne.s32.totalorder %s80, %s94
      %p96 = scmp.eq.s32.totalorder %s28, 0
      %p97 = por %p95, %p96
      %s99 = sadd.s32 %s98, 1
      %p102 = scmp.eq.s32.totalorder %s22, 1
      %p103 = scmp.ne.s32.totalorder %s98, %s100
      %p104 = scmp.eq.s32.totalorder %s22, 0
      %p105 = por %p103, %p104
      %p106 = scmp.ne.s32.totalorder %s98, %s100
      %p107 = scmp.eq.s32.totalorder %s27, 1
      %p108 = por %p106, %p107
      %p109 = scmp.ne.s32.totalorder %s100, %s101
      %p110 = scmp.eq.s32.totalorder %s27, 0
      %p111 = por %p109, %p110
      %p112 = scmp.ne.s32.totalorder %s100, %s101
      %p113 = scmp.eq.s32.totalorder %s28, 1
      %p114 = por %p112, %p113
      %p116 = scmp.ne.s32.totalorder %s101, %s115
      %p117 = scmp.eq.s32.totalorder %s28, 0
      %p118 = por %p116, %p117
      %s120 = sadd.s32 %s119, 1
      %p123 = scmp.eq.s32.totalorder %s22, 1
      %p124 = scmp.ne.s32.totalorder %s119, %s121
      %p125 = scmp.eq.s32.totalorder %s22, 0
      %p126 = por %p124, %p125
      %p127 = scmp.ne.s32.totalorder %s119, %s121
      %p128 = scmp.eq.s32.totalorder %s27, 1
      %p129 = por %p127, %p128
      %p130 = scmp.ne.s32.totalorder %s121, %s122
      %p131 = scmp.eq.s32.totalorder %s27, 0
      %p132 = por %p130, %p131
      %p133 = scmp.ne.s32.totalorder %s121, %s122
      %p134 = scmp.eq.s32.totalorder %s28, 1
      %p135 = por %p133, %p134
      %p137 = scmp.ne.s32.totalorder %s122, %s136
      %p138 = scmp.eq.s32.totalorder %s28, 0
      %p139 = por %p137, %p138
      %s141 = sadd.s32 %s140, 1
      %p144 = scmp.eq.s32.totalorder %s22, 1
      %p145 = scmp.ne.s32.totalorder %s140, %s142
      %p146 = scmp.eq.s32.totalorder %s22, 0
      %p147 = por %p145, %p146
      %p148 = scmp.ne.s32.totalorder %s140, %s142
      %p149 = scmp.eq.s32.totalorder %s27, 1
      %p150 = por %p148, %p149
      %p151 = scmp.ne.s32.totalorder %s142, %s143
      %p152 = scmp.eq.s32.totalorder %s27, 0
      %p153 = por %p151, %p152
      %p154 = scmp.ne.s32.totalorder %s142, %s143
      %p155 = scmp.eq.s32.totalorder %s28, 1
      %p156 = por %p154, %p155
      %p158 = scmp.ne.s32.totalorder %s143, %s157
      %p159 = scmp.eq.s32.totalorder %s28, 0
      %p160 = por %p158, %p159
      %s162 = sadd.s32 %s161, 1
      %p165 = scmp.eq.s32.totalorder %s22, 1
      %p166 = scmp.ne.s32.totalorder %s161, %s163
      %p167 = scmp.eq.s32.totalorder %s22, 0
      %p168 = por %p166, %p167
      %p169 = scmp.ne.s32.totalorder %s161, %s163
      %p170 = scmp.eq.s32.totalorder %s27, 1
      %p171 = por %p169, %p170
      %p172 = scmp.ne.s32.totalorder %s163, %s164
      %p173 = scmp.eq.s32.totalorder %s27, 0
      %p174 = por %p172, %p173
      %p175 = scmp.ne.s32.totalorder %s163, %s164
      %p176 = scmp.eq.s32.totalorder %s28, 1
      %p177 = por %p175, %p176
      %p179 = scmp.ne.s32.totalorder %s164, %s178
      %p180 = scmp.eq.s32.totalorder %s28, 0
      %p181 = por %p179, %p180
      %s182 = ssub.s32 %s22, %s29
      %p183 = scmp.eq.s32.totalorder %s182, 0
      %s185 = sadd.s32 %s184, 1
      %s186 = scalar_select %p183, %s184, %s185
      %p189 = pneg %p183
      %p190 = scmp.eq.s32.totalorder %s22, 1
      %p191 = por %p189, %p190
      %p192 = scmp.ne.s32.totalorder %s184, %s187
      %p193 = scmp.eq.s32.totalorder %s22, 0
      %p194 = por %p192, %p193
      %p195 = scmp.ne.s32.totalorder %s184, %s187
      %p196 = scmp.eq.s32.totalorder %s27, 1
      %p197 = por %p195, %p196
      %p198 = scmp.ne.s32.totalorder %s187, %s188
      %p199 = scmp.eq.s32.totalorder %s27, 0
      %p200 = por %p198, %p199
      %p201 = scmp.ne.s32.totalorder %s187, %s188
      %p202 = scmp.eq.s32.totalorder %s28, 1
      %p203 = por %p201, %p202
      %p205 = scmp.ne.s32.totalorder %s188, %s204
      %p206 = scmp.eq.s32.totalorder %s28, 0
      %p207 = por %p205, %p206
      %p208 = scmp.le.s32.totalorder 1, %s22
      %p209 = scmp.lt.s32.totalorder %s22, 3
      %p210 = pnand %p208, %p209
      %p211 = pneg %p210
      // Predicated region
      $region9: #{tpu_custom_call.1} parent=5 // pred_check
        _
      $region10: #{tpu_custom_call.1} parent=5 // pred_check_branch
        %213 = sbr.rel (%p210) target = $region12
      $region11: #{tpu_custom_call.1} parent=5 // pred_region
        %s214 = ssub.s32 %s22, 1
        // Predicated region
        $region13: #{tpu_custom_call.1} parent=11 // pred_check
          %p215 = pneg %p69
        $region14: #{tpu_custom_call.1} parent=11 // pred_check_branch
          %217 = sbr.rel (%p215) target = $region16
        $region15: #{tpu_custom_call.1} parent=11 // pred_region
          %s219 = ssub.s32 4096, 4096
          %220 = vsyncadd [#allocation6], %s219
          %s221 = sshll.u32 [#allocation5], 4
          %s222 = int_to_ptr.vmem [resolvable:$true] %s221
          %227 = dma.hbm_to_vmem [thread:$0]  %s1, 4096, %s222, [#allocation6], 128, 128, 8
        $region16: #{tpu_custom_call.1} parent=11 // pred_fallthru
          _
        // Predicated region
        $region17: #{tpu_custom_call.1} parent=11 // pred_check
          %p228 = pneg %p90
        $region18: #{tpu_custom_call.1} parent=11 // pred_check_branch
          %230 = sbr.rel (%p228) target = $region20
        $region19: #{tpu_custom_call.1} parent=11 // pred_region
          %s232 = ssub.s32 8192, 8192
          %233 = vsyncadd [#allocation6], %s232
          %s234 = sshll.u32 [#allocation7], 4
          %s235 = int_to_ptr.vmem [resolvable:$true] %s234
          %240 = dma.hbm_to_vmem [thread:$0]  %s2, 8192, %s235, [#allocation6], 256, 256, 16
        $region20: #{tpu_custom_call.1} parent=11 // pred_fallthru
          _
        // Predicated region
        $region21: #{tpu_custom_call.1} parent=11 // pred_check
          %p241 = pneg %p111
        $region22: #{tpu_custom_call.1} parent=11 // pred_check_branch
          %243 = sbr.rel (%p241) target = $region24
        $region23: #{tpu_custom_call.1} parent=11 // pred_region
          %s245 = ssub.s32 16384, 16384
          %246 = vsyncadd [#allocation9], %s245
          %s247 = sshll.u32 [#allocation8], 4
          %s248 = int_to_ptr.vmem [resolvable:$true] %s247
          %253 = dma.hbm_to_vmem [thread:$0]  %s3, 16384, %s248, [#allocation9], 256, 256, 16
        $region24: #{tpu_custom_call.1} parent=11 // pred_fallthru
          _
        // Predicated region
        $region25: #{tpu_custom_call.1} parent=11 // pred_check
          %p254 = pneg %p132
        $region26: #{tpu_custom_call.1} parent=11 // pred_check_branch
          %256 = sbr.rel (%p254) target = $region28
        $region27: #{tpu_custom_call.1} parent=11 // pred_region
          %s258 = ssub.s32 8192, 8192
          %259 = vsyncadd [#allocation9], %s258
          %s260 = sshll.u32 [#allocation10], 4
          %s261 = int_to_ptr.vmem [resolvable:$true] %s260
          %266 = dma.hbm_to_vmem [thread:$0]  %s4, 8192, %s261, [#allocation9], 128, 128, 8
        $region28: #{tpu_custom_call.1} parent=11 // pred_fallthru
          _
        // Predicated region
        $region29: #{tpu_custom_call.1} parent=11 // pred_check
          %p267 = pneg %p153
        $region30: #{tpu_custom_call.1} parent=11 // pred_check_branch
          %269 = sbr.rel (%p267) target = $region32
        $region31: #{tpu_custom_call.1} parent=11 // pred_region
          %s271 = ssub.s32 2048, 2048
          %272 = vsyncadd [#allocation12], %s271
          %s273 = sshll.u32 [#allocation11], 4
          %s274 = int_to_ptr.vmem [resolvable:$true] %s273
          %279 = dma.hbm_to_vmem [thread:$0]  %s5, 2048, %s274, [#allocation12], 64, 64, 4
        $region32: #{tpu_custom_call.1} parent=11 // pred_fallthru
          _
        // Predicated region
        $region33: #{tpu_custom_call.1} parent=11 // pred_check
          %p280 = pneg %p174
        $region34: #{tpu_custom_call.1} parent=11 // pred_check_branch
          %282 = sbr.rel (%p280) target = $region36
        $region35: #{tpu_custom_call.1} parent=11 // pred_region
          %s284 = ssub.s32 208, 208
          %285 = vsyncadd [#allocation12], %s284
          %s287 = sshll.u32 [#allocation13], 4
          %s288 = int_to_ptr.vmem [resolvable:$true] %s287
          %290 = dma.hbm_to_vmem [thread:$0]  %s6, 208, %s288, [#allocation12]
        $region36: #{tpu_custom_call.1} parent=11 // pred_fallthru
          _
      $region12: #{tpu_custom_call.1} parent=5 // pred_fallthru
        _
      %p291 = scmp.lt.s32.totalorder %s22, 2
      // Predicated region
      $region37: #{tpu_custom_call.1} parent=5 // pred_check
        %p292 = pneg %p291
      $region38: #{tpu_custom_call.1} parent=5 // pred_check_branch
        %294 = sbr.rel (%p292) target = $region40
      $region39: #{tpu_custom_call.1} parent=5 // pred_region
        // Predicated region
        $region41: #{tpu_custom_call.1} parent=39 // pred_check
          %p295 = pneg %p42
        $region42: #{tpu_custom_call.1} parent=39 // pred_check_branch
          %297 = sbr.rel (%p295) target = $region44
        $region43: #{tpu_custom_call.1} parent=39 // pred_region
          %s298 = sand.u32 %s32, 1
          %s299 = scalar_lea.sflag [#allocation3], %s298
          %s300 = sand.u32 %s32, 1
          %s301 = smul.addr %s300, 128
          %s302 = scalar_lea.vmem [#allocation2], %s301
          %s303 = smul.u32 16, %s22
          %s305 = ssub.s32 2048, 2048
          %306 = vsyncadd %s299, %s305
          %s307 = smul.addr %s303, 2
          %s308 = smul.addr %s307, 64
          %s309 = scalar_lea.hbm %s0, %s308
          %s310 = sshll.u32 %s302, 4
          %s311 = int_to_ptr.vmem [resolvable:$true] %s310
          %316 = dma.hbm_to_vmem [thread:$0]  %s309, 2048, %s311, %s299, 128, 128, 8
        $region44: #{tpu_custom_call.1} parent=39 // pred_fallthru
          _
      $region40: #{tpu_custom_call.1} parent=5 // pred_fallthru
        _
      %p317 = scmp.le.s32.totalorder 1, %s22
      %p318 = scmp.lt.s32.totalorder %s22, 3
      %p319 = pnand %p317, %p318
      %p320 = pneg %p319
      // Predicated region
      $region45: #{tpu_custom_call.1} parent=5 // pred_check
        _
      $region46: #{tpu_custom_call.1} parent=5 // pred_check_branch
        %322 = sbr.rel (%p319) target = $region48
      $region47: #{tpu_custom_call.1} parent=5 // pred_region
        %s323 = ssub.s32 %s22, 1
        %s324 = sand.u32 %s35, 1
        %s325 = scalar_lea.sflag [#allocation3], %s324
        %s326 = sand.u32 %s35, 1
        %s327 = smul.addr %s326, 128
        %s328 = scalar_lea.vmem [#allocation2], %s327
        // Predicated region
        $region49: #{tpu_custom_call.1} parent=47 // pred_check
          %p329 = pneg %p48
        $region50: #{tpu_custom_call.1} parent=47 // pred_check_branch
          %331 = sbr.rel (%p329) target = $region52
        $region51: #{tpu_custom_call.1} parent=47 // pred_region
          %332 = dma.done %s325, 2048
        $region52: #{tpu_custom_call.1} parent=47 // pred_fallthru
          _
        // Predicated region
        $region53: #{tpu_custom_call.1} parent=47 // pred_check
          %p333 = pneg %p69
        $region54: #{tpu_custom_call.1} parent=47 // pred_check_branch
          %335 = sbr.rel (%p333) target = $region56
        $region55: #{tpu_custom_call.1} parent=47 // pred_region
          %336 = dma.done [#allocation6], 4096
        $region56: #{tpu_custom_call.1} parent=47 // pred_fallthru
          _
        // Predicated region
        $region57: #{tpu_custom_call.1} parent=47 // pred_check
          %p337 = pneg %p90
        $region58: #{tpu_custom_call.1} parent=47 // pred_check_branch
          %339 = sbr.rel (%p337) target = $region60
        $region59: #{tpu_custom_call.1} parent=47 // pred_region
          %340 = dma.done [#allocation6], 8192
        $region60: #{tpu_custom_call.1} parent=47 // pred_fallthru
          _
        // Predicated region
        $region61: #{tpu_custom_call.1} parent=47 // pred_check
          %p341 = pneg %p111
        $region62: #{tpu_custom_call.1} parent=47 // pred_check_branch
          %343 = sbr.rel (%p341) target = $region64
        $region63: #{tpu_custom_call.1} parent=47 // pred_region
          %344 = dma.done [#allocation9], 16384
        $region64: #{tpu_custom_call.1} parent=47 // pred_fallthru
          _
        // Predicated region
        $region65: #{tpu_custom_call.1} parent=47 // pred_check
          %p345 = pneg %p132
        $region66: #{tpu_custom_call.1} parent=47 // pred_check_branch
          %347 = sbr.rel (%p345) target = $region68
        $region67: #{tpu_custom_call.1} parent=47 // pred_region
          %348 = dma.done [#allocation9], 8192
        $region68: #{tpu_custom_call.1} parent=47 // pred_fallthru
          _
        // Predicated region
        $region69: #{tpu_custom_call.1} parent=47 // pred_check
          %p349 = pneg %p153
        $region70: #{tpu_custom_call.1} parent=47 // pred_check_branch
          %351 = sbr.rel (%p349) target = $region72
        $region71: #{tpu_custom_call.1} parent=47 // pred_region
          %352 = dma.done [#allocation12], 2048
        $region72: #{tpu_custom_call.1} parent=47 // pred_fallthru
          _
        // Predicated region
        $region73: #{tpu_custom_call.1} parent=47 // pred_check
          %p353 = pneg %p174
        $region74: #{tpu_custom_call.1} parent=47 // pred_check_branch
          %355 = sbr.rel (%p353) target = $region76
        $region75: #{tpu_custom_call.1} parent=47 // pred_region
          %356 = dma.done [#allocation12], 208
        $region76: #{tpu_custom_call.1} parent=47 // pred_fallthru
          _
        %s357 = sand.u32 %s35, 1
        %s358 = scalar_lea.sflag [#allocation3], %s357
        %s359 = sand.u32 %s35, 1
        %s360 = smul.addr %s359, 128
        %s361 = scalar_lea.vmem [#allocation2], %s360
        %p362 = pneg %p48
        %p363 = pneg %p45
        %p364 = pneg %p69
        %p365 = pneg %p66
        %p366 = pneg %p90
        %p367 = pneg %p87
        %p368 = pneg %p111
        %p369 = pneg %p108
        %p370 = pneg %p132
        %p371 = pneg %p129
        %p372 = pneg %p153
        %p373 = pneg %p150
        %p374 = pneg %p174
        %p375 = pneg %p171
        %p376 = pneg %p200
        %p377 = pneg %p197
        %s378 = sand.u32 %s187, 1
        %s379 = scalar_lea.sflag [#allocation4], %s378
        %s380 = sand.u32 %s187, 1
        %s381 = smul.addr %s380, 128
        %s382 = scalar_lea.vmem [#allocation14], %s381
        %s383 = smul.u32 16, %s27
        %s384 = smul.u32 16, %s27
        %v386 = vld [vmem:[%s328] sm:$0xff]
        %v387 = vld [vmem:[%s328 + $0x8] sm:$0xff]
        %v388 = vld [vmem:[%s328 + $0x10] sm:$0xff]
        %v389 = vld [vmem:[%s328 + $0x18] sm:$0xff]
        %v390 = vld [vmem:[%s328 + $0x20] sm:$0xff]
        %v391 = vld [vmem:[%s328 + $0x28] sm:$0xff]
        %v392 = vld [vmem:[%s328 + $0x30] sm:$0xff]
        %v393 = vld [vmem:[%s328 + $0x38] sm:$0xff]
        %v394 = vld [vmem:[%s328 + $0x40] sm:$0xff]
        %v395 = vld [vmem:[%s328 + $0x48] sm:$0xff]
        %v396 = vld [vmem:[%s328 + $0x50] sm:$0xff]
        %v397 = vld [vmem:[%s328 + $0x58] sm:$0xff]
        %v398 = vld [vmem:[%s328 + $0x60] sm:$0xff]
        %v399 = vld [vmem:[%s328 + $0x68] sm:$0xff]
        %v400 = vld [vmem:[%s328 + $0x70] sm:$0xff]
        %v401 = vld [vmem:[%s328 + $0x78] sm:$0xff]
        %v402 = vld [vmem:[#allocation5] sm:$0xff]
        %v403 = vld [vmem:[#allocation5 + $0x8] sm:$0xff]
        %v404 = vld [vmem:[#allocation5 + $0x10] sm:$0xff]
        %v405 = vld [vmem:[#allocation5 + $0x18] sm:$0xff]
        %v406 = vld [vmem:[#allocation5 + $0x20] sm:$0xff]
        %v407 = vld [vmem:[#allocation5 + $0x28] sm:$0xff]
        %v408 = vld [vmem:[#allocation5 + $0x30] sm:$0xff]
        %v409 = vld [vmem:[#allocation5 + $0x38] sm:$0xff]
        %v410 = vld [vmem:[#allocation5 + $0x40] sm:$0xff]
        %v411 = vld [vmem:[#allocation5 + $0x48] sm:$0xff]
        %v412 = vld [vmem:[#allocation5 + $0x50] sm:$0xff]
        %v413 = vld [vmem:[#allocation5 + $0x58] sm:$0xff]
        %v414 = vld [vmem:[#allocation5 + $0x60] sm:$0xff]
        %v415 = vld [vmem:[#allocation5 + $0x68] sm:$0xff]
        %v416 = vld [vmem:[#allocation5 + $0x70] sm:$0xff]
        %v417 = vld [vmem:[#allocation5 + $0x78] sm:$0xff]
        %v418 = vld [vmem:[#allocation5 + $0x80] sm:$0xff]
        %v419 = vld [vmem:[#allocation5 + $0x88] sm:$0xff]
        %v420 = vld [vmem:[#allocation5 + $0x90] sm:$0xff]
        %v421 = vld [vmem:[#allocation5 + $0x98] sm:$0xff]
        %v422 = vld [vmem:[#allocation5 + $0xa0] sm:$0xff]
        %v423 = vld [vmem:[#allocation5 + $0xa8] sm:$0xff]
        %v424 = vld [vmem:[#allocation5 + $0xb0] sm:$0xff]
        %v425 = vld [vmem:[#allocation5 + $0xb8] sm:$0xff]
        %v426 = vld [vmem:[#allocation5 + $0xc0] sm:$0xff]
        %v427 = vld [vmem:[#allocation5 + $0xc8] sm:$0xff]
        %v428 = vld [vmem:[#allocation5 + $0xd0] sm:$0xff]
        %v429 = vld [vmem:[#allocation5 + $0xd8] sm:$0xff]
        %v430 = vld [vmem:[#allocation5 + $0xe0] sm:$0xff]
        %v431 = vld [vmem:[#allocation5 + $0xe8] sm:$0xff]
        %v432 = vld [vmem:[#allocation5 + $0xf0] sm:$0xff]
        %v433 = vld [vmem:[#allocation5 + $0xf8] sm:$0xff]
        %v434 = vld [vmem:[#allocation13] sm:$0x3]
        %v436 = vlaneseq
        %v437 = vshrl.u32 %v436, 7
        %v438 = vsub.s32 0, %v437
        %v439 = vrot.slane %v434, %v438
        %v440 = vlaneseq
        %v441 = vshrl.u32 %v440, 7
        %v442 = vsub.s32 1, %v441
        %v443 = vrot.slane %v434, %v442
        %v462 = vunpack.c.l.b16 %v386
        %v463 = vunpack.c.h.b16 %v386
        %v464 = vunpack.c.l.b16 %v387
        %v465 = vunpack.c.h.b16 %v387
        %v466 = vunpack.c.l.b16 %v388
        %v467 = vunpack.c.h.b16 %v388
        %v468 = vunpack.c.l.b16 %v389
        %v469 = vunpack.c.h.b16 %v389
        %v470 = vunpack.c.l.b16 %v390
        %v471 = vunpack.c.h.b16 %v390
        %v472 = vunpack.c.l.b16 %v391
        %v473 = vunpack.c.h.b16 %v391
        %v474 = vunpack.c.l.b16 %v392
        %v475 = vunpack.c.h.b16 %v392
        %v476 = vunpack.c.l.b16 %v393
        %v477 = vunpack.c.h.b16 %v393
        %v478 = vunpack.c.l.b16 %v394
        %v479 = vunpack.c.h.b16 %v394
        %v480 = vunpack.c.l.b16 %v395
        %v481 = vunpack.c.h.b16 %v395
        %v482 = vunpack.c.l.b16 %v396
        %v483 = vunpack.c.h.b16 %v396
        %v484 = vunpack.c.l.b16 %v397
        %v485 = vunpack.c.h.b16 %v397
        %v486 = vunpack.c.l.b16 %v398
        %v487 = vunpack.c.h.b16 %v398
        %v488 = vunpack.c.l.b16 %v399
        %v489 = vunpack.c.h.b16 %v399
        %v490 = vunpack.c.l.b16 %v400
        %v491 = vunpack.c.h.b16 %v400
        %v492 = vunpack.c.l.b16 %v401
        %v493 = vunpack.c.h.b16 %v401
        %v494 = vpack.c.b16 %v464, %v462
        %v495 = vpack.c.b16 %v465, %v463
        %v496 = vpack.c.b16 %v468, %v466
        %v497 = vpack.c.b16 %v469, %v467
        %v498 = vpack.c.b16 %v472, %v470
        %v499 = vpack.c.b16 %v473, %v471
        %v500 = vpack.c.b16 %v476, %v474
        %v501 = vpack.c.b16 %v477, %v475
        %v502 = vpack.c.b16 %v480, %v478
        %v503 = vpack.c.b16 %v481, %v479
        %v504 = vpack.c.b16 %v484, %v482
        %v505 = vpack.c.b16 %v485, %v483
        %v506 = vpack.c.b16 %v488, %v486
        %v507 = vpack.c.b16 %v489, %v487
        %v508 = vpack.c.b16 %v492, %v490
        %v509 = vpack.c.b16 %v493, %v491
        %v558 = vunpack.c.l.b16 %v402
        %v559 = vunpack.c.h.b16 %v402
        %v560 = vunpack.c.l.b16 %v403
        %v561 = vunpack.c.h.b16 %v403
        %v562 = vunpack.c.l.b16 %v404
        %v563 = vunpack.c.h.b16 %v404
        %v564 = vunpack.c.l.b16 %v405
        %v565 = vunpack.c.h.b16 %v405
        %v566 = vunpack.c.l.b16 %v406
        %v567 = vunpack.c.h.b16 %v406
        %v568 = vunpack.c.l.b16 %v407
        %v569 = vunpack.c.h.b16 %v407
        %v570 = vunpack.c.l.b16 %v408
        %v571 = vunpack.c.h.b16 %v408
        %v572 = vunpack.c.l.b16 %v409
        %v573 = vunpack.c.h.b16 %v409
        %v574 = vunpack.c.l.b16 %v410
        %v575 = vunpack.c.h.b16 %v410
        %v576 = vunpack.c.l.b16 %v411
        %v577 = vunpack.c.h.b16 %v411
        %v578 = vunpack.c.l.b16 %v412
        %v579 = vunpack.c.h.b16 %v412
        %v580 = vunpack.c.l.b16 %v413
        %v581 = vunpack.c.h.b16 %v413
        %v582 = vunpack.c.l.b16 %v414
        %v583 = vunpack.c.h.b16 %v414
        %v584 = vunpack.c.l.b16 %v415
        %v585 = vunpack.c.h.b16 %v415
        %v586 = vunpack.c.l.b16 %v416
        %v587 = vunpack.c.h.b16 %v416
        %v588 = vunpack.c.l.b16 %v417
        %v589 = vunpack.c.h.b16 %v417
        %v590 = vunpack.c.l.b16 %v418
        %v591 = vunpack.c.h.b16 %v418
        %v592 = vunpack.c.l.b16 %v419
        %v593 = vunpack.c.h.b16 %v419
        %v594 = vunpack.c.l.b16 %v420
        %v595 = vunpack.c.h.b16 %v420
        %v596 = vunpack.c.l.b16 %v421
        %v597 = vunpack.c.h.b16 %v421
        %v598 = vunpack.c.l.b16 %v422
        %v599 = vunpack.c.h.b16 %v422
        %v600 = vunpack.c.l.b16 %v423
        %v601 = vunpack.c.h.b16 %v423
        %v602 = vunpack.c.l.b16 %v424
        %v603 = vunpack.c.h.b16 %v424
        %v604 = vunpack.c.l.b16 %v425
        %v605 = vunpack.c.h.b16 %v425
        %v606 = vunpack.c.l.b16 %v426
        %v607 = vunpack.c.h.b16 %v426
        %v608 = vunpack.c.l.b16 %v427
        %v609 = vunpack.c.h.b16 %v427
        %v610 = vunpack.c.l.b16 %v428
        %v611 = vunpack.c.h.b16 %v428
        %v612 = vunpack.c.l.b16 %v429
        %v613 = vunpack.c.h.b16 %v429
        %v614 = vunpack.c.l.b16 %v430
        %v615 = vunpack.c.h.b16 %v430
        %v616 = vunpack.c.l.b16 %v431
        %v617 = vunpack.c.h.b16 %v431
        %v618 = vunpack.c.l.b16 %v432
        %v619 = vunpack.c.h.b16 %v432
        %v620 = vunpack.c.l.b16 %v433
        %v621 = vunpack.c.h.b16 %v433
        %v622 = vpack.c.b16 %v560, %v558
        %v623 = vpack.c.b16 %v561, %v559
        %v624 = vpack.c.b16 %v564, %v562
        %v625 = vpack.c.b16 %v565, %v563
        %v626 = vpack.c.b16 %v568, %v566
        %v627 = vpack.c.b16 %v569, %v567
        %v628 = vpack.c.b16 %v572, %v570
        %v629 = vpack.c.b16 %v573, %v571
        %v630 = vpack.c.b16 %v576, %v574
        %v631 = vpack.c.b16 %v577, %v575
        %v632 = vpack.c.b16 %v580, %v578
        %v633 = vpack.c.b16 %v581, %v579
        %v634 = vpack.c.b16 %v584, %v582
        %v635 = vpack.c.b16 %v585, %v583
        %v636 = vpack.c.b16 %v588, %v586
        %v637 = vpack.c.b16 %v589, %v587
        %v638 = vpack.c.b16 %v592, %v590
        %v639 = vpack.c.b16 %v593, %v591
        %v640 = vpack.c.b16 %v596, %v594
        %v641 = vpack.c.b16 %v597, %v595
        %v642 = vpack.c.b16 %v600, %v598
        %v643 = vpack.c.b16 %v601, %v599
        %v644 = vpack.c.b16 %v604, %v602
        %v645 = vpack.c.b16 %v605, %v603
        %v646 = vpack.c.b16 %v608, %v606
        %v647 = vpack.c.b16 %v609, %v607
        %v648 = vpack.c.b16 %v612, %v610
        %v649 = vpack.c.b16 %v613, %v611
        %v650 = vpack.c.b16 %v616, %v614
        %v651 = vpack.c.b16 %v617, %v615
        %v652 = vpack.c.b16 %v620, %v618
        %v653 = vpack.c.b16 %v621, %v619
        %686 = vmatprep.subr.bf16.mxu0 %v637
        %687 = vmatpush1.bf16.msra.mxu0 %v636
        %688 = vmatprep.subr.bf16.mxu0 %v635
        %689 = vmatpush1.bf16.msra.mxu0 %v634
        %690 = vmatprep.subr.bf16.mxu0 %v633
        %691 = vmatpush1.bf16.msra.mxu0 %v632
        %692 = vmatprep.subr.bf16.mxu0 %v631
        %693 = vmatpush1.bf16.msra.mxu0 %v630
        %694 = vmatprep.subr.bf16.mxu0 %v629
        %695 = vmatpush1.bf16.msra.mxu0 %v628
        %696 = vmatprep.subr.bf16.mxu0 %v627
        %697 = vmatpush1.bf16.msra.mxu0 %v626
        %698 = vmatprep.subr.bf16.mxu0 %v625
        %699 = vmatpush1.bf16.msra.mxu0 %v624
        %700 = vmatprep.subr.bf16.mxu0 %v623
        %701 = vmatpush1.bf16.msra.mxu0 %v622
        %702 = vmatprep.subr.bf16.mxu0 %v653
        %703 = vmatpush2.bf16.msra.mxu0 %v652
        %704 = vmatprep.subr.bf16.mxu0 %v651
        %705 = vmatpush2.bf16.msra.mxu0 %v650
        %706 = vmatprep.subr.bf16.mxu0 %v649
        %707 = vmatpush2.bf16.msra.mxu0 %v648
        %708 = vmatprep.subr.bf16.mxu0 %v647
        %709 = vmatpush2.bf16.msra.mxu0 %v646
        %710 = vmatprep.subr.bf16.mxu0 %v645
        %711 = vmatpush2.bf16.msra.mxu0 %v644
        %712 = vmatprep.subr.bf16.mxu0 %v643
        %713 = vmatpush2.bf16.msra.mxu0 %v642
        %714 = vmatprep.subr.bf16.mxu0 %v641
        %715 = vmatpush2.bf16.msra.mxu0 %v640
        %716 = vmatprep.subr.bf16.mxu0 %v639
        %717 = vmatpush2.bf16.msra.mxu0 %v638
        %718 = vmatprep.mubr.bf16.mxu0 %v495
        %719 = vmatmul.mubr.bf16.gmra.mxu0 %v494
        %v720 = vpop.f32.mrf.mxu0
        %v721 = vadd.f32 %v439, %v720
        %v722 = vpop.f32.mrf.mxu0
        %v723 = vadd.f32 %v443, %v722
        %v724 = vpop.f32.mrf.mxu0
        %v725 = vadd.f32 %v439, %v724
        %v726 = vpop.f32.mrf.mxu0
        %v727 = vadd.f32 %v443, %v726
        %728 = vmatprep.mubr.bf16.mxu0 %v497
        %729 = vmatmul.mubr.bf16.gmra.mxu0 %v496
        %v730 = vpop.f32.mrf.mxu0
        %v731 = vadd.f32 %v439, %v730
        %v732 = vpop.f32.mrf.mxu0
        %v733 = vadd.f32 %v443, %v732
        %v734 = vpop.f32.mrf.mxu0
        %v735 = vadd.f32 %v439, %v734
        %v736 = vpop.f32.mrf.mxu0
        %v737 = vadd.f32 %v443, %v736
        %738 = vmatprep.mubr.bf16.mxu0 %v499
        %739 = vmatmul.mubr.bf16.gmra.mxu0 %v498
        %v740 = vpop.f32.mrf.mxu0
        %v741 = vadd.f32 %v439, %v740
        %v742 = vpop.f32.mrf.mxu0
        %v743 = vadd.f32 %v443, %v742
        %v744 = vpop.f32.mrf.mxu0
        %v745 = vadd.f32 %v439, %v744
        %v746 = vpop.f32.mrf.mxu0
        %v747 = vadd.f32 %v443, %v746
        %748 = vmatprep.mubr.bf16.mxu0 %v501
        %749 = vmatmul.mubr.bf16.gmra.mxu0 %v500
        %v750 = vpop.f32.mrf.mxu0
        %v751 = vadd.f32 %v439, %v750
        %v752 = vpop.f32.mrf.mxu0
        %v753 = vadd.f32 %v443, %v752
        %v754 = vpop.f32.mrf.mxu0
        %v755 = vadd.f32 %v439, %v754
        %v756 = vpop.f32.mrf.mxu0
        %v757 = vadd.f32 %v443, %v756
        %758 = vmatprep.mubr.bf16.mxu0 %v503
        %759 = vmatmul.mubr.bf16.gmra.mxu0 %v502
        %v760 = vpop.f32.mrf.mxu0
        %v761 = vadd.f32 %v439, %v760
        %v762 = vpop.f32.mrf.mxu0
        %v763 = vadd.f32 %v443, %v762
        %v764 = vpop.f32.mrf.mxu0
        %v765 = vadd.f32 %v439, %v764
        %v766 = vpop.f32.mrf.mxu0
        %v767 = vadd.f32 %v443, %v766
        %768 = vmatprep.mubr.bf16.mxu0 %v505
        %769 = vmatmul.mubr.bf16.gmra.mxu0 %v504
        %v770 = vpop.f32.mrf.mxu0
        %v771 = vadd.f32 %v439, %v770
        %v772 = vpop.f32.mrf.mxu0
        %v773 = vadd.f32 %v443, %v772
        %v774 = vpop.f32.mrf.mxu0
        %v775 = vadd.f32 %v439, %v774
        %v776 = vpop.f32.mrf.mxu0
        %v777 = vadd.f32 %v443, %v776
        %778 = vmatprep.mubr.bf16.mxu0 %v507
        %779 = vmatmul.mubr.bf16.gmra.mxu0 %v506
        %v780 = vpop.f32.mrf.mxu0
        %v781 = vadd.f32 %v439, %v780
        %v782 = vpop.f32.mrf.mxu0
        %v783 = vadd.f32 %v443, %v782
        %v784 = vpop.f32.mrf.mxu0
        %v785 = vadd.f32 %v439, %v784
        %v786 = vpop.f32.mrf.mxu0
        %v787 = vadd.f32 %v443, %v786
        %788 = vmatprep.mubr.bf16.mxu0 %v509
        %789 = vmatmul.mubr.bf16.gmra.mxu0 %v508
        %v790 = vpop.f32.mrf.mxu0
        %v791 = vadd.f32 %v439, %v790
        %v792 = vpop.f32.mrf.mxu0
        %v793 = vadd.f32 %v443, %v792
        %v794 = vpop.f32.mrf.mxu0
        %v795 = vadd.f32 %v439, %v794
        %v796 = vpop.f32.mrf.mxu0
        %v797 = vadd.f32 %v443, %v796
        %798 = vdwg.mxu0
        %v799 = vmax.f32 %v721, 0.0
        %v800 = vmax.f32 %v723, 0.0
        %v801 = vmax.f32 %v725, 0.0
        %v802 = vmax.f32 %v727, 0.0
        %v803 = vmax.f32 %v731, 0.0
        %v804 = vmax.f32 %v733, 0.0
        %v805 = vmax.f32 %v735, 0.0
        %v806 = vmax.f32 %v737, 0.0
        %v807 = vmax.f32 %v741, 0.0
        %v808 = vmax.f32 %v743, 0.0
        %v809 = vmax.f32 %v745, 0.0
        %v810 = vmax.f32 %v747, 0.0
        %v811 = vmax.f32 %v751, 0.0
        %v812 = vmax.f32 %v753, 0.0
        %v813 = vmax.f32 %v755, 0.0
        %v814 = vmax.f32 %v757, 0.0
        %v815 = vmax.f32 %v761, 0.0
        %v816 = vmax.f32 %v763, 0.0
        %v817 = vmax.f32 %v765, 0.0
        %v818 = vmax.f32 %v767, 0.0
        %v819 = vmax.f32 %v771, 0.0
        %v820 = vmax.f32 %v773, 0.0
        %v821 = vmax.f32 %v775, 0.0
        %v822 = vmax.f32 %v777, 0.0
        %v823 = vmax.f32 %v781, 0.0
        %v824 = vmax.f32 %v783, 0.0
        %v825 = vmax.f32 %v785, 0.0
        %v826 = vmax.f32 %v787, 0.0
        %v827 = vmax.f32 %v791, 0.0
        %v828 = vmax.f32 %v793, 0.0
        %v829 = vmax.f32 %v795, 0.0
        %v830 = vmax.f32 %v797, 0.0
        %v831 = vpack.c.bf16 %v801, %v799
        %v832 = vpack.c.bf16 %v802, %v800
        %v833 = vpack.c.bf16 %v805, %v803
        %v834 = vpack.c.bf16 %v806, %v804
        %v835 = vpack.c.bf16 %v809, %v807
        %v836 = vpack.c.bf16 %v810, %v808
        %v837 = vpack.c.bf16 %v813, %v811
        %v838 = vpack.c.bf16 %v814, %v812
        %v839 = vpack.c.bf16 %v817, %v815
        %v840 = vpack.c.bf16 %v818, %v816
        %v841 = vpack.c.bf16 %v821, %v819
        %v842 = vpack.c.bf16 %v822, %v820
        %v843 = vpack.c.bf16 %v825, %v823
        %v844 = vpack.c.bf16 %v826, %v824
        %v845 = vpack.c.bf16 %v829, %v827
        %v846 = vpack.c.bf16 %v830, %v828
        %v847 = vld [vmem:[#allocation7] sm:$0xff]
        %v848 = vld [vmem:[#allocation7 + $0x8] sm:$0xff]
        %v849 = vld [vmem:[#allocation7 + $0x10] sm:$0xff]
        %v850 = vld [vmem:[#allocation7 + $0x18] sm:$0xff]
        %v851 = vld [vmem:[#allocation7 + $0x20] sm:$0xff]
        %v852 = vld [vmem:[#allocation7 + $0x28] sm:$0xff]
        %v853 = vld [vmem:[#allocation7 + $0x30] sm:$0xff]
        %v854 = vld [vmem:[#allocation7 + $0x38] sm:$0xff]
        %v855 = vld [vmem:[#allocation7 + $0x40] sm:$0xff]
        %v856 = vld [vmem:[#allocation7 + $0x48] sm:$0xff]
        %v857 = vld [vmem:[#allocation7 + $0x50] sm:$0xff]
        %v858 = vld [vmem:[#allocation7 + $0x58] sm:$0xff]
        %v859 = vld [vmem:[#allocation7 + $0x60] sm:$0xff]
        %v860 = vld [vmem:[#allocation7 + $0x68] sm:$0xff]
        %v861 = vld [vmem:[#allocation7 + $0x70] sm:$0xff]
        %v862 = vld [vmem:[#allocation7 + $0x78] sm:$0xff]
        %v863 = vld [vmem:[#allocation7 + $0x80] sm:$0xff]
        %v864 = vld [vmem:[#allocation7 + $0x88] sm:$0xff]
        %v865 = vld [vmem:[#allocation7 + $0x90] sm:$0xff]
        %v866 = vld [vmem:[#allocation7 + $0x98] sm:$0xff]
        %v867 = vld [vmem:[#allocation7 + $0xa0] sm:$0xff]
        %v868 = vld [vmem:[#allocation7 + $0xa8] sm:$0xff]
        %v869 = vld [vmem:[#allocation7 + $0xb0] sm:$0xff]
        %v870 = vld [vmem:[#allocation7 + $0xb8] sm:$0xff]
        %v871 = vld [vmem:[#allocation7 + $0xc0] sm:$0xff]
        %v872 = vld [vmem:[#allocation7 + $0xc8] sm:$0xff]
        %v873 = vld [vmem:[#allocation7 + $0xd0] sm:$0xff]
        %v874 = vld [vmem:[#allocation7 + $0xd8] sm:$0xff]
        %v875 = vld [vmem:[#allocation7 + $0xe0] sm:$0xff]
        %v876 = vld [vmem:[#allocation7 + $0xe8] sm:$0xff]
        %v877 = vld [vmem:[#allocation7 + $0xf0] sm:$0xff]
        %v878 = vld [vmem:[#allocation7 + $0xf8] sm:$0xff]
        %v879 = vld [vmem:[#allocation7 + $0x100] sm:$0xff]
        %v880 = vld [vmem:[#allocation7 + $0x108] sm:$0xff]
        %v881 = vld [vmem:[#allocation7 + $0x110] sm:$0xff]
        %v882 = vld [vmem:[#allocation7 + $0x118] sm:$0xff]
        %v883 = vld [vmem:[#allocation7 + $0x120] sm:$0xff]
        %v884 = vld [vmem:[#allocation7 + $0x128] sm:$0xff]
        %v885 = vld [vmem:[#allocation7 + $0x130] sm:$0xff]
        %v886 = vld [vmem:[#allocation7 + $0x138] sm:$0xff]
        %v887 = vld [vmem:[#allocation7 + $0x140] sm:$0xff]
        %v888 = vld [vmem:[#allocation7 + $0x148] sm:$0xff]
        %v889 = vld [vmem:[#allocation7 + $0x150] sm:$0xff]
        %v890 = vld [vmem:[#allocation7 + $0x158] sm:$0xff]
        %v891 = vld [vmem:[#allocation7 + $0x160] sm:$0xff]
        %v892 = vld [vmem:[#allocation7 + $0x168] sm:$0xff]
        %v893 = vld [vmem:[#allocation7 + $0x170] sm:$0xff]
        %v894 = vld [vmem:[#allocation7 + $0x178] sm:$0xff]
        %v895 = vld [vmem:[#allocation7 + $0x180] sm:$0xff]
        %v896 = vld [vmem:[#allocation7 + $0x188] sm:$0xff]
        %v897 = vld [vmem:[#allocation7 + $0x190] sm:$0xff]
        %v898 = vld [vmem:[#allocation7 + $0x198] sm:$0xff]
        %v899 = vld [vmem:[#allocation7 + $0x1a0] sm:$0xff]
        %v900 = vld [vmem:[#allocation7 + $0x1a8] sm:$0xff]
        %v901 = vld [vmem:[#allocation7 + $0x1b0] sm:$0xff]
        %v902 = vld [vmem:[#allocation7 + $0x1b8] sm:$0xff]
        %v903 = vld [vmem:[#allocation7 + $0x1c0] sm:$0xff]
        %v904 = vld [vmem:[#allocation7 + $0x1c8] sm:$0xff]
        %v905 = vld [vmem:[#allocation7 + $0x1d0] sm:$0xff]
        %v906 = vld [vmem:[#allocation7 + $0x1d8] sm:$0xff]
        %v907 = vld [vmem:[#allocation7 + $0x1e0] sm:$0xff]
        %v908 = vld [vmem:[#allocation7 + $0x1e8] sm:$0xff]
        %v909 = vld [vmem:[#allocation7 + $0x1f0] sm:$0xff]
        %v910 = vld [vmem:[#allocation7 + $0x1f8] sm:$0xff]
        %v911 = vld [vmem:[#allocation13 + $0x2] sm:$0xf]
        %v913 = vlaneseq
        %v914 = vshrl.u32 %v913, 7
        %v915 = vsub.s32 0, %v914
        %v916 = vrot.slane %v911, %v915
        %v917 = vlaneseq
        %v918 = vshrl.u32 %v917, 7
        %v919 = vsub.s32 1, %v918
        %v920 = vrot.slane %v911, %v919
        %v921 = vlaneseq
        %v922 = vshrl.u32 %v921, 7
        %v923 = vsub.s32 2, %v922
        %v924 = vrot.slane %v911, %v923
        %v925 = vlaneseq
        %v926 = vshrl.u32 %v925, 7
        %v927 = vsub.s32 3, %v926
        %v928 = vrot.slane %v911, %v927
        %v997 = vunpack.c.l.b16 %v847
        %v998 = vunpack.c.h.b16 %v847
        %v999 = vunpack.c.l.b16 %v848
        %v1000 = vunpack.c.h.b16 %v848
        %v1001 = vunpack.c.l.b16 %v849
        %v1002 = vunpack.c.h.b16 %v849
        %v1003 = vunpack.c.l.b16 %v850
        %v1004 = vunpack.c.h.b16 %v850
        %v1005 = vunpack.c.l.b16 %v851
        %v1006 = vunpack.c.h.b16 %v851
        %v1007 = vunpack.c.l.b16 %v852
        %v1008 = vunpack.c.h.b16 %v852
        %v1009 = vunpack.c.l.b16 %v853
        %v1010 = vunpack.c.h.b16 %v853
        %v1011 = vunpack.c.l.b16 %v854
        %v1012 = vunpack.c.h.b16 %v854
        %v1013 = vunpack.c.l.b16 %v855
        %v1014 = vunpack.c.h.b16 %v855
        %v1015 = vunpack.c.l.b16 %v856
        %v1016 = vunpack.c.h.b16 %v856
        %v1017 = vunpack.c.l.b16 %v857
        %v1018 = vunpack.c.h.b16 %v857
        %v1019 = vunpack.c.l.b16 %v858
        %v1020 = vunpack.c.h.b16 %v858
        %v1021 = vunpack.c.l.b16 %v859
        %v1022 = vunpack.c.h.b16 %v859
        %v1023 = vunpack.c.l.b16 %v860
        %v1024 = vunpack.c.h.b16 %v860
        %v1025 = vunpack.c.l.b16 %v861
        %v1026 = vunpack.c.h.b16 %v861
        %v1027 = vunpack.c.l.b16 %v862
        %v1028 = vunpack.c.h.b16 %v862
        %v1029 = vunpack.c.l.b16 %v863
        %v1030 = vunpack.c.h.b16 %v863
        %v1031 = vunpack.c.l.b16 %v864
        %v1032 = vunpack.c.h.b16 %v864
        %v1033 = vunpack.c.l.b16 %v865
        %v1034 = vunpack.c.h.b16 %v865
        %v1035 = vunpack.c.l.b16 %v866
        %v1036 = vunpack.c.h.b16 %v866
        %v1037 = vunpack.c.l.b16 %v867
        %v1038 = vunpack.c.h.b16 %v867
        %v1039 = vunpack.c.l.b16 %v868
        %v1040 = vunpack.c.h.b16 %v868
        %v1041 = vunpack.c.l.b16 %v869
        %v1042 = vunpack.c.h.b16 %v869
        %v1043 = vunpack.c.l.b16 %v870
        %v1044 = vunpack.c.h.b16 %v870
        %v1045 = vunpack.c.l.b16 %v871
        %v1046 = vunpack.c.h.b16 %v871
        %v1047 = vunpack.c.l.b16 %v872
        %v1048 = vunpack.c.h.b16 %v872
        %v1049 = vunpack.c.l.b16 %v873
        %v1050 = vunpack.c.h.b16 %v873
        %v1051 = vunpack.c.l.b16 %v874
        %v1052 = vunpack.c.h.b16 %v874
        %v1053 = vunpack.c.l.b16 %v875
        %v1054 = vunpack.c.h.b16 %v875
        %v1055 = vunpack.c.l.b16 %v876
        %v1056 = vunpack.c.h.b16 %v876
        %v1057 = vunpack.c.l.b16 %v877
        %v1058 = vunpack.c.h.b16 %v877
        %v1059 = vunpack.c.l.b16 %v878
        %v1060 = vunpack.c.h.b16 %v878
        %v1061 = vunpack.c.l.b16 %v879
        %v1062 = vunpack.c.h.b16 %v879
        %v1063 = vunpack.c.l.b16 %v880
        %v1064 = vunpack.c.h.b16 %v880
        %v1065 = vunpack.c.l.b16 %v881
        %v1066 = vunpack.c.h.b16 %v881
        %v1067 = vunpack.c.l.b16 %v882
        %v1068 = vunpack.c.h.b16 %v882
        %v1069 = vunpack.c.l.b16 %v883
        %v1070 = vunpack.c.h.b16 %v883
        %v1071 = vunpack.c.l.b16 %v884
        %v1072 = vunpack.c.h.b16 %v884
        %v1073 = vunpack.c.l.b16 %v885
        %v1074 = vunpack.c.h.b16 %v885
        %v1075 = vunpack.c.l.b16 %v886
        %v1076 = vunpack.c.h.b16 %v886
        %v1077 = vunpack.c.l.b16 %v887
        %v1078 = vunpack.c.h.b16 %v887
        %v1079 = vunpack.c.l.b16 %v888
        %v1080 = vunpack.c.h.b16 %v888
        %v1081 = vunpack.c.l.b16 %v889
        %v1082 = vunpack.c.h.b16 %v889
        %v1083 = vunpack.c.l.b16 %v890
        %v1084 = vunpack.c.h.b16 %v890
        %v1085 = vunpack.c.l.b16 %v891
        %v1086 = vunpack.c.h.b16 %v891
        %v1087 = vunpack.c.l.b16 %v892
        %v1088 = vunpack.c.h.b16 %v892
        %v1089 = vunpack.c.l.b16 %v893
        %v1090 = vunpack.c.h.b16 %v893
        %v1091 = vunpack.c.l.b16 %v894
        %v1092 = vunpack.c.h.b16 %v894
        %v1093 = vunpack.c.l.b16 %v895
        %v1094 = vunpack.c.h.b16 %v895
        %v1095 = vunpack.c.l.b16 %v896
        %v1096 = vunpack.c.h.b16 %v896
        %v1097 = vunpack.c.l.b16 %v897
        %v1098 = vunpack.c.h.b16 %v897
        %v1099 = vunpack.c.l.b16 %v898
        %v1100 = vunpack.c.h.b16 %v898
        %v1101 = vunpack.c.l.b16 %v899
        %v1102 = vunpack.c.h.b16 %v899
        %v1103 = vunpack.c.l.b16 %v900
        %v1104 = vunpack.c.h.b16 %v900
        %v1105 = vunpack.c.l.b16 %v901
        %v1106 = vunpack.c.h.b16 %v901
        %v1107 = vunpack.c.l.b16 %v902
        %v1108 = vunpack.c.h.b16 %v902
        %v1109 = vunpack.c.l.b16 %v903
        %v1110 = vunpack.c.h.b16 %v903
        %v1111 = vunpack.c.l.b16 %v904
        %v1112 = vunpack.c.h.b16 %v904
        %v1113 = vunpack.c.l.b16 %v905
        %v1114 = vunpack.c.h.b16 %v905
        %v1115 = vunpack.c.l.b16 %v906
        %v1116 = vunpack.c.h.b16 %v906
        %v1117 = vunpack.c.l.b16 %v907
        %v1118 = vunpack.c.h.b16 %v907
        %v1119 = vunpack.c.l.b16 %v908
        %v1120 = vunpack.c.h.b16 %v908
        %v1121 = vunpack.c.l.b16 %v909
        %v1122 = vunpack.c.h.b16 %v909
        %v1123 = vunpack.c.l.b16 %v910
        %v1124 = vunpack.c.h.b16 %v910
        %v1125 = vpack.c.b16 %v1001, %v997
        %v1126 = vpack.c.b16 %v1002, %v998
        %v1127 = vpack.c.b16 %v1003, %v999
        %v1128 = vpack.c.b16 %v1004, %v1000
        %v1129 = vpack.c.b16 %v1009, %v1005
        %v1130 = vpack.c.b16 %v1010, %v1006
        %v1131 = vpack.c.b16 %v1011, %v1007
        %v1132 = vpack.c.b16 %v1012, %v1008
        %v1133 = vpack.c.b16 %v1017, %v1013
        %v1134 = vpack.c.b16 %v1018, %v1014
        %v1135 = vpack.c.b16 %v1019, %v1015
        %v1136 = vpack.c.b16 %v1020, %v1016
        %v1137 = vpack.c.b16 %v1025, %v1021
        %v1138 = vpack.c.b16 %v1026, %v1022
        %v1139 = vpack.c.b16 %v1027, %v1023
        %v1140 = vpack.c.b16 %v1028, %v1024
        %v1141 = vpack.c.b16 %v1033, %v1029
        %v1142 = vpack.c.b16 %v1034, %v1030
        %v1143 = vpack.c.b16 %v1035, %v1031
        %v1144 = vpack.c.b16 %v1036, %v1032
        %v1145 = vpack.c.b16 %v1041, %v1037
        %v1146 = vpack.c.b16 %v1042, %v1038
        %v1147 = vpack.c.b16 %v1043, %v1039
        %v1148 = vpack.c.b16 %v1044, %v1040
        %v1149 = vpack.c.b16 %v1049, %v1045
        %v1150 = vpack.c.b16 %v1050, %v1046
        %v1151 = vpack.c.b16 %v1051, %v1047
        %v1152 = vpack.c.b16 %v1052, %v1048
        %v1153 = vpack.c.b16 %v1057, %v1053
        %v1154 = vpack.c.b16 %v1058, %v1054
        %v1155 = vpack.c.b16 %v1059, %v1055
        %v1156 = vpack.c.b16 %v1060, %v1056
        %v1157 = vpack.c.b16 %v1065, %v1061
        %v1158 = vpack.c.b16 %v1066, %v1062
        %v1159 = vpack.c.b16 %v1067, %v1063
        %v1160 = vpack.c.b16 %v1068, %v1064
        %v1161 = vpack.c.b16 %v1073, %v1069
        %v1162 = vpack.c.b16 %v1074, %v1070
        %v1163 = vpack.c.b16 %v1075, %v1071
        %v1164 = vpack.c.b16 %v1076, %v1072
        %v1165 = vpack.c.b16 %v1081, %v1077
        %v1166 = vpack.c.b16 %v1082, %v1078
        %v1167 = vpack.c.b16 %v1083, %v1079
        %v1168 = vpack.c.b16 %v1084, %v1080
        %v1169 = vpack.c.b16 %v1089, %v1085
        %v1170 = vpack.c.b16 %v1090, %v1086
        %v1171 = vpack.c.b16 %v1091, %v1087
        %v1172 = vpack.c.b16 %v1092, %v1088
        %v1173 = vpack.c.b16 %v1097, %v1093
        %v1174 = vpack.c.b16 %v1098, %v1094
        %v1175 = vpack.c.b16 %v1099, %v1095
        %v1176 = vpack.c.b16 %v1100, %v1096
        %v1177 = vpack.c.b16 %v1105, %v1101
        %v1178 = vpack.c.b16 %v1106, %v1102
        %v1179 = vpack.c.b16 %v1107, %v1103
        %v1180 = vpack.c.b16 %v1108, %v1104
        %v1181 = vpack.c.b16 %v1113, %v1109
        %v1182 = vpack.c.b16 %v1114, %v1110
        %v1183 = vpack.c.b16 %v1115, %v1111
        %v1184 = vpack.c.b16 %v1116, %v1112
        %v1185 = vpack.c.b16 %v1121, %v1117
        %v1186 = vpack.c.b16 %v1122, %v1118
        %v1187 = vpack.c.b16 %v1123, %v1119
        %v1188 = vpack.c.b16 %v1124, %v1120
        %1253 = vmatprep.subr.bf16.mxu0 %v1154
        %1254 = vmatpush1.bf16.msra.mxu0 %v1153
        %1255 = vmatprep.subr.bf16.mxu0 %v1150
        %1256 = vmatpush1.bf16.msra.mxu0 %v1149
        %1257 = vmatprep.subr.bf16.mxu0 %v1146
        %1258 = vmatpush1.bf16.msra.mxu0 %v1145
        %1259 = vmatprep.subr.bf16.mxu0 %v1142
        %1260 = vmatpush1.bf16.msra.mxu0 %v1141
        %1261 = vmatprep.subr.bf16.mxu0 %v1138
        %1262 = vmatpush1.bf16.msra.mxu0 %v1137
        %1263 = vmatprep.subr.bf16.mxu0 %v1134
        %1264 = vmatpush1.bf16.msra.mxu0 %v1133
        %1265 = vmatprep.subr.bf16.mxu0 %v1130
        %1266 = vmatpush1.bf16.msra.mxu0 %v1129
        %1267 = vmatprep.subr.bf16.mxu0 %v1126
        %1268 = vmatpush1.bf16.msra.mxu0 %v1125
        %1269 = vmatprep.subr.bf16.mxu0 %v1186
        %1270 = vmatpush2.bf16.msra.mxu0 %v1185
        %1271 = vmatprep.subr.bf16.mxu0 %v1182
        %1272 = vmatpush2.bf16.msra.mxu0 %v1181
        %1273 = vmatprep.subr.bf16.mxu0 %v1178
        %1274 = vmatpush2.bf16.msra.mxu0 %v1177
        %1275 = vmatprep.subr.bf16.mxu0 %v1174
        %1276 = vmatpush2.bf16.msra.mxu0 %v1173
        %1277 = vmatprep.subr.bf16.mxu0 %v1170
        %1278 = vmatpush2.bf16.msra.mxu0 %v1169
        %1279 = vmatprep.subr.bf16.mxu0 %v1166
        %1280 = vmatpush2.bf16.msra.mxu0 %v1165
        %1281 = vmatprep.subr.bf16.mxu0 %v1162
        %1282 = vmatpush2.bf16.msra.mxu0 %v1161
        %1283 = vmatprep.subr.bf16.mxu0 %v1158
        %1284 = vmatpush2.bf16.msra.mxu0 %v1157
        %1285 = vmatprep.mubr.bf16.mxu0 %v832
        %1286 = vmatmul.mubr.bf16.gmra.mxu0 %v831
        %v1287 = vpop.f32.mrf.mxu0
        %v1288 = vadd.f32 %v916, %v1287
        %v1289 = vpop.f32.mrf.mxu0
        %v1290 = vadd.f32 %v920, %v1289
        %v1291 = vpop.f32.mrf.mxu0
        %v1292 = vadd.f32 %v916, %v1291
        %v1293 = vpop.f32.mrf.mxu0
        %v1294 = vadd.f32 %v920, %v1293
        %1295 = vmatprep.mubr.bf16.mxu0 %v834
        %1296 = vmatmul.mubr.bf16.gmra.mxu0 %v833
        %v1297 = vpop.f32.mrf.mxu0
        %v1298 = vadd.f32 %v916, %v1297
        %v1299 = vpop.f32.mrf.mxu0
        %v1300 = vadd.f32 %v920, %v1299
        %v1301 = vpop.f32.mrf.mxu0
        %v1302 = vadd.f32 %v916, %v1301
        %v1303 = vpop.f32.mrf.mxu0
        %v1304 = vadd.f32 %v920, %v1303
        %1305 = vmatprep.mubr.bf16.mxu0 %v836
        %1306 = vmatmul.mubr.bf16.gmra.mxu0 %v835
        %v1307 = vpop.f32.mrf.mxu0
        %v1308 = vadd.f32 %v916, %v1307
        %v1309 = vpop.f32.mrf.mxu0
        %v1310 = vadd.f32 %v920, %v1309
        %v1311 = vpop.f32.mrf.mxu0
        %v1312 = vadd.f32 %v916, %v1311
        %v1313 = vpop.f32.mrf.mxu0
        %v1314 = vadd.f32 %v920, %v1313
        %1315 = vmatprep.mubr.bf16.mxu0 %v838
        %1316 = vmatmul.mubr.bf16.gmra.mxu0 %v837
        %v1317 = vpop.f32.mrf.mxu0
        %v1318 = vadd.f32 %v916, %v1317
        %v1319 = vpop.f32.mrf.mxu0
        %v1320 = vadd.f32 %v920, %v1319
        %v1321 = vpop.f32.mrf.mxu0
        %v1322 = vadd.f32 %v916, %v1321
        %v1323 = vpop.f32.mrf.mxu0
        %v1324 = vadd.f32 %v920, %v1323
        %1325 = vmatprep.mubr.bf16.mxu0 %v840
        %1326 = vmatmul.mubr.bf16.gmra.mxu0 %v839
        %v1327 = vpop.f32.mrf.mxu0
        %v1328 = vadd.f32 %v916, %v1327
        %v1329 = vpop.f32.mrf.mxu0
        %v1330 = vadd.f32 %v920, %v1329
        %v1331 = vpop.f32.mrf.mxu0
        %v1332 = vadd.f32 %v916, %v1331
        %v1333 = vpop.f32.mrf.mxu0
        %v1334 = vadd.f32 %v920, %v1333
        %1335 = vmatprep.mubr.bf16.mxu0 %v842
        %1336 = vmatmul.mubr.bf16.gmra.mxu0 %v841
        %v1337 = vpop.f32.mrf.mxu0
        %v1338 = vadd.f32 %v916, %v1337
        %v1339 = vpop.f32.mrf.mxu0
        %v1340 = vadd.f32 %v920, %v1339
        %v1341 = vpop.f32.mrf.mxu0
        %v1342 = vadd.f32 %v916, %v1341
        %v1343 = vpop.f32.mrf.mxu0
        %v1344 = vadd.f32 %v920, %v1343
        %1345 = vmatprep.mubr.bf16.mxu0 %v844
        %1346 = vmatmul.mubr.bf16.gmra.mxu0 %v843
        %v1347 = vpop.f32.mrf.mxu0
        %v1348 = vadd.f32 %v916, %v1347
        %v1349 = vpop.f32.mrf.mxu0
        %v1350 = vadd.f32 %v920, %v1349
        %v1351 = vpop.f32.mrf.mxu0
        %v1352 = vadd.f32 %v916, %v1351
        %v1353 = vpop.f32.mrf.mxu0
        %v1354 = vadd.f32 %v920, %v1353
        %1355 = vmatprep.mubr.bf16.mxu0 %v846
        %1356 = vmatmul.mubr.bf16.gmra.mxu0 %v845
        %v1357 = vpop.f32.mrf.mxu0
        %v1358 = vadd.f32 %v916, %v1357
        %v1359 = vpop.f32.mrf.mxu0
        %v1360 = vadd.f32 %v920, %v1359
        %v1361 = vpop.f32.mrf.mxu0
        %v1362 = vadd.f32 %v916, %v1361
        %v1363 = vpop.f32.mrf.mxu0
        %v1364 = vadd.f32 %v920, %v1363
        %1365 = vdwg.mxu0
        %1366 = vmatprep.subr.bf16.mxu0 %v1156
        %1367 = vmatpush1.bf16.msra.mxu0 %v1155
        %1368 = vmatprep.subr.bf16.mxu0 %v1152
        %1369 = vmatpush1.bf16.msra.mxu0 %v1151
        %1370 = vmatprep.subr.bf16.mxu0 %v1148
        %1371 = vmatpush1.bf16.msra.mxu0 %v1147
        %1372 = vmatprep.subr.bf16.mxu0 %v1144
        %1373 = vmatpush1.bf16.msra.mxu0 %v1143
        %1374 = vmatprep.subr.bf16.mxu0 %v1140
        %1375 = vmatpush1.bf16.msra.mxu0 %v1139
        %1376 = vmatprep.subr.bf16.mxu0 %v1136
        %1377 = vmatpush1.bf16.msra.mxu0 %v1135
        %1378 = vmatprep.subr.bf16.mxu0 %v1132
        %1379 = vmatpush1.bf16.msra.mxu0 %v1131
        %1380 = vmatprep.subr.bf16.mxu0 %v1128
        %1381 = vmatpush1.bf16.msra.mxu0 %v1127
        %1382 = vmatprep.subr.bf16.mxu0 %v1188
        %1383 = vmatpush2.bf16.msra.mxu0 %v1187
        %1384 = vmatprep.subr.bf16.mxu0 %v1184
        %1385 = vmatpush2.bf16.msra.mxu0 %v1183
        %1386 = vmatprep.subr.bf16.mxu0 %v1180
        %1387 = vmatpush2.bf16.msra.mxu0 %v1179
        %1388 = vmatprep.subr.bf16.mxu0 %v1176
        %1389 = vmatpush2.bf16.msra.mxu0 %v1175
        %1390 = vmatprep.subr.bf16.mxu0 %v1172
        %1391 = vmatpush2.bf16.msra.mxu0 %v1171
        %1392 = vmatprep.subr.bf16.mxu0 %v1168
        %1393 = vmatpush2.bf16.msra.mxu0 %v1167
        %1394 = vmatprep.subr.bf16.mxu0 %v1164
        %1395 = vmatpush2.bf16.msra.mxu0 %v1163
        %1396 = vmatprep.subr.bf16.mxu0 %v1160
        %1397 = vmatpush2.bf16.msra.mxu0 %v1159
        %1398 = vmatprep.mubr.bf16.mxu0 %v832
        %1399 = vmatmul.mubr.bf16.gmra.mxu0 %v831
        %v1400 = vpop.f32.mrf.mxu0
        %v1401 = vadd.f32 %v924, %v1400
        %v1402 = vpop.f32.mrf.mxu0
        %v1403 = vadd.f32 %v928, %v1402
        %v1404 = vpop.f32.mrf.mxu0
        %v1405 = vadd.f32 %v924, %v1404
        %v1406 = vpop.f32.mrf.mxu0
        %v1407 = vadd.f32 %v928, %v1406
        %1408 = vmatprep.mubr.bf16.mxu0 %v834
        %1409 = vmatmul.mubr.bf16.gmra.mxu0 %v833
        %v1410 = vpop.f32.mrf.mxu0
        %v1411 = vadd.f32 %v924, %v1410
        %v1412 = vpop.f32.mrf.mxu0
        %v1413 = vadd.f32 %v928, %v1412
        %v1414 = vpop.f32.mrf.mxu0
        %v1415 = vadd.f32 %v924, %v1414
        %v1416 = vpop.f32.mrf.mxu0
        %v1417 = vadd.f32 %v928, %v1416
        %1418 = vmatprep.mubr.bf16.mxu0 %v836
        %1419 = vmatmul.mubr.bf16.gmra.mxu0 %v835
        %v1420 = vpop.f32.mrf.mxu0
        %v1421 = vadd.f32 %v924, %v1420
        %v1422 = vpop.f32.mrf.mxu0
        %v1423 = vadd.f32 %v928, %v1422
        %v1424 = vpop.f32.mrf.mxu0
        %v1425 = vadd.f32 %v924, %v1424
        %v1426 = vpop.f32.mrf.mxu0
        %v1427 = vadd.f32 %v928, %v1426
        %1428 = vmatprep.mubr.bf16.mxu0 %v838
        %1429 = vmatmul.mubr.bf16.gmra.mxu0 %v837
        %v1430 = vpop.f32.mrf.mxu0
        %v1431 = vadd.f32 %v924, %v1430
        %v1432 = vpop.f32.mrf.mxu0
        %v1433 = vadd.f32 %v928, %v1432
        %v1434 = vpop.f32.mrf.mxu0
        %v1435 = vadd.f32 %v924, %v1434
        %v1436 = vpop.f32.mrf.mxu0
        %v1437 = vadd.f32 %v928, %v1436
        %1438 = vmatprep.mubr.bf16.mxu0 %v840
        %1439 = vmatmul.mubr.bf16.gmra.mxu0 %v839
        %v1440 = vpop.f32.mrf.mxu0
        %v1441 = vadd.f32 %v924, %v1440
        %v1442 = vpop.f32.mrf.mxu0
        %v1443 = vadd.f32 %v928, %v1442
        %v1444 = vpop.f32.mrf.mxu0
        %v1445 = vadd.f32 %v924, %v1444
        %v1446 = vpop.f32.mrf.mxu0
        %v1447 = vadd.f32 %v928, %v1446
        %1448 = vmatprep.mubr.bf16.mxu0 %v842
        %1449 = vmatmul.mubr.bf16.gmra.mxu0 %v841
        %v1450 = vpop.f32.mrf.mxu0
        %v1451 = vadd.f32 %v924, %v1450
        %v1452 = vpop.f32.mrf.mxu0
        %v1453 = vadd.f32 %v928, %v1452
        %v1454 = vpop.f32.mrf.mxu0
        %v1455 = vadd.f32 %v924, %v1454
        %v1456 = vpop.f32.mrf.mxu0
        %v1457 = vadd.f32 %v928, %v1456
        %1458 = vmatprep.mubr.bf16.mxu0 %v844
        %1459 = vmatmul.mubr.bf16.gmra.mxu0 %v843
        %v1460 = vpop.f32.mrf.mxu0
        %v1461 = vadd.f32 %v924, %v1460
        %v1462 = vpop.f32.mrf.mxu0
        %v1463 = vadd.f32 %v928, %v1462
        %v1464 = vpop.f32.mrf.mxu0
        %v1465 = vadd.f32 %v924, %v1464
        %v1466 = vpop.f32.mrf.mxu0
        %v1467 = vadd.f32 %v928, %v1466
        %1468 = vmatprep.mubr.bf16.mxu0 %v846
        %1469 = vmatmul.mubr.bf16.gmra.mxu0 %v845
        %v1470 = vpop.f32.mrf.mxu0
        %v1471 = vadd.f32 %v924, %v1470
        %v1472 = vpop.f32.mrf.mxu0
        %v1473 = vadd.f32 %v928, %v1472
        %v1474 = vpop.f32.mrf.mxu0
        %v1475 = vadd.f32 %v924, %v1474
        %v1476 = vpop.f32.mrf.mxu0
        %v1477 = vadd.f32 %v928, %v1476
        %1478 = vdwg.mxu0
        %v1479 = vmax.f32 %v1288, 0.0
        %v1480 = vmax.f32 %v1290, 0.0
        %v1481 = vmax.f32 %v1401, 0.0
        %v1482 = vmax.f32 %v1403, 0.0
        %v1483 = vmax.f32 %v1292, 0.0
        %v1484 = vmax.f32 %v1294, 0.0
        %v1485 = vmax.f32 %v1405, 0.0
        %v1486 = vmax.f32 %v1407, 0.0
        %v1487 = vmax.f32 %v1298, 0.0
        %v1488 = vmax.f32 %v1300, 0.0
        %v1489 = vmax.f32 %v1411, 0.0
        %v1490 = vmax.f32 %v1413, 0.0
        %v1491 = vmax.f32 %v1302, 0.0
        %v1492 = vmax.f32 %v1304, 0.0
        %v1493 = vmax.f32 %v1415, 0.0
        %v1494 = vmax.f32 %v1417, 0.0
        %v1495 = vmax.f32 %v1308, 0.0
        %v1496 = vmax.f32 %v1310, 0.0
        %v1497 = vmax.f32 %v1421, 0.0
        %v1498 = vmax.f32 %v1423, 0.0
        %v1499 = vmax.f32 %v1312, 0.0
        %v1500 = vmax.f32 %v1314, 0.0
        %v1501 = vmax.f32 %v1425, 0.0
        %v1502 = vmax.f32 %v1427, 0.0
        %v1503 = vmax.f32 %v1318, 0.0
        %v1504 = vmax.f32 %v1320, 0.0
        %v1505 = vmax.f32 %v1431, 0.0
        %v1506 = vmax.f32 %v1433, 0.0
        %v1507 = vmax.f32 %v1322, 0.0
        %v1508 = vmax.f32 %v1324, 0.0
        %v1509 = vmax.f32 %v1435, 0.0
        %v1510 = vmax.f32 %v1437, 0.0
        %v1511 = vmax.f32 %v1328, 0.0
        %v1512 = vmax.f32 %v1330, 0.0
        %v1513 = vmax.f32 %v1441, 0.0
        %v1514 = vmax.f32 %v1443, 0.0
        %v1515 = vmax.f32 %v1332, 0.0
        %v1516 = vmax.f32 %v1334, 0.0
        %v1517 = vmax.f32 %v1445, 0.0
        %v1518 = vmax.f32 %v1447, 0.0
        %v1519 = vmax.f32 %v1338, 0.0
        %v1520 = vmax.f32 %v1340, 0.0
        %v1521 = vmax.f32 %v1451, 0.0
        %v1522 = vmax.f32 %v1453, 0.0
        %v1523 = vmax.f32 %v1342, 0.0
        %v1524 = vmax.f32 %v1344, 0.0
        %v1525 = vmax.f32 %v1455, 0.0
        %v1526 = vmax.f32 %v1457, 0.0
        %v1527 = vmax.f32 %v1348, 0.0
        %v1528 = vmax.f32 %v1350, 0.0
        %v1529 = vmax.f32 %v1461, 0.0
        %v1530 = vmax.f32 %v1463, 0.0
        %v1531 = vmax.f32 %v1352, 0.0
        %v1532 = vmax.f32 %v1354, 0.0
        %v1533 = vmax.f32 %v1465, 0.0
        %v1534 = vmax.f32 %v1467, 0.0
        %v1535 = vmax.f32 %v1358, 0.0
        %v1536 = vmax.f32 %v1360, 0.0
        %v1537 = vmax.f32 %v1471, 0.0
        %v1538 = vmax.f32 %v1473, 0.0
        %v1539 = vmax.f32 %v1362, 0.0
        %v1540 = vmax.f32 %v1364, 0.0
        %v1541 = vmax.f32 %v1475, 0.0
        %v1542 = vmax.f32 %v1477, 0.0
        %v1543 = vpack.c.bf16 %v1483, %v1479
        %v1544 = vpack.c.bf16 %v1484, %v1480
        %v1545 = vpack.c.bf16 %v1485, %v1481
        %v1546 = vpack.c.bf16 %v1486, %v1482
        %v1547 = vpack.c.bf16 %v1491, %v1487
        %v1548 = vpack.c.bf16 %v1492, %v1488
        %v1549 = vpack.c.bf16 %v1493, %v1489
        %v1550 = vpack.c.bf16 %v1494, %v1490
        %v1551 = vpack.c.bf16 %v1499, %v1495
        %v1552 = vpack.c.bf16 %v1500, %v1496
        %v1553 = vpack.c.bf16 %v1501, %v1497
        %v1554 = vpack.c.bf16 %v1502, %v1498
        %v1555 = vpack.c.bf16 %v1507, %v1503
        %v1556 = vpack.c.bf16 %v1508, %v1504
        %v1557 = vpack.c.bf16 %v1509, %v1505
        %v1558 = vpack.c.bf16 %v1510, %v1506
        %v1559 = vpack.c.bf16 %v1515, %v1511
        %v1560 = vpack.c.bf16 %v1516, %v1512
        %v1561 = vpack.c.bf16 %v1517, %v1513
        %v1562 = vpack.c.bf16 %v1518, %v1514
        %v1563 = vpack.c.bf16 %v1523, %v1519
        %v1564 = vpack.c.bf16 %v1524, %v1520
        %v1565 = vpack.c.bf16 %v1525, %v1521
        %v1566 = vpack.c.bf16 %v1526, %v1522
        %v1567 = vpack.c.bf16 %v1531, %v1527
        %v1568 = vpack.c.bf16 %v1532, %v1528
        %v1569 = vpack.c.bf16 %v1533, %v1529
        %v1570 = vpack.c.bf16 %v1534, %v1530
        %v1571 = vpack.c.bf16 %v1539, %v1535
        %v1572 = vpack.c.bf16 %v1540, %v1536
        %v1573 = vpack.c.bf16 %v1541, %v1537
        %v1574 = vpack.c.bf16 %v1542, %v1538
        %v1575 = vld [vmem:[#allocation8] sm:$0xff]
        %v1576 = vld [vmem:[#allocation8 + $0x8] sm:$0xff]
        %v1577 = vld [vmem:[#allocation8 + $0x10] sm:$0xff]
        %v1578 = vld [vmem:[#allocation8 + $0x18] sm:$0xff]
        %v1579 = vld [vmem:[#allocation8 + $0x20] sm:$0xff]
        %v1580 = vld [vmem:[#allocation8 + $0x28] sm:$0xff]
        %v1581 = vld [vmem:[#allocation8 + $0x30] sm:$0xff]
        %v1582 = vld [vmem:[#allocation8 + $0x38] sm:$0xff]
        %v1583 = vld [vmem:[#allocation8 + $0x40] sm:$0xff]
        %v1584 = vld [vmem:[#allocation8 + $0x48] sm:$0xff]
        %v1585 = vld [vmem:[#allocation8 + $0x50] sm:$0xff]
        %v1586 = vld [vmem:[#allocation8 + $0x58] sm:$0xff]
        %v1587 = vld [vmem:[#allocation8 + $0x60] sm:$0xff]
        %v1588 = vld [vmem:[#allocation8 + $0x68] sm:$0xff]
        %v1589 = vld [vmem:[#allocation8 + $0x70] sm:$0xff]
        %v1590 = vld [vmem:[#allocation8 + $0x78] sm:$0xff]
        %v1591 = vld [vmem:[#allocation8 + $0x80] sm:$0xff]
        %v1592 = vld [vmem:[#allocation8 + $0x88] sm:$0xff]
        %v1593 = vld [vmem:[#allocation8 + $0x90] sm:$0xff]
        %v1594 = vld [vmem:[#allocation8 + $0x98] sm:$0xff]
        %v1595 = vld [vmem:[#allocation8 + $0xa0] sm:$0xff]
        %v1596 = vld [vmem:[#allocation8 + $0xa8] sm:$0xff]
        %v1597 = vld [vmem:[#allocation8 + $0xb0] sm:$0xff]
        %v1598 = vld [vmem:[#allocation8 + $0xb8] sm:$0xff]
        %v1599 = vld [vmem:[#allocation8 + $0xc0] sm:$0xff]
        %v1600 = vld [vmem:[#allocation8 + $0xc8] sm:$0xff]
        %v1601 = vld [vmem:[#allocation8 + $0xd0] sm:$0xff]
        %v1602 = vld [vmem:[#allocation8 + $0xd8] sm:$0xff]
        %v1603 = vld [vmem:[#allocation8 + $0xe0] sm:$0xff]
        %v1604 = vld [vmem:[#allocation8 + $0xe8] sm:$0xff]
        %v1605 = vld [vmem:[#allocation8 + $0xf0] sm:$0xff]
        %v1606 = vld [vmem:[#allocation8 + $0xf8] sm:$0xff]
        %v1607 = vld [vmem:[#allocation8 + $0x100] sm:$0xff]
        %v1608 = vld [vmem:[#allocation8 + $0x108] sm:$0xff]
        %v1609 = vld [vmem:[#allocation8 + $0x110] sm:$0xff]
        %v1610 = vld [vmem:[#allocation8 + $0x118] sm:$0xff]
        %v1611 = vld [vmem:[#allocation8 + $0x120] sm:$0xff]
        %v1612 = vld [vmem:[#allocation8 + $0x128] sm:$0xff]
        %v1613 = vld [vmem:[#allocation8 + $0x130] sm:$0xff]
        %v1614 = vld [vmem:[#allocation8 + $0x138] sm:$0xff]
        %v1615 = vld [vmem:[#allocation8 + $0x140] sm:$0xff]
        %v1616 = vld [vmem:[#allocation8 + $0x148] sm:$0xff]
        %v1617 = vld [vmem:[#allocation8 + $0x150] sm:$0xff]
        %v1618 = vld [vmem:[#allocation8 + $0x158] sm:$0xff]
        %v1619 = vld [vmem:[#allocation8 + $0x160] sm:$0xff]
        %v1620 = vld [vmem:[#allocation8 + $0x168] sm:$0xff]
        %v1621 = vld [vmem:[#allocation8 + $0x170] sm:$0xff]
        %v1622 = vld [vmem:[#allocation8 + $0x178] sm:$0xff]
        %v1623 = vld [vmem:[#allocation8 + $0x180] sm:$0xff]
        %v1624 = vld [vmem:[#allocation8 + $0x188] sm:$0xff]
        %v1625 = vld [vmem:[#allocation8 + $0x190] sm:$0xff]
        %v1626 = vld [vmem:[#allocation8 + $0x198] sm:$0xff]
        %v1627 = vld [vmem:[#allocation8 + $0x1a0] sm:$0xff]
        %v1628 = vld [vmem:[#allocation8 + $0x1a8] sm:$0xff]
        %v1629 = vld [vmem:[#allocation8 + $0x1b0] sm:$0xff]
        %v1630 = vld [vmem:[#allocation8 + $0x1b8] sm:$0xff]
        %v1631 = vld [vmem:[#allocation8 + $0x1c0] sm:$0xff]
        %v1632 = vld [vmem:[#allocation8 + $0x1c8] sm:$0xff]
        %v1633 = vld [vmem:[#allocation8 + $0x1d0] sm:$0xff]
        %v1634 = vld [vmem:[#allocation8 + $0x1d8] sm:$0xff]
        %v1635 = vld [vmem:[#allocation8 + $0x1e0] sm:$0xff]
        %v1636 = vld [vmem:[#allocation8 + $0x1e8] sm:$0xff]
        %v1637 = vld [vmem:[#allocation8 + $0x1f0] sm:$0xff]
        %v1638 = vld [vmem:[#allocation8 + $0x1f8] sm:$0xff]
        %v1639 = vld [vmem:[#allocation8 + $0x200] sm:$0xff]
        %v1640 = vld [vmem:[#allocation8 + $0x208] sm:$0xff]
        %v1641 = vld [vmem:[#allocation8 + $0x210] sm:$0xff]
        %v1642 = vld [vmem:[#allocation8 + $0x218] sm:$0xff]
        %v1643 = vld [vmem:[#allocation8 + $0x220] sm:$0xff]
        %v1644 = vld [vmem:[#allocation8 + $0x228] sm:$0xff]
        %v1645 = vld [vmem:[#allocation8 + $0x230] sm:$0xff]
        %v1646 = vld [vmem:[#allocation8 + $0x238] sm:$0xff]
        %v1647 = vld [vmem:[#allocation8 + $0x240] sm:$0xff]
        %v1648 = vld [vmem:[#allocation8 + $0x248] sm:$0xff]
        %v1649 = vld [vmem:[#allocation8 + $0x250] sm:$0xff]
        %v1650 = vld [vmem:[#allocation8 + $0x258] sm:$0xff]
        %v1651 = vld [vmem:[#allocation8 + $0x260] sm:$0xff]
        %v1652 = vld [vmem:[#allocation8 + $0x268] sm:$0xff]
        %v1653 = vld [vmem:[#allocation8 + $0x270] sm:$0xff]
        %v1654 = vld [vmem:[#allocation8 + $0x278] sm:$0xff]
        %v1655 = vld [vmem:[#allocation8 + $0x280] sm:$0xff]
        %v1656 = vld [vmem:[#allocation8 + $0x288] sm:$0xff]
        %v1657 = vld [vmem:[#allocation8 + $0x290] sm:$0xff]
        %v1658 = vld [vmem:[#allocation8 + $0x298] sm:$0xff]
        %v1659 = vld [vmem:[#allocation8 + $0x2a0] sm:$0xff]
        %v1660 = vld [vmem:[#allocation8 + $0x2a8] sm:$0xff]
        %v1661 = vld [vmem:[#allocation8 + $0x2b0] sm:$0xff]
        %v1662 = vld [vmem:[#allocation8 + $0x2b8] sm:$0xff]
        %v1663 = vld [vmem:[#allocation8 + $0x2c0] sm:$0xff]
        %v1664 = vld [vmem:[#allocation8 + $0x2c8] sm:$0xff]
        %v1665 = vld [vmem:[#allocation8 + $0x2d0] sm:$0xff]
        %v1666 = vld [vmem:[#allocation8 + $0x2d8] sm:$0xff]
        %v1667 = vld [vmem:[#allocation8 + $0x2e0] sm:$0xff]
        %v1668 = vld [vmem:[#allocation8 + $0x2e8] sm:$0xff]
        %v1669 = vld [vmem:[#allocation8 + $0x2f0] sm:$0xff]
        %v1670 = vld [vmem:[#allocation8 + $0x2f8] sm:$0xff]
        %v1671 = vld [vmem:[#allocation8 + $0x300] sm:$0xff]
        %v1672 = vld [vmem:[#allocation8 + $0x308] sm:$0xff]
        %v1673 = vld [vmem:[#allocation8 + $0x310] sm:$0xff]
        %v1674 = vld [vmem:[#allocation8 + $0x318] sm:$0xff]
        %v1675 = vld [vmem:[#allocation8 + $0x320] sm:$0xff]
        %v1676 = vld [vmem:[#allocation8 + $0x328] sm:$0xff]
        %v1677 = vld [vmem:[#allocation8 + $0x330] sm:$0xff]
        %v1678 = vld [vmem:[#allocation8 + $0x338] sm:$0xff]
        %v1679 = vld [vmem:[#allocation8 + $0x340] sm:$0xff]
        %v1680 = vld [vmem:[#allocation8 + $0x348] sm:$0xff]
        %v1681 = vld [vmem:[#allocation8 + $0x350] sm:$0xff]
        %v1682 = vld [vmem:[#allocation8 + $0x358] sm:$0xff]
        %v1683 = vld [vmem:[#allocation8 + $0x360] sm:$0xff]
        %v1684 = vld [vmem:[#allocation8 + $0x368] sm:$0xff]
        %v1685 = vld [vmem:[#allocation8 + $0x370] sm:$0xff]
        %v1686 = vld [vmem:[#allocation8 + $0x378] sm:$0xff]
        %v1687 = vld [vmem:[#allocation8 + $0x380] sm:$0xff]
        %v1688 = vld [vmem:[#allocation8 + $0x388] sm:$0xff]
        %v1689 = vld [vmem:[#allocation8 + $0x390] sm:$0xff]
        %v1690 = vld [vmem:[#allocation8 + $0x398] sm:$0xff]
        %v1691 = vld [vmem:[#allocation8 + $0x3a0] sm:$0xff]
        %v1692 = vld [vmem:[#allocation8 + $0x3a8] sm:$0xff]
        %v1693 = vld [vmem:[#allocation8 + $0x3b0] sm:$0xff]
        %v1694 = vld [vmem:[#allocation8 + $0x3b8] sm:$0xff]
        %v1695 = vld [vmem:[#allocation8 + $0x3c0] sm:$0xff]
        %v1696 = vld [vmem:[#allocation8 + $0x3c8] sm:$0xff]
        %v1697 = vld [vmem:[#allocation8 + $0x3d0] sm:$0xff]
        %v1698 = vld [vmem:[#allocation8 + $0x3d8] sm:$0xff]
        %v1699 = vld [vmem:[#allocation8 + $0x3e0] sm:$0xff]
        %v1700 = vld [vmem:[#allocation8 + $0x3e8] sm:$0xff]
        %v1701 = vld [vmem:[#allocation8 + $0x3f0] sm:$0xff]
        %v1702 = vld [vmem:[#allocation8 + $0x3f8] sm:$0xff]
        %v1703 = vld [vmem:[#allocation13 + $0x6] sm:$0xf]
        %v1705 = vlaneseq
        %v1706 = vshrl.u32 %v1705, 7
        %v1707 = vsub.s32 0, %v1706
        %v1708 = vrot.slane %v1703, %v1707
        %v1709 = vlaneseq
        %v1710 = vshrl.u32 %v1709, 7
        %v1711 = vsub.s32 1, %v1710
        %v1712 = vrot.slane %v1703, %v1711
        %v1713 = vlaneseq
        %v1714 = vshrl.u32 %v1713, 7
        %v1715 = vsub.s32 2, %v1714
        %v1716 = vrot.slane %v1703, %v1715
        %v1717 = vlaneseq
        %v1718 = vshrl.u32 %v1717, 7
        %v1719 = vsub.s32 3, %v1718
        %v1720 = vrot.slane %v1703, %v1719
        %v1853 = vunpack.c.l.b16 %v1575
        %v1854 = vunpack.c.h.b16 %v1575
        %v1855 = vunpack.c.l.b16 %v1576
        %v1856 = vunpack.c.h.b16 %v1576
        %v1857 = vunpack.c.l.b16 %v1577
        %v1858 = vunpack.c.h.b16 %v1577
        %v1859 = vunpack.c.l.b16 %v1578
        %v1860 = vunpack.c.h.b16 %v1578
        %v1861 = vunpack.c.l.b16 %v1579
        %v1862 = vunpack.c.h.b16 %v1579
        %v1863 = vunpack.c.l.b16 %v1580
        %v1864 = vunpack.c.h.b16 %v1580
        %v1865 = vunpack.c.l.b16 %v1581
        %v1866 = vunpack.c.h.b16 %v1581
        %v1867 = vunpack.c.l.b16 %v1582
        %v1868 = vunpack.c.h.b16 %v1582
        %v1869 = vunpack.c.l.b16 %v1583
        %v1870 = vunpack.c.h.b16 %v1583
        %v1871 = vunpack.c.l.b16 %v1584
        %v1872 = vunpack.c.h.b16 %v1584
        %v1873 = vunpack.c.l.b16 %v1585
        %v1874 = vunpack.c.h.b16 %v1585
        %v1875 = vunpack.c.l.b16 %v1586
        %v1876 = vunpack.c.h.b16 %v1586
        %v1877 = vunpack.c.l.b16 %v1587
        %v1878 = vunpack.c.h.b16 %v1587
        %v1879 = vunpack.c.l.b16 %v1588
        %v1880 = vunpack.c.h.b16 %v1588
        %v1881 = vunpack.c.l.b16 %v1589
        %v1882 = vunpack.c.h.b16 %v1589
        %v1883 = vunpack.c.l.b16 %v1590
        %v1884 = vunpack.c.h.b16 %v1590
        %v1885 = vunpack.c.l.b16 %v1591
        %v1886 = vunpack.c.h.b16 %v1591
        %v1887 = vunpack.c.l.b16 %v1592
        %v1888 = vunpack.c.h.b16 %v1592
        %v1889 = vunpack.c.l.b16 %v1593
        %v1890 = vunpack.c.h.b16 %v1593
        %v1891 = vunpack.c.l.b16 %v1594
        %v1892 = vunpack.c.h.b16 %v1594
        %v1893 = vunpack.c.l.b16 %v1595
        %v1894 = vunpack.c.h.b16 %v1595
        %v1895 = vunpack.c.l.b16 %v1596
        %v1896 = vunpack.c.h.b16 %v1596
        %v1897 = vunpack.c.l.b16 %v1597
        %v1898 = vunpack.c.h.b16 %v1597
        %v1899 = vunpack.c.l.b16 %v1598
        %v1900 = vunpack.c.h.b16 %v1598
        %v1901 = vunpack.c.l.b16 %v1599
        %v1902 = vunpack.c.h.b16 %v1599
        %v1903 = vunpack.c.l.b16 %v1600
        %v1904 = vunpack.c.h.b16 %v1600
        %v1905 = vunpack.c.l.b16 %v1601
        %v1906 = vunpack.c.h.b16 %v1601
        %v1907 = vunpack.c.l.b16 %v1602
        %v1908 = vunpack.c.h.b16 %v1602
        %v1909 = vunpack.c.l.b16 %v1603
        %v1910 = vunpack.c.h.b16 %v1603
        %v1911 = vunpack.c.l.b16 %v1604
        %v1912 = vunpack.c.h.b16 %v1604
        %v1913 = vunpack.c.l.b16 %v1605
        %v1914 = vunpack.c.h.b16 %v1605
        %v1915 = vunpack.c.l.b16 %v1606
        %v1916 = vunpack.c.h.b16 %v1606
        %v1917 = vunpack.c.l.b16 %v1607
        %v1918 = vunpack.c.h.b16 %v1607
        %v1919 = vunpack.c.l.b16 %v1608
        %v1920 = vunpack.c.h.b16 %v1608
        %v1921 = vunpack.c.l.b16 %v1609
        %v1922 = vunpack.c.h.b16 %v1609
        %v1923 = vunpack.c.l.b16 %v1610
        %v1924 = vunpack.c.h.b16 %v1610
        %v1925 = vunpack.c.l.b16 %v1611
        %v1926 = vunpack.c.h.b16 %v1611
        %v1927 = vunpack.c.l.b16 %v1612
        %v1928 = vunpack.c.h.b16 %v1612
        %v1929 = vunpack.c.l.b16 %v1613
        %v1930 = vunpack.c.h.b16 %v1613
        %v1931 = vunpack.c.l.b16 %v1614
        %v1932 = vunpack.c.h.b16 %v1614
        %v1933 = vunpack.c.l.b16 %v1615
        %v1934 = vunpack.c.h.b16 %v1615
        %v1935 = vunpack.c.l.b16 %v1616
        %v1936 = vunpack.c.h.b16 %v1616
        %v1937 = vunpack.c.l.b16 %v1617
        %v1938 = vunpack.c.h.b16 %v1617
        %v1939 = vunpack.c.l.b16 %v1618
        %v1940 = vunpack.c.h.b16 %v1618
        %v1941 = vunpack.c.l.b16 %v1619
        %v1942 = vunpack.c.h.b16 %v1619
        %v1943 = vunpack.c.l.b16 %v1620
        %v1944 = vunpack.c.h.b16 %v1620
        %v1945 = vunpack.c.l.b16 %v1621
        %v1946 = vunpack.c.h.b16 %v1621
        %v1947 = vunpack.c.l.b16 %v1622
        %v1948 = vunpack.c.h.b16 %v1622
        %v1949 = vunpack.c.l.b16 %v1623
        %v1950 = vunpack.c.h.b16 %v1623
        %v1951 = vunpack.c.l.b16 %v1624
        %v1952 = vunpack.c.h.b16 %v1624
        %v1953 = vunpack.c.l.b16 %v1625
        %v1954 = vunpack.c.h.b16 %v1625
        %v1955 = vunpack.c.l.b16 %v1626
        %v1956 = vunpack.c.h.b16 %v1626
        %v1957 = vunpack.c.l.b16 %v1627
        %v1958 = vunpack.c.h.b16 %v1627
        %v1959 = vunpack.c.l.b16 %v1628
        %v1960 = vunpack.c.h.b16 %v1628
        %v1961 = vunpack.c.l.b16 %v1629
        %v1962 = vunpack.c.h.b16 %v1629
        %v1963 = vunpack.c.l.b16 %v1630
        %v1964 = vunpack.c.h.b16 %v1630
        %v1965 = vunpack.c.l.b16 %v1631
        %v1966 = vunpack.c.h.b16 %v1631
        %v1967 = vunpack.c.l.b16 %v1632
        %v1968 = vunpack.c.h.b16 %v1632
        %v1969 = vunpack.c.l.b16 %v1633
        %v1970 = vunpack.c.h.b16 %v1633
        %v1971 = vunpack.c.l.b16 %v1634
        %v1972 = vunpack.c.h.b16 %v1634
        %v1973 = vunpack.c.l.b16 %v1635
        %v1974 = vunpack.c.h.b16 %v1635
        %v1975 = vunpack.c.l.b16 %v1636
        %v1976 = vunpack.c.h.b16 %v1636
        %v1977 = vunpack.c.l.b16 %v1637
        %v1978 = vunpack.c.h.b16 %v1637
        %v1979 = vunpack.c.l.b16 %v1638
        %v1980 = vunpack.c.h.b16 %v1638
        %v1981 = vunpack.c.l.b16 %v1639
        %v1982 = vunpack.c.h.b16 %v1639
        %v1983 = vunpack.c.l.b16 %v1640
        %v1984 = vunpack.c.h.b16 %v1640
        %v1985 = vunpack.c.l.b16 %v1641
        %v1986 = vunpack.c.h.b16 %v1641
        %v1987 = vunpack.c.l.b16 %v1642
        %v1988 = vunpack.c.h.b16 %v1642
        %v1989 = vunpack.c.l.b16 %v1643
        %v1990 = vunpack.c.h.b16 %v1643
        %v1991 = vunpack.c.l.b16 %v1644
        %v1992 = vunpack.c.h.b16 %v1644
        %v1993 = vunpack.c.l.b16 %v1645
        %v1994 = vunpack.c.h.b16 %v1645
        %v1995 = vunpack.c.l.b16 %v1646
        %v1996 = vunpack.c.h.b16 %v1646
        %v1997 = vunpack.c.l.b16 %v1647
        %v1998 = vunpack.c.h.b16 %v1647
        %v1999 = vunpack.c.l.b16 %v1648
        %v2000 = vunpack.c.h.b16 %v1648
        %v2001 = vunpack.c.l.b16 %v1649
        %v2002 = vunpack.c.h.b16 %v1649
        %v2003 = vunpack.c.l.b16 %v1650
        %v2004 = vunpack.c.h.b16 %v1650
        %v2005 = vunpack.c.l.b16 %v1651
        %v2006 = vunpack.c.h.b16 %v1651
        %v2007 = vunpack.c.l.b16 %v1652
        %v2008 = vunpack.c.h.b16 %v1652
        %v2009 = vunpack.c.l.b16 %v1653
        %v2010 = vunpack.c.h.b16 %v1653
        %v2011 = vunpack.c.l.b16 %v1654
        %v2012 = vunpack.c.h.b16 %v1654
        %v2013 = vunpack.c.l.b16 %v1655
        %v2014 = vunpack.c.h.b16 %v1655
        %v2015 = vunpack.c.l.b16 %v1656
        %v2016 = vunpack.c.h.b16 %v1656
        %v2017 = vunpack.c.l.b16 %v1657
        %v2018 = vunpack.c.h.b16 %v1657
        %v2019 = vunpack.c.l.b16 %v1658
        %v2020 = vunpack.c.h.b16 %v1658
        %v2021 = vunpack.c.l.b16 %v1659
        %v2022 = vunpack.c.h.b16 %v1659
        %v2023 = vunpack.c.l.b16 %v1660
        %v2024 = vunpack.c.h.b16 %v1660
        %v2025 = vunpack.c.l.b16 %v1661
        %v2026 = vunpack.c.h.b16 %v1661
        %v2027 = vunpack.c.l.b16 %v1662
        %v2028 = vunpack.c.h.b16 %v1662
        %v2029 = vunpack.c.l.b16 %v1663
        %v2030 = vunpack.c.h.b16 %v1663
        %v2031 = vunpack.c.l.b16 %v1664
        %v2032 = vunpack.c.h.b16 %v1664
        %v2033 = vunpack.c.l.b16 %v1665
        %v2034 = vunpack.c.h.b16 %v1665
        %v2035 = vunpack.c.l.b16 %v1666
        %v2036 = vunpack.c.h.b16 %v1666
        %v2037 = vunpack.c.l.b16 %v1667
        %v2038 = vunpack.c.h.b16 %v1667
        %v2039 = vunpack.c.l.b16 %v1668
        %v2040 = vunpack.c.h.b16 %v1668
        %v2041 = vunpack.c.l.b16 %v1669
        %v2042 = vunpack.c.h.b16 %v1669
        %v2043 = vunpack.c.l.b16 %v1670
        %v2044 = vunpack.c.h.b16 %v1670
        %v2045 = vunpack.c.l.b16 %v1671
        %v2046 = vunpack.c.h.b16 %v1671
        %v2047 = vunpack.c.l.b16 %v1672
        %v2048 = vunpack.c.h.b16 %v1672
        %v2049 = vunpack.c.l.b16 %v1673
        %v2050 = vunpack.c.h.b16 %v1673
        %v2051 = vunpack.c.l.b16 %v1674
        %v2052 = vunpack.c.h.b16 %v1674
        %v2053 = vunpack.c.l.b16 %v1675
        %v2054 = vunpack.c.h.b16 %v1675
        %v2055 = vunpack.c.l.b16 %v1676
        %v2056 = vunpack.c.h.b16 %v1676
        %v2057 = vunpack.c.l.b16 %v1677
        %v2058 = vunpack.c.h.b16 %v1677
        %v2059 = vunpack.c.l.b16 %v1678
        %v2060 = vunpack.c.h.b16 %v1678
        %v2061 = vunpack.c.l.b16 %v1679
        %v2062 = vunpack.c.h.b16 %v1679
        %v2063 = vunpack.c.l.b16 %v1680
        %v2064 = vunpack.c.h.b16 %v1680
        %v2065 = vunpack.c.l.b16 %v1681
        %v2066 = vunpack.c.h.b16 %v1681
        %v2067 = vunpack.c.l.b16 %v1682
        %v2068 = vunpack.c.h.b16 %v1682
        %v2069 = vunpack.c.l.b16 %v1683
        %v2070 = vunpack.c.h.b16 %v1683
        %v2071 = vunpack.c.l.b16 %v1684
        %v2072 = vunpack.c.h.b16 %v1684
        %v2073 = vunpack.c.l.b16 %v1685
        %v2074 = vunpack.c.h.b16 %v1685
        %v2075 = vunpack.c.l.b16 %v1686
        %v2076 = vunpack.c.h.b16 %v1686
        %v2077 = vunpack.c.l.b16 %v1687
        %v2078 = vunpack.c.h.b16 %v1687
        %v2079 = vunpack.c.l.b16 %v1688
        %v2080 = vunpack.c.h.b16 %v1688
        %v2081 = vunpack.c.l.b16 %v1689
        %v2082 = vunpack.c.h.b16 %v1689
        %v2083 = vunpack.c.l.b16 %v1690
        %v2084 = vunpack.c.h.b16 %v1690
        %v2085 = vunpack.c.l.b16 %v1691
        %v2086 = vunpack.c.h.b16 %v1691
        %v2087 = vunpack.c.l.b16 %v1692
        %v2088 = vunpack.c.h.b16 %v1692
        %v2089 = vunpack.c.l.b16 %v1693
        %v2090 = vunpack.c.h.b16 %v1693
        %v2091 = vunpack.c.l.b16 %v1694
        %v2092 = vunpack.c.h.b16 %v1694
        %v2093 = vunpack.c.l.b16 %v1695
        %v2094 = vunpack.c.h.b16 %v1695
        %v2095 = vunpack.c.l.b16 %v1696
        %v2096 = vunpack.c.h.b16 %v1696
        %v2097 = vunpack.c.l.b16 %v1697
        %v2098 = vunpack.c.h.b16 %v1697
        %v2099 = vunpack.c.l.b16 %v1698
        %v2100 = vunpack.c.h.b16 %v1698
        %v2101 = vunpack.c.l.b16 %v1699
        %v2102 = vunpack.c.h.b16 %v1699
        %v2103 = vunpack.c.l.b16 %v1700
        %v2104 = vunpack.c.h.b16 %v1700
        %v2105 = vunpack.c.l.b16 %v1701
        %v2106 = vunpack.c.h.b16 %v1701
        %v2107 = vunpack.c.l.b16 %v1702
        %v2108 = vunpack.c.h.b16 %v1702
        %v2109 = vpack.c.b16 %v1857, %v1853
        %v2110 = vpack.c.b16 %v1858, %v1854
        %v2111 = vpack.c.b16 %v1859, %v1855
        %v2112 = vpack.c.b16 %v1860, %v1856
        %v2113 = vpack.c.b16 %v1865, %v1861
        %v2114 = vpack.c.b16 %v1866, %v1862
        %v2115 = vpack.c.b16 %v1867, %v1863
        %v2116 = vpack.c.b16 %v1868, %v1864
        %v2117 = vpack.c.b16 %v1873, %v1869
        %v2118 = vpack.c.b16 %v1874, %v1870
        %v2119 = vpack.c.b16 %v1875, %v1871
        %v2120 = vpack.c.b16 %v1876, %v1872
        %v2121 = vpack.c.b16 %v1881, %v1877
        %v2122 = vpack.c.b16 %v1882, %v1878
        %v2123 = vpack.c.b16 %v1883, %v1879
        %v2124 = vpack.c.b16 %v1884, %v1880
        %v2125 = vpack.c.b16 %v1889, %v1885
        %v2126 = vpack.c.b16 %v1890, %v1886
        %v2127 = vpack.c.b16 %v1891, %v1887
        %v2128 = vpack.c.b16 %v1892, %v1888
        %v2129 = vpack.c.b16 %v1897, %v1893
        %v2130 = vpack.c.b16 %v1898, %v1894
        %v2131 = vpack.c.b16 %v1899, %v1895
        %v2132 = vpack.c.b16 %v1900, %v1896
        %v2133 = vpack.c.b16 %v1905, %v1901
        %v2134 = vpack.c.b16 %v1906, %v1902
        %v2135 = vpack.c.b16 %v1907, %v1903
        %v2136 = vpack.c.b16 %v1908, %v1904
        %v2137 = vpack.c.b16 %v1913, %v1909
        %v2138 = vpack.c.b16 %v1914, %v1910
        %v2139 = vpack.c.b16 %v1915, %v1911
        %v2140 = vpack.c.b16 %v1916, %v1912
        %v2141 = vpack.c.b16 %v1921, %v1917
        %v2142 = vpack.c.b16 %v1922, %v1918
        %v2143 = vpack.c.b16 %v1923, %v1919
        %v2144 = vpack.c.b16 %v1924, %v1920
        %v2145 = vpack.c.b16 %v1929, %v1925
        %v2146 = vpack.c.b16 %v1930, %v1926
        %v2147 = vpack.c.b16 %v1931, %v1927
        %v2148 = vpack.c.b16 %v1932, %v1928
        %v2149 = vpack.c.b16 %v1937, %v1933
        %v2150 = vpack.c.b16 %v1938, %v1934
        %v2151 = vpack.c.b16 %v1939, %v1935
        %v2152 = vpack.c.b16 %v1940, %v1936
        %v2153 = vpack.c.b16 %v1945, %v1941
        %v2154 = vpack.c.b16 %v1946, %v1942
        %v2155 = vpack.c.b16 %v1947, %v1943
        %v2156 = vpack.c.b16 %v1948, %v1944
        %v2157 = vpack.c.b16 %v1953, %v1949
        %v2158 = vpack.c.b16 %v1954, %v1950
        %v2159 = vpack.c.b16 %v1955, %v1951
        %v2160 = vpack.c.b16 %v1956, %v1952
        %v2161 = vpack.c.b16 %v1961, %v1957
        %v2162 = vpack.c.b16 %v1962, %v1958
        %v2163 = vpack.c.b16 %v1963, %v1959
        %v2164 = vpack.c.b16 %v1964, %v1960
        %v2165 = vpack.c.b16 %v1969, %v1965
        %v2166 = vpack.c.b16 %v1970, %v1966
        %v2167 = vpack.c.b16 %v1971, %v1967
        %v2168 = vpack.c.b16 %v1972, %v1968
        %v2169 = vpack.c.b16 %v1977, %v1973
        %v2170 = vpack.c.b16 %v1978, %v1974
        %v2171 = vpack.c.b16 %v1979, %v1975
        %v2172 = vpack.c.b16 %v1980, %v1976
        %v2173 = vpack.c.b16 %v1985, %v1981
        %v2174 = vpack.c.b16 %v1986, %v1982
        %v2175 = vpack.c.b16 %v1987, %v1983
        %v2176 = vpack.c.b16 %v1988, %v1984
        %v2177 = vpack.c.b16 %v1993, %v1989
        %v2178 = vpack.c.b16 %v1994, %v1990
        %v2179 = vpack.c.b16 %v1995, %v1991
        %v2180 = vpack.c.b16 %v1996, %v1992
        %v2181 = vpack.c.b16 %v2001, %v1997
        %v2182 = vpack.c.b16 %v2002, %v1998
        %v2183 = vpack.c.b16 %v2003, %v1999
        %v2184 = vpack.c.b16 %v2004, %v2000
        %v2185 = vpack.c.b16 %v2009, %v2005
        %v2186 = vpack.c.b16 %v2010, %v2006
        %v2187 = vpack.c.b16 %v2011, %v2007
        %v2188 = vpack.c.b16 %v2012, %v2008
        %v2189 = vpack.c.b16 %v2017, %v2013
        %v2190 = vpack.c.b16 %v2018, %v2014
        %v2191 = vpack.c.b16 %v2019, %v2015
        %v2192 = vpack.c.b16 %v2020, %v2016
        %v2193 = vpack.c.b16 %v2025, %v2021
        %v2194 = vpack.c.b16 %v2026, %v2022
        %v2195 = vpack.c.b16 %v2027, %v2023
        %v2196 = vpack.c.b16 %v2028, %v2024
        %v2197 = vpack.c.b16 %v2033, %v2029
        %v2198 = vpack.c.b16 %v2034, %v2030
        %v2199 = vpack.c.b16 %v2035, %v2031
        %v2200 = vpack.c.b16 %v2036, %v2032
        %v2201 = vpack.c.b16 %v2041, %v2037
        %v2202 = vpack.c.b16 %v2042, %v2038
        %v2203 = vpack.c.b16 %v2043, %v2039
        %v2204 = vpack.c.b16 %v2044, %v2040
        %v2205 = vpack.c.b16 %v2049, %v2045
        %v2206 = vpack.c.b16 %v2050, %v2046
        %v2207 = vpack.c.b16 %v2051, %v2047
        %v2208 = vpack.c.b16 %v2052, %v2048
        %v2209 = vpack.c.b16 %v2057, %v2053
        %v2210 = vpack.c.b16 %v2058, %v2054
        %v2211 = vpack.c.b16 %v2059, %v2055
        %v2212 = vpack.c.b16 %v2060, %v2056
        %v2213 = vpack.c.b16 %v2065, %v2061
        %v2214 = vpack.c.b16 %v2066, %v2062
        %v2215 = vpack.c.b16 %v2067, %v2063
        %v2216 = vpack.c.b16 %v2068, %v2064
        %v2217 = vpack.c.b16 %v2073, %v2069
        %v2218 = vpack.c.b16 %v2074, %v2070
        %v2219 = vpack.c.b16 %v2075, %v2071
        %v2220 = vpack.c.b16 %v2076, %v2072
        %v2221 = vpack.c.b16 %v2081, %v2077
        %v2222 = vpack.c.b16 %v2082, %v2078
        %v2223 = vpack.c.b16 %v2083, %v2079
        %v2224 = vpack.c.b16 %v2084, %v2080
        %v2225 = vpack.c.b16 %v2089, %v2085
        %v2226 = vpack.c.b16 %v2090, %v2086
        %v2227 = vpack.c.b16 %v2091, %v2087
        %v2228 = vpack.c.b16 %v2092, %v2088
        %v2229 = vpack.c.b16 %v2097, %v2093
        %v2230 = vpack.c.b16 %v2098, %v2094
        %v2231 = vpack.c.b16 %v2099, %v2095
        %v2232 = vpack.c.b16 %v2100, %v2096
        %v2233 = vpack.c.b16 %v2105, %v2101
        %v2234 = vpack.c.b16 %v2106, %v2102
        %v2235 = vpack.c.b16 %v2107, %v2103
        %v2236 = vpack.c.b16 %v2108, %v2104
        %2365 = vmatprep.subr.bf16.mxu0 %v2138
        %2366 = vmatpush1.bf16.msra.mxu0 %v2137
        %2367 = vmatprep.subr.bf16.mxu0 %v2134
        %2368 = vmatpush1.bf16.msra.mxu0 %v2133
        %2369 = vmatprep.subr.bf16.mxu0 %v2130
        %2370 = vmatpush1.bf16.msra.mxu0 %v2129
        %2371 = vmatprep.subr.bf16.mxu0 %v2126
        %2372 = vmatpush1.bf16.msra.mxu0 %v2125
        %2373 = vmatprep.subr.bf16.mxu0 %v2122
        %2374 = vmatpush1.bf16.msra.mxu0 %v2121
        %2375 = vmatprep.subr.bf16.mxu0 %v2118
        %2376 = vmatpush1.bf16.msra.mxu0 %v2117
        %2377 = vmatprep.subr.bf16.mxu0 %v2114
        %2378 = vmatpush1.bf16.msra.mxu0 %v2113
        %2379 = vmatprep.subr.bf16.mxu0 %v2110
        %2380 = vmatpush1.bf16.msra.mxu0 %v2109
        %2381 = vmatprep.subr.bf16.mxu0 %v2170
        %2382 = vmatpush2.bf16.msra.mxu0 %v2169
        %2383 = vmatprep.subr.bf16.mxu0 %v2166
        %2384 = vmatpush2.bf16.msra.mxu0 %v2165
        %2385 = vmatprep.subr.bf16.mxu0 %v2162
        %2386 = vmatpush2.bf16.msra.mxu0 %v2161
        %2387 = vmatprep.subr.bf16.mxu0 %v2158
        %2388 = vmatpush2.bf16.msra.mxu0 %v2157
        %2389 = vmatprep.subr.bf16.mxu0 %v2154
        %2390 = vmatpush2.bf16.msra.mxu0 %v2153
        %2391 = vmatprep.subr.bf16.mxu0 %v2150
        %2392 = vmatpush2.bf16.msra.mxu0 %v2149
        %2393 = vmatprep.subr.bf16.mxu0 %v2146
        %2394 = vmatpush2.bf16.msra.mxu0 %v2145
        %2395 = vmatprep.subr.bf16.mxu0 %v2142
        %2396 = vmatpush2.bf16.msra.mxu0 %v2141
        %2397 = vmatprep.mubr.bf16.mxu0 %v1544
        %2398 = vmatmul.mubr.bf16.gmra.mxu0 %v1543
        %v2399 = vpop.f32.mrf.mxu0
        %v2400 = vadd.f32 %v1708, %v2399
        %v2401 = vpop.f32.mrf.mxu0
        %v2402 = vadd.f32 %v1712, %v2401
        %v2403 = vpop.f32.mrf.mxu0
        %v2404 = vadd.f32 %v1708, %v2403
        %v2405 = vpop.f32.mrf.mxu0
        %v2406 = vadd.f32 %v1712, %v2405
        %2407 = vmatprep.mubr.bf16.mxu0 %v1548
        %2408 = vmatmul.mubr.bf16.gmra.mxu0 %v1547
        %v2409 = vpop.f32.mrf.mxu0
        %v2410 = vadd.f32 %v1708, %v2409
        %v2411 = vpop.f32.mrf.mxu0
        %v2412 = vadd.f32 %v1712, %v2411
        %v2413 = vpop.f32.mrf.mxu0
        %v2414 = vadd.f32 %v1708, %v2413
        %v2415 = vpop.f32.mrf.mxu0
        %v2416 = vadd.f32 %v1712, %v2415
        %2417 = vmatprep.mubr.bf16.mxu0 %v1552
        %2418 = vmatmul.mubr.bf16.gmra.mxu0 %v1551
        %v2419 = vpop.f32.mrf.mxu0
        %v2420 = vadd.f32 %v1708, %v2419
        %v2421 = vpop.f32.mrf.mxu0
        %v2422 = vadd.f32 %v1712, %v2421
        %v2423 = vpop.f32.mrf.mxu0
        %v2424 = vadd.f32 %v1708, %v2423
        %v2425 = vpop.f32.mrf.mxu0
        %v2426 = vadd.f32 %v1712, %v2425
        %2427 = vmatprep.mubr.bf16.mxu0 %v1556
        %2428 = vmatmul.mubr.bf16.gmra.mxu0 %v1555
        %v2429 = vpop.f32.mrf.mxu0
        %v2430 = vadd.f32 %v1708, %v2429
        %v2431 = vpop.f32.mrf.mxu0
        %v2432 = vadd.f32 %v1712, %v2431
        %v2433 = vpop.f32.mrf.mxu0
        %v2434 = vadd.f32 %v1708, %v2433
        %v2435 = vpop.f32.mrf.mxu0
        %v2436 = vadd.f32 %v1712, %v2435
        %2437 = vmatprep.mubr.bf16.mxu0 %v1560
        %2438 = vmatmul.mubr.bf16.gmra.mxu0 %v1559
        %v2439 = vpop.f32.mrf.mxu0
        %v2440 = vadd.f32 %v1708, %v2439
        %v2441 = vpop.f32.mrf.mxu0
        %v2442 = vadd.f32 %v1712, %v2441
        %v2443 = vpop.f32.mrf.mxu0
        %v2444 = vadd.f32 %v1708, %v2443
        %v2445 = vpop.f32.mrf.mxu0
        %v2446 = vadd.f32 %v1712, %v2445
        %2447 = vmatprep.mubr.bf16.mxu0 %v1564
        %2448 = vmatmul.mubr.bf16.gmra.mxu0 %v1563
        %v2449 = vpop.f32.mrf.mxu0
        %v2450 = vadd.f32 %v1708, %v2449
        %v2451 = vpop.f32.mrf.mxu0
        %v2452 = vadd.f32 %v1712, %v2451
        %v2453 = vpop.f32.mrf.mxu0
        %v2454 = vadd.f32 %v1708, %v2453
        %v2455 = vpop.f32.mrf.mxu0
        %v2456 = vadd.f32 %v1712, %v2455
        %2457 = vmatprep.mubr.bf16.mxu0 %v1568
        %2458 = vmatmul.mubr.bf16.gmra.mxu0 %v1567
        %v2459 = vpop.f32.mrf.mxu0
        %v2460 = vadd.f32 %v1708, %v2459
        %v2461 = vpop.f32.mrf.mxu0
        %v2462 = vadd.f32 %v1712, %v2461
        %v2463 = vpop.f32.mrf.mxu0
        %v2464 = vadd.f32 %v1708, %v2463
        %v2465 = vpop.f32.mrf.mxu0
        %v2466 = vadd.f32 %v1712, %v2465
        %2467 = vmatprep.mubr.bf16.mxu0 %v1572
        %2468 = vmatmul.mubr.bf16.gmra.mxu0 %v1571
        %v2469 = vpop.f32.mrf.mxu0
        %v2470 = vadd.f32 %v1708, %v2469
        %v2471 = vpop.f32.mrf.mxu0
        %v2472 = vadd.f32 %v1712, %v2471
        %v2473 = vpop.f32.mrf.mxu0
        %v2474 = vadd.f32 %v1708, %v2473
        %v2475 = vpop.f32.mrf.mxu0
        %v2476 = vadd.f32 %v1712, %v2475
        %2477 = vdwg.mxu0
        %2478 = vmatprep.subr.bf16.mxu0 %v2202
        %2479 = vmatpush1.bf16.msra.mxu0 %v2201
        %2480 = vmatprep.subr.bf16.mxu0 %v2198
        %2481 = vmatpush1.bf16.msra.mxu0 %v2197
        %2482 = vmatprep.subr.bf16.mxu0 %v2194
        %2483 = vmatpush1.bf16.msra.mxu0 %v2193
        %2484 = vmatprep.subr.bf16.mxu0 %v2190
        %2485 = vmatpush1.bf16.msra.mxu0 %v2189
        %2486 = vmatprep.subr.bf16.mxu0 %v2186
        %2487 = vmatpush1.bf16.msra.mxu0 %v2185
        %2488 = vmatprep.subr.bf16.mxu0 %v2182
        %2489 = vmatpush1.bf16.msra.mxu0 %v2181
        %2490 = vmatprep.subr.bf16.mxu0 %v2178
        %2491 = vmatpush1.bf16.msra.mxu0 %v2177
        %2492 = vmatprep.subr.bf16.mxu0 %v2174
        %2493 = vmatpush1.bf16.msra.mxu0 %v2173
        %2494 = vmatprep.subr.bf16.mxu0 %v2234
        %2495 = vmatpush2.bf16.msra.mxu0 %v2233
        %2496 = vmatprep.subr.bf16.mxu0 %v2230
        %2497 = vmatpush2.bf16.msra.mxu0 %v2229
        %2498 = vmatprep.subr.bf16.mxu0 %v2226
        %2499 = vmatpush2.bf16.msra.mxu0 %v2225
        %2500 = vmatprep.subr.bf16.mxu0 %v2222
        %2501 = vmatpush2.bf16.msra.mxu0 %v2221
        %2502 = vmatprep.subr.bf16.mxu0 %v2218
        %2503 = vmatpush2.bf16.msra.mxu0 %v2217
        %2504 = vmatprep.subr.bf16.mxu0 %v2214
        %2505 = vmatpush2.bf16.msra.mxu0 %v2213
        %2506 = vmatprep.subr.bf16.mxu0 %v2210
        %2507 = vmatpush2.bf16.msra.mxu0 %v2209
        %2508 = vmatprep.subr.bf16.mxu0 %v2206
        %2509 = vmatpush2.bf16.msra.mxu0 %v2205
        %2510 = vmatprep.mubr.bf16.mxu0 %v1546
        %2511 = vmatmul.mubr.bf16.gmra.mxu0 %v1545
        %v2512 = vpop.f32.mrf.mxu0
        %v2513 = vadd.f32 %v2400, %v2512
        %v2514 = vpop.f32.mrf.mxu0
        %v2515 = vadd.f32 %v2402, %v2514
        %v2516 = vpop.f32.mrf.mxu0
        %v2517 = vadd.f32 %v2404, %v2516
        %v2518 = vpop.f32.mrf.mxu0
        %v2519 = vadd.f32 %v2406, %v2518
        %2520 = vmatprep.mubr.bf16.mxu0 %v1550
        %2521 = vmatmul.mubr.bf16.gmra.mxu0 %v1549
        %v2522 = vpop.f32.mrf.mxu0
        %v2523 = vadd.f32 %v2410, %v2522
        %v2524 = vpop.f32.mrf.mxu0
        %v2525 = vadd.f32 %v2412, %v2524
        %v2526 = vpop.f32.mrf.mxu0
        %v2527 = vadd.f32 %v2414, %v2526
        %v2528 = vpop.f32.mrf.mxu0
        %v2529 = vadd.f32 %v2416, %v2528
        %2530 = vmatprep.mubr.bf16.mxu0 %v1554
        %2531 = vmatmul.mubr.bf16.gmra.mxu0 %v1553
        %v2532 = vpop.f32.mrf.mxu0
        %v2533 = vadd.f32 %v2420, %v2532
        %v2534 = vpop.f32.mrf.mxu0
        %v2535 = vadd.f32 %v2422, %v2534
        %v2536 = vpop.f32.mrf.mxu0
        %v2537 = vadd.f32 %v2424, %v2536
        %v2538 = vpop.f32.mrf.mxu0
        %v2539 = vadd.f32 %v2426, %v2538
        %2540 = vmatprep.mubr.bf16.mxu0 %v1558
        %2541 = vmatmul.mubr.bf16.gmra.mxu0 %v1557
        %v2542 = vpop.f32.mrf.mxu0
        %v2543 = vadd.f32 %v2430, %v2542
        %v2544 = vpop.f32.mrf.mxu0
        %v2545 = vadd.f32 %v2432, %v2544
        %v2546 = vpop.f32.mrf.mxu0
        %v2547 = vadd.f32 %v2434, %v2546
        %v2548 = vpop.f32.mrf.mxu0
        %v2549 = vadd.f32 %v2436, %v2548
        %2550 = vmatprep.mubr.bf16.mxu0 %v1562
        %2551 = vmatmul.mubr.bf16.gmra.mxu0 %v1561
        %v2552 = vpop.f32.mrf.mxu0
        %v2553 = vadd.f32 %v2440, %v2552
        %v2554 = vpop.f32.mrf.mxu0
        %v2555 = vadd.f32 %v2442, %v2554
        %v2556 = vpop.f32.mrf.mxu0
        %v2557 = vadd.f32 %v2444, %v2556
        %v2558 = vpop.f32.mrf.mxu0
        %v2559 = vadd.f32 %v2446, %v2558
        %2560 = vmatprep.mubr.bf16.mxu0 %v1566
        %2561 = vmatmul.mubr.bf16.gmra.mxu0 %v1565
        %v2562 = vpop.f32.mrf.mxu0
        %v2563 = vadd.f32 %v2450, %v2562
        %v2564 = vpop.f32.mrf.mxu0
        %v2565 = vadd.f32 %v2452, %v2564
        %v2566 = vpop.f32.mrf.mxu0
        %v2567 = vadd.f32 %v2454, %v2566
        %v2568 = vpop.f32.mrf.mxu0
        %v2569 = vadd.f32 %v2456, %v2568
        %2570 = vmatprep.mubr.bf16.mxu0 %v1570
        %2571 = vmatmul.mubr.bf16.gmra.mxu0 %v1569
        %v2572 = vpop.f32.mrf.mxu0
        %v2573 = vadd.f32 %v2460, %v2572
        %v2574 = vpop.f32.mrf.mxu0
        %v2575 = vadd.f32 %v2462, %v2574
        %v2576 = vpop.f32.mrf.mxu0
        %v2577 = vadd.f32 %v2464, %v2576
        %v2578 = vpop.f32.mrf.mxu0
        %v2579 = vadd.f32 %v2466, %v2578
        %2580 = vmatprep.mubr.bf16.mxu0 %v1574
        %2581 = vmatmul.mubr.bf16.gmra.mxu0 %v1573
        %v2582 = vpop.f32.mrf.mxu0
        %v2583 = vadd.f32 %v2470, %v2582
        %v2584 = vpop.f32.mrf.mxu0
        %v2585 = vadd.f32 %v2472, %v2584
        %v2586 = vpop.f32.mrf.mxu0
        %v2587 = vadd.f32 %v2474, %v2586
        %v2588 = vpop.f32.mrf.mxu0
        %v2589 = vadd.f32 %v2476, %v2588
        %2590 = vdwg.mxu0
        %2591 = vmatprep.subr.bf16.mxu0 %v2140
        %2592 = vmatpush1.bf16.msra.mxu0 %v2139
        %2593 = vmatprep.subr.bf16.mxu0 %v2136
        %2594 = vmatpush1.bf16.msra.mxu0 %v2135
        %2595 = vmatprep.subr.bf16.mxu0 %v2132
        %2596 = vmatpush1.bf16.msra.mxu0 %v2131
        %2597 = vmatprep.subr.bf16.mxu0 %v2128
        %2598 = vmatpush1.bf16.msra.mxu0 %v2127
        %2599 = vmatprep.subr.bf16.mxu0 %v2124
        %2600 = vmatpush1.bf16.msra.mxu0 %v2123
        %2601 = vmatprep.subr.bf16.mxu0 %v2120
        %2602 = vmatpush1.bf16.msra.mxu0 %v2119
        %2603 = vmatprep.subr.bf16.mxu0 %v2116
        %2604 = vmatpush1.bf16.msra.mxu0 %v2115
        %2605 = vmatprep.subr.bf16.mxu0 %v2112
        %2606 = vmatpush1.bf16.msra.mxu0 %v2111
        %2607 = vmatprep.subr.bf16.mxu0 %v2172
        %2608 = vmatpush2.bf16.msra.mxu0 %v2171
        %2609 = vmatprep.subr.bf16.mxu0 %v2168
        %2610 = vmatpush2.bf16.msra.mxu0 %v2167
        %2611 = vmatprep.subr.bf16.mxu0 %v2164
        %2612 = vmatpush2.bf16.msra.mxu0 %v2163
        %2613 = vmatprep.subr.bf16.mxu0 %v2160
        %2614 = vmatpush2.bf16.msra.mxu0 %v2159
        %2615 = vmatprep.subr.bf16.mxu0 %v2156
        %2616 = vmatpush2.bf16.msra.mxu0 %v2155
        %2617 = vmatprep.subr.bf16.mxu0 %v2152
        %2618 = vmatpush2.bf16.msra.mxu0 %v2151
        %2619 = vmatprep.subr.bf16.mxu0 %v2148
        %2620 = vmatpush2.bf16.msra.mxu0 %v2147
        %2621 = vmatprep.subr.bf16.mxu0 %v2144
        %2622 = vmatpush2.bf16.msra.mxu0 %v2143
        %2623 = vmatprep.mubr.bf16.mxu0 %v1544
        %2624 = vmatmul.mubr.bf16.gmra.mxu0 %v1543
        %v2625 = vpop.f32.mrf.mxu0
        %v2626 = vadd.f32 %v1716, %v2625
        %v2627 = vpop.f32.mrf.mxu0
        %v2628 = vadd.f32 %v1720, %v2627
        %v2629 = vpop.f32.mrf.mxu0
        %v2630 = vadd.f32 %v1716, %v2629
        %v2631 = vpop.f32.mrf.mxu0
        %v2632 = vadd.f32 %v1720, %v2631
        %2633 = vmatprep.mubr.bf16.mxu0 %v1548
        %2634 = vmatmul.mubr.bf16.gmra.mxu0 %v1547
        %v2635 = vpop.f32.mrf.mxu0
        %v2636 = vadd.f32 %v1716, %v2635
        %v2637 = vpop.f32.mrf.mxu0
        %v2638 = vadd.f32 %v1720, %v2637
        %v2639 = vpop.f32.mrf.mxu0
        %v2640 = vadd.f32 %v1716, %v2639
        %v2641 = vpop.f32.mrf.mxu0
        %v2642 = vadd.f32 %v1720, %v2641
        %2643 = vmatprep.mubr.bf16.mxu0 %v1552
        %2644 = vmatmul.mubr.bf16.gmra.mxu0 %v1551
        %v2645 = vpop.f32.mrf.mxu0
        %v2646 = vadd.f32 %v1716, %v2645
        %v2647 = vpop.f32.mrf.mxu0
        %v2648 = vadd.f32 %v1720, %v2647
        %v2649 = vpop.f32.mrf.mxu0
        %v2650 = vadd.f32 %v1716, %v2649
        %v2651 = vpop.f32.mrf.mxu0
        %v2652 = vadd.f32 %v1720, %v2651
        %2653 = vmatprep.mubr.bf16.mxu0 %v1556
        %2654 = vmatmul.mubr.bf16.gmra.mxu0 %v1555
        %v2655 = vpop.f32.mrf.mxu0
        %v2656 = vadd.f32 %v1716, %v2655
        %v2657 = vpop.f32.mrf.mxu0
        %v2658 = vadd.f32 %v1720, %v2657
        %v2659 = vpop.f32.mrf.mxu0
        %v2660 = vadd.f32 %v1716, %v2659
        %v2661 = vpop.f32.mrf.mxu0
        %v2662 = vadd.f32 %v1720, %v2661
        %2663 = vmatprep.mubr.bf16.mxu0 %v1560
        %2664 = vmatmul.mubr.bf16.gmra.mxu0 %v1559
        %v2665 = vpop.f32.mrf.mxu0
        %v2666 = vadd.f32 %v1716, %v2665
        %v2667 = vpop.f32.mrf.mxu0
        %v2668 = vadd.f32 %v1720, %v2667
        %v2669 = vpop.f32.mrf.mxu0
        %v2670 = vadd.f32 %v1716, %v2669
        %v2671 = vpop.f32.mrf.mxu0
        %v2672 = vadd.f32 %v1720, %v2671
        %2673 = vmatprep.mubr.bf16.mxu0 %v1564
        %2674 = vmatmul.mubr.bf16.gmra.mxu0 %v1563
        %v2675 = vpop.f32.mrf.mxu0
        %v2676 = vadd.f32 %v1716, %v2675
        %v2677 = vpop.f32.mrf.mxu0
        %v2678 = vadd.f32 %v1720, %v2677
        %v2679 = vpop.f32.mrf.mxu0
        %v2680 = vadd.f32 %v1716, %v2679
        %v2681 = vpop.f32.mrf.mxu0
        %v2682 = vadd.f32 %v1720, %v2681
        %2683 = vmatprep.mubr.bf16.mxu0 %v1568
        %2684 = vmatmul.mubr.bf16.gmra.mxu0 %v1567
        %v2685 = vpop.f32.mrf.mxu0
        %v2686 = vadd.f32 %v1716, %v2685
        %v2687 = vpop.f32.mrf.mxu0
        %v2688 = vadd.f32 %v1720, %v2687
        %v2689 = vpop.f32.mrf.mxu0
        %v2690 = vadd.f32 %v1716, %v2689
        %v2691 = vpop.f32.mrf.mxu0
        %v2692 = vadd.f32 %v1720, %v2691
        %2693 = vmatprep.mubr.bf16.mxu0 %v1572
        %2694 = vmatmul.mubr.bf16.gmra.mxu0 %v1571
        %v2695 = vpop.f32.mrf.mxu0
        %v2696 = vadd.f32 %v1716, %v2695
        %v2697 = vpop.f32.mrf.mxu0
        %v2698 = vadd.f32 %v1720, %v2697
        %v2699 = vpop.f32.mrf.mxu0
        %v2700 = vadd.f32 %v1716, %v2699
        %v2701 = vpop.f32.mrf.mxu0
        %v2702 = vadd.f32 %v1720, %v2701
        %2703 = vdwg.mxu0
        %2704 = vmatprep.subr.bf16.mxu0 %v2204
        %2705 = vmatpush1.bf16.msra.mxu0 %v2203
        %2706 = vmatprep.subr.bf16.mxu0 %v2200
        %2707 = vmatpush1.bf16.msra.mxu0 %v2199
        %2708 = vmatprep.subr.bf16.mxu0 %v2196
        %2709 = vmatpush1.bf16.msra.mxu0 %v2195
        %2710 = vmatprep.subr.bf16.mxu0 %v2192
        %2711 = vmatpush1.bf16.msra.mxu0 %v2191
        %2712 = vmatprep.subr.bf16.mxu0 %v2188
        %2713 = vmatpush1.bf16.msra.mxu0 %v2187
        %2714 = vmatprep.subr.bf16.mxu0 %v2184
        %2715 = vmatpush1.bf16.msra.mxu0 %v2183
        %2716 = vmatprep.subr.bf16.mxu0 %v2180
        %2717 = vmatpush1.bf16.msra.mxu0 %v2179
        %2718 = vmatprep.subr.bf16.mxu0 %v2176
        %2719 = vmatpush1.bf16.msra.mxu0 %v2175
        %2720 = vmatprep.subr.bf16.mxu0 %v2236
        %2721 = vmatpush2.bf16.msra.mxu0 %v2235
        %2722 = vmatprep.subr.bf16.mxu0 %v2232
        %2723 = vmatpush2.bf16.msra.mxu0 %v2231
        %2724 = vmatprep.subr.bf16.mxu0 %v2228
        %2725 = vmatpush2.bf16.msra.mxu0 %v2227
        %2726 = vmatprep.subr.bf16.mxu0 %v2224
        %2727 = vmatpush2.bf16.msra.mxu0 %v2223
        %2728 = vmatprep.subr.bf16.mxu0 %v2220
        %2729 = vmatpush2.bf16.msra.mxu0 %v2219
        %2730 = vmatprep.subr.bf16.mxu0 %v2216
        %2731 = vmatpush2.bf16.msra.mxu0 %v2215
        %2732 = vmatprep.subr.bf16.mxu0 %v2212
        %2733 = vmatpush2.bf16.msra.mxu0 %v2211
        %2734 = vmatprep.subr.bf16.mxu0 %v2208
        %2735 = vmatpush2.bf16.msra.mxu0 %v2207
        %2736 = vmatprep.mubr.bf16.mxu0 %v1546
        %2737 = vmatmul.mubr.bf16.gmra.mxu0 %v1545
        %v2738 = vpop.f32.mrf.mxu0
        %v2739 = vadd.f32 %v2626, %v2738
        %v2740 = vpop.f32.mrf.mxu0
        %v2741 = vadd.f32 %v2628, %v2740
        %v2742 = vpop.f32.mrf.mxu0
        %v2743 = vadd.f32 %v2630, %v2742
        %v2744 = vpop.f32.mrf.mxu0
        %v2745 = vadd.f32 %v2632, %v2744
        %2746 = vmatprep.mubr.bf16.mxu0 %v1550
        %2747 = vmatmul.mubr.bf16.gmra.mxu0 %v1549
        %v2748 = vpop.f32.mrf.mxu0
        %v2749 = vadd.f32 %v2636, %v2748
        %v2750 = vpop.f32.mrf.mxu0
        %v2751 = vadd.f32 %v2638, %v2750
        %v2752 = vpop.f32.mrf.mxu0
        %v2753 = vadd.f32 %v2640, %v2752
        %v2754 = vpop.f32.mrf.mxu0
        %v2755 = vadd.f32 %v2642, %v2754
        %2756 = vmatprep.mubr.bf16.mxu0 %v1554
        %2757 = vmatmul.mubr.bf16.gmra.mxu0 %v1553
        %v2758 = vpop.f32.mrf.mxu0
        %v2759 = vadd.f32 %v2646, %v2758
        %v2760 = vpop.f32.mrf.mxu0
        %v2761 = vadd.f32 %v2648, %v2760
        %v2762 = vpop.f32.mrf.mxu0
        %v2763 = vadd.f32 %v2650, %v2762
        %v2764 = vpop.f32.mrf.mxu0
        %v2765 = vadd.f32 %v2652, %v2764
        %2766 = vmatprep.mubr.bf16.mxu0 %v1558
        %2767 = vmatmul.mubr.bf16.gmra.mxu0 %v1557
        %v2768 = vpop.f32.mrf.mxu0
        %v2769 = vadd.f32 %v2656, %v2768
        %v2770 = vpop.f32.mrf.mxu0
        %v2771 = vadd.f32 %v2658, %v2770
        %v2772 = vpop.f32.mrf.mxu0
        %v2773 = vadd.f32 %v2660, %v2772
        %v2774 = vpop.f32.mrf.mxu0
        %v2775 = vadd.f32 %v2662, %v2774
        %2776 = vmatprep.mubr.bf16.mxu0 %v1562
        %2777 = vmatmul.mubr.bf16.gmra.mxu0 %v1561
        %v2778 = vpop.f32.mrf.mxu0
        %v2779 = vadd.f32 %v2666, %v2778
        %v2780 = vpop.f32.mrf.mxu0
        %v2781 = vadd.f32 %v2668, %v2780
        %v2782 = vpop.f32.mrf.mxu0
        %v2783 = vadd.f32 %v2670, %v2782
        %v2784 = vpop.f32.mrf.mxu0
        %v2785 = vadd.f32 %v2672, %v2784
        %2786 = vmatprep.mubr.bf16.mxu0 %v1566
        %2787 = vmatmul.mubr.bf16.gmra.mxu0 %v1565
        %v2788 = vpop.f32.mrf.mxu0
        %v2789 = vadd.f32 %v2676, %v2788
        %v2790 = vpop.f32.mrf.mxu0
        %v2791 = vadd.f32 %v2678, %v2790
        %v2792 = vpop.f32.mrf.mxu0
        %v2793 = vadd.f32 %v2680, %v2792
        %v2794 = vpop.f32.mrf.mxu0
        %v2795 = vadd.f32 %v2682, %v2794
        %2796 = vmatprep.mubr.bf16.mxu0 %v1570
        %2797 = vmatmul.mubr.bf16.gmra.mxu0 %v1569
        %v2798 = vpop.f32.mrf.mxu0
        %v2799 = vadd.f32 %v2686, %v2798
        %v2800 = vpop.f32.mrf.mxu0
        %v2801 = vadd.f32 %v2688, %v2800
        %v2802 = vpop.f32.mrf.mxu0
        %v2803 = vadd.f32 %v2690, %v2802
        %v2804 = vpop.f32.mrf.mxu0
        %v2805 = vadd.f32 %v2692, %v2804
        %2806 = vmatprep.mubr.bf16.mxu0 %v1574
        %2807 = vmatmul.mubr.bf16.gmra.mxu0 %v1573
        %v2808 = vpop.f32.mrf.mxu0
        %v2809 = vadd.f32 %v2696, %v2808
        %v2810 = vpop.f32.mrf.mxu0
        %v2811 = vadd.f32 %v2698, %v2810
        %v2812 = vpop.f32.mrf.mxu0
        %v2813 = vadd.f32 %v2700, %v2812
        %v2814 = vpop.f32.mrf.mxu0
        %v2815 = vadd.f32 %v2702, %v2814
        %2816 = vdwg.mxu0
        %v2817 = vmax.f32 %v2513, 0.0
        %v2818 = vmax.f32 %v2515, 0.0
        %v2819 = vmax.f32 %v2739, 0.0
        %v2820 = vmax.f32 %v2741, 0.0
        %v2821 = vmax.f32 %v2517, 0.0
        %v2822 = vmax.f32 %v2519, 0.0
        %v2823 = vmax.f32 %v2743, 0.0
        %v2824 = vmax.f32 %v2745, 0.0
        %v2825 = vmax.f32 %v2523, 0.0
        %v2826 = vmax.f32 %v2525, 0.0
        %v2827 = vmax.f32 %v2749, 0.0
        %v2828 = vmax.f32 %v2751, 0.0
        %v2829 = vmax.f32 %v2527, 0.0
        %v2830 = vmax.f32 %v2529, 0.0
        %v2831 = vmax.f32 %v2753, 0.0
        %v2832 = vmax.f32 %v2755, 0.0
        %v2833 = vmax.f32 %v2533, 0.0
        %v2834 = vmax.f32 %v2535, 0.0
        %v2835 = vmax.f32 %v2759, 0.0
        %v2836 = vmax.f32 %v2761, 0.0
        %v2837 = vmax.f32 %v2537, 0.0
        %v2838 = vmax.f32 %v2539, 0.0
        %v2839 = vmax.f32 %v2763, 0.0
        %v2840 = vmax.f32 %v2765, 0.0
        %v2841 = vmax.f32 %v2543, 0.0
        %v2842 = vmax.f32 %v2545, 0.0
        %v2843 = vmax.f32 %v2769, 0.0
        %v2844 = vmax.f32 %v2771, 0.0
        %v2845 = vmax.f32 %v2547, 0.0
        %v2846 = vmax.f32 %v2549, 0.0
        %v2847 = vmax.f32 %v2773, 0.0
        %v2848 = vmax.f32 %v2775, 0.0
        %v2849 = vmax.f32 %v2553, 0.0
        %v2850 = vmax.f32 %v2555, 0.0
        %v2851 = vmax.f32 %v2779, 0.0
        %v2852 = vmax.f32 %v2781, 0.0
        %v2853 = vmax.f32 %v2557, 0.0
        %v2854 = vmax.f32 %v2559, 0.0
        %v2855 = vmax.f32 %v2783, 0.0
        %v2856 = vmax.f32 %v2785, 0.0
        %v2857 = vmax.f32 %v2563, 0.0
        %v2858 = vmax.f32 %v2565, 0.0
        %v2859 = vmax.f32 %v2789, 0.0
        %v2860 = vmax.f32 %v2791, 0.0
        %v2861 = vmax.f32 %v2567, 0.0
        %v2862 = vmax.f32 %v2569, 0.0
        %v2863 = vmax.f32 %v2793, 0.0
        %v2864 = vmax.f32 %v2795, 0.0
        %v2865 = vmax.f32 %v2573, 0.0
        %v2866 = vmax.f32 %v2575, 0.0
        %v2867 = vmax.f32 %v2799, 0.0
        %v2868 = vmax.f32 %v2801, 0.0
        %v2869 = vmax.f32 %v2577, 0.0
        %v2870 = vmax.f32 %v2579, 0.0
        %v2871 = vmax.f32 %v2803, 0.0
        %v2872 = vmax.f32 %v2805, 0.0
        %v2873 = vmax.f32 %v2583, 0.0
        %v2874 = vmax.f32 %v2585, 0.0
        %v2875 = vmax.f32 %v2809, 0.0
        %v2876 = vmax.f32 %v2811, 0.0
        %v2877 = vmax.f32 %v2587, 0.0
        %v2878 = vmax.f32 %v2589, 0.0
        %v2879 = vmax.f32 %v2813, 0.0
        %v2880 = vmax.f32 %v2815, 0.0
        %v2881 = vpack.c.bf16 %v2821, %v2817
        %v2882 = vpack.c.bf16 %v2822, %v2818
        %v2883 = vpack.c.bf16 %v2823, %v2819
        %v2884 = vpack.c.bf16 %v2824, %v2820
        %v2885 = vpack.c.bf16 %v2829, %v2825
        %v2886 = vpack.c.bf16 %v2830, %v2826
        %v2887 = vpack.c.bf16 %v2831, %v2827
        %v2888 = vpack.c.bf16 %v2832, %v2828
        %v2889 = vpack.c.bf16 %v2837, %v2833
        %v2890 = vpack.c.bf16 %v2838, %v2834
        %v2891 = vpack.c.bf16 %v2839, %v2835
        %v2892 = vpack.c.bf16 %v2840, %v2836
        %v2893 = vpack.c.bf16 %v2845, %v2841
        %v2894 = vpack.c.bf16 %v2846, %v2842
        %v2895 = vpack.c.bf16 %v2847, %v2843
        %v2896 = vpack.c.bf16 %v2848, %v2844
        %v2897 = vpack.c.bf16 %v2853, %v2849
        %v2898 = vpack.c.bf16 %v2854, %v2850
        %v2899 = vpack.c.bf16 %v2855, %v2851
        %v2900 = vpack.c.bf16 %v2856, %v2852
        %v2901 = vpack.c.bf16 %v2861, %v2857
        %v2902 = vpack.c.bf16 %v2862, %v2858
        %v2903 = vpack.c.bf16 %v2863, %v2859
        %v2904 = vpack.c.bf16 %v2864, %v2860
        %v2905 = vpack.c.bf16 %v2869, %v2865
        %v2906 = vpack.c.bf16 %v2870, %v2866
        %v2907 = vpack.c.bf16 %v2871, %v2867
        %v2908 = vpack.c.bf16 %v2872, %v2868
        %v2909 = vpack.c.bf16 %v2877, %v2873
        %v2910 = vpack.c.bf16 %v2878, %v2874
        %v2911 = vpack.c.bf16 %v2879, %v2875
        %v2912 = vpack.c.bf16 %v2880, %v2876
        %v2913 = vld [vmem:[#allocation10] sm:$0xff]
        %v2914 = vld [vmem:[#allocation10 + $0x8] sm:$0xff]
        %v2915 = vld [vmem:[#allocation10 + $0x10] sm:$0xff]
        %v2916 = vld [vmem:[#allocation10 + $0x18] sm:$0xff]
        %v2917 = vld [vmem:[#allocation10 + $0x20] sm:$0xff]
        %v2918 = vld [vmem:[#allocation10 + $0x28] sm:$0xff]
        %v2919 = vld [vmem:[#allocation10 + $0x30] sm:$0xff]
        %v2920 = vld [vmem:[#allocation10 + $0x38] sm:$0xff]
        %v2921 = vld [vmem:[#allocation10 + $0x40] sm:$0xff]
        %v2922 = vld [vmem:[#allocation10 + $0x48] sm:$0xff]
        %v2923 = vld [vmem:[#allocation10 + $0x50] sm:$0xff]
        %v2924 = vld [vmem:[#allocation10 + $0x58] sm:$0xff]
        %v2925 = vld [vmem:[#allocation10 + $0x60] sm:$0xff]
        %v2926 = vld [vmem:[#allocation10 + $0x68] sm:$0xff]
        %v2927 = vld [vmem:[#allocation10 + $0x70] sm:$0xff]
        %v2928 = vld [vmem:[#allocation10 + $0x78] sm:$0xff]
        %v2929 = vld [vmem:[#allocation10 + $0x80] sm:$0xff]
        %v2930 = vld [vmem:[#allocation10 + $0x88] sm:$0xff]
        %v2931 = vld [vmem:[#allocation10 + $0x90] sm:$0xff]
        %v2932 = vld [vmem:[#allocation10 + $0x98] sm:$0xff]
        %v2933 = vld [vmem:[#allocation10 + $0xa0] sm:$0xff]
        %v2934 = vld [vmem:[#allocation10 + $0xa8] sm:$0xff]
        %v2935 = vld [vmem:[#allocation10 + $0xb0] sm:$0xff]
        %v2936 = vld [vmem:[#allocation10 + $0xb8] sm:$0xff]
        %v2937 = vld [vmem:[#allocation10 + $0xc0] sm:$0xff]
        %v2938 = vld [vmem:[#allocation10 + $0xc8] sm:$0xff]
        %v2939 = vld [vmem:[#allocation10 + $0xd0] sm:$0xff]
        %v2940 = vld [vmem:[#allocation10 + $0xd8] sm:$0xff]
        %v2941 = vld [vmem:[#allocation10 + $0xe0] sm:$0xff]
        %v2942 = vld [vmem:[#allocation10 + $0xe8] sm:$0xff]
        %v2943 = vld [vmem:[#allocation10 + $0xf0] sm:$0xff]
        %v2944 = vld [vmem:[#allocation10 + $0xf8] sm:$0xff]
        %v2945 = vld [vmem:[#allocation10 + $0x100] sm:$0xff]
        %v2946 = vld [vmem:[#allocation10 + $0x108] sm:$0xff]
        %v2947 = vld [vmem:[#allocation10 + $0x110] sm:$0xff]
        %v2948 = vld [vmem:[#allocation10 + $0x118] sm:$0xff]
        %v2949 = vld [vmem:[#allocation10 + $0x120] sm:$0xff]
        %v2950 = vld [vmem:[#allocation10 + $0x128] sm:$0xff]
        %v2951 = vld [vmem:[#allocation10 + $0x130] sm:$0xff]
        %v2952 = vld [vmem:[#allocation10 + $0x138] sm:$0xff]
        %v2953 = vld [vmem:[#allocation10 + $0x140] sm:$0xff]
        %v2954 = vld [vmem:[#allocation10 + $0x148] sm:$0xff]
        %v2955 = vld [vmem:[#allocation10 + $0x150] sm:$0xff]
        %v2956 = vld [vmem:[#allocation10 + $0x158] sm:$0xff]
        %v2957 = vld [vmem:[#allocation10 + $0x160] sm:$0xff]
        %v2958 = vld [vmem:[#allocation10 + $0x168] sm:$0xff]
        %v2959 = vld [vmem:[#allocation10 + $0x170] sm:$0xff]
        %v2960 = vld [vmem:[#allocation10 + $0x178] sm:$0xff]
        %v2961 = vld [vmem:[#allocation10 + $0x180] sm:$0xff]
        %v2962 = vld [vmem:[#allocation10 + $0x188] sm:$0xff]
        %v2963 = vld [vmem:[#allocation10 + $0x190] sm:$0xff]
        %v2964 = vld [vmem:[#allocation10 + $0x198] sm:$0xff]
        %v2965 = vld [vmem:[#allocation10 + $0x1a0] sm:$0xff]
        %v2966 = vld [vmem:[#allocation10 + $0x1a8] sm:$0xff]
        %v2967 = vld [vmem:[#allocation10 + $0x1b0] sm:$0xff]
        %v2968 = vld [vmem:[#allocation10 + $0x1b8] sm:$0xff]
        %v2969 = vld [vmem:[#allocation10 + $0x1c0] sm:$0xff]
        %v2970 = vld [vmem:[#allocation10 + $0x1c8] sm:$0xff]
        %v2971 = vld [vmem:[#allocation10 + $0x1d0] sm:$0xff]
        %v2972 = vld [vmem:[#allocation10 + $0x1d8] sm:$0xff]
        %v2973 = vld [vmem:[#allocation10 + $0x1e0] sm:$0xff]
        %v2974 = vld [vmem:[#allocation10 + $0x1e8] sm:$0xff]
        %v2975 = vld [vmem:[#allocation10 + $0x1f0] sm:$0xff]
        %v2976 = vld [vmem:[#allocation10 + $0x1f8] sm:$0xff]
        %v2977 = vld [vmem:[#allocation13 + $0xa] sm:$0x3]
        %v2979 = vlaneseq
        %v2980 = vshrl.u32 %v2979, 7
        %v2981 = vsub.s32 0, %v2980
        %v2982 = vrot.slane %v2977, %v2981
        %v2983 = vlaneseq
        %v2984 = vshrl.u32 %v2983, 7
        %v2985 = vsub.s32 1, %v2984
        %v2986 = vrot.slane %v2977, %v2985
        %v3053 = vunpack.c.l.b16 %v2913
        %v3054 = vunpack.c.h.b16 %v2913
        %v3055 = vunpack.c.l.b16 %v2914
        %v3056 = vunpack.c.h.b16 %v2914
        %v3057 = vunpack.c.l.b16 %v2915
        %v3058 = vunpack.c.h.b16 %v2915
        %v3059 = vunpack.c.l.b16 %v2916
        %v3060 = vunpack.c.h.b16 %v2916
        %v3061 = vunpack.c.l.b16 %v2917
        %v3062 = vunpack.c.h.b16 %v2917
        %v3063 = vunpack.c.l.b16 %v2918
        %v3064 = vunpack.c.h.b16 %v2918
        %v3065 = vunpack.c.l.b16 %v2919
        %v3066 = vunpack.c.h.b16 %v2919
        %v3067 = vunpack.c.l.b16 %v2920
        %v3068 = vunpack.c.h.b16 %v2920
        %v3069 = vunpack.c.l.b16 %v2921
        %v3070 = vunpack.c.h.b16 %v2921
        %v3071 = vunpack.c.l.b16 %v2922
        %v3072 = vunpack.c.h.b16 %v2922
        %v3073 = vunpack.c.l.b16 %v2923
        %v3074 = vunpack.c.h.b16 %v2923
        %v3075 = vunpack.c.l.b16 %v2924
        %v3076 = vunpack.c.h.b16 %v2924
        %v3077 = vunpack.c.l.b16 %v2925
        %v3078 = vunpack.c.h.b16 %v2925
        %v3079 = vunpack.c.l.b16 %v2926
        %v3080 = vunpack.c.h.b16 %v2926
        %v3081 = vunpack.c.l.b16 %v2927
        %v3082 = vunpack.c.h.b16 %v2927
        %v3083 = vunpack.c.l.b16 %v2928
        %v3084 = vunpack.c.h.b16 %v2928
        %v3085 = vunpack.c.l.b16 %v2929
        %v3086 = vunpack.c.h.b16 %v2929
        %v3087 = vunpack.c.l.b16 %v2930
        %v3088 = vunpack.c.h.b16 %v2930
        %v3089 = vunpack.c.l.b16 %v2931
        %v3090 = vunpack.c.h.b16 %v2931
        %v3091 = vunpack.c.l.b16 %v2932
        %v3092 = vunpack.c.h.b16 %v2932
        %v3093 = vunpack.c.l.b16 %v2933
        %v3094 = vunpack.c.h.b16 %v2933
        %v3095 = vunpack.c.l.b16 %v2934
        %v3096 = vunpack.c.h.b16 %v2934
        %v3097 = vunpack.c.l.b16 %v2935
        %v3098 = vunpack.c.h.b16 %v2935
        %v3099 = vunpack.c.l.b16 %v2936
        %v3100 = vunpack.c.h.b16 %v2936
        %v3101 = vunpack.c.l.b16 %v2937
        %v3102 = vunpack.c.h.b16 %v2937
        %v3103 = vunpack.c.l.b16 %v2938
        %v3104 = vunpack.c.h.b16 %v2938
        %v3105 = vunpack.c.l.b16 %v2939
        %v3106 = vunpack.c.h.b16 %v2939
        %v3107 = vunpack.c.l.b16 %v2940
        %v3108 = vunpack.c.h.b16 %v2940
        %v3109 = vunpack.c.l.b16 %v2941
        %v3110 = vunpack.c.h.b16 %v2941
        %v3111 = vunpack.c.l.b16 %v2942
        %v3112 = vunpack.c.h.b16 %v2942
        %v3113 = vunpack.c.l.b16 %v2943
        %v3114 = vunpack.c.h.b16 %v2943
        %v3115 = vunpack.c.l.b16 %v2944
        %v3116 = vunpack.c.h.b16 %v2944
        %v3117 = vunpack.c.l.b16 %v2945
        %v3118 = vunpack.c.h.b16 %v2945
        %v3119 = vunpack.c.l.b16 %v2946
        %v3120 = vunpack.c.h.b16 %v2946
        %v3121 = vunpack.c.l.b16 %v2947
        %v3122 = vunpack.c.h.b16 %v2947
        %v3123 = vunpack.c.l.b16 %v2948
        %v3124 = vunpack.c.h.b16 %v2948
        %v3125 = vunpack.c.l.b16 %v2949
        %v3126 = vunpack.c.h.b16 %v2949
        %v3127 = vunpack.c.l.b16 %v2950
        %v3128 = vunpack.c.h.b16 %v2950
        %v3129 = vunpack.c.l.b16 %v2951
        %v3130 = vunpack.c.h.b16 %v2951
        %v3131 = vunpack.c.l.b16 %v2952
        %v3132 = vunpack.c.h.b16 %v2952
        %v3133 = vunpack.c.l.b16 %v2953
        %v3134 = vunpack.c.h.b16 %v2953
        %v3135 = vunpack.c.l.b16 %v2954
        %v3136 = vunpack.c.h.b16 %v2954
        %v3137 = vunpack.c.l.b16 %v2955
        %v3138 = vunpack.c.h.b16 %v2955
        %v3139 = vunpack.c.l.b16 %v2956
        %v3140 = vunpack.c.h.b16 %v2956
        %v3141 = vunpack.c.l.b16 %v2957
        %v3142 = vunpack.c.h.b16 %v2957
        %v3143 = vunpack.c.l.b16 %v2958
        %v3144 = vunpack.c.h.b16 %v2958
        %v3145 = vunpack.c.l.b16 %v2959
        %v3146 = vunpack.c.h.b16 %v2959
        %v3147 = vunpack.c.l.b16 %v2960
        %v3148 = vunpack.c.h.b16 %v2960
        %v3149 = vunpack.c.l.b16 %v2961
        %v3150 = vunpack.c.h.b16 %v2961
        %v3151 = vunpack.c.l.b16 %v2962
        %v3152 = vunpack.c.h.b16 %v2962
        %v3153 = vunpack.c.l.b16 %v2963
        %v3154 = vunpack.c.h.b16 %v2963
        %v3155 = vunpack.c.l.b16 %v2964
        %v3156 = vunpack.c.h.b16 %v2964
        %v3157 = vunpack.c.l.b16 %v2965
        %v3158 = vunpack.c.h.b16 %v2965
        %v3159 = vunpack.c.l.b16 %v2966
        %v3160 = vunpack.c.h.b16 %v2966
        %v3161 = vunpack.c.l.b16 %v2967
        %v3162 = vunpack.c.h.b16 %v2967
        %v3163 = vunpack.c.l.b16 %v2968
        %v3164 = vunpack.c.h.b16 %v2968
        %v3165 = vunpack.c.l.b16 %v2969
        %v3166 = vunpack.c.h.b16 %v2969
        %v3167 = vunpack.c.l.b16 %v2970
        %v3168 = vunpack.c.h.b16 %v2970
        %v3169 = vunpack.c.l.b16 %v2971
        %v3170 = vunpack.c.h.b16 %v2971
        %v3171 = vunpack.c.l.b16 %v2972
        %v3172 = vunpack.c.h.b16 %v2972
        %v3173 = vunpack.c.l.b16 %v2973
        %v3174 = vunpack.c.h.b16 %v2973
        %v3175 = vunpack.c.l.b16 %v2974
        %v3176 = vunpack.c.h.b16 %v2974
        %v3177 = vunpack.c.l.b16 %v2975
        %v3178 = vunpack.c.h.b16 %v2975
        %v3179 = vunpack.c.l.b16 %v2976
        %v3180 = vunpack.c.h.b16 %v2976
        %v3181 = vpack.c.b16 %v3055, %v3053
        %v3182 = vpack.c.b16 %v3056, %v3054
        %v3183 = vpack.c.b16 %v3059, %v3057
        %v3184 = vpack.c.b16 %v3060, %v3058
        %v3185 = vpack.c.b16 %v3063, %v3061
        %v3186 = vpack.c.b16 %v3064, %v3062
        %v3187 = vpack.c.b16 %v3067, %v3065
        %v3188 = vpack.c.b16 %v3068, %v3066
        %v3189 = vpack.c.b16 %v3071, %v3069
        %v3190 = vpack.c.b16 %v3072, %v3070
        %v3191 = vpack.c.b16 %v3075, %v3073
        %v3192 = vpack.c.b16 %v3076, %v3074
        %v3193 = vpack.c.b16 %v3079, %v3077
        %v3194 = vpack.c.b16 %v3080, %v3078
        %v3195 = vpack.c.b16 %v3083, %v3081
        %v3196 = vpack.c.b16 %v3084, %v3082
        %v3197 = vpack.c.b16 %v3087, %v3085
        %v3198 = vpack.c.b16 %v3088, %v3086
        %v3199 = vpack.c.b16 %v3091, %v3089
        %v3200 = vpack.c.b16 %v3092, %v3090
        %v3201 = vpack.c.b16 %v3095, %v3093
        %v3202 = vpack.c.b16 %v3096, %v3094
        %v3203 = vpack.c.b16 %v3099, %v3097
        %v3204 = vpack.c.b16 %v3100, %v3098
        %v3205 = vpack.c.b16 %v3103, %v3101
        %v3206 = vpack.c.b16 %v3104, %v3102
        %v3207 = vpack.c.b16 %v3107, %v3105
        %v3208 = vpack.c.b16 %v3108, %v3106
        %v3209 = vpack.c.b16 %v3111, %v3109
        %v3210 = vpack.c.b16 %v3112, %v3110
        %v3211 = vpack.c.b16 %v3115, %v3113
        %v3212 = vpack.c.b16 %v3116, %v3114
        %v3213 = vpack.c.b16 %v3119, %v3117
        %v3214 = vpack.c.b16 %v3120, %v3118
        %v3215 = vpack.c.b16 %v3123, %v3121
        %v3216 = vpack.c.b16 %v3124, %v3122
        %v3217 = vpack.c.b16 %v3127, %v3125
        %v3218 = vpack.c.b16 %v3128, %v3126
        %v3219 = vpack.c.b16 %v3131, %v3129
        %v3220 = vpack.c.b16 %v3132, %v3130
        %v3221 = vpack.c.b16 %v3135, %v3133
        %v3222 = vpack.c.b16 %v3136, %v3134
        %v3223 = vpack.c.b16 %v3139, %v3137
        %v3224 = vpack.c.b16 %v3140, %v3138
        %v3225 = vpack.c.b16 %v3143, %v3141
        %v3226 = vpack.c.b16 %v3144, %v3142
        %v3227 = vpack.c.b16 %v3147, %v3145
        %v3228 = vpack.c.b16 %v3148, %v3146
        %v3229 = vpack.c.b16 %v3151, %v3149
        %v3230 = vpack.c.b16 %v3152, %v3150
        %v3231 = vpack.c.b16 %v3155, %v3153
        %v3232 = vpack.c.b16 %v3156, %v3154
        %v3233 = vpack.c.b16 %v3159, %v3157
        %v3234 = vpack.c.b16 %v3160, %v3158
        %v3235 = vpack.c.b16 %v3163, %v3161
        %v3236 = vpack.c.b16 %v3164, %v3162
        %v3237 = vpack.c.b16 %v3167, %v3165
        %v3238 = vpack.c.b16 %v3168, %v3166
        %v3239 = vpack.c.b16 %v3171, %v3169
        %v3240 = vpack.c.b16 %v3172, %v3170
        %v3241 = vpack.c.b16 %v3175, %v3173
        %v3242 = vpack.c.b16 %v3176, %v3174
        %v3243 = vpack.c.b16 %v3179, %v3177
        %v3244 = vpack.c.b16 %v3180, %v3178
        %3309 = vmatprep.subr.bf16.mxu0 %v3196
        %3310 = vmatpush1.bf16.msra.mxu0 %v3195
        %3311 = vmatprep.subr.bf16.mxu0 %v3194
        %3312 = vmatpush1.bf16.msra.mxu0 %v3193
        %3313 = vmatprep.subr.bf16.mxu0 %v3192
        %3314 = vmatpush1.bf16.msra.mxu0 %v3191
        %3315 = vmatprep.subr.bf16.mxu0 %v3190
        %3316 = vmatpush1.bf16.msra.mxu0 %v3189
        %3317 = vmatprep.subr.bf16.mxu0 %v3188
        %3318 = vmatpush1.bf16.msra.mxu0 %v3187
        %3319 = vmatprep.subr.bf16.mxu0 %v3186
        %3320 = vmatpush1.bf16.msra.mxu0 %v3185
        %3321 = vmatprep.subr.bf16.mxu0 %v3184
        %3322 = vmatpush1.bf16.msra.mxu0 %v3183
        %3323 = vmatprep.subr.bf16.mxu0 %v3182
        %3324 = vmatpush1.bf16.msra.mxu0 %v3181
        %3325 = vmatprep.subr.bf16.mxu0 %v3212
        %3326 = vmatpush2.bf16.msra.mxu0 %v3211
        %3327 = vmatprep.subr.bf16.mxu0 %v3210
        %3328 = vmatpush2.bf16.msra.mxu0 %v3209
        %3329 = vmatprep.subr.bf16.mxu0 %v3208
        %3330 = vmatpush2.bf16.msra.mxu0 %v3207
        %3331 = vmatprep.subr.bf16.mxu0 %v3206
        %3332 = vmatpush2.bf16.msra.mxu0 %v3205
        %3333 = vmatprep.subr.bf16.mxu0 %v3204
        %3334 = vmatpush2.bf16.msra.mxu0 %v3203
        %3335 = vmatprep.subr.bf16.mxu0 %v3202
        %3336 = vmatpush2.bf16.msra.mxu0 %v3201
        %3337 = vmatprep.subr.bf16.mxu0 %v3200
        %3338 = vmatpush2.bf16.msra.mxu0 %v3199
        %3339 = vmatprep.subr.bf16.mxu0 %v3198
        %3340 = vmatpush2.bf16.msra.mxu0 %v3197
        %3341 = vmatprep.mubr.bf16.mxu0 %v2882
        %3342 = vmatmul.mubr.bf16.gmra.mxu0 %v2881
        %v3343 = vpop.f32.mrf.mxu0
        %v3344 = vadd.f32 %v2982, %v3343
        %v3345 = vpop.f32.mrf.mxu0
        %v3346 = vadd.f32 %v2986, %v3345
        %v3347 = vpop.f32.mrf.mxu0
        %v3348 = vadd.f32 %v2982, %v3347
        %v3349 = vpop.f32.mrf.mxu0
        %v3350 = vadd.f32 %v2986, %v3349
        %3351 = vmatprep.mubr.bf16.mxu0 %v2886
        %3352 = vmatmul.mubr.bf16.gmra.mxu0 %v2885
        %v3353 = vpop.f32.mrf.mxu0
        %v3354 = vadd.f32 %v2982, %v3353
        %v3355 = vpop.f32.mrf.mxu0
        %v3356 = vadd.f32 %v2986, %v3355
        %v3357 = vpop.f32.mrf.mxu0
        %v3358 = vadd.f32 %v2982, %v3357
        %v3359 = vpop.f32.mrf.mxu0
        %v3360 = vadd.f32 %v2986, %v3359
        %3361 = vmatprep.mubr.bf16.mxu0 %v2890
        %3362 = vmatmul.mubr.bf16.gmra.mxu0 %v2889
        %v3363 = vpop.f32.mrf.mxu0
        %v3364 = vadd.f32 %v2982, %v3363
        %v3365 = vpop.f32.mrf.mxu0
        %v3366 = vadd.f32 %v2986, %v3365
        %v3367 = vpop.f32.mrf.mxu0
        %v3368 = vadd.f32 %v2982, %v3367
        %v3369 = vpop.f32.mrf.mxu0
        %v3370 = vadd.f32 %v2986, %v3369
        %3371 = vmatprep.mubr.bf16.mxu0 %v2894
        %3372 = vmatmul.mubr.bf16.gmra.mxu0 %v2893
        %v3373 = vpop.f32.mrf.mxu0
        %v3374 = vadd.f32 %v2982, %v3373
        %v3375 = vpop.f32.mrf.mxu0
        %v3376 = vadd.f32 %v2986, %v3375
        %v3377 = vpop.f32.mrf.mxu0
        %v3378 = vadd.f32 %v2982, %v3377
        %v3379 = vpop.f32.mrf.mxu0
        %v3380 = vadd.f32 %v2986, %v3379
        %3381 = vmatprep.mubr.bf16.mxu0 %v2898
        %3382 = vmatmul.mubr.bf16.gmra.mxu0 %v2897
        %v3383 = vpop.f32.mrf.mxu0
        %v3384 = vadd.f32 %v2982, %v3383
        %v3385 = vpop.f32.mrf.mxu0
        %v3386 = vadd.f32 %v2986, %v3385
        %v3387 = vpop.f32.mrf.mxu0
        %v3388 = vadd.f32 %v2982, %v3387
        %v3389 = vpop.f32.mrf.mxu0
        %v3390 = vadd.f32 %v2986, %v3389
        %3391 = vmatprep.mubr.bf16.mxu0 %v2902
        %3392 = vmatmul.mubr.bf16.gmra.mxu0 %v2901
        %v3393 = vpop.f32.mrf.mxu0
        %v3394 = vadd.f32 %v2982, %v3393
        %v3395 = vpop.f32.mrf.mxu0
        %v3396 = vadd.f32 %v2986, %v3395
        %v3397 = vpop.f32.mrf.mxu0
        %v3398 = vadd.f32 %v2982, %v3397
        %v3399 = vpop.f32.mrf.mxu0
        %v3400 = vadd.f32 %v2986, %v3399
        %3401 = vmatprep.mubr.bf16.mxu0 %v2906
        %3402 = vmatmul.mubr.bf16.gmra.mxu0 %v2905
        %v3403 = vpop.f32.mrf.mxu0
        %v3404 = vadd.f32 %v2982, %v3403
        %v3405 = vpop.f32.mrf.mxu0
        %v3406 = vadd.f32 %v2986, %v3405
        %v3407 = vpop.f32.mrf.mxu0
        %v3408 = vadd.f32 %v2982, %v3407
        %v3409 = vpop.f32.mrf.mxu0
        %v3410 = vadd.f32 %v2986, %v3409
        %3411 = vmatprep.mubr.bf16.mxu0 %v2910
        %3412 = vmatmul.mubr.bf16.gmra.mxu0 %v2909
        %v3413 = vpop.f32.mrf.mxu0
        %v3414 = vadd.f32 %v2982, %v3413
        %v3415 = vpop.f32.mrf.mxu0
        %v3416 = vadd.f32 %v2986, %v3415
        %v3417 = vpop.f32.mrf.mxu0
        %v3418 = vadd.f32 %v2982, %v3417
        %v3419 = vpop.f32.mrf.mxu0
        %v3420 = vadd.f32 %v2986, %v3419
        %3421 = vdwg.mxu0
        %3422 = vmatprep.subr.bf16.mxu0 %v3228
        %3423 = vmatpush1.bf16.msra.mxu0 %v3227
        %3424 = vmatprep.subr.bf16.mxu0 %v3226
        %3425 = vmatpush1.bf16.msra.mxu0 %v3225
        %3426 = vmatprep.subr.bf16.mxu0 %v3224
        %3427 = vmatpush1.bf16.msra.mxu0 %v3223
        %3428 = vmatprep.subr.bf16.mxu0 %v3222
        %3429 = vmatpush1.bf16.msra.mxu0 %v3221
        %3430 = vmatprep.subr.bf16.mxu0 %v3220
        %3431 = vmatpush1.bf16.msra.mxu0 %v3219
        %3432 = vmatprep.subr.bf16.mxu0 %v3218
        %3433 = vmatpush1.bf16.msra.mxu0 %v3217
        %3434 = vmatprep.subr.bf16.mxu0 %v3216
        %3435 = vmatpush1.bf16.msra.mxu0 %v3215
        %3436 = vmatprep.subr.bf16.mxu0 %v3214
        %3437 = vmatpush1.bf16.msra.mxu0 %v3213
        %3438 = vmatprep.subr.bf16.mxu0 %v3244
        %3439 = vmatpush2.bf16.msra.mxu0 %v3243
        %3440 = vmatprep.subr.bf16.mxu0 %v3242
        %3441 = vmatpush2.bf16.msra.mxu0 %v3241
        %3442 = vmatprep.subr.bf16.mxu0 %v3240
        %3443 = vmatpush2.bf16.msra.mxu0 %v3239
        %3444 = vmatprep.subr.bf16.mxu0 %v3238
        %3445 = vmatpush2.bf16.msra.mxu0 %v3237
        %3446 = vmatprep.subr.bf16.mxu0 %v3236
        %3447 = vmatpush2.bf16.msra.mxu0 %v3235
        %3448 = vmatprep.subr.bf16.mxu0 %v3234
        %3449 = vmatpush2.bf16.msra.mxu0 %v3233
        %3450 = vmatprep.subr.bf16.mxu0 %v3232
        %3451 = vmatpush2.bf16.msra.mxu0 %v3231
        %3452 = vmatprep.subr.bf16.mxu0 %v3230
        %3453 = vmatpush2.bf16.msra.mxu0 %v3229
        %3454 = vmatprep.mubr.bf16.mxu0 %v2884
        %3455 = vmatmul.mubr.bf16.gmra.mxu0 %v2883
        %v3456 = vpop.f32.mrf.mxu0
        %v3457 = vadd.f32 %v3344, %v3456
        %v3458 = vpop.f32.mrf.mxu0
        %v3459 = vadd.f32 %v3346, %v3458
        %v3460 = vpop.f32.mrf.mxu0
        %v3461 = vadd.f32 %v3348, %v3460
        %v3462 = vpop.f32.mrf.mxu0
        %v3463 = vadd.f32 %v3350, %v3462
        %3464 = vmatprep.mubr.bf16.mxu0 %v2888
        %3465 = vmatmul.mubr.bf16.gmra.mxu0 %v2887
        %v3466 = vpop.f32.mrf.mxu0
        %v3467 = vadd.f32 %v3354, %v3466
        %v3468 = vpop.f32.mrf.mxu0
        %v3469 = vadd.f32 %v3356, %v3468
        %v3470 = vpop.f32.mrf.mxu0
        %v3471 = vadd.f32 %v3358, %v3470
        %v3472 = vpop.f32.mrf.mxu0
        %v3473 = vadd.f32 %v3360, %v3472
        %3474 = vmatprep.mubr.bf16.mxu0 %v2892
        %3475 = vmatmul.mubr.bf16.gmra.mxu0 %v2891
        %v3476 = vpop.f32.mrf.mxu0
        %v3477 = vadd.f32 %v3364, %v3476
        %v3478 = vpop.f32.mrf.mxu0
        %v3479 = vadd.f32 %v3366, %v3478
        %v3480 = vpop.f32.mrf.mxu0
        %v3481 = vadd.f32 %v3368, %v3480
        %v3482 = vpop.f32.mrf.mxu0
        %v3483 = vadd.f32 %v3370, %v3482
        %3484 = vmatprep.mubr.bf16.mxu0 %v2896
        %3485 = vmatmul.mubr.bf16.gmra.mxu0 %v2895
        %v3486 = vpop.f32.mrf.mxu0
        %v3487 = vadd.f32 %v3374, %v3486
        %v3488 = vpop.f32.mrf.mxu0
        %v3489 = vadd.f32 %v3376, %v3488
        %v3490 = vpop.f32.mrf.mxu0
        %v3491 = vadd.f32 %v3378, %v3490
        %v3492 = vpop.f32.mrf.mxu0
        %v3493 = vadd.f32 %v3380, %v3492
        %3494 = vmatprep.mubr.bf16.mxu0 %v2900
        %3495 = vmatmul.mubr.bf16.gmra.mxu0 %v2899
        %v3496 = vpop.f32.mrf.mxu0
        %v3497 = vadd.f32 %v3384, %v3496
        %v3498 = vpop.f32.mrf.mxu0
        %v3499 = vadd.f32 %v3386, %v3498
        %v3500 = vpop.f32.mrf.mxu0
        %v3501 = vadd.f32 %v3388, %v3500
        %v3502 = vpop.f32.mrf.mxu0
        %v3503 = vadd.f32 %v3390, %v3502
        %3504 = vmatprep.mubr.bf16.mxu0 %v2904
        %3505 = vmatmul.mubr.bf16.gmra.mxu0 %v2903
        %v3506 = vpop.f32.mrf.mxu0
        %v3507 = vadd.f32 %v3394, %v3506
        %v3508 = vpop.f32.mrf.mxu0
        %v3509 = vadd.f32 %v3396, %v3508
        %v3510 = vpop.f32.mrf.mxu0
        %v3511 = vadd.f32 %v3398, %v3510
        %v3512 = vpop.f32.mrf.mxu0
        %v3513 = vadd.f32 %v3400, %v3512
        %3514 = vmatprep.mubr.bf16.mxu0 %v2908
        %3515 = vmatmul.mubr.bf16.gmra.mxu0 %v2907
        %v3516 = vpop.f32.mrf.mxu0
        %v3517 = vadd.f32 %v3404, %v3516
        %v3518 = vpop.f32.mrf.mxu0
        %v3519 = vadd.f32 %v3406, %v3518
        %v3520 = vpop.f32.mrf.mxu0
        %v3521 = vadd.f32 %v3408, %v3520
        %v3522 = vpop.f32.mrf.mxu0
        %v3523 = vadd.f32 %v3410, %v3522
        %3524 = vmatprep.mubr.bf16.mxu0 %v2912
        %3525 = vmatmul.mubr.bf16.gmra.mxu0 %v2911
        %v3526 = vpop.f32.mrf.mxu0
        %v3527 = vadd.f32 %v3414, %v3526
        %v3528 = vpop.f32.mrf.mxu0
        %v3529 = vadd.f32 %v3416, %v3528
        %v3530 = vpop.f32.mrf.mxu0
        %v3531 = vadd.f32 %v3418, %v3530
        %v3532 = vpop.f32.mrf.mxu0
        %v3533 = vadd.f32 %v3420, %v3532
        %3534 = vdwg.mxu0
        %v3535 = vmax.f32 %v3457, 0.0
        %v3536 = vmax.f32 %v3459, 0.0
        %v3537 = vmax.f32 %v3461, 0.0
        %v3538 = vmax.f32 %v3463, 0.0
        %v3539 = vmax.f32 %v3467, 0.0
        %v3540 = vmax.f32 %v3469, 0.0
        %v3541 = vmax.f32 %v3471, 0.0
        %v3542 = vmax.f32 %v3473, 0.0
        %v3543 = vmax.f32 %v3477, 0.0
        %v3544 = vmax.f32 %v3479, 0.0
        %v3545 = vmax.f32 %v3481, 0.0
        %v3546 = vmax.f32 %v3483, 0.0
        %v3547 = vmax.f32 %v3487, 0.0
        %v3548 = vmax.f32 %v3489, 0.0
        %v3549 = vmax.f32 %v3491, 0.0
        %v3550 = vmax.f32 %v3493, 0.0
        %v3551 = vmax.f32 %v3497, 0.0
        %v3552 = vmax.f32 %v3499, 0.0
        %v3553 = vmax.f32 %v3501, 0.0
        %v3554 = vmax.f32 %v3503, 0.0
        %v3555 = vmax.f32 %v3507, 0.0
        %v3556 = vmax.f32 %v3509, 0.0
        %v3557 = vmax.f32 %v3511, 0.0
        %v3558 = vmax.f32 %v3513, 0.0
        %v3559 = vmax.f32 %v3517, 0.0
        %v3560 = vmax.f32 %v3519, 0.0
        %v3561 = vmax.f32 %v3521, 0.0
        %v3562 = vmax.f32 %v3523, 0.0
        %v3563 = vmax.f32 %v3527, 0.0
        %v3564 = vmax.f32 %v3529, 0.0
        %v3565 = vmax.f32 %v3531, 0.0
        %v3566 = vmax.f32 %v3533, 0.0
        %v3567 = vpack.c.bf16 %v3537, %v3535
        %v3568 = vpack.c.bf16 %v3538, %v3536
        %v3569 = vpack.c.bf16 %v3541, %v3539
        %v3570 = vpack.c.bf16 %v3542, %v3540
        %v3571 = vpack.c.bf16 %v3545, %v3543
        %v3572 = vpack.c.bf16 %v3546, %v3544
        %v3573 = vpack.c.bf16 %v3549, %v3547
        %v3574 = vpack.c.bf16 %v3550, %v3548
        %v3575 = vpack.c.bf16 %v3553, %v3551
        %v3576 = vpack.c.bf16 %v3554, %v3552
        %v3577 = vpack.c.bf16 %v3557, %v3555
        %v3578 = vpack.c.bf16 %v3558, %v3556
        %v3579 = vpack.c.bf16 %v3561, %v3559
        %v3580 = vpack.c.bf16 %v3562, %v3560
        %v3581 = vpack.c.bf16 %v3565, %v3563
        %v3582 = vpack.c.bf16 %v3566, %v3564
        %v3583 = vld [vmem:[#allocation11] sm:$0xf]
        %v3584 = vld [vmem:[#allocation11 + $0x4] sm:$0xf]
        %v3585 = vld [vmem:[#allocation11 + $0x8] sm:$0xf]
        %v3586 = vld [vmem:[#allocation11 + $0xc] sm:$0xf]
        %v3587 = vld [vmem:[#allocation11 + $0x10] sm:$0xf]
        %v3588 = vld [vmem:[#allocation11 + $0x14] sm:$0xf]
        %v3589 = vld [vmem:[#allocation11 + $0x18] sm:$0xf]
        %v3590 = vld [vmem:[#allocation11 + $0x1c] sm:$0xf]
        %v3591 = vld [vmem:[#allocation11 + $0x20] sm:$0xf]
        %v3592 = vld [vmem:[#allocation11 + $0x24] sm:$0xf]
        %v3593 = vld [vmem:[#allocation11 + $0x28] sm:$0xf]
        %v3594 = vld [vmem:[#allocation11 + $0x2c] sm:$0xf]
        %v3595 = vld [vmem:[#allocation11 + $0x30] sm:$0xf]
        %v3596 = vld [vmem:[#allocation11 + $0x34] sm:$0xf]
        %v3597 = vld [vmem:[#allocation11 + $0x38] sm:$0xf]
        %v3598 = vld [vmem:[#allocation11 + $0x3c] sm:$0xf]
        %v3599 = vld [vmem:[#allocation11 + $0x40] sm:$0xf]
        %v3600 = vld [vmem:[#allocation11 + $0x44] sm:$0xf]
        %v3601 = vld [vmem:[#allocation11 + $0x48] sm:$0xf]
        %v3602 = vld [vmem:[#allocation11 + $0x4c] sm:$0xf]
        %v3603 = vld [vmem:[#allocation11 + $0x50] sm:$0xf]
        %v3604 = vld [vmem:[#allocation11 + $0x54] sm:$0xf]
        %v3605 = vld [vmem:[#allocation11 + $0x58] sm:$0xf]
        %v3606 = vld [vmem:[#allocation11 + $0x5c] sm:$0xf]
        %v3607 = vld [vmem:[#allocation11 + $0x60] sm:$0xf]
        %v3608 = vld [vmem:[#allocation11 + $0x64] sm:$0xf]
        %v3609 = vld [vmem:[#allocation11 + $0x68] sm:$0xf]
        %v3610 = vld [vmem:[#allocation11 + $0x6c] sm:$0xf]
        %v3611 = vld [vmem:[#allocation11 + $0x70] sm:$0xf]
        %v3612 = vld [vmem:[#allocation11 + $0x74] sm:$0xf]
        %v3613 = vld [vmem:[#allocation11 + $0x78] sm:$0xf]
        %v3614 = vld [vmem:[#allocation11 + $0x7c] sm:$0xf]
        %v3615 = vld [vmem:[#allocation13 + $0xc] sm:$0x1]
        %v3617 = vlaneseq
        %v3618 = vshrl.u32 %v3617, 7
        %v3619 = vsub.s32 0, %v3618
        %v3620 = vrot.slane %v3615, %v3619
        %v3654 = vunpack.c.l.b16 %v3583
        %v3655 = vunpack.c.l.b16 %v3584
        %v3656 = vunpack.c.l.b16 %v3585
        %v3657 = vunpack.c.l.b16 %v3586
        %v3658 = vunpack.c.l.b16 %v3587
        %v3659 = vunpack.c.l.b16 %v3588
        %v3660 = vunpack.c.l.b16 %v3589
        %v3661 = vunpack.c.l.b16 %v3590
        %v3662 = vunpack.c.l.b16 %v3591
        %v3663 = vunpack.c.l.b16 %v3592
        %v3664 = vunpack.c.l.b16 %v3593
        %v3665 = vunpack.c.l.b16 %v3594
        %v3666 = vunpack.c.l.b16 %v3595
        %v3667 = vunpack.c.l.b16 %v3596
        %v3668 = vunpack.c.l.b16 %v3597
        %v3669 = vunpack.c.l.b16 %v3598
        %v3670 = vunpack.c.l.b16 %v3599
        %v3671 = vunpack.c.l.b16 %v3600
        %v3672 = vunpack.c.l.b16 %v3601
        %v3673 = vunpack.c.l.b16 %v3602
        %v3674 = vunpack.c.l.b16 %v3603
        %v3675 = vunpack.c.l.b16 %v3604
        %v3676 = vunpack.c.l.b16 %v3605
        %v3677 = vunpack.c.l.b16 %v3606
        %v3678 = vunpack.c.l.b16 %v3607
        %v3679 = vunpack.c.l.b16 %v3608
        %v3680 = vunpack.c.l.b16 %v3609
        %v3681 = vunpack.c.l.b16 %v3610
        %v3682 = vunpack.c.l.b16 %v3611
        %v3683 = vunpack.c.l.b16 %v3612
        %v3684 = vunpack.c.l.b16 %v3613
        %v3685 = vunpack.c.l.b16 %v3614
        %v3686 = vpack.c.b16 %v3655, %v3654
        %v3687 = vpack.c.b16 %v3657, %v3656
        %v3688 = vpack.c.b16 %v3659, %v3658
        %v3689 = vpack.c.b16 %v3661, %v3660
        %v3690 = vpack.c.b16 %v3663, %v3662
        %v3691 = vpack.c.b16 %v3665, %v3664
        %v3692 = vpack.c.b16 %v3667, %v3666
        %v3693 = vpack.c.b16 %v3669, %v3668
        %v3694 = vpack.c.b16 %v3671, %v3670
        %v3695 = vpack.c.b16 %v3673, %v3672
        %v3696 = vpack.c.b16 %v3675, %v3674
        %v3697 = vpack.c.b16 %v3677, %v3676
        %v3698 = vpack.c.b16 %v3679, %v3678
        %v3699 = vpack.c.b16 %v3681, %v3680
        %v3700 = vpack.c.b16 %v3683, %v3682
        %v3701 = vpack.c.b16 %v3685, %v3684
        %3718 = vmatprep.subr.bf16.mxu0 0
        %3719 = vmatpush1.bf16.msra.mxu0 %v3693
        %3720 = vmatprep.subr.bf16.mxu0 0
        %3721 = vmatpush1.bf16.msra.mxu0 %v3692
        %3722 = vmatprep.subr.bf16.mxu0 0
        %3723 = vmatpush1.bf16.msra.mxu0 %v3691
        %3724 = vmatprep.subr.bf16.mxu0 0
        %3725 = vmatpush1.bf16.msra.mxu0 %v3690
        %3726 = vmatprep.subr.bf16.mxu0 0
        %3727 = vmatpush1.bf16.msra.mxu0 %v3689
        %3728 = vmatprep.subr.bf16.mxu0 0
        %3729 = vmatpush1.bf16.msra.mxu0 %v3688
        %3730 = vmatprep.subr.bf16.mxu0 0
        %3731 = vmatpush1.bf16.msra.mxu0 %v3687
        %3732 = vmatprep.subr.bf16.mxu0 0
        %3733 = vmatpush1.bf16.msra.mxu0 %v3686
        %3734 = vmatprep.subr.bf16.mxu0 0
        %3735 = vmatpush2.bf16.msra.mxu0 %v3701
        %3736 = vmatprep.subr.bf16.mxu0 0
        %3737 = vmatpush2.bf16.msra.mxu0 %v3700
        %3738 = vmatprep.subr.bf16.mxu0 0
        %3739 = vmatpush2.bf16.msra.mxu0 %v3699
        %3740 = vmatprep.subr.bf16.mxu0 0
        %3741 = vmatpush2.bf16.msra.mxu0 %v3698
        %3742 = vmatprep.subr.bf16.mxu0 0
        %3743 = vmatpush2.bf16.msra.mxu0 %v3697
        %3744 = vmatprep.subr.bf16.mxu0 0
        %3745 = vmatpush2.bf16.msra.mxu0 %v3696
        %3746 = vmatprep.subr.bf16.mxu0 0
        %3747 = vmatpush2.bf16.msra.mxu0 %v3695
        %3748 = vmatprep.subr.bf16.mxu0 0
        %3749 = vmatpush2.bf16.msra.mxu0 %v3694
        %3750 = vmatprep.mubr.bf16.mxu0 %v3568
        %3751 = vmatmul.mubr.bf16.gmra.mxu0 %v3567
        %v3752 = vpop.f32.mrf.mxu0
        %v3753 = vadd.f32 %v3620, %v3752
        %v3754 = vpop.f32.mrf.mxu0
        %v3755 = vpop.f32.mrf.mxu0
        %v3756 = vadd.f32 %v3620, %v3755
        %v3757 = vpop.f32.mrf.mxu0
        %3758 = vmatprep.mubr.bf16.mxu0 %v3570
        %3759 = vmatmul.mubr.bf16.gmra.mxu0 %v3569
        %v3760 = vpop.f32.mrf.mxu0
        %v3761 = vadd.f32 %v3620, %v3760
        %v3762 = vpop.f32.mrf.mxu0
        %v3763 = vpop.f32.mrf.mxu0
        %v3764 = vadd.f32 %v3620, %v3763
        %v3765 = vpop.f32.mrf.mxu0
        %3766 = vmatprep.mubr.bf16.mxu0 %v3572
        %3767 = vmatmul.mubr.bf16.gmra.mxu0 %v3571
        %v3768 = vpop.f32.mrf.mxu0
        %v3769 = vadd.f32 %v3620, %v3768
        %v3770 = vpop.f32.mrf.mxu0
        %v3771 = vpop.f32.mrf.mxu0
        %v3772 = vadd.f32 %v3620, %v3771
        %v3773 = vpop.f32.mrf.mxu0
        %3774 = vmatprep.mubr.bf16.mxu0 %v3574
        %3775 = vmatmul.mubr.bf16.gmra.mxu0 %v3573
        %v3776 = vpop.f32.mrf.mxu0
        %v3777 = vadd.f32 %v3620, %v3776
        %v3778 = vpop.f32.mrf.mxu0
        %v3779 = vpop.f32.mrf.mxu0
        %v3780 = vadd.f32 %v3620, %v3779
        %v3781 = vpop.f32.mrf.mxu0
        %3782 = vmatprep.mubr.bf16.mxu0 %v3576
        %3783 = vmatmul.mubr.bf16.gmra.mxu0 %v3575
        %v3784 = vpop.f32.mrf.mxu0
        %v3785 = vadd.f32 %v3620, %v3784
        %v3786 = vpop.f32.mrf.mxu0
        %v3787 = vpop.f32.mrf.mxu0
        %v3788 = vadd.f32 %v3620, %v3787
        %v3789 = vpop.f32.mrf.mxu0
        %3790 = vmatprep.mubr.bf16.mxu0 %v3578
        %3791 = vmatmul.mubr.bf16.gmra.mxu0 %v3577
        %v3792 = vpop.f32.mrf.mxu0
        %v3793 = vadd.f32 %v3620, %v3792
        %v3794 = vpop.f32.mrf.mxu0
        %v3795 = vpop.f32.mrf.mxu0
        %v3796 = vadd.f32 %v3620, %v3795
        %v3797 = vpop.f32.mrf.mxu0
        %3798 = vmatprep.mubr.bf16.mxu0 %v3580
        %3799 = vmatmul.mubr.bf16.gmra.mxu0 %v3579
        %v3800 = vpop.f32.mrf.mxu0
        %v3801 = vadd.f32 %v3620, %v3800
        %v3802 = vpop.f32.mrf.mxu0
        %v3803 = vpop.f32.mrf.mxu0
        %v3804 = vadd.f32 %v3620, %v3803
        %v3805 = vpop.f32.mrf.mxu0
        %3806 = vmatprep.mubr.bf16.mxu0 %v3582
        %3807 = vmatmul.mubr.bf16.gmra.mxu0 %v3581
        %v3808 = vpop.f32.mrf.mxu0
        %v3809 = vadd.f32 %v3620, %v3808
        %v3810 = vpop.f32.mrf.mxu0
        %v3811 = vpop.f32.mrf.mxu0
        %v3812 = vadd.f32 %v3620, %v3811
        %v3813 = vpop.f32.mrf.mxu0
        %3814 = vdwg.mxu0
        %3815 = vst [vmem:[%s382] sm:$0xff] %v3753
        %3816 = vst [vmem:[%s382 + $0x8] sm:$0xff] %v3756
        %3817 = vst [vmem:[%s382 + $0x10] sm:$0xff] %v3761
        %3818 = vst [vmem:[%s382 + $0x18] sm:$0xff] %v3764
        %3819 = vst [vmem:[%s382 + $0x20] sm:$0xff] %v3769
        %3820 = vst [vmem:[%s382 + $0x28] sm:$0xff] %v3772
        %3821 = vst [vmem:[%s382 + $0x30] sm:$0xff] %v3777
        %3822 = vst [vmem:[%s382 + $0x38] sm:$0xff] %v3780
        %3823 = vst [vmem:[%s382 + $0x40] sm:$0xff] %v3785
        %3824 = vst [vmem:[%s382 + $0x48] sm:$0xff] %v3788
        %3825 = vst [vmem:[%s382 + $0x50] sm:$0xff] %v3793
        %3826 = vst [vmem:[%s382 + $0x58] sm:$0xff] %v3796
        %3827 = vst [vmem:[%s382 + $0x60] sm:$0xff] %v3801
        %3828 = vst [vmem:[%s382 + $0x68] sm:$0xff] %v3804
        %3829 = vst [vmem:[%s382 + $0x70] sm:$0xff] %v3809
        %3830 = vst [vmem:[%s382 + $0x78] sm:$0xff] %v3812
        %s3831 = sand.u32 %s187, 1
        %s3832 = scalar_lea.sflag [#allocation4], %s3831
        %s3833 = sand.u32 %s187, 1
        %s3834 = smul.addr %s3833, 128
        %s3835 = scalar_lea.vmem [#allocation14], %s3834
        // Predicated region
        $region77: #{tpu_custom_call.1} parent=47 // pred_check
          %p3836 = pneg %p197
        $region78: #{tpu_custom_call.1} parent=47 // pred_check_branch
          %3838 = sbr.rel (%p3836) target = $region80
        $region79: #{tpu_custom_call.1} parent=47 // pred_region
          %s3839 = smul.u32 16, %s27
          %s3841 = ssub.s32 2048, 2048
          %3842 = vsyncadd %s3832, %s3841
          %s3843 = smul.addr %s3839, 128
          %s3844 = scalar_lea.hbm %s7, %s3843
          %s3845 = sshll.u32 %s3835, 4
          %s3846 = int_to_ptr.vmem [resolvable:$true] %s3845
          %3851 = dma.vmem_to_hbm [thread:$0]  %s3846, 2048, %s3844, %s3832, 128, 128, 8
        $region80: #{tpu_custom_call.1} parent=47 // pred_fallthru
          _
      $region48: #{tpu_custom_call.1} parent=5 // pred_fallthru
        _
      %p3852 = scmp.le.s32.totalorder 2, %s22
      // Predicated region
      $region81: #{tpu_custom_call.1} parent=5 // pred_check
        %p3853 = pneg %p3852
      $region82: #{tpu_custom_call.1} parent=5 // pred_check_branch
        %3855 = sbr.rel (%p3853) target = $region84
      $region83: #{tpu_custom_call.1} parent=5 // pred_region
        %s3856 = ssub.s32 %s22, 2
        // Predicated region
        $region85: #{tpu_custom_call.1} parent=83 // pred_check
          %p3857 = pneg %p203
        $region86: #{tpu_custom_call.1} parent=83 // pred_check_branch
          %3859 = sbr.rel (%p3857) target = $region88
        $region87: #{tpu_custom_call.1} parent=83 // pred_region
          %s3860 = sand.u32 %s188, 1
          %s3861 = scalar_lea.sflag [#allocation4], %s3860
          %s3862 = sand.u32 %s188, 1
          %s3863 = smul.addr %s3862, 128
          %s3864 = scalar_lea.vmem [#allocation14], %s3863
          %3865 = dma.done %s3861, 2048
        $region88: #{tpu_custom_call.1} parent=83 // pred_fallthru
          _
      $region84: #{tpu_custom_call.1} parent=5 // pred_fallthru
        _
    $region6: #{tpu_custom_call.1} parent=1 // loop_footer
      %s26 = sadd.s32 1, %s22
    $region7: #{tpu_custom_call.1} parent=1 // loop_footer_branch
      %21 = sbr.rel target = $region3
    $region8: #{tpu_custom_call.1} parent=1 // loop_exit
      _
    %3866 = vsyncpa [#allocation3], 1
    %s3867 = scalar_lea.sflag [#allocation3], 1
    %3868 = vsyncpa %s3867, 1
    %3869 = vsyncpa [#allocation6], 1
    %3870 = vsyncpa [#allocation9], 1
    %3871 = vsyncpa [#allocation12], 1
    %3872 = vsyncpa [#allocation4], 1
    %s3873 = scalar_lea.sflag [#allocation4], 1
    %3874 = vsyncpa %s3873, 1

</llo_original>
